<compile_context>
chip_gen: v5e
topology: v5e:2x2
jax: 0.10.0
libtpu: 0.0.40
codegen_flags: <defaults>
</compile_context>

<pallas_src>
import functools

import jax
import jax.numpy as jnp
from jax import lax
from jax.experimental import pallas as pl
from jax.experimental.pallas import tpu as pltpu


DILATIONS = (1, 3, 5)
MAXD = max(DILATIONS)


def _mbf_kernel(x_ref, w3_ref, b3_ref, wm_ref, bm_ref, o_ref,
                xp_ref, col3_ref, acc_ref, *, H, W):
    """One image per grid step.

    x_ref   : (1, H, W, C)   bf16   unpadded input block (NHWC)
    w3_ref  : (3, 3, 3*C, C) bf16   [branch, ky, kx*Cin, Cout]  (K folded over kx)
    b3_ref  : (3, 1, C)      f32    per-branch bias
    wm_ref  : (C, C)         bf16   1x1 merge conv weight [Cin, Cout]
    bm_ref  : (1, C)         f32    merge bias
    o_ref   : (1, H, W, C)   bf16
    xp_ref  : (Hp, Wp, C)    bf16   zero-padded image (halo fused in-kernel)
    col3_ref: (Hp*W, 3*C)    bf16   the 3 kx-shifted slabs, lane-concatenated
    acc_ref : (H*W, C)       f32    merged-output accumulator
    """
    C = x_ref.shape[-1]
    Hp, Wp = H + 2 * MAXD, W + 2 * MAXD
    HW = H * W

    # ---- fused zero padding: zero only the halo strips, copy the image in.
    # Re-zeroed every grid step so the kernel stays correct when the batch axis
    # is split across TensorCores ("parallel" semantics).
    xp_ref[0:MAXD, :, :] = jnp.zeros((MAXD, Wp, C), xp_ref.dtype)
    xp_ref[MAXD + H:Hp, :, :] = jnp.zeros((MAXD, Wp, C), xp_ref.dtype)
    xp_ref[MAXD:MAXD + H, 0:MAXD, :] = jnp.zeros((H, MAXD, C), xp_ref.dtype)
    xp_ref[MAXD:MAXD + H, MAXD + W:Wp, :] = jnp.zeros((H, MAXD, C), xp_ref.dtype)
    xp_ref[MAXD:MAXD + H, MAXD:MAXD + W, :] = x_ref[0]

    for b, d in enumerate(DILATIONS):
        # One W-shifted slab per (branch, kx), packed side-by-side on the lane
        # dim: the 3 kx taps become a single K=3*C contraction per ky.
        for kx in range(3):
            dx = MAXD + (kx - 1) * d
            col3_ref[:, kx * C:(kx + 1) * C] = (
                xp_ref[:, dx:dx + W, :].reshape(Hp * W, C))

        # ky taps accumulate in a value chain (no zero-init store, no per-tap
        # read-modify-write of a scratch accumulator).  Row windows of col3 are
        # aligned slices (dy*W is a multiple of 8 since W % 8 == 0).
        branch = None
        for ky in range(3):
            dy = MAXD + (ky - 1) * d
            patch = col3_ref[dy * W:dy * W + HW, :]
            t = jnp.dot(patch, w3_ref[b, ky],
                        preferred_element_type=jnp.float32)
            branch = t if branch is None else branch + t

        # Bias + ReLU once per branch; fold the (linear) 1x1 merge conv in
        # per-branch:  out = sum_b ReLU(branch_b) @ Wm  -> no bsum scratch.
        branch = jnp.maximum(branch + b3_ref[b], 0.0).astype(jnp.bfloat16)
        m = jnp.dot(branch, wm_ref[...], preferred_element_type=jnp.float32)
        if b == 0:
            acc_ref[...] = m            # first branch: assignment, no zero-init
        else:
            acc_ref[...] += m

    # Merge bias in f32, emit bf16 (halves output HBM writeback + VMEM block).
    o_ref[0] = (acc_ref[...] + bm_ref[...]).astype(o_ref.dtype).reshape(H, W, C)


def _vmem_limit_bytes(H, W, C):
    """Working-set-derived VMEM limit (don't hard-cap the 128 MiB parts)."""
    Hp, Wp = H + 2 * MAXD, W + 2 * MAXD
    scratch = Hp * Wp * C * 2 + Hp * W * 3 * C * 2 + H * W * C * 4
    io = 2 * (H * W * C * 2) + 2 * (H * W * C * 2)          # dbl-buffered in/out (bf16)
    weights = 2 * (27 * C * C * 2 + 3 * C * 4 + C * C * 2 + C * 4)
    need = scratch + io + weights
    # 2x headroom, clamped to [32 MiB, 100 MiB].  100 MiB is fine on v5e/v6e;
    # v7x (64 MiB/TC) needs the row-block grid axis anyway at production sizes.
    return int(min(max(2 * need, 32 * 1024 * 1024), 100 * 1024 * 1024))


def multi_branch_fusion(x_nchw, w3, b3, wm, bm):
    """x_nchw: (N, C, H, W) float32.  Returns (N, C, H, W) float32."""
    # bf16 cast fused into the layout transpose; halves the kernel's HBM read.
    x = jnp.transpose(x_nchw, (0, 2, 3, 1)).astype(jnp.bfloat16)   # NHWC, bf16
    N, H, W, C = x.shape
    Hp, Wp = H + 2 * MAXD, W + 2 * MAXD
    # In-kernel (H, W, C) <-> (H*W, C) reshapes are layout-preserving only when
    # W is a multiple of the 8-wide sublane dim (perf cliff otherwise).
    assert W % 8 == 0, "W must be a multiple of 8 for layout-clean reshapes"

    # Fold the kx taps into the contraction dim: (branch, ky, kx*Cin, Cout).
    w3_b = w3.reshape(3, 3, 3 * C, C).astype(jnp.bfloat16)
    wm_b = wm.astype(jnp.bfloat16)
    b3_f = b3.astype(jnp.float32)
    bm_f = bm.astype(jnp.float32)

    out = pl.pallas_call(
        functools.partial(_mbf_kernel, H=H, W=W),
        out_shape=jax.ShapeDtypeStruct((N, H, W, C), jnp.bfloat16),
        grid_spec=pltpu.PrefetchScalarGridSpec(
            num_scalar_prefetch=0,
            grid=(N,),
            in_specs=[
                pl.BlockSpec((1, H, W, C), lambda n: (n, 0, 0, 0)),
                pl.BlockSpec((3, 3, 3 * C, C), lambda n: (0, 0, 0, 0)),
                pl.BlockSpec((3, 1, C), lambda n: (0, 0, 0)),
                pl.BlockSpec((C, C), lambda n: (0, 0)),
                pl.BlockSpec((1, C), lambda n: (0, 0)),
            ],
            out_specs=pl.BlockSpec((1, H, W, C), lambda n: (n, 0, 0, 0)),
            scratch_shapes=[
                pltpu.VMEM((Hp, Wp, C), jnp.bfloat16),        # padded image (halo)
                pltpu.VMEM((Hp * W, 3 * C), jnp.bfloat16),    # kx-packed shift slab
                pltpu.VMEM((H * W, C), jnp.float32),          # merged-output acc
            ]),
        compiler_params=pltpu.CompilerParams(
            dimension_semantics=("parallel",),
            vmem_limit_bytes=_vmem_limit_bytes(H, W, C)),
    )(x, w3_b, b3_f, wm_b, bm_f)

    # Restore NCHW / f32 to match the PyTorch module interface (cast fuses into
    # the transpose; drop this if the downstream consumer takes NHWC/bf16).
    return jnp.transpose(out, (0, 3, 1, 2)).astype(jnp.float32)


def _reference(x_nchw, w3, b3, wm, bm):
    """Pure-JAX f32 reference using lax.conv_general_dilated (NHWC / HWIO)."""
    x = jnp.transpose(x_nchw, (0, 2, 3, 1)).astype(jnp.float32)
    dn = lax.conv_dimension_numbers(x.shape, w3[0].shape, ("NHWC", "HWIO", "NHWC"))
    branch_sum = 0.0
    for b, d in enumerate(DILATIONS):
        y = lax.conv_general_dilated(
            x, w3[b], window_strides=(1, 1), padding=[(d, d), (d, d)],
            rhs_dilation=(d, d), dimension_numbers=dn)
        y = y + b3[b][0][None, None, None, :]
        branch_sum = branch_sum + jnp.maximum(y, 0.0)
    out = jnp.einsum("nhwc,cd->nhwd", branch_sum, wm) + bm[0][None, None, None, :]
    return jnp.transpose(out, (0, 3, 1, 2))


if __name__ == "__main__":
    key = jax.random.PRNGKey(0)
    N, C, H, W = 2, 4, 16, 16          # feat_dim = 4

    k_x, k_w3, k_b3, k_wm, k_bm = jax.random.split(key, 5)
    x = jax.random.normal(k_x, (N, C, H, W), jnp.float32)

    # Deterministic synthetic parameters (HWIO-style layouts).
    w3 = 0.1 * jax.random.normal(k_w3, (3, 3, 3, C, C), jnp.float32)  # [branch,kh,kw,Cin,Cout]
    b3 = 0.1 * jax.random.normal(k_b3, (3, 1, C), jnp.float32)
    wm = 0.1 * jax.random.normal(k_wm, (C, C), jnp.float32)           # [Cin,Cout]
    bm = 0.1 * jax.random.normal(k_bm, (1, C), jnp.float32)

    out = jax.block_until_ready(multi_branch_fusion(x, w3, b3, wm, bm))
    ref = jax.block_until_ready(_reference(x, w3, b3, wm, bm))

    assert out.shape == (N, C, H, W)
    # bf16 MXU operands / bf16 output (f32 accumulation) -> bf16-appropriate tolerance.
    rel_err = float(jnp.linalg.norm(out - ref) / jnp.linalg.norm(ref))
    assert rel_err < 2e-2, f"relative L2 error too large: {rel_err}"
    assert jnp.allclose(out, ref, atol=1e-1, rtol=1e-1), "mismatch vs JAX reference"

    print("KERNEL_OK")
</pallas_src>

<mosaic_0001>
module attributes {stable_mosaic.version = 11 : i64} {
  func.func @_mbf_kernel(%arg0: i32, %arg1: memref<1x16x16x4xbf16, #tpu.memory_space<vmem>>, %arg2: memref<3x3x12x4xbf16, #tpu.memory_space<vmem>>, %arg3: memref<3x1x4xf32, #tpu.memory_space<vmem>>, %arg4: memref<4x4xbf16, #tpu.memory_space<vmem>>, %arg5: memref<1x4xf32, #tpu.memory_space<vmem>>, %arg6: memref<1x16x16x4xbf16, #tpu.memory_space<vmem>>, %arg7: memref<26x26x4xbf16, #tpu.memory_space<vmem>>, %arg8: memref<416x12xbf16, #tpu.memory_space<vmem>>, %arg9: memref<256x4xf32, #tpu.memory_space<vmem>>) attributes {dimension_semantics = [#tpu.dimension_semantics<parallel>], iteration_bounds = array<i64: 2>, scalar_prefetch = 0 : i64, scratch_operands = 3 : i64, tpu.core_type = #tpu.core_type<tc>, window_params = [{transform_indices = @transform_0, window_bounds = array<i64: 1, 16, 16, 4>}, {pipeline_mode = #tpu.pipeline_mode<synchronous>, transform_indices = @transform_1, window_bounds = array<i64: 3, 3, 12, 4>}, {pipeline_mode = #tpu.pipeline_mode<synchronous>, transform_indices = @transform_2, window_bounds = array<i64: 3, 1, 4>}, {pipeline_mode = #tpu.pipeline_mode<synchronous>, transform_indices = @transform_3, window_bounds = array<i64: 4, 4>}, {pipeline_mode = #tpu.pipeline_mode<synchronous>, transform_indices = @transform_4, window_bounds = array<i64: 1, 4>}, {transform_indices = @transform_5, window_bounds = array<i64: 1, 16, 16, 4>}]} {
    %cst = arith.constant 0.000000e+00 : bf16
    %0 = vector.broadcast %cst : bf16 to vector<5x26x4xbf16>
    %c0 = arith.constant 0 : index
    %c0_0 = arith.constant 0 : index
    %c0_1 = arith.constant 0 : index
    %1 = vector.load %arg7[%c0, %c0_0, %c0_1] : memref<26x26x4xbf16, #tpu.memory_space<vmem>>, vector<5x26x4xbf16>
    tpu.vector_store %arg7[%c0, %c0_0, %c0_1], %0 {strides = array<i32>} : memref<26x26x4xbf16, #tpu.memory_space<vmem>>, vector<5x26x4xbf16>,
    %cst_2 = arith.constant 0.000000e+00 : bf16
    %2 = vector.broadcast %cst_2 : bf16 to vector<5x26x4xbf16>
    %c21 = arith.constant 21 : index
    %c0_3 = arith.constant 0 : index
    %c0_4 = arith.constant 0 : index
    %3 = vector.load %arg7[%c21, %c0_3, %c0_4] : memref<26x26x4xbf16, #tpu.memory_space<vmem>>, vector<5x26x4xbf16>
    tpu.vector_store %arg7[%c21, %c0_3, %c0_4], %2 {strides = array<i32>} : memref<26x26x4xbf16, #tpu.memory_space<vmem>>, vector<5x26x4xbf16>,
    %cst_5 = arith.constant 0.000000e+00 : bf16
    %4 = vector.broadcast %cst_5 : bf16 to vector<16x5x4xbf16>
    %c5 = arith.constant 5 : index
    %c0_6 = arith.constant 0 : index
    %c0_7 = arith.constant 0 : index
    %5 = vector.load %arg7[%c5, %c0_6, %c0_7] : memref<26x26x4xbf16, #tpu.memory_space<vmem>>, vector<16x5x4xbf16>
    tpu.vector_store %arg7[%c5, %c0_6, %c0_7], %4 {strides = array<i32>} : memref<26x26x4xbf16, #tpu.memory_space<vmem>>, vector<16x5x4xbf16>,
    %cst_8 = arith.constant 0.000000e+00 : bf16
    %6 = vector.broadcast %cst_8 : bf16 to vector<16x5x4xbf16>
    %c5_9 = arith.constant 5 : index
    %c21_10 = arith.constant 21 : index
    %c0_11 = arith.constant 0 : index
    %7 = vector.load %arg7[%c5_9, %c21_10, %c0_11] : memref<26x26x4xbf16, #tpu.memory_space<vmem>>, vector<16x5x4xbf16>
    tpu.vector_store %arg7[%c5_9, %c21_10, %c0_11], %6 {strides = array<i32>} : memref<26x26x4xbf16, #tpu.memory_space<vmem>>, vector<16x5x4xbf16>,
    %c0_12 = arith.constant 0 : index
    %c0_13 = arith.constant 0 : index
    %c0_14 = arith.constant 0 : index
    %c0_15 = arith.constant 0 : index
    %8 = vector.load %arg1[%c0_12, %c0_13, %c0_14, %c0_15] : memref<1x16x16x4xbf16, #tpu.memory_space<vmem>>, vector<1x16x16x4xbf16>
    %9 = vector.shape_cast %8 : vector<1x16x16x4xbf16> to vector<16x16x4xbf16>
    %c5_16 = arith.constant 5 : index
    %c5_17 = arith.constant 5 : index
    %c0_18 = arith.constant 0 : index
    %10 = vector.load %arg7[%c5_16, %c5_17, %c0_18] : memref<26x26x4xbf16, #tpu.memory_space<vmem>>, vector<16x16x4xbf16>
    tpu.vector_store %arg7[%c5_16, %c5_17, %c0_18], %9 {strides = array<i32>} : memref<26x26x4xbf16, #tpu.memory_space<vmem>>, vector<16x16x4xbf16>,
    %c0_19 = arith.constant 0 : index
    %c4 = arith.constant 4 : index
    %c0_20 = arith.constant 0 : index
    %11 = vector.load %arg7[%c0_19, %c4, %c0_20] : memref<26x26x4xbf16, #tpu.memory_space<vmem>>, vector<26x16x4xbf16>
    %12 = vector.shape_cast %11 : vector<26x16x4xbf16> to vector<416x4xbf16>
    %c0_21 = arith.constant 0 : index
    %c0_22 = arith.constant 0 : index
    %13 = vector.load %arg8[%c0_21, %c0_22] : memref<416x12xbf16, #tpu.memory_space<vmem>>, vector<416x4xbf16>
    tpu.vector_store %arg8[%c0_21, %c0_22], %12 {strides = array<i32>} : memref<416x12xbf16, #tpu.memory_space<vmem>>, vector<416x4xbf16>,
    %c0_23 = arith.constant 0 : index
    %c5_24 = arith.constant 5 : index
    %c0_25 = arith.constant 0 : index
    %14 = vector.load %arg7[%c0_23, %c5_24, %c0_25] : memref<26x26x4xbf16, #tpu.memory_space<vmem>>, vector<26x16x4xbf16>
    %15 = vector.shape_cast %14 : vector<26x16x4xbf16> to vector<416x4xbf16>
    %c0_26 = arith.constant 0 : index
    %c4_27 = arith.constant 4 : index
    %16 = vector.load %arg8[%c0_26, %c4_27] : memref<416x12xbf16, #tpu.memory_space<vmem>>, vector<416x4xbf16>
    tpu.vector_store %arg8[%c0_26, %c4_27], %15 {strides = array<i32>} : memref<416x12xbf16, #tpu.memory_space<vmem>>, vector<416x4xbf16>,
    %c0_28 = arith.constant 0 : index
    %c6 = arith.constant 6 : index
    %c0_29 = arith.constant 0 : index
    %17 = vector.load %arg7[%c0_28, %c6, %c0_29] : memref<26x26x4xbf16, #tpu.memory_space<vmem>>, vector<26x16x4xbf16>
    %18 = vector.shape_cast %17 : vector<26x16x4xbf16> to vector<416x4xbf16>
    %c0_30 = arith.constant 0 : index
    %c8 = arith.constant 8 : index
    %19 = vector.load %arg8[%c0_30, %c8] : memref<416x12xbf16, #tpu.memory_space<vmem>>, vector<416x4xbf16>
    tpu.vector_store %arg8[%c0_30, %c8], %18 {strides = array<i32>} : memref<416x12xbf16, #tpu.memory_space<vmem>>, vector<416x4xbf16>,
    %c64 = arith.constant 64 : index
    %c0_31 = arith.constant 0 : index
    %20 = vector.load %arg8[%c64, %c0_31] : memref<416x12xbf16, #tpu.memory_space<vmem>>, vector<256x12xbf16>
    %c0_32 = arith.constant 0 : index
    %c0_33 = arith.constant 0 : index
    %c0_34 = arith.constant 0 : index
    %c0_35 = arith.constant 0 : index
    %21 = vector.load %arg2[%c0_32, %c0_33, %c0_34, %c0_35] : memref<3x3x12x4xbf16, #tpu.memory_space<vmem>>, vector<1x1x12x4xbf16>
    %22 = vector.shape_cast %21 : vector<1x1x12x4xbf16> to vector<12x4xbf16>
    %cst_36 = arith.constant dense<0.000000e+00> : vector<256x4xf32>
    %23 = tpu.matmul %20, %22, %cst_36 {dimension_numbers = #tpu.dot_dimension_numbers<[1], [0], [0], [1], [0, 0, 1, 1], [], []>} : vector<256x12xbf16>, vector<12x4xbf16>, vector<256x4xf32> -> vector<256x4xf32>
    %c80 = arith.constant 80 : index
    %c0_37 = arith.constant 0 : index
    %24 = vector.load %arg8[%c80, %c0_37] : memref<416x12xbf16, #tpu.memory_space<vmem>>, vector<256x12xbf16>
    %c0_38 = arith.constant 0 : index
    %c1 = arith.constant 1 : index
    %c0_39 = arith.constant 0 : index
    %c0_40 = arith.constant 0 : index
    %25 = vector.load %arg2[%c0_38, %c1, %c0_39, %c0_40] : memref<3x3x12x4xbf16, #tpu.memory_space<vmem>>, vector<1x1x12x4xbf16>
    %26 = vector.shape_cast %25 : vector<1x1x12x4xbf16> to vector<12x4xbf16>
    %cst_41 = arith.constant dense<0.000000e+00> : vector<256x4xf32>
    %27 = tpu.matmul %24, %26, %cst_41 {dimension_numbers = #tpu.dot_dimension_numbers<[1], [0], [0], [1], [0, 0, 1, 1], [], []>} : vector<256x12xbf16>, vector<12x4xbf16>, vector<256x4xf32> -> vector<256x4xf32>
    %28 = arith.addf %23, %27 : vector<256x4xf32>
    %c96 = arith.constant 96 : index
    %c0_42 = arith.constant 0 : index
    %29 = vector.load %arg8[%c96, %c0_42] : memref<416x12xbf16, #tpu.memory_space<vmem>>, vector<256x12xbf16>
    %c0_43 = arith.constant 0 : index
    %c2 = arith.constant 2 : index
    %c0_44 = arith.constant 0 : index
    %c0_45 = arith.constant 0 : index
    %30 = vector.load %arg2[%c0_43, %c2, %c0_44, %c0_45] : memref<3x3x12x4xbf16, #tpu.memory_space<vmem>>, vector<1x1x12x4xbf16>
    %31 = vector.shape_cast %30 : vector<1x1x12x4xbf16> to vector<12x4xbf16>
    %cst_46 = arith.constant dense<0.000000e+00> : vector<256x4xf32>
    %32 = tpu.matmul %29, %31, %cst_46 {dimension_numbers = #tpu.dot_dimension_numbers<[1], [0], [0], [1], [0, 0, 1, 1], [], []>} : vector<256x12xbf16>, vector<12x4xbf16>, vector<256x4xf32> -> vector<256x4xf32>
    %33 = arith.addf %28, %32 : vector<256x4xf32>
    %c0_47 = arith.constant 0 : index
    %c0_48 = arith.constant 0 : index
    %c0_49 = arith.constant 0 : index
    %34 = vector.load %arg3[%c0_47, %c0_48, %c0_49] : memref<3x1x4xf32, #tpu.memory_space<vmem>>, vector<1x1x4xf32>
    %35 = vector.shape_cast %34 : vector<1x1x4xf32> to vector<1x4xf32>
    %36 = vector.broadcast %35 : vector<1x4xf32> to vector<256x4xf32>
    %37 = arith.addf %33, %36 : vector<256x4xf32>
    %cst_50 = arith.constant 0.000000e+00 : f32
    %38 = vector.broadcast %cst_50 : f32 to vector<256x4xf32>
    %39 = arith.maximumf %37, %38 : vector<256x4xf32>
    %40 = arith.truncf %39 : vector<256x4xf32> to vector<256x4xbf16>
    %c0_51 = arith.constant 0 : index
    %c0_52 = arith.constant 0 : index
    %41 = vector.load %arg4[%c0_51, %c0_52] : memref<4x4xbf16, #tpu.memory_space<vmem>>, vector<4x4xbf16>
    %cst_53 = arith.constant dense<0.000000e+00> : vector<256x4xf32>
    %42 = tpu.matmul %40, %41, %cst_53 {dimension_numbers = #tpu.dot_dimension_numbers<[1], [0], [0], [1], [0, 0, 1, 1], [], []>} : vector<256x4xbf16>, vector<4x4xbf16>, vector<256x4xf32> -> vector<256x4xf32>
    %c0_54 = arith.constant 0 : index
    %c0_55 = arith.constant 0 : index
    %43 = vector.load %arg9[%c0_54, %c0_55] : memref<256x4xf32, #tpu.memory_space<vmem>>, vector<256x4xf32>
    tpu.vector_store %arg9[%c0_54, %c0_55], %42 {strides = array<i32>} : memref<256x4xf32, #tpu.memory_space<vmem>>, vector<256x4xf32>,
    %c0_56 = arith.constant 0 : index
    %c2_57 = arith.constant 2 : index
    %c0_58 = arith.constant 0 : index
    %44 = vector.load %arg7[%c0_56, %c2_57, %c0_58] : memref<26x26x4xbf16, #tpu.memory_space<vmem>>, vector<26x16x4xbf16>
    %45 = vector.shape_cast %44 : vector<26x16x4xbf16> to vector<416x4xbf16>
    %c0_59 = arith.constant 0 : index
    %c0_60 = arith.constant 0 : index
    %46 = vector.load %arg8[%c0_59, %c0_60] : memref<416x12xbf16, #tpu.memory_space<vmem>>, vector<416x4xbf16>
    tpu.vector_store %arg8[%c0_59, %c0_60], %45 {strides = array<i32>} : memref<416x12xbf16, #tpu.memory_space<vmem>>, vector<416x4xbf16>,
    %c0_61 = arith.constant 0 : index
    %c5_62 = arith.constant 5 : index
    %c0_63 = arith.constant 0 : index
    %47 = vector.load %arg7[%c0_61, %c5_62, %c0_63] : memref<26x26x4xbf16, #tpu.memory_space<vmem>>, vector<26x16x4xbf16>
    %48 = vector.shape_cast %47 : vector<26x16x4xbf16> to vector<416x4xbf16>
    %c0_64 = arith.constant 0 : index
    %c4_65 = arith.constant 4 : index
    %49 = vector.load %arg8[%c0_64, %c4_65] : memref<416x12xbf16, #tpu.memory_space<vmem>>, vector<416x4xbf16>
    tpu.vector_store %arg8[%c0_64, %c4_65], %48 {strides = array<i32>} : memref<416x12xbf16, #tpu.memory_space<vmem>>, vector<416x4xbf16>,
    %c0_66 = arith.constant 0 : index
    %c8_67 = arith.constant 8 : index
    %c0_68 = arith.constant 0 : index
    %50 = vector.load %arg7[%c0_66, %c8_67, %c0_68] : memref<26x26x4xbf16, #tpu.memory_space<vmem>>, vector<26x16x4xbf16>
    %51 = vector.shape_cast %50 : vector<26x16x4xbf16> to vector<416x4xbf16>
    %c0_69 = arith.constant 0 : index
    %c8_70 = arith.constant 8 : index
    %52 = vector.load %arg8[%c0_69, %c8_70] : memref<416x12xbf16, #tpu.memory_space<vmem>>, vector<416x4xbf16>
    tpu.vector_store %arg8[%c0_69, %c8_70], %51 {strides = array<i32>} : memref<416x12xbf16, #tpu.memory_space<vmem>>, vector<416x4xbf16>,
    %c32 = arith.constant 32 : index
    %c0_71 = arith.constant 0 : index
    %53 = vector.load %arg8[%c32, %c0_71] : memref<416x12xbf16, #tpu.memory_space<vmem>>, vector<256x12xbf16>
    %c1_72 = arith.constant 1 : index
    %c0_73 = arith.constant 0 : index
    %c0_74 = arith.constant 0 : index
    %c0_75 = arith.constant 0 : index
    %54 = vector.load %arg2[%c1_72, %c0_73, %c0_74, %c0_75] : memref<3x3x12x4xbf16, #tpu.memory_space<vmem>>, vector<1x1x12x4xbf16>
    %55 = vector.shape_cast %54 : vector<1x1x12x4xbf16> to vector<12x4xbf16>
    %cst_76 = arith.constant dense<0.000000e+00> : vector<256x4xf32>
    %56 = tpu.matmul %53, %55, %cst_76 {dimension_numbers = #tpu.dot_dimension_numbers<[1], [0], [0], [1], [0, 0, 1, 1], [], []>} : vector<256x12xbf16>, vector<12x4xbf16>, vector<256x4xf32> -> vector<256x4xf32>
    %c80_77 = arith.constant 80 : index
    %c0_78 = arith.constant 0 : index
    %57 = vector.load %arg8[%c80_77, %c0_78] : memref<416x12xbf16, #tpu.memory_space<vmem>>, vector<256x12xbf16>
    %c1_79 = arith.constant 1 : index
    %c1_80 = arith.constant 1 : index
    %c0_81 = arith.constant 0 : index
    %c0_82 = arith.constant 0 : index
    %58 = vector.load %arg2[%c1_79, %c1_80, %c0_81, %c0_82] : memref<3x3x12x4xbf16, #tpu.memory_space<vmem>>, vector<1x1x12x4xbf16>
    %59 = vector.shape_cast %58 : vector<1x1x12x4xbf16> to vector<12x4xbf16>
    %cst_83 = arith.constant dense<0.000000e+00> : vector<256x4xf32>
    %60 = tpu.matmul %57, %59, %cst_83 {dimension_numbers = #tpu.dot_dimension_numbers<[1], [0], [0], [1], [0, 0, 1, 1], [], []>} : vector<256x12xbf16>, vector<12x4xbf16>, vector<256x4xf32> -> vector<256x4xf32>
    %61 = arith.addf %56, %60 : vector<256x4xf32>
    %c128 = arith.constant 128 : index
    %c0_84 = arith.constant 0 : index
    %62 = vector.load %arg8[%c128, %c0_84] : memref<416x12xbf16, #tpu.memory_space<vmem>>, vector<256x12xbf16>
    %c1_85 = arith.constant 1 : index
    %c2_86 = arith.constant 2 : index
    %c0_87 = arith.constant 0 : index
    %c0_88 = arith.constant 0 : index
    %63 = vector.load %arg2[%c1_85, %c2_86, %c0_87, %c0_88] : memref<3x3x12x4xbf16, #tpu.memory_space<vmem>>, vector<1x1x12x4xbf16>
    %64 = vector.shape_cast %63 : vector<1x1x12x4xbf16> to vector<12x4xbf16>
    %cst_89 = arith.constant dense<0.000000e+00> : vector<256x4xf32>
    %65 = tpu.matmul %62, %64, %cst_89 {dimension_numbers = #tpu.dot_dimension_numbers<[1], [0], [0], [1], [0, 0, 1, 1], [], []>} : vector<256x12xbf16>, vector<12x4xbf16>, vector<256x4xf32> -> vector<256x4xf32>
    %66 = arith.addf %61, %65 : vector<256x4xf32>
    %c1_90 = arith.constant 1 : index
    %c0_91 = arith.constant 0 : index
    %c0_92 = arith.constant 0 : index
    %67 = vector.load %arg3[%c1_90, %c0_91, %c0_92] : memref<3x1x4xf32, #tpu.memory_space<vmem>>, vector<1x1x4xf32>
    %68 = vector.shape_cast %67 : vector<1x1x4xf32> to vector<1x4xf32>
    %69 = vector.broadcast %68 : vector<1x4xf32> to vector<256x4xf32>
    %70 = arith.addf %66, %69 : vector<256x4xf32>
    %cst_93 = arith.constant 0.000000e+00 : f32
    %71 = vector.broadcast %cst_93 : f32 to vector<256x4xf32>
    %72 = arith.maximumf %70, %71 : vector<256x4xf32>
    %73 = arith.truncf %72 : vector<256x4xf32> to vector<256x4xbf16>
    %c0_94 = arith.constant 0 : index
    %c0_95 = arith.constant 0 : index
    %74 = vector.load %arg4[%c0_94, %c0_95] : memref<4x4xbf16, #tpu.memory_space<vmem>>, vector<4x4xbf16>
    %cst_96 = arith.constant dense<0.000000e+00> : vector<256x4xf32>
    %75 = tpu.matmul %73, %74, %cst_96 {dimension_numbers = #tpu.dot_dimension_numbers<[1], [0], [0], [1], [0, 0, 1, 1], [], []>} : vector<256x4xbf16>, vector<4x4xbf16>, vector<256x4xf32> -> vector<256x4xf32>
    %c0_97 = arith.constant 0 : index
    %c0_98 = arith.constant 0 : index
    %76 = vector.load %arg9[%c0_97, %c0_98] : memref<256x4xf32, #tpu.memory_space<vmem>>, vector<256x4xf32>
    %77 = arith.addf %76, %75 : vector<256x4xf32>
    %c0_99 = arith.constant 0 : index
    %c0_100 = arith.constant 0 : index
    %78 = vector.load %arg9[%c0_99, %c0_100] : memref<256x4xf32, #tpu.memory_space<vmem>>, vector<256x4xf32>
    tpu.vector_store %arg9[%c0_99, %c0_100], %77 {strides = array<i32>} : memref<256x4xf32, #tpu.memory_space<vmem>>, vector<256x4xf32>,
    %c0_101 = arith.constant 0 : index
    %c0_102 = arith.constant 0 : index
    %c0_103 = arith.constant 0 : index
    %79 = vector.load %arg7[%c0_101, %c0_102, %c0_103] : memref<26x26x4xbf16, #tpu.memory_space<vmem>>, vector<26x16x4xbf16>
    %80 = vector.shape_cast %79 : vector<26x16x4xbf16> to vector<416x4xbf16>
    %c0_104 = arith.constant 0 : index
    %c0_105 = arith.constant 0 : index
    %81 = vector.load %arg8[%c0_104, %c0_105] : memref<416x12xbf16, #tpu.memory_space<vmem>>, vector<416x4xbf16>
    tpu.vector_store %arg8[%c0_104, %c0_105], %80 {strides = array<i32>} : memref<416x12xbf16, #tpu.memory_space<vmem>>, vector<416x4xbf16>,
    %c0_106 = arith.constant 0 : index
    %c5_107 = arith.constant 5 : index
    %c0_108 = arith.constant 0 : index
    %82 = vector.load %arg7[%c0_106, %c5_107, %c0_108] : memref<26x26x4xbf16, #tpu.memory_space<vmem>>, vector<26x16x4xbf16>
    %83 = vector.shape_cast %82 : vector<26x16x4xbf16> to vector<416x4xbf16>
    %c0_109 = arith.constant 0 : index
    %c4_110 = arith.constant 4 : index
    %84 = vector.load %arg8[%c0_109, %c4_110] : memref<416x12xbf16, #tpu.memory_space<vmem>>, vector<416x4xbf16>
    tpu.vector_store %arg8[%c0_109, %c4_110], %83 {strides = array<i32>} : memref<416x12xbf16, #tpu.memory_space<vmem>>, vector<416x4xbf16>,
    %c0_111 = arith.constant 0 : index
    %c10 = arith.constant 10 : index
    %c0_112 = arith.constant 0 : index
    %85 = vector.load %arg7[%c0_111, %c10, %c0_112] : memref<26x26x4xbf16, #tpu.memory_space<vmem>>, vector<26x16x4xbf16>
    %86 = vector.shape_cast %85 : vector<26x16x4xbf16> to vector<416x4xbf16>
    %c0_113 = arith.constant 0 : index
    %c8_114 = arith.constant 8 : index
    %87 = vector.load %arg8[%c0_113, %c8_114] : memref<416x12xbf16, #tpu.memory_space<vmem>>, vector<416x4xbf16>
    tpu.vector_store %arg8[%c0_113, %c8_114], %86 {strides = array<i32>} : memref<416x12xbf16, #tpu.memory_space<vmem>>, vector<416x4xbf16>,
    %c0_115 = arith.constant 0 : index
    %c0_116 = arith.constant 0 : index
    %88 = vector.load %arg8[%c0_115, %c0_116] : memref<416x12xbf16, #tpu.memory_space<vmem>>, vector<256x12xbf16>
    %c2_117 = arith.constant 2 : index
    %c0_118 = arith.constant 0 : index
    %c0_119 = arith.constant 0 : index
    %c0_120 = arith.constant 0 : index
    %89 = vector.load %arg2[%c2_117, %c0_118, %c0_119, %c0_120] : memref<3x3x12x4xbf16, #tpu.memory_space<vmem>>, vector<1x1x12x4xbf16>
    %90 = vector.shape_cast %89 : vector<1x1x12x4xbf16> to vector<12x4xbf16>
    %cst_121 = arith.constant dense<0.000000e+00> : vector<256x4xf32>
    %91 = tpu.matmul %88, %90, %cst_121 {dimension_numbers = #tpu.dot_dimension_numbers<[1], [0], [0], [1], [0, 0, 1, 1], [], []>} : vector<256x12xbf16>, vector<12x4xbf16>, vector<256x4xf32> -> vector<256x4xf32>
    %c80_122 = arith.constant 80 : index
    %c0_123 = arith.constant 0 : index
    %92 = vector.load %arg8[%c80_122, %c0_123] : memref<416x12xbf16, #tpu.memory_space<vmem>>, vector<256x12xbf16>
    %c2_124 = arith.constant 2 : index
    %c1_125 = arith.constant 1 : index
    %c0_126 = arith.constant 0 : index
    %c0_127 = arith.constant 0 : index
    %93 = vector.load %arg2[%c2_124, %c1_125, %c0_126, %c0_127] : memref<3x3x12x4xbf16, #tpu.memory_space<vmem>>, vector<1x1x12x4xbf16>
    %94 = vector.shape_cast %93 : vector<1x1x12x4xbf16> to vector<12x4xbf16>
    %cst_128 = arith.constant dense<0.000000e+00> : vector<256x4xf32>
    %95 = tpu.matmul %92, %94, %cst_128 {dimension_numbers = #tpu.dot_dimension_numbers<[1], [0], [0], [1], [0, 0, 1, 1], [], []>} : vector<256x12xbf16>, vector<12x4xbf16>, vector<256x4xf32> -> vector<256x4xf32>
    %96 = arith.addf %91, %95 : vector<256x4xf32>
    %c160 = arith.constant 160 : index
    %c0_129 = arith.constant 0 : index
    %97 = vector.load %arg8[%c160, %c0_129] : memref<416x12xbf16, #tpu.memory_space<vmem>>, vector<256x12xbf16>
    %c2_130 = arith.constant 2 : index
    %c2_131 = arith.constant 2 : index
    %c0_132 = arith.constant 0 : index
    %c0_133 = arith.constant 0 : index
    %98 = vector.load %arg2[%c2_130, %c2_131, %c0_132, %c0_133] : memref<3x3x12x4xbf16, #tpu.memory_space<vmem>>, vector<1x1x12x4xbf16>
    %99 = vector.shape_cast %98 : vector<1x1x12x4xbf16> to vector<12x4xbf16>
    %cst_134 = arith.constant dense<0.000000e+00> : vector<256x4xf32>
    %100 = tpu.matmul %97, %99, %cst_134 {dimension_numbers = #tpu.dot_dimension_numbers<[1], [0], [0], [1], [0, 0, 1, 1], [], []>} : vector<256x12xbf16>, vector<12x4xbf16>, vector<256x4xf32> -> vector<256x4xf32>
    %101 = arith.addf %96, %100 : vector<256x4xf32>
    %c2_135 = arith.constant 2 : index
    %c0_136 = arith.constant 0 : index
    %c0_137 = arith.constant 0 : index
    %102 = vector.load %arg3[%c2_135, %c0_136, %c0_137] : memref<3x1x4xf32, #tpu.memory_space<vmem>>, vector<1x1x4xf32>
    %103 = vector.shape_cast %102 : vector<1x1x4xf32> to vector<1x4xf32>
    %104 = vector.broadcast %103 : vector<1x4xf32> to vector<256x4xf32>
    %105 = arith.addf %101, %104 : vector<256x4xf32>
    %cst_138 = arith.constant 0.000000e+00 : f32
    %106 = vector.broadcast %cst_138 : f32 to vector<256x4xf32>
    %107 = arith.maximumf %105, %106 : vector<256x4xf32>
    %108 = arith.truncf %107 : vector<256x4xf32> to vector<256x4xbf16>
    %c0_139 = arith.constant 0 : index
    %c0_140 = arith.constant 0 : index
    %109 = vector.load %arg4[%c0_139, %c0_140] : memref<4x4xbf16, #tpu.memory_space<vmem>>, vector<4x4xbf16>
    %cst_141 = arith.constant dense<0.000000e+00> : vector<256x4xf32>
    %110 = tpu.matmul %108, %109, %cst_141 {dimension_numbers = #tpu.dot_dimension_numbers<[1], [0], [0], [1], [0, 0, 1, 1], [], []>} : vector<256x4xbf16>, vector<4x4xbf16>, vector<256x4xf32> -> vector<256x4xf32>
    %c0_142 = arith.constant 0 : index
    %c0_143 = arith.constant 0 : index
    %111 = vector.load %arg9[%c0_142, %c0_143] : memref<256x4xf32, #tpu.memory_space<vmem>>, vector<256x4xf32>
    %112 = arith.addf %111, %110 : vector<256x4xf32>
    %c0_144 = arith.constant 0 : index
    %c0_145 = arith.constant 0 : index
    %113 = vector.load %arg9[%c0_144, %c0_145] : memref<256x4xf32, #tpu.memory_space<vmem>>, vector<256x4xf32>
    tpu.vector_store %arg9[%c0_144, %c0_145], %112 {strides = array<i32>} : memref<256x4xf32, #tpu.memory_space<vmem>>, vector<256x4xf32>,
    %c0_146 = arith.constant 0 : index
    %c0_147 = arith.constant 0 : index
    %114 = vector.load %arg9[%c0_146, %c0_147] : memref<256x4xf32, #tpu.memory_space<vmem>>, vector<256x4xf32>
    %c0_148 = arith.constant 0 : index
    %c0_149 = arith.constant 0 : index
    %115 = vector.load %arg5[%c0_148, %c0_149] : memref<1x4xf32, #tpu.memory_space<vmem>>, vector<1x4xf32>
    %116 = vector.broadcast %115 : vector<1x4xf32> to vector<256x4xf32>
    %117 = arith.addf %114, %116 : vector<256x4xf32>
    %118 = arith.truncf %117 : vector<256x4xf32> to vector<256x4xbf16>
    %119 = vector.shape_cast %118 : vector<256x4xbf16> to vector<16x16x4xbf16>
    %c0_150 = arith.constant 0 : index
    %c0_151 = arith.constant 0 : index
    %c0_152 = arith.constant 0 : index
    %c0_153 = arith.constant 0 : index
    %120 = vector.load %arg6[%c0_150, %c0_151, %c0_152, %c0_153] : memref<1x16x16x4xbf16, #tpu.memory_space<vmem>>, vector<1x16x16x4xbf16>
    %121 = vector.shape_cast %120 : vector<1x16x16x4xbf16> to vector<16x16x4xbf16>
    %122 = vector.shape_cast %119 : vector<16x16x4xbf16> to vector<1x16x16x4xbf16>
    tpu.vector_store %arg6[%c0_150, %c0_151, %c0_152, %c0_153], %122 {strides = array<i32>} : memref<1x16x16x4xbf16, #tpu.memory_space<vmem>>, vector<1x16x16x4xbf16>,
    return
  }
  func.func @transform_0(%arg0: i32) -> (i32, i32, i32, i32) {
    %c0_i32 = arith.constant 0 : i32
    %c0_i32_0 = arith.constant 0 : i32
    %c0_i32_1 = arith.constant 0 : i32
    %c0_i32_2 = arith.constant 0 : i32
    return %arg0, %c0_i32, %c0_i32_0, %c0_i32_1 : i32, i32, i32, i32
  }
  func.func @transform_1(%arg0: i32) -> (i32, i32, i32, i32) {
    %c0_i32 = arith.constant 0 : i32
    %c0_i32_0 = arith.constant 0 : i32
    %c0_i32_1 = arith.constant 0 : i32
    %c0_i32_2 = arith.constant 0 : i32
    %c0_i32_3 = arith.constant 0 : i32
    return %c0_i32, %c0_i32_0, %c0_i32_1, %c0_i32_2 : i32, i32, i32, i32
  }
  func.func @transform_2(%arg0: i32) -> (i32, i32, i32) {
    %c0_i32 = arith.constant 0 : i32
    %c0_i32_0 = arith.constant 0 : i32
    %c0_i32_1 = arith.constant 0 : i32
    %c0_i32_2 = arith.constant 0 : i32
    return %c0_i32, %c0_i32_0, %c0_i32_1 : i32, i32, i32
  }
  func.func @transform_3(%arg0: i32) -> (i32, i32) {
    %c0_i32 = arith.constant 0 : i32
    %c0_i32_0 = arith.constant 0 : i32
    %c0_i32_1 = arith.constant 0 : i32
    return %c0_i32, %c0_i32_0 : i32, i32
  }
  func.func @transform_4(%arg0: i32) -> (i32, i32) {
    %c0_i32 = arith.constant 0 : i32
    %c0_i32_0 = arith.constant 0 : i32
    %c0_i32_1 = arith.constant 0 : i32
    return %c0_i32, %c0_i32_0 : i32, i32
  }
  func.func @transform_5(%arg0: i32) -> (i32, i32, i32, i32) {
    %c0_i32 = arith.constant 0 : i32
    %c0_i32_0 = arith.constant 0 : i32
    %c0_i32_1 = arith.constant 0 : i32
    %c0_i32_2 = arith.constant 0 : i32
    return %arg0, %c0_i32, %c0_i32_0, %c0_i32_1 : i32, i32, i32, i32
  }
}

</mosaic_0001>

<llo_original>
// kernel: tpu_custom_call.1
$region0: #{tpu_custom_call.1}
  #allocation0 [shape = 'u32[]', space=smem, size = 0x4, offset = 0x4, fixed_abs, tag = 'smem constant byte address 0x4 - core index']
  #allocation1 [shape = 'u32[72,128]{1,0:T(1,128)}', space=vmem, size = 0x9000, scoped, tag = 'internal scratch']
  #allocation2 [shape = 'bf16[26,26,4]{2,1,0:T(8,128)(2,1)}', space=vmem, size = 0x34000, scoped, tag = 'scratch operand']
  #allocation3 [shape = 'bf16[416,12]{1,0:T(8,128)(2,1)}', space=vmem, size = 0x1a000, scoped, tag = 'scratch operand']
  #allocation4 [shape = 'f32[256,4]{1,0:T(8,128)}', space=vmem, size = 0x20000, scoped, tag = 'scratch operand']
  %s0 = inlined_call_operand.vmem [shape: bf16[2,16,16,4], index: 0, kind: input, shape index: {}]
  %s1 = inlined_call_operand.vmem [shape: bf16[3,3,12,4], index: 1, kind: input, shape index: {}]
  %s2 = inlined_call_operand.vmem [shape: f32[3,1,4], index: 2, kind: input, shape index: {}]
  %s3 = inlined_call_operand.vmem [shape: bf16[4,4], index: 3, kind: input, shape index: {}]
  %s4 = inlined_call_operand.vmem [shape: f32[1,4], index: 4, kind: input, shape index: {}]
  %s5 = inlined_call_operand.vmem [shape: bf16[2,16,16,4], index: 5, kind: output, shape index: {}]
  %s6 = sld [smem:[#allocation0]]
  $region53: #{tpu_custom_call.1} parent=0
    _
  %s8 = ssub.s32 1, %s6
  %s9 = scalar_select 0, %s8, %s6
  loop: start=0, step=1, limit=4
  $region2: #{tpu_custom_call.1} parent=0 // loop_pre_header
    _
  $region3: #{tpu_custom_call.1} parent=0 // loop_header
    %s11 = sphi 0, %s15
    %p12 = scmp.ge.s32.totalorder %s11, 4
    %s21 = sphi 0, %s23
    %s24 = sphi 0, %s21
    %s25 = sphi 0, %s24
    %s41 = sphi 0, %s25
    %s45 = sphi 0, %s45
    %s47 = sphi 0, %s45
    %s48 = sphi 0, %s47
    %s62 = sphi 0, %s48
    %s66 = sphi 0, %s66
    %s68 = sphi 0, %s66
    %s69 = sphi 0, %s68
    %s83 = sphi 0, %s69
    %s87 = sphi 0, %s87
    %s89 = sphi 0, %s87
    %s90 = sphi 0, %s89
    %s104 = sphi 0, %s90
    %s108 = sphi 0, %s108
    %s110 = sphi 0, %s108
    %s111 = sphi 0, %s110
    %s125 = sphi 0, %s111
    %s131 = sphi 0, %s133
    %s134 = sphi 0, %s131
    %s135 = sphi 0, %s134
    %s151 = sphi 0, %s135
  $region4: #{tpu_custom_call.1} parent=0 // loop_header_branch
    %14 = sbr.rel (%p12) target = $region8
  $region5: #{tpu_custom_call.1} parent=0 // loop_body
    %s16 = ssub.s32 %s11, 1
    %s17 = ssub.s32 %s11, 2
    %s18 = sadd.s32 %s11, 1
    %s19 = ssub.s32 %s11, %s18
    %p20 = scmp.eq.s32.totalorder %s19, 0
    %s22 = sadd.s32 %s21, 1
    %s23 = scalar_select %p20, %s21, %s22
    %p26 = pneg %p20
    %p27 = scmp.eq.s32.totalorder %s11, 1
    %p28 = por %p26, %p27
    %p29 = scmp.ne.s32.totalorder %s21, %s24
    %p30 = scmp.eq.s32.totalorder %s11, 0
    %p31 = por %p29, %p30
    %p32 = scmp.ne.s32.totalorder %s21, %s24
    %p33 = scmp.eq.s32.totalorder %s16, 1
    %p34 = por %p32, %p33
    %p35 = scmp.ne.s32.totalorder %s24, %s25
    %p36 = scmp.eq.s32.totalorder %s16, 0
    %p37 = por %p35, %p36
    %p38 = scmp.ne.s32.totalorder %s24, %s25
    %p39 = scmp.eq.s32.totalorder %s17, 1
    %p40 = por %p38, %p39
    %p42 = scmp.ne.s32.totalorder %s25, %s41
    %p43 = scmp.eq.s32.totalorder %s17, 0
    %p44 = por %p42, %p43
    %s46 = sadd.s32 %s45, 1
    %p49 = scmp.eq.s32.totalorder %s11, 1
    %p50 = scmp.ne.s32.totalorder %s45, %s47
    %p51 = scmp.eq.s32.totalorder %s11, 0
    %p52 = por %p50, %p51
    %p53 = scmp.ne.s32.totalorder %s45, %s47
    %p54 = scmp.eq.s32.totalorder %s16, 1
    %p55 = por %p53, %p54
    %p56 = scmp.ne.s32.totalorder %s47, %s48
    %p57 = scmp.eq.s32.totalorder %s16, 0
    %p58 = por %p56, %p57
    %p59 = scmp.ne.s32.totalorder %s47, %s48
    %p60 = scmp.eq.s32.totalorder %s17, 1
    %p61 = por %p59, %p60
    %p63 = scmp.ne.s32.totalorder %s48, %s62
    %p64 = scmp.eq.s32.totalorder %s17, 0
    %p65 = por %p63, %p64
    %s67 = sadd.s32 %s66, 1
    %p70 = scmp.eq.s32.totalorder %s11, 1
    %p71 = scmp.ne.s32.totalorder %s66, %s68
    %p72 = scmp.eq.s32.totalorder %s11, 0
    %p73 = por %p71, %p72
    %p74 = scmp.ne.s32.totalorder %s66, %s68
    %p75 = scmp.eq.s32.totalorder %s16, 1
    %p76 = por %p74, %p75
    %p77 = scmp.ne.s32.totalorder %s68, %s69
    %p78 = scmp.eq.s32.totalorder %s16, 0
    %p79 = por %p77, %p78
    %p80 = scmp.ne.s32.totalorder %s68, %s69
    %p81 = scmp.eq.s32.totalorder %s17, 1
    %p82 = por %p80, %p81
    %p84 = scmp.ne.s32.totalorder %s69, %s83
    %p85 = scmp.eq.s32.totalorder %s17, 0
    %p86 = por %p84, %p85
    %s88 = sadd.s32 %s87, 1
    %p91 = scmp.eq.s32.totalorder %s11, 1
    %p92 = scmp.ne.s32.totalorder %s87, %s89
    %p93 = scmp.eq.s32.totalorder %s11, 0
    %p94 = por %p92, %p93
    %p95 = scmp.ne.s32.totalorder %s87, %s89
    %p96 = scmp.eq.s32.totalorder %s16, 1
    %p97 = por %p95, %p96
    %p98 = scmp.ne.s32.totalorder %s89, %s90
    %p99 = scmp.eq.s32.totalorder %s16, 0
    %p100 = por %p98, %p99
    %p101 = scmp.ne.s32.totalorder %s89, %s90
    %p102 = scmp.eq.s32.totalorder %s17, 1
    %p103 = por %p101, %p102
    %p105 = scmp.ne.s32.totalorder %s90, %s104
    %p106 = scmp.eq.s32.totalorder %s17, 0
    %p107 = por %p105, %p106
    %s109 = sadd.s32 %s108, 1
    %p112 = scmp.eq.s32.totalorder %s11, 1
    %p113 = scmp.ne.s32.totalorder %s108, %s110
    %p114 = scmp.eq.s32.totalorder %s11, 0
    %p115 = por %p113, %p114
    %p116 = scmp.ne.s32.totalorder %s108, %s110
    %p117 = scmp.eq.s32.totalorder %s16, 1
    %p118 = por %p116, %p117
    %p119 = scmp.ne.s32.totalorder %s110, %s111
    %p120 = scmp.eq.s32.totalorder %s16, 0
    %p121 = por %p119, %p120
    %p122 = scmp.ne.s32.totalorder %s110, %s111
    %p123 = scmp.eq.s32.totalorder %s17, 1
    %p124 = por %p122, %p123
    %p126 = scmp.ne.s32.totalorder %s111, %s125
    %p127 = scmp.eq.s32.totalorder %s17, 0
    %p128 = por %p126, %p127
    %s129 = ssub.s32 %s11, %s18
    %p130 = scmp.eq.s32.totalorder %s129, 0
    %s132 = sadd.s32 %s131, 1
    %s133 = scalar_select %p130, %s131, %s132
    %p136 = pneg %p130
    %p137 = scmp.eq.s32.totalorder %s11, 1
    %p138 = por %p136, %p137
    %p139 = scmp.ne.s32.totalorder %s131, %s134
    %p140 = scmp.eq.s32.totalorder %s11, 0
    %p141 = por %p139, %p140
    %p142 = scmp.ne.s32.totalorder %s131, %s134
    %p143 = scmp.eq.s32.totalorder %s16, 1
    %p144 = por %p142, %p143
    %p145 = scmp.ne.s32.totalorder %s134, %s135
    %p146 = scmp.eq.s32.totalorder %s16, 0
    %p147 = por %p145, %p146
    %p148 = scmp.ne.s32.totalorder %s134, %s135
    %p149 = scmp.eq.s32.totalorder %s17, 1
    %p150 = por %p148, %p149
    %p152 = scmp.ne.s32.totalorder %s135, %s151
    %p153 = scmp.eq.s32.totalorder %s17, 0
    %p154 = por %p152, %p153
    %p155 = scmp.le.s32.totalorder 1, %s11
    %p156 = scmp.lt.s32.totalorder %s11, 3
    %p157 = pnand %p155, %p156
    %p158 = pneg %p157
    // Predicated region
    $region9: #{tpu_custom_call.1} parent=5 // pred_check
      _
    $region10: #{tpu_custom_call.1} parent=5 // pred_check_branch
      %160 = sbr.rel (%p157) target = $region12
    $region11: #{tpu_custom_call.1} parent=5 // pred_region
      %s161 = ssub.s32 %s11, 1
      // Predicated region
      $region13: #{tpu_custom_call.1} parent=11 // pred_check
        %p162 = pneg %p58
      $region14: #{tpu_custom_call.1} parent=11 // pred_check_branch
        %164 = sbr.rel (%p162) target = $region16
      $region15: #{tpu_custom_call.1} parent=11 // pred_region
        _
      $region16: #{tpu_custom_call.1} parent=11 // pred_fallthru
        _
      // Predicated region
      $region17: #{tpu_custom_call.1} parent=11 // pred_check
        %p165 = pneg %p79
      $region18: #{tpu_custom_call.1} parent=11 // pred_check_branch
        %167 = sbr.rel (%p165) target = $region20
      $region19: #{tpu_custom_call.1} parent=11 // pred_region
        _
      $region20: #{tpu_custom_call.1} parent=11 // pred_fallthru
        _
      // Predicated region
      $region21: #{tpu_custom_call.1} parent=11 // pred_check
        %p168 = pneg %p100
      $region22: #{tpu_custom_call.1} parent=11 // pred_check_branch
        %170 = sbr.rel (%p168) target = $region24
      $region23: #{tpu_custom_call.1} parent=11 // pred_region
        _
      $region24: #{tpu_custom_call.1} parent=11 // pred_fallthru
        _
      // Predicated region
      $region25: #{tpu_custom_call.1} parent=11 // pred_check
        %p171 = pneg %p121
      $region26: #{tpu_custom_call.1} parent=11 // pred_check_branch
        %173 = sbr.rel (%p171) target = $region28
      $region27: #{tpu_custom_call.1} parent=11 // pred_region
        _
      $region28: #{tpu_custom_call.1} parent=11 // pred_fallthru
        _
    $region12: #{tpu_custom_call.1} parent=5 // pred_fallthru
      _
    %p174 = scmp.lt.s32.totalorder %s11, 2
    // Predicated region
    $region29: #{tpu_custom_call.1} parent=5 // pred_check
      %p175 = pneg %p174
    $region30: #{tpu_custom_call.1} parent=5 // pred_check_branch
      %177 = sbr.rel (%p175) target = $region32
    $region31: #{tpu_custom_call.1} parent=5 // pred_region
      // Predicated region
      $region33: #{tpu_custom_call.1} parent=31 // pred_check
        %p178 = pneg %p31
      $region34: #{tpu_custom_call.1} parent=31 // pred_check_branch
        %180 = sbr.rel (%p178) target = $region36
      $region35: #{tpu_custom_call.1} parent=31 // pred_region
        %p181 = scmp.lt.s32.totalorder %s11, 1
        %s182 = scalar_select %p181, %s11, 1
        %s183 = smul.addr %s182, 32
        %s184 = smul.addr %s183, 4
        %s185 = scalar_lea.vmem %s0, %s184
      $region36: #{tpu_custom_call.1} parent=31 // pred_fallthru
        _
    $region32: #{tpu_custom_call.1} parent=5 // pred_fallthru
      _
    %p186 = scmp.le.s32.totalorder 1, %s11
    %p187 = scmp.lt.s32.totalorder %s11, 3
    %p188 = pnand %p186, %p187
    %p189 = pneg %p188
    // Predicated region
    $region37: #{tpu_custom_call.1} parent=5 // pred_check
      _
    $region38: #{tpu_custom_call.1} parent=5 // pred_check_branch
      %191 = sbr.rel (%p188) target = $region40
    $region39: #{tpu_custom_call.1} parent=5 // pred_region
      %s192 = ssub.s32 %s11, 1
      %p193 = scmp.lt.s32.totalorder %s16, 1
      %s194 = scalar_select %p193, %s16, 1
      %s195 = smul.addr %s194, 32
      %s196 = smul.addr %s195, 4
      %s197 = scalar_lea.vmem %s0, %s196
      %p198 = pneg %p37
      %p199 = pneg %p34
      %p200 = pneg %p58
      %p201 = pneg %p55
      %p202 = pneg %p79
      %p203 = pneg %p76
      %p204 = pneg %p100
      %p205 = pneg %p97
      %p206 = pneg %p121
      %p207 = pneg %p118
      %p208 = pneg %p147
      %p209 = pneg %p144
      %p210 = scmp.lt.s32.totalorder %s16, 1
      %s211 = scalar_select %p210, %s16, 1
      %s212 = smul.addr %s211, 32
      %s213 = smul.addr %s212, 4
      %s214 = scalar_lea.vmem %s5, %s213
      %p215 = scmp.lt.s32.totalorder %s16, 1
      %s216 = scalar_select %p215, %s16, 1
      %s217 = smul.addr %s216, 32
      %s218 = smul.addr %s217, 4
      %s219 = scalar_lea.vmem %s0, %s218
      %p220 = scmp.lt.s32.totalorder %s16, 1
      %s221 = scalar_select %p220, %s16, 1
      %s222 = smul.addr %s221, 32
      %s223 = smul.addr %s222, 4
      %s224 = scalar_lea.vmem %s5, %s223
      %vm226 = vcmask 27648
      %227 = vst.msk [vmem:[#allocation2] sm:$0xf] %vm226, 0
      %228 = vst.msk [vmem:[#allocation2 + $0x4] sm:$0xf] %vm226, 0
      %229 = vst.msk [vmem:[#allocation2 + $0x8] sm:$0xf] %vm226, 0
      %vm230 = vcmask 24576
      %231 = vst.msk [vmem:[#allocation2 + $0xc] sm:$0x1] %vm230, 0
      %232 = vst.msk [vmem:[#allocation2 + $0x10] sm:$0xf] %vm226, 0
      %233 = vst.msk [vmem:[#allocation2 + $0x14] sm:$0xf] %vm226, 0
      %234 = vst.msk [vmem:[#allocation2 + $0x18] sm:$0xf] %vm226, 0
      %235 = vst.msk [vmem:[#allocation2 + $0x1c] sm:$0x1] %vm230, 0
      %236 = vst.msk [vmem:[#allocation2 + $0x20] sm:$0xf] %vm226, 0
      %237 = vst.msk [vmem:[#allocation2 + $0x24] sm:$0xf] %vm226, 0
      %238 = vst.msk [vmem:[#allocation2 + $0x28] sm:$0xf] %vm226, 0
      %239 = vst.msk [vmem:[#allocation2 + $0x2c] sm:$0x1] %vm230, 0
      %240 = vst.msk [vmem:[#allocation2 + $0x30] sm:$0xf] %vm226, 0
      %241 = vst.msk [vmem:[#allocation2 + $0x34] sm:$0xf] %vm226, 0
      %242 = vst.msk [vmem:[#allocation2 + $0x38] sm:$0xf] %vm226, 0
      %243 = vst.msk [vmem:[#allocation2 + $0x3c] sm:$0x1] %vm230, 0
      %244 = vst.msk [vmem:[#allocation2 + $0x40] sm:$0xf] %vm226, 0
      %245 = vst.msk [vmem:[#allocation2 + $0x44] sm:$0xf] %vm226, 0
      %246 = vst.msk [vmem:[#allocation2 + $0x48] sm:$0xf] %vm226, 0
      %247 = vst.msk [vmem:[#allocation2 + $0x4c] sm:$0x1] %vm230, 0
      %s248 = scalar_lea.vmem [#allocation2], 336
      %249 = vst.msk [vmem:[%s248] sm:$0xf] %vm226, 0
      %250 = vst.msk [vmem:[%s248 + $0x4] sm:$0xf] %vm226, 0
      %251 = vst.msk [vmem:[%s248 + $0x8] sm:$0xf] %vm226, 0
      %252 = vst.msk [vmem:[%s248 + $0xc] sm:$0x1] %vm230, 0
      %253 = vst.msk [vmem:[%s248 + $0x10] sm:$0xf] %vm226, 0
      %254 = vst.msk [vmem:[%s248 + $0x14] sm:$0xf] %vm226, 0
      %255 = vst.msk [vmem:[%s248 + $0x18] sm:$0xf] %vm226, 0
      %256 = vst.msk [vmem:[%s248 + $0x1c] sm:$0x1] %vm230, 0
      %257 = vst.msk [vmem:[%s248 + $0x20] sm:$0xf] %vm226, 0
      %258 = vst.msk [vmem:[%s248 + $0x24] sm:$0xf] %vm226, 0
      %259 = vst.msk [vmem:[%s248 + $0x28] sm:$0xf] %vm226, 0
      %260 = vst.msk [vmem:[%s248 + $0x2c] sm:$0x1] %vm230, 0
      %261 = vst.msk [vmem:[%s248 + $0x30] sm:$0xf] %vm226, 0
      %262 = vst.msk [vmem:[%s248 + $0x34] sm:$0xf] %vm226, 0
      %263 = vst.msk [vmem:[%s248 + $0x38] sm:$0xf] %vm226, 0
      %264 = vst.msk [vmem:[%s248 + $0x3c] sm:$0x1] %vm230, 0
      %265 = vst.msk [vmem:[%s248 + $0x40] sm:$0xf] %vm226, 0
      %266 = vst.msk [vmem:[%s248 + $0x44] sm:$0xf] %vm226, 0
      %267 = vst.msk [vmem:[%s248 + $0x48] sm:$0xf] %vm226, 0
      %268 = vst.msk [vmem:[%s248 + $0x4c] sm:$0x1] %vm230, 0
      %s269 = scalar_lea.vmem [#allocation2], 80
      %vm270 = vcmask 26624
      %vm271 = vsmask.f32 2304
      %vm272 = vmand %vm270, %vm271
      %v273 = vld [vmem:[%s269] sm:$0x7]
      %v274 = vsel %vm272, 0, %v273
      %275 = vst [vmem:[%s269] sm:$0x7] %v274
      %v276 = vld [vmem:[%s269 + $0x10] sm:$0x7]
      %v277 = vsel %vm272, 0, %v276
      %278 = vst [vmem:[%s269 + $0x10] sm:$0x7] %v277
      %v279 = vld [vmem:[%s269 + $0x20] sm:$0x7]
      %v280 = vsel %vm272, 0, %v279
      %281 = vst [vmem:[%s269 + $0x20] sm:$0x7] %v280
      %v282 = vld [vmem:[%s269 + $0x30] sm:$0x7]
      %v283 = vsel %vm272, 0, %v282
      %284 = vst [vmem:[%s269 + $0x30] sm:$0x7] %v283
      %v285 = vld [vmem:[%s269 + $0x40] sm:$0x7]
      %v286 = vsel %vm272, 0, %v285
      %287 = vst [vmem:[%s269 + $0x40] sm:$0x7] %v286
      %v288 = vld [vmem:[%s269 + $0x50] sm:$0x7]
      %v289 = vsel %vm272, 0, %v288
      %290 = vst [vmem:[%s269 + $0x50] sm:$0x7] %v289
      %v291 = vld [vmem:[%s269 + $0x60] sm:$0x7]
      %v292 = vsel %vm272, 0, %v291
      %293 = vst [vmem:[%s269 + $0x60] sm:$0x7] %v292
      %v294 = vld [vmem:[%s269 + $0x70] sm:$0x7]
      %v295 = vsel %vm272, 0, %v294
      %296 = vst [vmem:[%s269 + $0x70] sm:$0x7] %v295
      %v297 = vld [vmem:[%s269 + $0x80] sm:$0x7]
      %v298 = vsel %vm272, 0, %v297
      %299 = vst [vmem:[%s269 + $0x80] sm:$0x7] %v298
      %v300 = vld [vmem:[%s269 + $0x90] sm:$0x7]
      %v301 = vsel %vm272, 0, %v300
      %302 = vst [vmem:[%s269 + $0x90] sm:$0x7] %v301
      %v303 = vld [vmem:[%s269 + $0xa0] sm:$0x7]
      %v304 = vsel %vm272, 0, %v303
      %305 = vst [vmem:[%s269 + $0xa0] sm:$0x7] %v304
      %v306 = vld [vmem:[%s269 + $0xb0] sm:$0x7]
      %v307 = vsel %vm272, 0, %v306
      %308 = vst [vmem:[%s269 + $0xb0] sm:$0x7] %v307
      %v309 = vld [vmem:[%s269 + $0xc0] sm:$0x7]
      %v310 = vsel %vm272, 0, %v309
      %311 = vst [vmem:[%s269 + $0xc0] sm:$0x7] %v310
      %v312 = vld [vmem:[%s269 + $0xd0] sm:$0x7]
      %v313 = vsel %vm272, 0, %v312
      %314 = vst [vmem:[%s269 + $0xd0] sm:$0x7] %v313
      %v315 = vld [vmem:[%s269 + $0xe0] sm:$0x7]
      %v316 = vsel %vm272, 0, %v315
      %317 = vst [vmem:[%s269 + $0xe0] sm:$0x7] %v316
      %v318 = vld [vmem:[%s269 + $0xf0] sm:$0x7]
      %v319 = vsel %vm272, 0, %v318
      %320 = vst [vmem:[%s269 + $0xf0] sm:$0x7] %v319
      %vm321 = vcmask 27650
      %vm322 = vsmask.f32 7946
      %vm323 = vmand %vm321, %vm322
      %v324 = vld [vmem:[%s269 + $0x8] sm:$0xc]
      %v325 = vsel %vm323, 0, %v324
      %326 = vst [vmem:[%s269 + $0x8] sm:$0xc] %v325
      %327 = vst.msk [vmem:[%s269 + $0xc] sm:$0x1] %vm230, 0
      %v328 = vld [vmem:[%s269 + $0x18] sm:$0xc]
      %v329 = vsel %vm323, 0, %v328
      %330 = vst [vmem:[%s269 + $0x18] sm:$0xc] %v329
      %331 = vst.msk [vmem:[%s269 + $0x1c] sm:$0x1] %vm230, 0
      %v332 = vld [vmem:[%s269 + $0x28] sm:$0xc]
      %v333 = vsel %vm323, 0, %v332
      %334 = vst [vmem:[%s269 + $0x28] sm:$0xc] %v333
      %335 = vst.msk [vmem:[%s269 + $0x2c] sm:$0x1] %vm230, 0
      %v336 = vld [vmem:[%s269 + $0x38] sm:$0xc]
      %v337 = vsel %vm323, 0, %v336
      %338 = vst [vmem:[%s269 + $0x38] sm:$0xc] %v337
      %339 = vst.msk [vmem:[%s269 + $0x3c] sm:$0x1] %vm230, 0
      %v340 = vld [vmem:[%s269 + $0x48] sm:$0xc]
      %v341 = vsel %vm323, 0, %v340
      %342 = vst [vmem:[%s269 + $0x48] sm:$0xc] %v341
      %343 = vst.msk [vmem:[%s269 + $0x4c] sm:$0x1] %vm230, 0
      %v344 = vld [vmem:[%s269 + $0x58] sm:$0xc]
      %v345 = vsel %vm323, 0, %v344
      %346 = vst [vmem:[%s269 + $0x58] sm:$0xc] %v345
      %347 = vst.msk [vmem:[%s269 + $0x5c] sm:$0x1] %vm230, 0
      %v348 = vld [vmem:[%s269 + $0x68] sm:$0xc]
      %v349 = vsel %vm323, 0, %v348
      %350 = vst [vmem:[%s269 + $0x68] sm:$0xc] %v349
      %351 = vst.msk [vmem:[%s269 + $0x6c] sm:$0x1] %vm230, 0
      %v352 = vld [vmem:[%s269 + $0x78] sm:$0xc]
      %v353 = vsel %vm323, 0, %v352
      %354 = vst [vmem:[%s269 + $0x78] sm:$0xc] %v353
      %355 = vst.msk [vmem:[%s269 + $0x7c] sm:$0x1] %vm230, 0
      %v356 = vld [vmem:[%s269 + $0x88] sm:$0xc]
      %v357 = vsel %vm323, 0, %v356
      %358 = vst [vmem:[%s269 + $0x88] sm:$0xc] %v357
      %359 = vst.msk [vmem:[%s269 + $0x8c] sm:$0x1] %vm230, 0
      %v360 = vld [vmem:[%s269 + $0x98] sm:$0xc]
      %v361 = vsel %vm323, 0, %v360
      %362 = vst [vmem:[%s269 + $0x98] sm:$0xc] %v361
      %363 = vst.msk [vmem:[%s269 + $0x9c] sm:$0x1] %vm230, 0
      %v364 = vld [vmem:[%s269 + $0xa8] sm:$0xc]
      %v365 = vsel %vm323, 0, %v364
      %366 = vst [vmem:[%s269 + $0xa8] sm:$0xc] %v365
      %367 = vst.msk [vmem:[%s269 + $0xac] sm:$0x1] %vm230, 0
      %v368 = vld [vmem:[%s269 + $0xb8] sm:$0xc]
      %v369 = vsel %vm323, 0, %v368
      %370 = vst [vmem:[%s269 + $0xb8] sm:$0xc] %v369
      %371 = vst.msk [vmem:[%s269 + $0xbc] sm:$0x1] %vm230, 0
      %v372 = vld [vmem:[%s269 + $0xc8] sm:$0xc]
      %v373 = vsel %vm323, 0, %v372
      %374 = vst [vmem:[%s269 + $0xc8] sm:$0xc] %v373
      %375 = vst.msk [vmem:[%s269 + $0xcc] sm:$0x1] %vm230, 0
      %v376 = vld [vmem:[%s269 + $0xd8] sm:$0xc]
      %v377 = vsel %vm323, 0, %v376
      %378 = vst [vmem:[%s269 + $0xd8] sm:$0xc] %v377
      %379 = vst.msk [vmem:[%s269 + $0xdc] sm:$0x1] %vm230, 0
      %v380 = vld [vmem:[%s269 + $0xe8] sm:$0xc]
      %v381 = vsel %vm323, 0, %v380
      %382 = vst [vmem:[%s269 + $0xe8] sm:$0xc] %v381
      %383 = vst.msk [vmem:[%s269 + $0xec] sm:$0x1] %vm230, 0
      %v384 = vld [vmem:[%s269 + $0xf8] sm:$0xc]
      %v385 = vsel %vm323, 0, %v384
      %386 = vst [vmem:[%s269 + $0xf8] sm:$0xc] %v385
      %387 = vst.msk [vmem:[%s269 + $0xfc] sm:$0x1] %vm230, 0
      %v388 = vld [vmem:[%s219] sm:$0xf]
      %v389 = vld [vmem:[%s219 + $0x4] sm:$0xf]
      %v390 = vld [vmem:[%s219 + $0x8] sm:$0xf]
      %v391 = vld [vmem:[%s219 + $0xc] sm:$0xf]
      %v392 = vld [vmem:[%s219 + $0x10] sm:$0xf]
      %v393 = vld [vmem:[%s219 + $0x14] sm:$0xf]
      %v394 = vld [vmem:[%s219 + $0x18] sm:$0xf]
      %v395 = vld [vmem:[%s219 + $0x1c] sm:$0xf]
      %v396 = vld [vmem:[%s219 + $0x20] sm:$0xf]
      %v397 = vld [vmem:[%s219 + $0x24] sm:$0xf]
      %v398 = vld [vmem:[%s219 + $0x28] sm:$0xf]
      %v399 = vld [vmem:[%s219 + $0x2c] sm:$0xf]
      %v400 = vld [vmem:[%s219 + $0x30] sm:$0xf]
      %v401 = vld [vmem:[%s219 + $0x34] sm:$0xf]
      %v402 = vld [vmem:[%s219 + $0x38] sm:$0xf]
      %v403 = vld [vmem:[%s219 + $0x3c] sm:$0xf]
      %v404 = vld [vmem:[%s219 + $0x40] sm:$0xf]
      %v405 = vld [vmem:[%s219 + $0x44] sm:$0xf]
      %v406 = vld [vmem:[%s219 + $0x48] sm:$0xf]
      %v407 = vld [vmem:[%s219 + $0x4c] sm:$0xf]
      %v408 = vld [vmem:[%s219 + $0x50] sm:$0xf]
      %v409 = vld [vmem:[%s219 + $0x54] sm:$0xf]
      %v410 = vld [vmem:[%s219 + $0x58] sm:$0xf]
      %v411 = vld [vmem:[%s219 + $0x5c] sm:$0xf]
      %v412 = vld [vmem:[%s219 + $0x60] sm:$0xf]
      %v413 = vld [vmem:[%s219 + $0x64] sm:$0xf]
      %v414 = vld [vmem:[%s219 + $0x68] sm:$0xf]
      %v415 = vld [vmem:[%s219 + $0x6c] sm:$0xf]
      %v416 = vld [vmem:[%s219 + $0x70] sm:$0xf]
      %v417 = vld [vmem:[%s219 + $0x74] sm:$0xf]
      %v418 = vld [vmem:[%s219 + $0x78] sm:$0xf]
      %v419 = vld [vmem:[%s219 + $0x7c] sm:$0xf]
      %vm420 = vsmask.f32 6416
      %vm421 = vmor %vm271, %vm420
      %v423 = vshrl.u32 %v388, 16
      %v425 = vrot.slane %v423, 5
      %v426 = vshll.u32 %v388, 16
      %v428 = vrot.slane %v426, 6
      %v429 = vor.u32 %v425, %v428
      %v430 = vrot.slane %v429, 4
      %v432 = vshrl.u32 %v389, 16
      %v434 = vrot.slane %v432, 5
      %v435 = vshll.u32 %v389, 16
      %v437 = vrot.slane %v435, 6
      %v438 = vor.u32 %v434, %v437
      %v439 = vsel %vm421, %v430, %v438
      %v440 = vrot.slane %v438, 4
      %v442 = vshrl.u32 %v390, 16
      %v444 = vrot.slane %v442, 5
      %v445 = vshll.u32 %v390, 16
      %v447 = vrot.slane %v445, 6
      %v448 = vor.u32 %v444, %v447
      %v449 = vrot.slane %v448, 4
      %v451 = vshrl.u32 %v391, 16
      %v453 = vrot.slane %v451, 5
      %v454 = vshll.u32 %v391, 16
      %v456 = vrot.slane %v454, 6
      %v457 = vor.u32 %v453, %v456
      %v458 = vsel %vm421, %v449, %v457
      %v459 = vrot.slane %v457, 4
      %v461 = vshrl.u32 %v392, 16
      %v463 = vrot.slane %v461, 5
      %v464 = vshll.u32 %v392, 16
      %v466 = vrot.slane %v464, 6
      %v467 = vor.u32 %v463, %v466
      %v468 = vrot.slane %v467, 4
      %v470 = vshrl.u32 %v393, 16
      %v472 = vrot.slane %v470, 5
      %v473 = vshll.u32 %v393, 16
      %v475 = vrot.slane %v473, 6
      %v476 = vor.u32 %v472, %v475
      %v477 = vsel %vm421, %v468, %v476
      %v478 = vrot.slane %v476, 4
      %v480 = vshrl.u32 %v394, 16
      %v482 = vrot.slane %v480, 5
      %v483 = vshll.u32 %v394, 16
      %v485 = vrot.slane %v483, 6
      %v486 = vor.u32 %v482, %v485
      %v487 = vrot.slane %v486, 4
      %v489 = vshrl.u32 %v395, 16
      %v491 = vrot.slane %v489, 5
      %v492 = vshll.u32 %v395, 16
      %v494 = vrot.slane %v492, 6
      %v495 = vor.u32 %v491, %v494
      %v496 = vsel %vm421, %v487, %v495
      %v497 = vrot.slane %v495, 4
      %v499 = vshrl.u32 %v396, 16
      %v501 = vrot.slane %v499, 5
      %v502 = vshll.u32 %v396, 16
      %v504 = vrot.slane %v502, 6
      %v505 = vor.u32 %v501, %v504
      %v506 = vrot.slane %v505, 4
      %v508 = vshrl.u32 %v397, 16
      %v510 = vrot.slane %v508, 5
      %v511 = vshll.u32 %v397, 16
      %v513 = vrot.slane %v511, 6
      %v514 = vor.u32 %v510, %v513
      %v515 = vsel %vm421, %v506, %v514
      %v516 = vrot.slane %v514, 4
      %v518 = vshrl.u32 %v398, 16
      %v520 = vrot.slane %v518, 5
      %v521 = vshll.u32 %v398, 16
      %v523 = vrot.slane %v521, 6
      %v524 = vor.u32 %v520, %v523
      %v525 = vrot.slane %v524, 4
      %v527 = vshrl.u32 %v399, 16
      %v529 = vrot.slane %v527, 5
      %v530 = vshll.u32 %v399, 16
      %v532 = vrot.slane %v530, 6
      %v533 = vor.u32 %v529, %v532
      %v534 = vsel %vm421, %v525, %v533
      %v535 = vrot.slane %v533, 4
      %v537 = vshrl.u32 %v400, 16
      %v539 = vrot.slane %v537, 5
      %v540 = vshll.u32 %v400, 16
      %v542 = vrot.slane %v540, 6
      %v543 = vor.u32 %v539, %v542
      %v544 = vrot.slane %v543, 4
      %v546 = vshrl.u32 %v401, 16
      %v548 = vrot.slane %v546, 5
      %v549 = vshll.u32 %v401, 16
      %v551 = vrot.slane %v549, 6
      %v552 = vor.u32 %v548, %v551
      %v553 = vsel %vm421, %v544, %v552
      %v554 = vrot.slane %v552, 4
      %v556 = vshrl.u32 %v402, 16
      %v558 = vrot.slane %v556, 5
      %v559 = vshll.u32 %v402, 16
      %v561 = vrot.slane %v559, 6
      %v562 = vor.u32 %v558, %v561
      %v563 = vrot.slane %v562, 4
      %v565 = vshrl.u32 %v403, 16
      %v567 = vrot.slane %v565, 5
      %v568 = vshll.u32 %v403, 16
      %v570 = vrot.slane %v568, 6
      %v571 = vor.u32 %v567, %v570
      %v572 = vsel %vm421, %v563, %v571
      %v573 = vrot.slane %v571, 4
      %v575 = vshrl.u32 %v404, 16
      %v577 = vrot.slane %v575, 5
      %v578 = vshll.u32 %v404, 16
      %v580 = vrot.slane %v578, 6
      %v581 = vor.u32 %v577, %v580
      %v582 = vrot.slane %v581, 4
      %v584 = vshrl.u32 %v405, 16
      %v586 = vrot.slane %v584, 5
      %v587 = vshll.u32 %v405, 16
      %v589 = vrot.slane %v587, 6
      %v590 = vor.u32 %v586, %v589
      %v591 = vsel %vm421, %v582, %v590
      %v592 = vrot.slane %v590, 4
      %v594 = vshrl.u32 %v406, 16
      %v596 = vrot.slane %v594, 5
      %v597 = vshll.u32 %v406, 16
      %v599 = vrot.slane %v597, 6
      %v600 = vor.u32 %v596, %v599
      %v601 = vrot.slane %v600, 4
      %v603 = vshrl.u32 %v407, 16
      %v605 = vrot.slane %v603, 5
      %v606 = vshll.u32 %v407, 16
      %v608 = vrot.slane %v606, 6
      %v609 = vor.u32 %v605, %v608
      %v610 = vsel %vm421, %v601, %v609
      %v611 = vrot.slane %v609, 4
      %v613 = vshrl.u32 %v408, 16
      %v615 = vrot.slane %v613, 5
      %v616 = vshll.u32 %v408, 16
      %v618 = vrot.slane %v616, 6
      %v619 = vor.u32 %v615, %v618
      %v620 = vrot.slane %v619, 4
      %v622 = vshrl.u32 %v409, 16
      %v624 = vrot.slane %v622, 5
      %v625 = vshll.u32 %v409, 16
      %v627 = vrot.slane %v625, 6
      %v628 = vor.u32 %v624, %v627
      %v629 = vsel %vm421, %v620, %v628
      %v630 = vrot.slane %v628, 4
      %v632 = vshrl.u32 %v410, 16
      %v634 = vrot.slane %v632, 5
      %v635 = vshll.u32 %v410, 16
      %v637 = vrot.slane %v635, 6
      %v638 = vor.u32 %v634, %v637
      %v639 = vrot.slane %v638, 4
      %v641 = vshrl.u32 %v411, 16
      %v643 = vrot.slane %v641, 5
      %v644 = vshll.u32 %v411, 16
      %v646 = vrot.slane %v644, 6
      %v647 = vor.u32 %v643, %v646
      %v648 = vsel %vm421, %v639, %v647
      %v649 = vrot.slane %v647, 4
      %v651 = vshrl.u32 %v412, 16
      %v653 = vrot.slane %v651, 5
      %v654 = vshll.u32 %v412, 16
      %v656 = vrot.slane %v654, 6
      %v657 = vor.u32 %v653, %v656
      %v658 = vrot.slane %v657, 4
      %v660 = vshrl.u32 %v413, 16
      %v662 = vrot.slane %v660, 5
      %v663 = vshll.u32 %v413, 16
      %v665 = vrot.slane %v663, 6
      %v666 = vor.u32 %v662, %v665
      %v667 = vsel %vm421, %v658, %v666
      %v668 = vrot.slane %v666, 4
      %v670 = vshrl.u32 %v414, 16
      %v672 = vrot.slane %v670, 5
      %v673 = vshll.u32 %v414, 16
      %v675 = vrot.slane %v673, 6
      %v676 = vor.u32 %v672, %v675
      %v677 = vrot.slane %v676, 4
      %v679 = vshrl.u32 %v415, 16
      %v681 = vrot.slane %v679, 5
      %v682 = vshll.u32 %v415, 16
      %v684 = vrot.slane %v682, 6
      %v685 = vor.u32 %v681, %v684
      %v686 = vsel %vm421, %v677, %v685
      %v687 = vrot.slane %v685, 4
      %v689 = vshrl.u32 %v416, 16
      %v691 = vrot.slane %v689, 5
      %v692 = vshll.u32 %v416, 16
      %v694 = vrot.slane %v692, 6
      %v695 = vor.u32 %v691, %v694
      %v696 = vrot.slane %v695, 4
      %v698 = vshrl.u32 %v417, 16
      %v700 = vrot.slane %v698, 5
      %v701 = vshll.u32 %v417, 16
      %v703 = vrot.slane %v701, 6
      %v704 = vor.u32 %v700, %v703
      %v705 = vsel %vm421, %v696, %v704
      %v706 = vrot.slane %v704, 4
      %v708 = vshrl.u32 %v418, 16
      %v710 = vrot.slane %v708, 5
      %v711 = vshll.u32 %v418, 16
      %v713 = vrot.slane %v711, 6
      %v714 = vor.u32 %v710, %v713
      %v715 = vrot.slane %v714, 4
      %v717 = vshrl.u32 %v419, 16
      %v719 = vrot.slane %v717, 5
      %v720 = vshll.u32 %v419, 16
      %v722 = vrot.slane %v720, 6
      %v723 = vor.u32 %v719, %v722
      %v724 = vsel %vm421, %v715, %v723
      %v725 = vrot.slane %v723, 4
      %v774 = vld [vmem:[%s269] sm:$0xc]
      %v775 = vsel %vm323, %v429, %v774
      %776 = vst [vmem:[%s269] sm:$0xc] %v775
      %777 = vst.msk [vmem:[%s269 + $0x4] sm:$0xf] %vm226, %v439
      %v778 = vld [vmem:[%s269 + $0x8] sm:$0x7]
      %v779 = vsel %vm272, %v440, %v778
      %780 = vst [vmem:[%s269 + $0x8] sm:$0x7] %v779
      %v781 = vld [vmem:[%s269 + $0x10] sm:$0xc]
      %v782 = vsel %vm323, %v448, %v781
      %783 = vst [vmem:[%s269 + $0x10] sm:$0xc] %v782
      %784 = vst.msk [vmem:[%s269 + $0x14] sm:$0xf] %vm226, %v458
      %v785 = vld [vmem:[%s269 + $0x18] sm:$0x7]
      %v786 = vsel %vm272, %v459, %v785
      %787 = vst [vmem:[%s269 + $0x18] sm:$0x7] %v786
      %v788 = vld [vmem:[%s269 + $0x20] sm:$0xc]
      %v789 = vsel %vm323, %v467, %v788
      %790 = vst [vmem:[%s269 + $0x20] sm:$0xc] %v789
      %791 = vst.msk [vmem:[%s269 + $0x24] sm:$0xf] %vm226, %v477
      %v792 = vld [vmem:[%s269 + $0x28] sm:$0x7]
      %v793 = vsel %vm272, %v478, %v792
      %794 = vst [vmem:[%s269 + $0x28] sm:$0x7] %v793
      %v795 = vld [vmem:[%s269 + $0x30] sm:$0xc]
      %v796 = vsel %vm323, %v486, %v795
      %797 = vst [vmem:[%s269 + $0x30] sm:$0xc] %v796
      %798 = vst.msk [vmem:[%s269 + $0x34] sm:$0xf] %vm226, %v496
      %v799 = vld [vmem:[%s269 + $0x38] sm:$0x7]
      %v800 = vsel %vm272, %v497, %v799
      %801 = vst [vmem:[%s269 + $0x38] sm:$0x7] %v800
      %v802 = vld [vmem:[%s269 + $0x40] sm:$0xc]
      %v803 = vsel %vm323, %v505, %v802
      %804 = vst [vmem:[%s269 + $0x40] sm:$0xc] %v803
      %805 = vst.msk [vmem:[%s269 + $0x44] sm:$0xf] %vm226, %v515
      %v806 = vld [vmem:[%s269 + $0x48] sm:$0x7]
      %v807 = vsel %vm272, %v516, %v806
      %808 = vst [vmem:[%s269 + $0x48] sm:$0x7] %v807
      %v809 = vld [vmem:[%s269 + $0x50] sm:$0xc]
      %v810 = vsel %vm323, %v524, %v809
      %811 = vst [vmem:[%s269 + $0x50] sm:$0xc] %v810
      %812 = vst.msk [vmem:[%s269 + $0x54] sm:$0xf] %vm226, %v534
      %v813 = vld [vmem:[%s269 + $0x58] sm:$0x7]
      %v814 = vsel %vm272, %v535, %v813
      %815 = vst [vmem:[%s269 + $0x58] sm:$0x7] %v814
      %v816 = vld [vmem:[%s269 + $0x60] sm:$0xc]
      %v817 = vsel %vm323, %v543, %v816
      %818 = vst [vmem:[%s269 + $0x60] sm:$0xc] %v817
      %819 = vst.msk [vmem:[%s269 + $0x64] sm:$0xf] %vm226, %v553
      %v820 = vld [vmem:[%s269 + $0x68] sm:$0x7]
      %v821 = vsel %vm272, %v554, %v820
      %822 = vst [vmem:[%s269 + $0x68] sm:$0x7] %v821
      %v823 = vld [vmem:[%s269 + $0x70] sm:$0xc]
      %v824 = vsel %vm323, %v562, %v823
      %825 = vst [vmem:[%s269 + $0x70] sm:$0xc] %v824
      %826 = vst.msk [vmem:[%s269 + $0x74] sm:$0xf] %vm226, %v572
      %v827 = vld [vmem:[%s269 + $0x78] sm:$0x7]
      %v828 = vsel %vm272, %v573, %v827
      %829 = vst [vmem:[%s269 + $0x78] sm:$0x7] %v828
      %v830 = vld [vmem:[%s269 + $0x80] sm:$0xc]
      %v831 = vsel %vm323, %v581, %v830
      %832 = vst [vmem:[%s269 + $0x80] sm:$0xc] %v831
      %833 = vst.msk [vmem:[%s269 + $0x84] sm:$0xf] %vm226, %v591
      %v834 = vld [vmem:[%s269 + $0x88] sm:$0x7]
      %v835 = vsel %vm272, %v592, %v834
      %836 = vst [vmem:[%s269 + $0x88] sm:$0x7] %v835
      %v837 = vld [vmem:[%s269 + $0x90] sm:$0xc]
      %v838 = vsel %vm323, %v600, %v837
      %839 = vst [vmem:[%s269 + $0x90] sm:$0xc] %v838
      %840 = vst.msk [vmem:[%s269 + $0x94] sm:$0xf] %vm226, %v610
      %v841 = vld [vmem:[%s269 + $0x98] sm:$0x7]
      %v842 = vsel %vm272, %v611, %v841
      %843 = vst [vmem:[%s269 + $0x98] sm:$0x7] %v842
      %v844 = vld [vmem:[%s269 + $0xa0] sm:$0xc]
      %v845 = vsel %vm323, %v619, %v844
      %846 = vst [vmem:[%s269 + $0xa0] sm:$0xc] %v845
      %847 = vst.msk [vmem:[%s269 + $0xa4] sm:$0xf] %vm226, %v629
      %v848 = vld [vmem:[%s269 + $0xa8] sm:$0x7]
      %v849 = vsel %vm272, %v630, %v848
      %850 = vst [vmem:[%s269 + $0xa8] sm:$0x7] %v849
      %v851 = vld [vmem:[%s269 + $0xb0] sm:$0xc]
      %v852 = vsel %vm323, %v638, %v851
      %853 = vst [vmem:[%s269 + $0xb0] sm:$0xc] %v852
      %854 = vst.msk [vmem:[%s269 + $0xb4] sm:$0xf] %vm226, %v648
      %v855 = vld [vmem:[%s269 + $0xb8] sm:$0x7]
      %v856 = vsel %vm272, %v649, %v855
      %857 = vst [vmem:[%s269 + $0xb8] sm:$0x7] %v856
      %v858 = vld [vmem:[%s269 + $0xc0] sm:$0xc]
      %v859 = vsel %vm323, %v657, %v858
      %860 = vst [vmem:[%s269 + $0xc0] sm:$0xc] %v859
      %861 = vst.msk [vmem:[%s269 + $0xc4] sm:$0xf] %vm226, %v667
      %v862 = vld [vmem:[%s269 + $0xc8] sm:$0x7]
      %v863 = vsel %vm272, %v668, %v862
      %864 = vst [vmem:[%s269 + $0xc8] sm:$0x7] %v863
      %v865 = vld [vmem:[%s269 + $0xd0] sm:$0xc]
      %v866 = vsel %vm323, %v676, %v865
      %867 = vst [vmem:[%s269 + $0xd0] sm:$0xc] %v866
      %868 = vst.msk [vmem:[%s269 + $0xd4] sm:$0xf] %vm226, %v686
      %v869 = vld [vmem:[%s269 + $0xd8] sm:$0x7]
      %v870 = vsel %vm272, %v687, %v869
      %871 = vst [vmem:[%s269 + $0xd8] sm:$0x7] %v870
      %v872 = vld [vmem:[%s269 + $0xe0] sm:$0xc]
      %v873 = vsel %vm323, %v695, %v872
      %874 = vst [vmem:[%s269 + $0xe0] sm:$0xc] %v873
      %875 = vst.msk [vmem:[%s269 + $0xe4] sm:$0xf] %vm226, %v705
      %v876 = vld [vmem:[%s269 + $0xe8] sm:$0x7]
      %v877 = vsel %vm272, %v706, %v876
      %878 = vst [vmem:[%s269 + $0xe8] sm:$0x7] %v877
      %v879 = vld [vmem:[%s269 + $0xf0] sm:$0xc]
      %v880 = vsel %vm323, %v714, %v879
      %881 = vst [vmem:[%s269 + $0xf0] sm:$0xc] %v880
      %882 = vst.msk [vmem:[%s269 + $0xf4] sm:$0xf] %vm226, %v724
      %v883 = vld [vmem:[%s269 + $0xf8] sm:$0x7]
      %v884 = vsel %vm272, %v725, %v883
      %885 = vst [vmem:[%s269 + $0xf8] sm:$0x7] %v884
      %v886 = vld [vmem:[#allocation2] sm:$0xc]
      %v887 = vld [vmem:[#allocation2 + $0x4] sm:$0xf]
      %v888 = vld [vmem:[#allocation2 + $0x8] sm:$0x3]
      %v889 = vld [vmem:[#allocation2 + $0x10] sm:$0xc]
      %v890 = vld [vmem:[#allocation2 + $0x14] sm:$0xf]
      %v891 = vld [vmem:[#allocation2 + $0x18] sm:$0x3]
      %v892 = vld [vmem:[#allocation2 + $0x20] sm:$0xc]
      %v893 = vld [vmem:[#allocation2 + $0x24] sm:$0xf]
      %v894 = vld [vmem:[#allocation2 + $0x28] sm:$0x3]
      %v895 = vld [vmem:[#allocation2 + $0x30] sm:$0xc]
      %v896 = vld [vmem:[#allocation2 + $0x34] sm:$0xf]
      %v897 = vld [vmem:[#allocation2 + $0x38] sm:$0x3]
      %v898 = vld [vmem:[#allocation2 + $0x40] sm:$0xc]
      %v899 = vld [vmem:[#allocation2 + $0x44] sm:$0xf]
      %v900 = vld [vmem:[#allocation2 + $0x48] sm:$0x3]
      %v901 = vld [vmem:[#allocation2 + $0x50] sm:$0xc]
      %v902 = vld [vmem:[#allocation2 + $0x54] sm:$0xf]
      %v903 = vld [vmem:[#allocation2 + $0x58] sm:$0x3]
      %v904 = vld [vmem:[#allocation2 + $0x60] sm:$0xc]
      %v905 = vld [vmem:[#allocation2 + $0x64] sm:$0xf]
      %v906 = vld [vmem:[#allocation2 + $0x68] sm:$0x3]
      %v907 = vld [vmem:[#allocation2 + $0x70] sm:$0xc]
      %v908 = vld [vmem:[#allocation2 + $0x74] sm:$0xf]
      %v909 = vld [vmem:[#allocation2 + $0x78] sm:$0x3]
      %v910 = vld [vmem:[#allocation2 + $0x80] sm:$0xc]
      %v911 = vld [vmem:[#allocation2 + $0x84] sm:$0xf]
      %v912 = vld [vmem:[#allocation2 + $0x88] sm:$0x3]
      %v913 = vld [vmem:[#allocation2 + $0x90] sm:$0xc]
      %v914 = vld [vmem:[#allocation2 + $0x94] sm:$0xf]
      %v915 = vld [vmem:[#allocation2 + $0x98] sm:$0x3]
      %v916 = vld [vmem:[#allocation2 + $0xa0] sm:$0xc]
      %v917 = vld [vmem:[#allocation2 + $0xa4] sm:$0xf]
      %v918 = vld [vmem:[#allocation2 + $0xa8] sm:$0x3]
      %v919 = vld [vmem:[#allocation2 + $0xb0] sm:$0xc]
      %v920 = vld [vmem:[#allocation2 + $0xb4] sm:$0xf]
      %v921 = vld [vmem:[#allocation2 + $0xb8] sm:$0x3]
      %v922 = vld [vmem:[#allocation2 + $0xc0] sm:$0xc]
      %v923 = vld [vmem:[#allocation2 + $0xc4] sm:$0xf]
      %v924 = vld [vmem:[#allocation2 + $0xc8] sm:$0x3]
      %v925 = vld [vmem:[#allocation2 + $0xd0] sm:$0xc]
      %v926 = vld [vmem:[#allocation2 + $0xd4] sm:$0xf]
      %v927 = vld [vmem:[#allocation2 + $0xd8] sm:$0x3]
      %v928 = vld [vmem:[#allocation2 + $0xe0] sm:$0xc]
      %v929 = vld [vmem:[#allocation2 + $0xe4] sm:$0xf]
      %v930 = vld [vmem:[#allocation2 + $0xe8] sm:$0x3]
      %v931 = vld [vmem:[#allocation2 + $0xf0] sm:$0xc]
      %v932 = vld [vmem:[#allocation2 + $0xf4] sm:$0xf]
      %v933 = vld [vmem:[#allocation2 + $0xf8] sm:$0x3]
      %v934 = vld [vmem:[#allocation2 + $0x100] sm:$0xc]
      %v935 = vld [vmem:[#allocation2 + $0x104] sm:$0xf]
      %v936 = vld [vmem:[#allocation2 + $0x108] sm:$0x3]
      %v937 = vld [vmem:[#allocation2 + $0x110] sm:$0xc]
      %v938 = vld [vmem:[#allocation2 + $0x114] sm:$0xf]
      %v939 = vld [vmem:[#allocation2 + $0x118] sm:$0x3]
      %v940 = vld [vmem:[#allocation2 + $0x120] sm:$0xc]
      %v941 = vld [vmem:[#allocation2 + $0x124] sm:$0xf]
      %v942 = vld [vmem:[#allocation2 + $0x128] sm:$0x3]
      %v943 = vld [vmem:[#allocation2 + $0x130] sm:$0xc]
      %v944 = vld [vmem:[#allocation2 + $0x134] sm:$0xf]
      %v945 = vld [vmem:[#allocation2 + $0x138] sm:$0x3]
      %v946 = vld [vmem:[#allocation2 + $0x140] sm:$0xc]
      %v947 = vld [vmem:[#allocation2 + $0x144] sm:$0xf]
      %v948 = vld [vmem:[#allocation2 + $0x148] sm:$0x3]
      %v949 = vld [vmem:[#allocation2 + $0x150] sm:$0xc]
      %v950 = vld [vmem:[#allocation2 + $0x154] sm:$0xf]
      %v951 = vld [vmem:[#allocation2 + $0x158] sm:$0x3]
      %v952 = vld [vmem:[#allocation2 + $0x160] sm:$0xc]
      %v953 = vld [vmem:[#allocation2 + $0x164] sm:$0xf]
      %v954 = vld [vmem:[#allocation2 + $0x168] sm:$0x3]
      %v955 = vld [vmem:[#allocation2 + $0x170] sm:$0xc]
      %v956 = vld [vmem:[#allocation2 + $0x174] sm:$0xf]
      %v957 = vld [vmem:[#allocation2 + $0x178] sm:$0x3]
      %v958 = vld [vmem:[#allocation2 + $0x180] sm:$0xc]
      %v959 = vld [vmem:[#allocation2 + $0x184] sm:$0xf]
      %v960 = vld [vmem:[#allocation2 + $0x188] sm:$0x3]
      %v961 = vld [vmem:[#allocation2 + $0x190] sm:$0xc]
      %v962 = vld [vmem:[#allocation2 + $0x194] sm:$0xf]
      %v963 = vld [vmem:[#allocation2 + $0x198] sm:$0x3]
      %vm1042 = vcmask 1041408
      %vm1043 = vcmask 1045508
      %vm1044 = vmor %vm1042, %vm1043
      %v1045 = vrot.slane %v886, 6
      %v1046 = vrot.slane %v1045, 4
      %v1047 = vrot.slane %v887, 6
      %v1048 = vsel %vm1044, %v1046, %v1047
      %v1049 = vrot.slane %v1047, 4
      %v1050 = vrot.slane %v888, 6
      %v1051 = vsel %vm1044, %v1049, %v1050
      %v1052 = vrot.slane %v889, 6
      %v1053 = vrot.slane %v1052, 4
      %v1054 = vrot.slane %v890, 6
      %v1055 = vsel %vm1044, %v1053, %v1054
      %v1056 = vrot.slane %v1054, 4
      %v1057 = vrot.slane %v891, 6
      %v1058 = vsel %vm1044, %v1056, %v1057
      %v1059 = vrot.slane %v892, 6
      %v1060 = vrot.slane %v1059, 4
      %v1061 = vrot.slane %v893, 6
      %v1062 = vsel %vm1044, %v1060, %v1061
      %v1063 = vrot.slane %v1061, 4
      %v1064 = vrot.slane %v894, 6
      %v1065 = vsel %vm1044, %v1063, %v1064
      %v1066 = vrot.slane %v895, 6
      %v1067 = vrot.slane %v1066, 4
      %v1068 = vrot.slane %v896, 6
      %v1069 = vsel %vm1044, %v1067, %v1068
      %v1070 = vrot.slane %v1068, 4
      %v1071 = vrot.slane %v897, 6
      %v1072 = vsel %vm1044, %v1070, %v1071
      %v1073 = vrot.slane %v898, 6
      %v1074 = vrot.slane %v1073, 4
      %v1075 = vrot.slane %v899, 6
      %v1076 = vsel %vm1044, %v1074, %v1075
      %v1077 = vrot.slane %v1075, 4
      %v1078 = vrot.slane %v900, 6
      %v1079 = vsel %vm1044, %v1077, %v1078
      %v1080 = vrot.slane %v901, 6
      %v1081 = vrot.slane %v1080, 4
      %v1082 = vrot.slane %v902, 6
      %v1083 = vsel %vm1044, %v1081, %v1082
      %v1084 = vrot.slane %v1082, 4
      %v1085 = vrot.slane %v903, 6
      %v1086 = vsel %vm1044, %v1084, %v1085
      %v1087 = vrot.slane %v904, 6
      %v1088 = vrot.slane %v1087, 4
      %v1089 = vrot.slane %v905, 6
      %v1090 = vsel %vm1044, %v1088, %v1089
      %v1091 = vrot.slane %v1089, 4
      %v1092 = vrot.slane %v906, 6
      %v1093 = vsel %vm1044, %v1091, %v1092
      %v1094 = vrot.slane %v907, 6
      %v1095 = vrot.slane %v1094, 4
      %v1096 = vrot.slane %v908, 6
      %v1097 = vsel %vm1044, %v1095, %v1096
      %v1098 = vrot.slane %v1096, 4
      %v1099 = vrot.slane %v909, 6
      %v1100 = vsel %vm1044, %v1098, %v1099
      %v1101 = vrot.slane %v910, 6
      %v1102 = vrot.slane %v1101, 4
      %v1103 = vrot.slane %v911, 6
      %v1104 = vsel %vm1044, %v1102, %v1103
      %v1105 = vrot.slane %v1103, 4
      %v1106 = vrot.slane %v912, 6
      %v1107 = vsel %vm1044, %v1105, %v1106
      %v1108 = vrot.slane %v913, 6
      %v1109 = vrot.slane %v1108, 4
      %v1110 = vrot.slane %v914, 6
      %v1111 = vsel %vm1044, %v1109, %v1110
      %v1112 = vrot.slane %v1110, 4
      %v1113 = vrot.slane %v915, 6
      %v1114 = vsel %vm1044, %v1112, %v1113
      %v1115 = vrot.slane %v916, 6
      %v1116 = vrot.slane %v1115, 4
      %v1117 = vrot.slane %v917, 6
      %v1118 = vsel %vm1044, %v1116, %v1117
      %v1119 = vrot.slane %v1117, 4
      %v1120 = vrot.slane %v918, 6
      %v1121 = vsel %vm1044, %v1119, %v1120
      %v1122 = vrot.slane %v919, 6
      %v1123 = vrot.slane %v1122, 4
      %v1124 = vrot.slane %v920, 6
      %v1125 = vsel %vm1044, %v1123, %v1124
      %v1126 = vrot.slane %v1124, 4
      %v1127 = vrot.slane %v921, 6
      %v1128 = vsel %vm1044, %v1126, %v1127
      %v1129 = vrot.slane %v922, 6
      %v1130 = vrot.slane %v1129, 4
      %v1131 = vrot.slane %v923, 6
      %v1132 = vsel %vm1044, %v1130, %v1131
      %v1133 = vrot.slane %v1131, 4
      %v1134 = vrot.slane %v924, 6
      %v1135 = vsel %vm1044, %v1133, %v1134
      %v1136 = vrot.slane %v925, 6
      %v1137 = vrot.slane %v1136, 4
      %v1138 = vrot.slane %v926, 6
      %v1139 = vsel %vm1044, %v1137, %v1138
      %v1140 = vrot.slane %v1138, 4
      %v1141 = vrot.slane %v927, 6
      %v1142 = vsel %vm1044, %v1140, %v1141
      %v1143 = vrot.slane %v928, 6
      %v1144 = vrot.slane %v1143, 4
      %v1145 = vrot.slane %v929, 6
      %v1146 = vsel %vm1044, %v1144, %v1145
      %v1147 = vrot.slane %v1145, 4
      %v1148 = vrot.slane %v930, 6
      %v1149 = vsel %vm1044, %v1147, %v1148
      %v1150 = vrot.slane %v931, 6
      %v1151 = vrot.slane %v1150, 4
      %v1152 = vrot.slane %v932, 6
      %v1153 = vsel %vm1044, %v1151, %v1152
      %v1154 = vrot.slane %v1152, 4
      %v1155 = vrot.slane %v933, 6
      %v1156 = vsel %vm1044, %v1154, %v1155
      %v1157 = vrot.slane %v934, 6
      %v1158 = vrot.slane %v1157, 4
      %v1159 = vrot.slane %v935, 6
      %v1160 = vsel %vm1044, %v1158, %v1159
      %v1161 = vrot.slane %v1159, 4
      %v1162 = vrot.slane %v936, 6
      %v1163 = vsel %vm1044, %v1161, %v1162
      %v1164 = vrot.slane %v937, 6
      %v1165 = vrot.slane %v1164, 4
      %v1166 = vrot.slane %v938, 6
      %v1167 = vsel %vm1044, %v1165, %v1166
      %v1168 = vrot.slane %v1166, 4
      %v1169 = vrot.slane %v939, 6
      %v1170 = vsel %vm1044, %v1168, %v1169
      %v1171 = vrot.slane %v940, 6
      %v1172 = vrot.slane %v1171, 4
      %v1173 = vrot.slane %v941, 6
      %v1174 = vsel %vm1044, %v1172, %v1173
      %v1175 = vrot.slane %v1173, 4
      %v1176 = vrot.slane %v942, 6
      %v1177 = vsel %vm1044, %v1175, %v1176
      %v1178 = vrot.slane %v943, 6
      %v1179 = vrot.slane %v1178, 4
      %v1180 = vrot.slane %v944, 6
      %v1181 = vsel %vm1044, %v1179, %v1180
      %v1182 = vrot.slane %v1180, 4
      %v1183 = vrot.slane %v945, 6
      %v1184 = vsel %vm1044, %v1182, %v1183
      %v1185 = vrot.slane %v946, 6
      %v1186 = vrot.slane %v1185, 4
      %v1187 = vrot.slane %v947, 6
      %v1188 = vsel %vm1044, %v1186, %v1187
      %v1189 = vrot.slane %v1187, 4
      %v1190 = vrot.slane %v948, 6
      %v1191 = vsel %vm1044, %v1189, %v1190
      %v1192 = vrot.slane %v949, 6
      %v1193 = vrot.slane %v1192, 4
      %v1194 = vrot.slane %v950, 6
      %v1195 = vsel %vm1044, %v1193, %v1194
      %v1196 = vrot.slane %v1194, 4
      %v1197 = vrot.slane %v951, 6
      %v1198 = vsel %vm1044, %v1196, %v1197
      %v1199 = vrot.slane %v952, 6
      %v1200 = vrot.slane %v1199, 4
      %v1201 = vrot.slane %v953, 6
      %v1202 = vsel %vm1044, %v1200, %v1201
      %v1203 = vrot.slane %v1201, 4
      %v1204 = vrot.slane %v954, 6
      %v1205 = vsel %vm1044, %v1203, %v1204
      %v1206 = vrot.slane %v955, 6
      %v1207 = vrot.slane %v1206, 4
      %v1208 = vrot.slane %v956, 6
      %v1209 = vsel %vm1044, %v1207, %v1208
      %v1210 = vrot.slane %v1208, 4
      %v1211 = vrot.slane %v957, 6
      %v1212 = vsel %vm1044, %v1210, %v1211
      %v1213 = vrot.slane %v958, 6
      %v1214 = vrot.slane %v1213, 4
      %v1215 = vrot.slane %v959, 6
      %v1216 = vsel %vm1044, %v1214, %v1215
      %v1217 = vrot.slane %v1215, 4
      %v1218 = vrot.slane %v960, 6
      %v1219 = vsel %vm1044, %v1217, %v1218
      %v1220 = vrot.slane %v961, 6
      %v1221 = vrot.slane %v1220, 4
      %v1222 = vrot.slane %v962, 6
      %v1223 = vsel %vm1044, %v1221, %v1222
      %v1224 = vrot.slane %v1222, 4
      %v1225 = vrot.slane %v963, 6
      %v1226 = vsel %vm1044, %v1224, %v1225
      %1279 = vst.msk [vmem:[#allocation3] sm:$0xf] %vm226, %v1048
      %1280 = vst.msk [vmem:[#allocation3 + $0x4] sm:$0xf] %vm226, %v1051
      %1281 = vst.msk [vmem:[#allocation3 + $0x8] sm:$0xf] %vm226, %v1055
      %1282 = vst.msk [vmem:[#allocation3 + $0xc] sm:$0xf] %vm226, %v1058
      %1283 = vst.msk [vmem:[#allocation3 + $0x10] sm:$0xf] %vm226, %v1062
      %1284 = vst.msk [vmem:[#allocation3 + $0x14] sm:$0xf] %vm226, %v1065
      %1285 = vst.msk [vmem:[#allocation3 + $0x18] sm:$0xf] %vm226, %v1069
      %1286 = vst.msk [vmem:[#allocation3 + $0x1c] sm:$0xf] %vm226, %v1072
      %1287 = vst.msk [vmem:[#allocation3 + $0x20] sm:$0xf] %vm226, %v1076
      %1288 = vst.msk [vmem:[#allocation3 + $0x24] sm:$0xf] %vm226, %v1079
      %1289 = vst.msk [vmem:[#allocation3 + $0x28] sm:$0xf] %vm226, %v1083
      %1290 = vst.msk [vmem:[#allocation3 + $0x2c] sm:$0xf] %vm226, %v1086
      %1291 = vst.msk [vmem:[#allocation3 + $0x30] sm:$0xf] %vm226, %v1090
      %1292 = vst.msk [vmem:[#allocation3 + $0x34] sm:$0xf] %vm226, %v1093
      %1293 = vst.msk [vmem:[#allocation3 + $0x38] sm:$0xf] %vm226, %v1097
      %1294 = vst.msk [vmem:[#allocation3 + $0x3c] sm:$0xf] %vm226, %v1100
      %1295 = vst.msk [vmem:[#allocation3 + $0x40] sm:$0xf] %vm226, %v1104
      %1296 = vst.msk [vmem:[#allocation3 + $0x44] sm:$0xf] %vm226, %v1107
      %1297 = vst.msk [vmem:[#allocation3 + $0x48] sm:$0xf] %vm226, %v1111
      %1298 = vst.msk [vmem:[#allocation3 + $0x4c] sm:$0xf] %vm226, %v1114
      %1299 = vst.msk [vmem:[#allocation3 + $0x50] sm:$0xf] %vm226, %v1118
      %1300 = vst.msk [vmem:[#allocation3 + $0x54] sm:$0xf] %vm226, %v1121
      %1301 = vst.msk [vmem:[#allocation3 + $0x58] sm:$0xf] %vm226, %v1125
      %1302 = vst.msk [vmem:[#allocation3 + $0x5c] sm:$0xf] %vm226, %v1128
      %1303 = vst.msk [vmem:[#allocation3 + $0x60] sm:$0xf] %vm226, %v1132
      %1304 = vst.msk [vmem:[#allocation3 + $0x64] sm:$0xf] %vm226, %v1135
      %1305 = vst.msk [vmem:[#allocation3 + $0x68] sm:$0xf] %vm226, %v1139
      %1306 = vst.msk [vmem:[#allocation3 + $0x6c] sm:$0xf] %vm226, %v1142
      %1307 = vst.msk [vmem:[#allocation3 + $0x70] sm:$0xf] %vm226, %v1146
      %1308 = vst.msk [vmem:[#allocation3 + $0x74] sm:$0xf] %vm226, %v1149
      %1309 = vst.msk [vmem:[#allocation3 + $0x78] sm:$0xf] %vm226, %v1153
      %1310 = vst.msk [vmem:[#allocation3 + $0x7c] sm:$0xf] %vm226, %v1156
      %1311 = vst.msk [vmem:[#allocation3 + $0x80] sm:$0xf] %vm226, %v1160
      %1312 = vst.msk [vmem:[#allocation3 + $0x84] sm:$0xf] %vm226, %v1163
      %1313 = vst.msk [vmem:[#allocation3 + $0x88] sm:$0xf] %vm226, %v1167
      %1314 = vst.msk [vmem:[#allocation3 + $0x8c] sm:$0xf] %vm226, %v1170
      %1315 = vst.msk [vmem:[#allocation3 + $0x90] sm:$0xf] %vm226, %v1174
      %1316 = vst.msk [vmem:[#allocation3 + $0x94] sm:$0xf] %vm226, %v1177
      %1317 = vst.msk [vmem:[#allocation3 + $0x98] sm:$0xf] %vm226, %v1181
      %1318 = vst.msk [vmem:[#allocation3 + $0x9c] sm:$0xf] %vm226, %v1184
      %1319 = vst.msk [vmem:[#allocation3 + $0xa0] sm:$0xf] %vm226, %v1188
      %1320 = vst.msk [vmem:[#allocation3 + $0xa4] sm:$0xf] %vm226, %v1191
      %1321 = vst.msk [vmem:[#allocation3 + $0xa8] sm:$0xf] %vm226, %v1195
      %1322 = vst.msk [vmem:[#allocation3 + $0xac] sm:$0xf] %vm226, %v1198
      %1323 = vst.msk [vmem:[#allocation3 + $0xb0] sm:$0xf] %vm226, %v1202
      %1324 = vst.msk [vmem:[#allocation3 + $0xb4] sm:$0xf] %vm226, %v1205
      %1325 = vst.msk [vmem:[#allocation3 + $0xb8] sm:$0xf] %vm226, %v1209
      %1326 = vst.msk [vmem:[#allocation3 + $0xbc] sm:$0xf] %vm226, %v1212
      %1327 = vst.msk [vmem:[#allocation3 + $0xc0] sm:$0xf] %vm226, %v1216
      %1328 = vst.msk [vmem:[#allocation3 + $0xc4] sm:$0xf] %vm226, %v1219
      %1329 = vst.msk [vmem:[#allocation3 + $0xc8] sm:$0xf] %vm226, %v1223
      %1330 = vst.msk [vmem:[#allocation3 + $0xcc] sm:$0xf] %vm226, %v1226
      %v1331 = vld [vmem:[#allocation2] sm:$0xc]
      %v1332 = vld [vmem:[#allocation2 + $0x4] sm:$0xf]
      %v1333 = vld [vmem:[#allocation2 + $0x8] sm:$0x7]
      %v1334 = vld [vmem:[#allocation2 + $0x10] sm:$0xc]
      %v1335 = vld [vmem:[#allocation2 + $0x14] sm:$0xf]
      %v1336 = vld [vmem:[#allocation2 + $0x18] sm:$0x7]
      %v1337 = vld [vmem:[#allocation2 + $0x20] sm:$0xc]
      %v1338 = vld [vmem:[#allocation2 + $0x24] sm:$0xf]
      %v1339 = vld [vmem:[#allocation2 + $0x28] sm:$0x7]
      %v1340 = vld [vmem:[#allocation2 + $0x30] sm:$0xc]
      %v1341 = vld [vmem:[#allocation2 + $0x34] sm:$0xf]
      %v1342 = vld [vmem:[#allocation2 + $0x38] sm:$0x7]
      %v1343 = vld [vmem:[#allocation2 + $0x40] sm:$0xc]
      %v1344 = vld [vmem:[#allocation2 + $0x44] sm:$0xf]
      %v1345 = vld [vmem:[#allocation2 + $0x48] sm:$0x7]
      %v1346 = vld [vmem:[#allocation2 + $0x50] sm:$0xc]
      %v1347 = vld [vmem:[#allocation2 + $0x54] sm:$0xf]
      %v1348 = vld [vmem:[#allocation2 + $0x58] sm:$0x7]
      %v1349 = vld [vmem:[#allocation2 + $0x60] sm:$0xc]
      %v1350 = vld [vmem:[#allocation2 + $0x64] sm:$0xf]
      %v1351 = vld [vmem:[#allocation2 + $0x68] sm:$0x7]
      %v1352 = vld [vmem:[#allocation2 + $0x70] sm:$0xc]
      %v1353 = vld [vmem:[#allocation2 + $0x74] sm:$0xf]
      %v1354 = vld [vmem:[#allocation2 + $0x78] sm:$0x7]
      %v1355 = vld [vmem:[#allocation2 + $0x80] sm:$0xc]
      %v1356 = vld [vmem:[#allocation2 + $0x84] sm:$0xf]
      %v1357 = vld [vmem:[#allocation2 + $0x88] sm:$0x7]
      %v1358 = vld [vmem:[#allocation2 + $0x90] sm:$0xc]
      %v1359 = vld [vmem:[#allocation2 + $0x94] sm:$0xf]
      %v1360 = vld [vmem:[#allocation2 + $0x98] sm:$0x7]
      %v1361 = vld [vmem:[#allocation2 + $0xa0] sm:$0xc]
      %v1362 = vld [vmem:[#allocation2 + $0xa4] sm:$0xf]
      %v1363 = vld [vmem:[#allocation2 + $0xa8] sm:$0x7]
      %v1364 = vld [vmem:[#allocation2 + $0xb0] sm:$0xc]
      %v1365 = vld [vmem:[#allocation2 + $0xb4] sm:$0xf]
      %v1366 = vld [vmem:[#allocation2 + $0xb8] sm:$0x7]
      %v1367 = vld [vmem:[#allocation2 + $0xc0] sm:$0xc]
      %v1368 = vld [vmem:[#allocation2 + $0xc4] sm:$0xf]
      %v1369 = vld [vmem:[#allocation2 + $0xc8] sm:$0x7]
      %v1370 = vld [vmem:[#allocation2 + $0xd0] sm:$0xc]
      %v1371 = vld [vmem:[#allocation2 + $0xd4] sm:$0xf]
      %v1372 = vld [vmem:[#allocation2 + $0xd8] sm:$0x7]
      %v1373 = vld [vmem:[#allocation2 + $0xe0] sm:$0xc]
      %v1374 = vld [vmem:[#allocation2 + $0xe4] sm:$0xf]
      %v1375 = vld [vmem:[#allocation2 + $0xe8] sm:$0x7]
      %v1376 = vld [vmem:[#allocation2 + $0xf0] sm:$0xc]
      %v1377 = vld [vmem:[#allocation2 + $0xf4] sm:$0xf]
      %v1378 = vld [vmem:[#allocation2 + $0xf8] sm:$0x7]
      %v1379 = vld [vmem:[#allocation2 + $0x100] sm:$0xc]
      %v1380 = vld [vmem:[#allocation2 + $0x104] sm:$0xf]
      %v1381 = vld [vmem:[#allocation2 + $0x108] sm:$0x7]
      %v1382 = vld [vmem:[#allocation2 + $0x110] sm:$0xc]
      %v1383 = vld [vmem:[#allocation2 + $0x114] sm:$0xf]
      %v1384 = vld [vmem:[#allocation2 + $0x118] sm:$0x7]
      %v1385 = vld [vmem:[#allocation2 + $0x120] sm:$0xc]
      %v1386 = vld [vmem:[#allocation2 + $0x124] sm:$0xf]
      %v1387 = vld [vmem:[#allocation2 + $0x128] sm:$0x7]
      %v1388 = vld [vmem:[#allocation2 + $0x130] sm:$0xc]
      %v1389 = vld [vmem:[#allocation2 + $0x134] sm:$0xf]
      %v1390 = vld [vmem:[#allocation2 + $0x138] sm:$0x7]
      %v1391 = vld [vmem:[#allocation2 + $0x140] sm:$0xc]
      %v1392 = vld [vmem:[#allocation2 + $0x144] sm:$0xf]
      %v1393 = vld [vmem:[#allocation2 + $0x148] sm:$0x7]
      %v1394 = vld [vmem:[#allocation2 + $0x150] sm:$0xc]
      %v1395 = vld [vmem:[#allocation2 + $0x154] sm:$0xf]
      %v1396 = vld [vmem:[#allocation2 + $0x158] sm:$0x7]
      %v1397 = vld [vmem:[#allocation2 + $0x160] sm:$0xc]
      %v1398 = vld [vmem:[#allocation2 + $0x164] sm:$0xf]
      %v1399 = vld [vmem:[#allocation2 + $0x168] sm:$0x7]
      %v1400 = vld [vmem:[#allocation2 + $0x170] sm:$0xc]
      %v1401 = vld [vmem:[#allocation2 + $0x174] sm:$0xf]
      %v1402 = vld [vmem:[#allocation2 + $0x178] sm:$0x7]
      %v1403 = vld [vmem:[#allocation2 + $0x180] sm:$0xc]
      %v1404 = vld [vmem:[#allocation2 + $0x184] sm:$0xf]
      %v1405 = vld [vmem:[#allocation2 + $0x188] sm:$0x7]
      %v1406 = vld [vmem:[#allocation2 + $0x190] sm:$0xc]
      %v1407 = vld [vmem:[#allocation2 + $0x194] sm:$0xf]
      %v1408 = vld [vmem:[#allocation2 + $0x198] sm:$0x7]
      %vm1409 = vsmask.f32 1280
      %vm1410 = vsmask.f32 5392
      %vm1411 = vmor %vm1409, %vm1410
      %v1413 = vshrl.u32 %v1331, 16
      %v1415 = vrot.slane %v1413, 6
      %v1416 = vshll.u32 %v1331, 16
      %v1418 = vrot.slane %v1416, 7
      %v1419 = vor.u32 %v1415, %v1418
      %v1420 = vrot.slane %v1419, 4
      %v1422 = vshrl.u32 %v1332, 16
      %v1424 = vrot.slane %v1422, 6
      %v1425 = vshll.u32 %v1332, 16
      %v1427 = vrot.slane %v1425, 7
      %v1428 = vor.u32 %v1424, %v1427
      %v1429 = vsel %vm1411, %v1420, %v1428
      %v1430 = vrot.slane %v1428, 4
      %v1432 = vshrl.u32 %v1333, 16
      %v1434 = vrot.slane %v1432, 6
      %v1435 = vshll.u32 %v1333, 16
      %v1437 = vrot.slane %v1435, 7
      %v1438 = vor.u32 %v1434, %v1437
      %v1439 = vsel %vm1411, %v1430, %v1438
      %v1441 = vshrl.u32 %v1334, 16
      %v1443 = vrot.slane %v1441, 6
      %v1444 = vshll.u32 %v1334, 16
      %v1446 = vrot.slane %v1444, 7
      %v1447 = vor.u32 %v1443, %v1446
      %v1448 = vrot.slane %v1447, 4
      %v1450 = vshrl.u32 %v1335, 16
      %v1452 = vrot.slane %v1450, 6
      %v1453 = vshll.u32 %v1335, 16
      %v1455 = vrot.slane %v1453, 7
      %v1456 = vor.u32 %v1452, %v1455
      %v1457 = vsel %vm1411, %v1448, %v1456
      %v1458 = vrot.slane %v1456, 4
      %v1460 = vshrl.u32 %v1336, 16
      %v1462 = vrot.slane %v1460, 6
      %v1463 = vshll.u32 %v1336, 16
      %v1465 = vrot.slane %v1463, 7
      %v1466 = vor.u32 %v1462, %v1465
      %v1467 = vsel %vm1411, %v1458, %v1466
      %v1469 = vshrl.u32 %v1337, 16
      %v1471 = vrot.slane %v1469, 6
      %v1472 = vshll.u32 %v1337, 16
      %v1474 = vrot.slane %v1472, 7
      %v1475 = vor.u32 %v1471, %v1474
      %v1476 = vrot.slane %v1475, 4
      %v1478 = vshrl.u32 %v1338, 16
      %v1480 = vrot.slane %v1478, 6
      %v1481 = vshll.u32 %v1338, 16
      %v1483 = vrot.slane %v1481, 7
      %v1484 = vor.u32 %v1480, %v1483
      %v1485 = vsel %vm1411, %v1476, %v1484
      %v1486 = vrot.slane %v1484, 4
      %v1488 = vshrl.u32 %v1339, 16
      %v1490 = vrot.slane %v1488, 6
      %v1491 = vshll.u32 %v1339, 16
      %v1493 = vrot.slane %v1491, 7
      %v1494 = vor.u32 %v1490, %v1493
      %v1495 = vsel %vm1411, %v1486, %v1494
      %v1497 = vshrl.u32 %v1340, 16
      %v1499 = vrot.slane %v1497, 6
      %v1500 = vshll.u32 %v1340, 16
      %v1502 = vrot.slane %v1500, 7
      %v1503 = vor.u32 %v1499, %v1502
      %v1504 = vrot.slane %v1503, 4
      %v1506 = vshrl.u32 %v1341, 16
      %v1508 = vrot.slane %v1506, 6
      %v1509 = vshll.u32 %v1341, 16
      %v1511 = vrot.slane %v1509, 7
      %v1512 = vor.u32 %v1508, %v1511
      %v1513 = vsel %vm1411, %v1504, %v1512
      %v1514 = vrot.slane %v1512, 4
      %v1516 = vshrl.u32 %v1342, 16
      %v1518 = vrot.slane %v1516, 6
      %v1519 = vshll.u32 %v1342, 16
      %v1521 = vrot.slane %v1519, 7
      %v1522 = vor.u32 %v1518, %v1521
      %v1523 = vsel %vm1411, %v1514, %v1522
      %v1525 = vshrl.u32 %v1343, 16
      %v1527 = vrot.slane %v1525, 6
      %v1528 = vshll.u32 %v1343, 16
      %v1530 = vrot.slane %v1528, 7
      %v1531 = vor.u32 %v1527, %v1530
      %v1532 = vrot.slane %v1531, 4
      %v1534 = vshrl.u32 %v1344, 16
      %v1536 = vrot.slane %v1534, 6
      %v1537 = vshll.u32 %v1344, 16
      %v1539 = vrot.slane %v1537, 7
      %v1540 = vor.u32 %v1536, %v1539
      %v1541 = vsel %vm1411, %v1532, %v1540
      %v1542 = vrot.slane %v1540, 4
      %v1544 = vshrl.u32 %v1345, 16
      %v1546 = vrot.slane %v1544, 6
      %v1547 = vshll.u32 %v1345, 16
      %v1549 = vrot.slane %v1547, 7
      %v1550 = vor.u32 %v1546, %v1549
      %v1551 = vsel %vm1411, %v1542, %v1550
      %v1553 = vshrl.u32 %v1346, 16
      %v1555 = vrot.slane %v1553, 6
      %v1556 = vshll.u32 %v1346, 16
      %v1558 = vrot.slane %v1556, 7
      %v1559 = vor.u32 %v1555, %v1558
      %v1560 = vrot.slane %v1559, 4
      %v1562 = vshrl.u32 %v1347, 16
      %v1564 = vrot.slane %v1562, 6
      %v1565 = vshll.u32 %v1347, 16
      %v1567 = vrot.slane %v1565, 7
      %v1568 = vor.u32 %v1564, %v1567
      %v1569 = vsel %vm1411, %v1560, %v1568
      %v1570 = vrot.slane %v1568, 4
      %v1572 = vshrl.u32 %v1348, 16
      %v1574 = vrot.slane %v1572, 6
      %v1575 = vshll.u32 %v1348, 16
      %v1577 = vrot.slane %v1575, 7
      %v1578 = vor.u32 %v1574, %v1577
      %v1579 = vsel %vm1411, %v1570, %v1578
      %v1581 = vshrl.u32 %v1349, 16
      %v1583 = vrot.slane %v1581, 6
      %v1584 = vshll.u32 %v1349, 16
      %v1586 = vrot.slane %v1584, 7
      %v1587 = vor.u32 %v1583, %v1586
      %v1588 = vrot.slane %v1587, 4
      %v1590 = vshrl.u32 %v1350, 16
      %v1592 = vrot.slane %v1590, 6
      %v1593 = vshll.u32 %v1350, 16
      %v1595 = vrot.slane %v1593, 7
      %v1596 = vor.u32 %v1592, %v1595
      %v1597 = vsel %vm1411, %v1588, %v1596
      %v1598 = vrot.slane %v1596, 4
      %v1600 = vshrl.u32 %v1351, 16
      %v1602 = vrot.slane %v1600, 6
      %v1603 = vshll.u32 %v1351, 16
      %v1605 = vrot.slane %v1603, 7
      %v1606 = vor.u32 %v1602, %v1605
      %v1607 = vsel %vm1411, %v1598, %v1606
      %v1609 = vshrl.u32 %v1352, 16
      %v1611 = vrot.slane %v1609, 6
      %v1612 = vshll.u32 %v1352, 16
      %v1614 = vrot.slane %v1612, 7
      %v1615 = vor.u32 %v1611, %v1614
      %v1616 = vrot.slane %v1615, 4
      %v1618 = vshrl.u32 %v1353, 16
      %v1620 = vrot.slane %v1618, 6
      %v1621 = vshll.u32 %v1353, 16
      %v1623 = vrot.slane %v1621, 7
      %v1624 = vor.u32 %v1620, %v1623
      %v1625 = vsel %vm1411, %v1616, %v1624
      %v1626 = vrot.slane %v1624, 4
      %v1628 = vshrl.u32 %v1354, 16
      %v1630 = vrot.slane %v1628, 6
      %v1631 = vshll.u32 %v1354, 16
      %v1633 = vrot.slane %v1631, 7
      %v1634 = vor.u32 %v1630, %v1633
      %v1635 = vsel %vm1411, %v1626, %v1634
      %v1637 = vshrl.u32 %v1355, 16
      %v1639 = vrot.slane %v1637, 6
      %v1640 = vshll.u32 %v1355, 16
      %v1642 = vrot.slane %v1640, 7
      %v1643 = vor.u32 %v1639, %v1642
      %v1644 = vrot.slane %v1643, 4
      %v1646 = vshrl.u32 %v1356, 16
      %v1648 = vrot.slane %v1646, 6
      %v1649 = vshll.u32 %v1356, 16
      %v1651 = vrot.slane %v1649, 7
      %v1652 = vor.u32 %v1648, %v1651
      %v1653 = vsel %vm1411, %v1644, %v1652
      %v1654 = vrot.slane %v1652, 4
      %v1656 = vshrl.u32 %v1357, 16
      %v1658 = vrot.slane %v1656, 6
      %v1659 = vshll.u32 %v1357, 16
      %v1661 = vrot.slane %v1659, 7
      %v1662 = vor.u32 %v1658, %v1661
      %v1663 = vsel %vm1411, %v1654, %v1662
      %v1665 = vshrl.u32 %v1358, 16
      %v1667 = vrot.slane %v1665, 6
      %v1668 = vshll.u32 %v1358, 16
      %v1670 = vrot.slane %v1668, 7
      %v1671 = vor.u32 %v1667, %v1670
      %v1672 = vrot.slane %v1671, 4
      %v1674 = vshrl.u32 %v1359, 16
      %v1676 = vrot.slane %v1674, 6
      %v1677 = vshll.u32 %v1359, 16
      %v1679 = vrot.slane %v1677, 7
      %v1680 = vor.u32 %v1676, %v1679
      %v1681 = vsel %vm1411, %v1672, %v1680
      %v1682 = vrot.slane %v1680, 4
      %v1684 = vshrl.u32 %v1360, 16
      %v1686 = vrot.slane %v1684, 6
      %v1687 = vshll.u32 %v1360, 16
      %v1689 = vrot.slane %v1687, 7
      %v1690 = vor.u32 %v1686, %v1689
      %v1691 = vsel %vm1411, %v1682, %v1690
      %v1693 = vshrl.u32 %v1361, 16
      %v1695 = vrot.slane %v1693, 6
      %v1696 = vshll.u32 %v1361, 16
      %v1698 = vrot.slane %v1696, 7
      %v1699 = vor.u32 %v1695, %v1698
      %v1700 = vrot.slane %v1699, 4
      %v1702 = vshrl.u32 %v1362, 16
      %v1704 = vrot.slane %v1702, 6
      %v1705 = vshll.u32 %v1362, 16
      %v1707 = vrot.slane %v1705, 7
      %v1708 = vor.u32 %v1704, %v1707
      %v1709 = vsel %vm1411, %v1700, %v1708
      %v1710 = vrot.slane %v1708, 4
      %v1712 = vshrl.u32 %v1363, 16
      %v1714 = vrot.slane %v1712, 6
      %v1715 = vshll.u32 %v1363, 16
      %v1717 = vrot.slane %v1715, 7
      %v1718 = vor.u32 %v1714, %v1717
      %v1719 = vsel %vm1411, %v1710, %v1718
      %v1721 = vshrl.u32 %v1364, 16
      %v1723 = vrot.slane %v1721, 6
      %v1724 = vshll.u32 %v1364, 16
      %v1726 = vrot.slane %v1724, 7
      %v1727 = vor.u32 %v1723, %v1726
      %v1728 = vrot.slane %v1727, 4
      %v1730 = vshrl.u32 %v1365, 16
      %v1732 = vrot.slane %v1730, 6
      %v1733 = vshll.u32 %v1365, 16
      %v1735 = vrot.slane %v1733, 7
      %v1736 = vor.u32 %v1732, %v1735
      %v1737 = vsel %vm1411, %v1728, %v1736
      %v1738 = vrot.slane %v1736, 4
      %v1740 = vshrl.u32 %v1366, 16
      %v1742 = vrot.slane %v1740, 6
      %v1743 = vshll.u32 %v1366, 16
      %v1745 = vrot.slane %v1743, 7
      %v1746 = vor.u32 %v1742, %v1745
      %v1747 = vsel %vm1411, %v1738, %v1746
      %v1749 = vshrl.u32 %v1367, 16
      %v1751 = vrot.slane %v1749, 6
      %v1752 = vshll.u32 %v1367, 16
      %v1754 = vrot.slane %v1752, 7
      %v1755 = vor.u32 %v1751, %v1754
      %v1756 = vrot.slane %v1755, 4
      %v1758 = vshrl.u32 %v1368, 16
      %v1760 = vrot.slane %v1758, 6
      %v1761 = vshll.u32 %v1368, 16
      %v1763 = vrot.slane %v1761, 7
      %v1764 = vor.u32 %v1760, %v1763
      %v1765 = vsel %vm1411, %v1756, %v1764
      %v1766 = vrot.slane %v1764, 4
      %v1768 = vshrl.u32 %v1369, 16
      %v1770 = vrot.slane %v1768, 6
      %v1771 = vshll.u32 %v1369, 16
      %v1773 = vrot.slane %v1771, 7
      %v1774 = vor.u32 %v1770, %v1773
      %v1775 = vsel %vm1411, %v1766, %v1774
      %v1777 = vshrl.u32 %v1370, 16
      %v1779 = vrot.slane %v1777, 6
      %v1780 = vshll.u32 %v1370, 16
      %v1782 = vrot.slane %v1780, 7
      %v1783 = vor.u32 %v1779, %v1782
      %v1784 = vrot.slane %v1783, 4
      %v1786 = vshrl.u32 %v1371, 16
      %v1788 = vrot.slane %v1786, 6
      %v1789 = vshll.u32 %v1371, 16
      %v1791 = vrot.slane %v1789, 7
      %v1792 = vor.u32 %v1788, %v1791
      %v1793 = vsel %vm1411, %v1784, %v1792
      %v1794 = vrot.slane %v1792, 4
      %v1796 = vshrl.u32 %v1372, 16
      %v1798 = vrot.slane %v1796, 6
      %v1799 = vshll.u32 %v1372, 16
      %v1801 = vrot.slane %v1799, 7
      %v1802 = vor.u32 %v1798, %v1801
      %v1803 = vsel %vm1411, %v1794, %v1802
      %v1805 = vshrl.u32 %v1373, 16
      %v1807 = vrot.slane %v1805, 6
      %v1808 = vshll.u32 %v1373, 16
      %v1810 = vrot.slane %v1808, 7
      %v1811 = vor.u32 %v1807, %v1810
      %v1812 = vrot.slane %v1811, 4
      %v1814 = vshrl.u32 %v1374, 16
      %v1816 = vrot.slane %v1814, 6
      %v1817 = vshll.u32 %v1374, 16
      %v1819 = vrot.slane %v1817, 7
      %v1820 = vor.u32 %v1816, %v1819
      %v1821 = vsel %vm1411, %v1812, %v1820
      %v1822 = vrot.slane %v1820, 4
      %v1824 = vshrl.u32 %v1375, 16
      %v1826 = vrot.slane %v1824, 6
      %v1827 = vshll.u32 %v1375, 16
      %v1829 = vrot.slane %v1827, 7
      %v1830 = vor.u32 %v1826, %v1829
      %v1831 = vsel %vm1411, %v1822, %v1830
      %v1833 = vshrl.u32 %v1376, 16
      %v1835 = vrot.slane %v1833, 6
      %v1836 = vshll.u32 %v1376, 16
      %v1838 = vrot.slane %v1836, 7
      %v1839 = vor.u32 %v1835, %v1838
      %v1840 = vrot.slane %v1839, 4
      %v1842 = vshrl.u32 %v1377, 16
      %v1844 = vrot.slane %v1842, 6
      %v1845 = vshll.u32 %v1377, 16
      %v1847 = vrot.slane %v1845, 7
      %v1848 = vor.u32 %v1844, %v1847
      %v1849 = vsel %vm1411, %v1840, %v1848
      %v1850 = vrot.slane %v1848, 4
      %v1852 = vshrl.u32 %v1378, 16
      %v1854 = vrot.slane %v1852, 6
      %v1855 = vshll.u32 %v1378, 16
      %v1857 = vrot.slane %v1855, 7
      %v1858 = vor.u32 %v1854, %v1857
      %v1859 = vsel %vm1411, %v1850, %v1858
      %v1861 = vshrl.u32 %v1379, 16
      %v1863 = vrot.slane %v1861, 6
      %v1864 = vshll.u32 %v1379, 16
      %v1866 = vrot.slane %v1864, 7
      %v1867 = vor.u32 %v1863, %v1866
      %v1868 = vrot.slane %v1867, 4
      %v1870 = vshrl.u32 %v1380, 16
      %v1872 = vrot.slane %v1870, 6
      %v1873 = vshll.u32 %v1380, 16
      %v1875 = vrot.slane %v1873, 7
      %v1876 = vor.u32 %v1872, %v1875
      %v1877 = vsel %vm1411, %v1868, %v1876
      %v1878 = vrot.slane %v1876, 4
      %v1880 = vshrl.u32 %v1381, 16
      %v1882 = vrot.slane %v1880, 6
      %v1883 = vshll.u32 %v1381, 16
      %v1885 = vrot.slane %v1883, 7
      %v1886 = vor.u32 %v1882, %v1885
      %v1887 = vsel %vm1411, %v1878, %v1886
      %v1889 = vshrl.u32 %v1382, 16
      %v1891 = vrot.slane %v1889, 6
      %v1892 = vshll.u32 %v1382, 16
      %v1894 = vrot.slane %v1892, 7
      %v1895 = vor.u32 %v1891, %v1894
      %v1896 = vrot.slane %v1895, 4
      %v1898 = vshrl.u32 %v1383, 16
      %v1900 = vrot.slane %v1898, 6
      %v1901 = vshll.u32 %v1383, 16
      %v1903 = vrot.slane %v1901, 7
      %v1904 = vor.u32 %v1900, %v1903
      %v1905 = vsel %vm1411, %v1896, %v1904
      %v1906 = vrot.slane %v1904, 4
      %v1908 = vshrl.u32 %v1384, 16
      %v1910 = vrot.slane %v1908, 6
      %v1911 = vshll.u32 %v1384, 16
      %v1913 = vrot.slane %v1911, 7
      %v1914 = vor.u32 %v1910, %v1913
      %v1915 = vsel %vm1411, %v1906, %v1914
      %v1917 = vshrl.u32 %v1385, 16
      %v1919 = vrot.slane %v1917, 6
      %v1920 = vshll.u32 %v1385, 16
      %v1922 = vrot.slane %v1920, 7
      %v1923 = vor.u32 %v1919, %v1922
      %v1924 = vrot.slane %v1923, 4
      %v1926 = vshrl.u32 %v1386, 16
      %v1928 = vrot.slane %v1926, 6
      %v1929 = vshll.u32 %v1386, 16
      %v1931 = vrot.slane %v1929, 7
      %v1932 = vor.u32 %v1928, %v1931
      %v1933 = vsel %vm1411, %v1924, %v1932
      %v1934 = vrot.slane %v1932, 4
      %v1936 = vshrl.u32 %v1387, 16
      %v1938 = vrot.slane %v1936, 6
      %v1939 = vshll.u32 %v1387, 16
      %v1941 = vrot.slane %v1939, 7
      %v1942 = vor.u32 %v1938, %v1941
      %v1943 = vsel %vm1411, %v1934, %v1942
      %v1945 = vshrl.u32 %v1388, 16
      %v1947 = vrot.slane %v1945, 6
      %v1948 = vshll.u32 %v1388, 16
      %v1950 = vrot.slane %v1948, 7
      %v1951 = vor.u32 %v1947, %v1950
      %v1952 = vrot.slane %v1951, 4
      %v1954 = vshrl.u32 %v1389, 16
      %v1956 = vrot.slane %v1954, 6
      %v1957 = vshll.u32 %v1389, 16
      %v1959 = vrot.slane %v1957, 7
      %v1960 = vor.u32 %v1956, %v1959
      %v1961 = vsel %vm1411, %v1952, %v1960
      %v1962 = vrot.slane %v1960, 4
      %v1964 = vshrl.u32 %v1390, 16
      %v1966 = vrot.slane %v1964, 6
      %v1967 = vshll.u32 %v1390, 16
      %v1969 = vrot.slane %v1967, 7
      %v1970 = vor.u32 %v1966, %v1969
      %v1971 = vsel %vm1411, %v1962, %v1970
      %v1973 = vshrl.u32 %v1391, 16
      %v1975 = vrot.slane %v1973, 6
      %v1976 = vshll.u32 %v1391, 16
      %v1978 = vrot.slane %v1976, 7
      %v1979 = vor.u32 %v1975, %v1978
      %v1980 = vrot.slane %v1979, 4
      %v1982 = vshrl.u32 %v1392, 16
      %v1984 = vrot.slane %v1982, 6
      %v1985 = vshll.u32 %v1392, 16
      %v1987 = vrot.slane %v1985, 7
      %v1988 = vor.u32 %v1984, %v1987
      %v1989 = vsel %vm1411, %v1980, %v1988
      %v1990 = vrot.slane %v1988, 4
      %v1992 = vshrl.u32 %v1393, 16
      %v1994 = vrot.slane %v1992, 6
      %v1995 = vshll.u32 %v1393, 16
      %v1997 = vrot.slane %v1995, 7
      %v1998 = vor.u32 %v1994, %v1997
      %v1999 = vsel %vm1411, %v1990, %v1998
      %v2001 = vshrl.u32 %v1394, 16
      %v2003 = vrot.slane %v2001, 6
      %v2004 = vshll.u32 %v1394, 16
      %v2006 = vrot.slane %v2004, 7
      %v2007 = vor.u32 %v2003, %v2006
      %v2008 = vrot.slane %v2007, 4
      %v2010 = vshrl.u32 %v1395, 16
      %v2012 = vrot.slane %v2010, 6
      %v2013 = vshll.u32 %v1395, 16
      %v2015 = vrot.slane %v2013, 7
      %v2016 = vor.u32 %v2012, %v2015
      %v2017 = vsel %vm1411, %v2008, %v2016
      %v2018 = vrot.slane %v2016, 4
      %v2020 = vshrl.u32 %v1396, 16
      %v2022 = vrot.slane %v2020, 6
      %v2023 = vshll.u32 %v1396, 16
      %v2025 = vrot.slane %v2023, 7
      %v2026 = vor.u32 %v2022, %v2025
      %v2027 = vsel %vm1411, %v2018, %v2026
      %v2029 = vshrl.u32 %v1397, 16
      %v2031 = vrot.slane %v2029, 6
      %v2032 = vshll.u32 %v1397, 16
      %v2034 = vrot.slane %v2032, 7
      %v2035 = vor.u32 %v2031, %v2034
      %v2036 = vrot.slane %v2035, 4
      %v2038 = vshrl.u32 %v1398, 16
      %v2040 = vrot.slane %v2038, 6
      %v2041 = vshll.u32 %v1398, 16
      %v2043 = vrot.slane %v2041, 7
      %v2044 = vor.u32 %v2040, %v2043
      %v2045 = vsel %vm1411, %v2036, %v2044
      %v2046 = vrot.slane %v2044, 4
      %v2048 = vshrl.u32 %v1399, 16
      %v2050 = vrot.slane %v2048, 6
      %v2051 = vshll.u32 %v1399, 16
      %v2053 = vrot.slane %v2051, 7
      %v2054 = vor.u32 %v2050, %v2053
      %v2055 = vsel %vm1411, %v2046, %v2054
      %v2057 = vshrl.u32 %v1400, 16
      %v2059 = vrot.slane %v2057, 6
      %v2060 = vshll.u32 %v1400, 16
      %v2062 = vrot.slane %v2060, 7
      %v2063 = vor.u32 %v2059, %v2062
      %v2064 = vrot.slane %v2063, 4
      %v2066 = vshrl.u32 %v1401, 16
      %v2068 = vrot.slane %v2066, 6
      %v2069 = vshll.u32 %v1401, 16
      %v2071 = vrot.slane %v2069, 7
      %v2072 = vor.u32 %v2068, %v2071
      %v2073 = vsel %vm1411, %v2064, %v2072
      %v2074 = vrot.slane %v2072, 4
      %v2076 = vshrl.u32 %v1402, 16
      %v2078 = vrot.slane %v2076, 6
      %v2079 = vshll.u32 %v1402, 16
      %v2081 = vrot.slane %v2079, 7
      %v2082 = vor.u32 %v2078, %v2081
      %v2083 = vsel %vm1411, %v2074, %v2082
      %v2085 = vshrl.u32 %v1403, 16
      %v2087 = vrot.slane %v2085, 6
      %v2088 = vshll.u32 %v1403, 16
      %v2090 = vrot.slane %v2088, 7
      %v2091 = vor.u32 %v2087, %v2090
      %v2092 = vrot.slane %v2091, 4
      %v2094 = vshrl.u32 %v1404, 16
      %v2096 = vrot.slane %v2094, 6
      %v2097 = vshll.u32 %v1404, 16
      %v2099 = vrot.slane %v2097, 7
      %v2100 = vor.u32 %v2096, %v2099
      %v2101 = vsel %vm1411, %v2092, %v2100
      %v2102 = vrot.slane %v2100, 4
      %v2104 = vshrl.u32 %v1405, 16
      %v2106 = vrot.slane %v2104, 6
      %v2107 = vshll.u32 %v1405, 16
      %v2109 = vrot.slane %v2107, 7
      %v2110 = vor.u32 %v2106, %v2109
      %v2111 = vsel %vm1411, %v2102, %v2110
      %v2113 = vshrl.u32 %v1406, 16
      %v2115 = vrot.slane %v2113, 6
      %v2116 = vshll.u32 %v1406, 16
      %v2118 = vrot.slane %v2116, 7
      %v2119 = vor.u32 %v2115, %v2118
      %v2120 = vrot.slane %v2119, 4
      %v2122 = vshrl.u32 %v1407, 16
      %v2124 = vrot.slane %v2122, 6
      %v2125 = vshll.u32 %v1407, 16
      %v2127 = vrot.slane %v2125, 7
      %v2128 = vor.u32 %v2124, %v2127
      %v2129 = vsel %vm1411, %v2120, %v2128
      %v2130 = vrot.slane %v2128, 4
      %v2132 = vshrl.u32 %v1408, 16
      %v2134 = vrot.slane %v2132, 6
      %v2135 = vshll.u32 %v1408, 16
      %v2137 = vrot.slane %v2135, 7
      %v2138 = vor.u32 %v2134, %v2137
      %v2139 = vsel %vm1411, %v2130, %v2138
      %2140 = vrot.lane.b32.xlu0 %v1429, 4
      %v2141 = vpop.permute.xlu0 %2140
      %2142 = vrot.lane.b32.xlu0 %v1439, 4
      %v2143 = vpop.permute.xlu0 %2142
      %2144 = vrot.lane.b32.xlu0 %v1457, 4
      %v2145 = vpop.permute.xlu0 %2144
      %2146 = vrot.lane.b32.xlu0 %v1467, 4
      %v2147 = vpop.permute.xlu0 %2146
      %2148 = vrot.lane.b32.xlu0 %v1485, 4
      %v2149 = vpop.permute.xlu0 %2148
      %2150 = vrot.lane.b32.xlu0 %v1495, 4
      %v2151 = vpop.permute.xlu0 %2150
      %2152 = vrot.lane.b32.xlu0 %v1513, 4
      %v2153 = vpop.permute.xlu0 %2152
      %2154 = vrot.lane.b32.xlu0 %v1523, 4
      %v2155 = vpop.permute.xlu0 %2154
      %2156 = vrot.lane.b32.xlu0 %v1541, 4
      %v2157 = vpop.permute.xlu0 %2156
      %2158 = vrot.lane.b32.xlu0 %v1551, 4
      %v2159 = vpop.permute.xlu0 %2158
      %2160 = vrot.lane.b32.xlu0 %v1569, 4
      %v2161 = vpop.permute.xlu0 %2160
      %2162 = vrot.lane.b32.xlu0 %v1579, 4
      %v2163 = vpop.permute.xlu0 %2162
      %2164 = vrot.lane.b32.xlu0 %v1597, 4
      %v2165 = vpop.permute.xlu0 %2164
      %2166 = vrot.lane.b32.xlu0 %v1607, 4
      %v2167 = vpop.permute.xlu0 %2166
      %2168 = vrot.lane.b32.xlu0 %v1625, 4
      %v2169 = vpop.permute.xlu0 %2168
      %2170 = vrot.lane.b32.xlu0 %v1635, 4
      %v2171 = vpop.permute.xlu0 %2170
      %2172 = vrot.lane.b32.xlu0 %v1653, 4
      %v2173 = vpop.permute.xlu0 %2172
      %2174 = vrot.lane.b32.xlu0 %v1663, 4
      %v2175 = vpop.permute.xlu0 %2174
      %2176 = vrot.lane.b32.xlu0 %v1681, 4
      %v2177 = vpop.permute.xlu0 %2176
      %2178 = vrot.lane.b32.xlu0 %v1691, 4
      %v2179 = vpop.permute.xlu0 %2178
      %2180 = vrot.lane.b32.xlu0 %v1709, 4
      %v2181 = vpop.permute.xlu0 %2180
      %2182 = vrot.lane.b32.xlu0 %v1719, 4
      %v2183 = vpop.permute.xlu0 %2182
      %2184 = vrot.lane.b32.xlu0 %v1737, 4
      %v2185 = vpop.permute.xlu0 %2184
      %2186 = vrot.lane.b32.xlu0 %v1747, 4
      %v2187 = vpop.permute.xlu0 %2186
      %2188 = vrot.lane.b32.xlu0 %v1765, 4
      %v2189 = vpop.permute.xlu0 %2188
      %2190 = vrot.lane.b32.xlu0 %v1775, 4
      %v2191 = vpop.permute.xlu0 %2190
      %2192 = vrot.lane.b32.xlu0 %v1793, 4
      %v2193 = vpop.permute.xlu0 %2192
      %2194 = vrot.lane.b32.xlu0 %v1803, 4
      %v2195 = vpop.permute.xlu0 %2194
      %2196 = vrot.lane.b32.xlu0 %v1821, 4
      %v2197 = vpop.permute.xlu0 %2196
      %2198 = vrot.lane.b32.xlu0 %v1831, 4
      %v2199 = vpop.permute.xlu0 %2198
      %2200 = vrot.lane.b32.xlu0 %v1849, 4
      %v2201 = vpop.permute.xlu0 %2200
      %2202 = vrot.lane.b32.xlu0 %v1859, 4
      %v2203 = vpop.permute.xlu0 %2202
      %2204 = vrot.lane.b32.xlu0 %v1877, 4
      %v2205 = vpop.permute.xlu0 %2204
      %2206 = vrot.lane.b32.xlu0 %v1887, 4
      %v2207 = vpop.permute.xlu0 %2206
      %2208 = vrot.lane.b32.xlu0 %v1905, 4
      %v2209 = vpop.permute.xlu0 %2208
      %2210 = vrot.lane.b32.xlu0 %v1915, 4
      %v2211 = vpop.permute.xlu0 %2210
      %2212 = vrot.lane.b32.xlu0 %v1933, 4
      %v2213 = vpop.permute.xlu0 %2212
      %2214 = vrot.lane.b32.xlu0 %v1943, 4
      %v2215 = vpop.permute.xlu0 %2214
      %2216 = vrot.lane.b32.xlu0 %v1961, 4
      %v2217 = vpop.permute.xlu0 %2216
      %2218 = vrot.lane.b32.xlu0 %v1971, 4
      %v2219 = vpop.permute.xlu0 %2218
      %2220 = vrot.lane.b32.xlu0 %v1989, 4
      %v2221 = vpop.permute.xlu0 %2220
      %2222 = vrot.lane.b32.xlu0 %v1999, 4
      %v2223 = vpop.permute.xlu0 %2222
      %2224 = vrot.lane.b32.xlu0 %v2017, 4
      %v2225 = vpop.permute.xlu0 %2224
      %2226 = vrot.lane.b32.xlu0 %v2027, 4
      %v2227 = vpop.permute.xlu0 %2226
      %2228 = vrot.lane.b32.xlu0 %v2045, 4
      %v2229 = vpop.permute.xlu0 %2228
      %2230 = vrot.lane.b32.xlu0 %v2055, 4
      %v2231 = vpop.permute.xlu0 %2230
      %2232 = vrot.lane.b32.xlu0 %v2073, 4
      %v2233 = vpop.permute.xlu0 %2232
      %2234 = vrot.lane.b32.xlu0 %v2083, 4
      %v2235 = vpop.permute.xlu0 %2234
      %2236 = vrot.lane.b32.xlu0 %v2101, 4
      %v2237 = vpop.permute.xlu0 %2236
      %2238 = vrot.lane.b32.xlu0 %v2111, 4
      %v2239 = vpop.permute.xlu0 %2238
      %2240 = vrot.lane.b32.xlu0 %v2129, 4
      %v2241 = vpop.permute.xlu0 %2240
      %2242 = vrot.lane.b32.xlu0 %v2139, 4
      %v2243 = vpop.permute.xlu0 %2242
      %vm2296 = vcmask 60448
      %2297 = vst.msk [vmem:[#allocation3] sm:$0xf] %vm2296, %v2141
      %2298 = vst.msk [vmem:[#allocation3 + $0x4] sm:$0xf] %vm2296, %v2143
      %2299 = vst.msk [vmem:[#allocation3 + $0x8] sm:$0xf] %vm2296, %v2145
      %2300 = vst.msk [vmem:[#allocation3 + $0xc] sm:$0xf] %vm2296, %v2147
      %2301 = vst.msk [vmem:[#allocation3 + $0x10] sm:$0xf] %vm2296, %v2149
      %2302 = vst.msk [vmem:[#allocation3 + $0x14] sm:$0xf] %vm2296, %v2151
      %2303 = vst.msk [vmem:[#allocation3 + $0x18] sm:$0xf] %vm2296, %v2153
      %2304 = vst.msk [vmem:[#allocation3 + $0x1c] sm:$0xf] %vm2296, %v2155
      %2305 = vst.msk [vmem:[#allocation3 + $0x20] sm:$0xf] %vm2296, %v2157
      %2306 = vst.msk [vmem:[#allocation3 + $0x24] sm:$0xf] %vm2296, %v2159
      %2307 = vst.msk [vmem:[#allocation3 + $0x28] sm:$0xf] %vm2296, %v2161
      %2308 = vst.msk [vmem:[#allocation3 + $0x2c] sm:$0xf] %vm2296, %v2163
      %2309 = vst.msk [vmem:[#allocation3 + $0x30] sm:$0xf] %vm2296, %v2165
      %2310 = vst.msk [vmem:[#allocation3 + $0x34] sm:$0xf] %vm2296, %v2167
      %2311 = vst.msk [vmem:[#allocation3 + $0x38] sm:$0xf] %vm2296, %v2169
      %2312 = vst.msk [vmem:[#allocation3 + $0x3c] sm:$0xf] %vm2296, %v2171
      %2313 = vst.msk [vmem:[#allocation3 + $0x40] sm:$0xf] %vm2296, %v2173
      %2314 = vst.msk [vmem:[#allocation3 + $0x44] sm:$0xf] %vm2296, %v2175
      %2315 = vst.msk [vmem:[#allocation3 + $0x48] sm:$0xf] %vm2296, %v2177
      %2316 = vst.msk [vmem:[#allocation3 + $0x4c] sm:$0xf] %vm2296, %v2179
      %2317 = vst.msk [vmem:[#allocation3 + $0x50] sm:$0xf] %vm2296, %v2181
      %2318 = vst.msk [vmem:[#allocation3 + $0x54] sm:$0xf] %vm2296, %v2183
      %2319 = vst.msk [vmem:[#allocation3 + $0x58] sm:$0xf] %vm2296, %v2185
      %2320 = vst.msk [vmem:[#allocation3 + $0x5c] sm:$0xf] %vm2296, %v2187
      %2321 = vst.msk [vmem:[#allocation3 + $0x60] sm:$0xf] %vm2296, %v2189
      %2322 = vst.msk [vmem:[#allocation3 + $0x64] sm:$0xf] %vm2296, %v2191
      %2323 = vst.msk [vmem:[#allocation3 + $0x68] sm:$0xf] %vm2296, %v2193
      %2324 = vst.msk [vmem:[#allocation3 + $0x6c] sm:$0xf] %vm2296, %v2195
      %2325 = vst.msk [vmem:[#allocation3 + $0x70] sm:$0xf] %vm2296, %v2197
      %2326 = vst.msk [vmem:[#allocation3 + $0x74] sm:$0xf] %vm2296, %v2199
      %2327 = vst.msk [vmem:[#allocation3 + $0x78] sm:$0xf] %vm2296, %v2201
      %2328 = vst.msk [vmem:[#allocation3 + $0x7c] sm:$0xf] %vm2296, %v2203
      %2329 = vst.msk [vmem:[#allocation3 + $0x80] sm:$0xf] %vm2296, %v2205
      %2330 = vst.msk [vmem:[#allocation3 + $0x84] sm:$0xf] %vm2296, %v2207
      %2331 = vst.msk [vmem:[#allocation3 + $0x88] sm:$0xf] %vm2296, %v2209
      %2332 = vst.msk [vmem:[#allocation3 + $0x8c] sm:$0xf] %vm2296, %v2211
      %2333 = vst.msk [vmem:[#allocation3 + $0x90] sm:$0xf] %vm2296, %v2213
      %2334 = vst.msk [vmem:[#allocation3 + $0x94] sm:$0xf] %vm2296, %v2215
      %2335 = vst.msk [vmem:[#allocation3 + $0x98] sm:$0xf] %vm2296, %v2217
      %2336 = vst.msk [vmem:[#allocation3 + $0x9c] sm:$0xf] %vm2296, %v2219
      %2337 = vst.msk [vmem:[#allocation3 + $0xa0] sm:$0xf] %vm2296, %v2221
      %2338 = vst.msk [vmem:[#allocation3 + $0xa4] sm:$0xf] %vm2296, %v2223
      %2339 = vst.msk [vmem:[#allocation3 + $0xa8] sm:$0xf] %vm2296, %v2225
      %2340 = vst.msk [vmem:[#allocation3 + $0xac] sm:$0xf] %vm2296, %v2227
      %2341 = vst.msk [vmem:[#allocation3 + $0xb0] sm:$0xf] %vm2296, %v2229
      %2342 = vst.msk [vmem:[#allocation3 + $0xb4] sm:$0xf] %vm2296, %v2231
      %2343 = vst.msk [vmem:[#allocation3 + $0xb8] sm:$0xf] %vm2296, %v2233
      %2344 = vst.msk [vmem:[#allocation3 + $0xbc] sm:$0xf] %vm2296, %v2235
      %2345 = vst.msk [vmem:[#allocation3 + $0xc0] sm:$0xf] %vm2296, %v2237
      %2346 = vst.msk [vmem:[#allocation3 + $0xc4] sm:$0xf] %vm2296, %v2239
      %2347 = vst.msk [vmem:[#allocation3 + $0xc8] sm:$0xf] %vm2296, %v2241
      %2348 = vst.msk [vmem:[#allocation3 + $0xcc] sm:$0xf] %vm2296, %v2243
      %v2349 = vld [vmem:[#allocation2] sm:$0x8]
      %v2350 = vld [vmem:[#allocation2 + $0x4] sm:$0xf]
      %v2351 = vld [vmem:[#allocation2 + $0x8] sm:$0x7]
      %v2352 = vld [vmem:[#allocation2 + $0x10] sm:$0x8]
      %v2353 = vld [vmem:[#allocation2 + $0x14] sm:$0xf]
      %v2354 = vld [vmem:[#allocation2 + $0x18] sm:$0x7]
      %v2355 = vld [vmem:[#allocation2 + $0x20] sm:$0x8]
      %v2356 = vld [vmem:[#allocation2 + $0x24] sm:$0xf]
      %v2357 = vld [vmem:[#allocation2 + $0x28] sm:$0x7]
      %v2358 = vld [vmem:[#allocation2 + $0x30] sm:$0x8]
      %v2359 = vld [vmem:[#allocation2 + $0x34] sm:$0xf]
      %v2360 = vld [vmem:[#allocation2 + $0x38] sm:$0x7]
      %v2361 = vld [vmem:[#allocation2 + $0x40] sm:$0x8]
      %v2362 = vld [vmem:[#allocation2 + $0x44] sm:$0xf]
      %v2363 = vld [vmem:[#allocation2 + $0x48] sm:$0x7]
      %v2364 = vld [vmem:[#allocation2 + $0x50] sm:$0x8]
      %v2365 = vld [vmem:[#allocation2 + $0x54] sm:$0xf]
      %v2366 = vld [vmem:[#allocation2 + $0x58] sm:$0x7]
      %v2367 = vld [vmem:[#allocation2 + $0x60] sm:$0x8]
      %v2368 = vld [vmem:[#allocation2 + $0x64] sm:$0xf]
      %v2369 = vld [vmem:[#allocation2 + $0x68] sm:$0x7]
      %v2370 = vld [vmem:[#allocation2 + $0x70] sm:$0x8]
      %v2371 = vld [vmem:[#allocation2 + $0x74] sm:$0xf]
      %v2372 = vld [vmem:[#allocation2 + $0x78] sm:$0x7]
      %v2373 = vld [vmem:[#allocation2 + $0x80] sm:$0x8]
      %v2374 = vld [vmem:[#allocation2 + $0x84] sm:$0xf]
      %v2375 = vld [vmem:[#allocation2 + $0x88] sm:$0x7]
      %v2376 = vld [vmem:[#allocation2 + $0x90] sm:$0x8]
      %v2377 = vld [vmem:[#allocation2 + $0x94] sm:$0xf]
      %v2378 = vld [vmem:[#allocation2 + $0x98] sm:$0x7]
      %v2379 = vld [vmem:[#allocation2 + $0xa0] sm:$0x8]
      %v2380 = vld [vmem:[#allocation2 + $0xa4] sm:$0xf]
      %v2381 = vld [vmem:[#allocation2 + $0xa8] sm:$0x7]
      %v2382 = vld [vmem:[#allocation2 + $0xb0] sm:$0x8]
      %v2383 = vld [vmem:[#allocation2 + $0xb4] sm:$0xf]
      %v2384 = vld [vmem:[#allocation2 + $0xb8] sm:$0x7]
      %v2385 = vld [vmem:[#allocation2 + $0xc0] sm:$0x8]
      %v2386 = vld [vmem:[#allocation2 + $0xc4] sm:$0xf]
      %v2387 = vld [vmem:[#allocation2 + $0xc8] sm:$0x7]
      %v2388 = vld [vmem:[#allocation2 + $0xd0] sm:$0x8]
      %v2389 = vld [vmem:[#allocation2 + $0xd4] sm:$0xf]
      %v2390 = vld [vmem:[#allocation2 + $0xd8] sm:$0x7]
      %v2391 = vld [vmem:[#allocation2 + $0xe0] sm:$0x8]
      %v2392 = vld [vmem:[#allocation2 + $0xe4] sm:$0xf]
      %v2393 = vld [vmem:[#allocation2 + $0xe8] sm:$0x7]
      %v2394 = vld [vmem:[#allocation2 + $0xf0] sm:$0x8]
      %v2395 = vld [vmem:[#allocation2 + $0xf4] sm:$0xf]
      %v2396 = vld [vmem:[#allocation2 + $0xf8] sm:$0x7]
      %v2397 = vld [vmem:[#allocation2 + $0x100] sm:$0x8]
      %v2398 = vld [vmem:[#allocation2 + $0x104] sm:$0xf]
      %v2399 = vld [vmem:[#allocation2 + $0x108] sm:$0x7]
      %v2400 = vld [vmem:[#allocation2 + $0x110] sm:$0x8]
      %v2401 = vld [vmem:[#allocation2 + $0x114] sm:$0xf]
      %v2402 = vld [vmem:[#allocation2 + $0x118] sm:$0x7]
      %v2403 = vld [vmem:[#allocation2 + $0x120] sm:$0x8]
      %v2404 = vld [vmem:[#allocation2 + $0x124] sm:$0xf]
      %v2405 = vld [vmem:[#allocation2 + $0x128] sm:$0x7]
      %v2406 = vld [vmem:[#allocation2 + $0x130] sm:$0x8]
      %v2407 = vld [vmem:[#allocation2 + $0x134] sm:$0xf]
      %v2408 = vld [vmem:[#allocation2 + $0x138] sm:$0x7]
      %v2409 = vld [vmem:[#allocation2 + $0x140] sm:$0x8]
      %v2410 = vld [vmem:[#allocation2 + $0x144] sm:$0xf]
      %v2411 = vld [vmem:[#allocation2 + $0x148] sm:$0x7]
      %v2412 = vld [vmem:[#allocation2 + $0x150] sm:$0x8]
      %v2413 = vld [vmem:[#allocation2 + $0x154] sm:$0xf]
      %v2414 = vld [vmem:[#allocation2 + $0x158] sm:$0x7]
      %v2415 = vld [vmem:[#allocation2 + $0x160] sm:$0x8]
      %v2416 = vld [vmem:[#allocation2 + $0x164] sm:$0xf]
      %v2417 = vld [vmem:[#allocation2 + $0x168] sm:$0x7]
      %v2418 = vld [vmem:[#allocation2 + $0x170] sm:$0x8]
      %v2419 = vld [vmem:[#allocation2 + $0x174] sm:$0xf]
      %v2420 = vld [vmem:[#allocation2 + $0x178] sm:$0x7]
      %v2421 = vld [vmem:[#allocation2 + $0x180] sm:$0x8]
      %v2422 = vld [vmem:[#allocation2 + $0x184] sm:$0xf]
      %v2423 = vld [vmem:[#allocation2 + $0x188] sm:$0x7]
      %v2424 = vld [vmem:[#allocation2 + $0x190] sm:$0x8]
      %v2425 = vld [vmem:[#allocation2 + $0x194] sm:$0xf]
      %v2426 = vld [vmem:[#allocation2 + $0x198] sm:$0x7]
      %vm2505 = vcmask 1040384
      %vm2506 = vcmask 1044484
      %vm2507 = vmor %vm2505, %vm2506
      %v2508 = vrot.slane %v2349, 7
      %v2509 = vrot.slane %v2508, 4
      %v2510 = vrot.slane %v2350, 7
      %v2511 = vsel %vm2507, %v2509, %v2510
      %v2512 = vrot.slane %v2510, 4
      %v2513 = vrot.slane %v2351, 7
      %v2514 = vsel %vm2507, %v2512, %v2513
      %v2515 = vrot.slane %v2352, 7
      %v2516 = vrot.slane %v2515, 4
      %v2517 = vrot.slane %v2353, 7
      %v2518 = vsel %vm2507, %v2516, %v2517
      %v2519 = vrot.slane %v2517, 4
      %v2520 = vrot.slane %v2354, 7
      %v2521 = vsel %vm2507, %v2519, %v2520
      %v2522 = vrot.slane %v2355, 7
      %v2523 = vrot.slane %v2522, 4
      %v2524 = vrot.slane %v2356, 7
      %v2525 = vsel %vm2507, %v2523, %v2524
      %v2526 = vrot.slane %v2524, 4
      %v2527 = vrot.slane %v2357, 7
      %v2528 = vsel %vm2507, %v2526, %v2527
      %v2529 = vrot.slane %v2358, 7
      %v2530 = vrot.slane %v2529, 4
      %v2531 = vrot.slane %v2359, 7
      %v2532 = vsel %vm2507, %v2530, %v2531
      %v2533 = vrot.slane %v2531, 4
      %v2534 = vrot.slane %v2360, 7
      %v2535 = vsel %vm2507, %v2533, %v2534
      %v2536 = vrot.slane %v2361, 7
      %v2537 = vrot.slane %v2536, 4
      %v2538 = vrot.slane %v2362, 7
      %v2539 = vsel %vm2507, %v2537, %v2538
      %v2540 = vrot.slane %v2538, 4
      %v2541 = vrot.slane %v2363, 7
      %v2542 = vsel %vm2507, %v2540, %v2541
      %v2543 = vrot.slane %v2364, 7
      %v2544 = vrot.slane %v2543, 4
      %v2545 = vrot.slane %v2365, 7
      %v2546 = vsel %vm2507, %v2544, %v2545
      %v2547 = vrot.slane %v2545, 4
      %v2548 = vrot.slane %v2366, 7
      %v2549 = vsel %vm2507, %v2547, %v2548
      %v2550 = vrot.slane %v2367, 7
      %v2551 = vrot.slane %v2550, 4
      %v2552 = vrot.slane %v2368, 7
      %v2553 = vsel %vm2507, %v2551, %v2552
      %v2554 = vrot.slane %v2552, 4
      %v2555 = vrot.slane %v2369, 7
      %v2556 = vsel %vm2507, %v2554, %v2555
      %v2557 = vrot.slane %v2370, 7
      %v2558 = vrot.slane %v2557, 4
      %v2559 = vrot.slane %v2371, 7
      %v2560 = vsel %vm2507, %v2558, %v2559
      %v2561 = vrot.slane %v2559, 4
      %v2562 = vrot.slane %v2372, 7
      %v2563 = vsel %vm2507, %v2561, %v2562
      %v2564 = vrot.slane %v2373, 7
      %v2565 = vrot.slane %v2564, 4
      %v2566 = vrot.slane %v2374, 7
      %v2567 = vsel %vm2507, %v2565, %v2566
      %v2568 = vrot.slane %v2566, 4
      %v2569 = vrot.slane %v2375, 7
      %v2570 = vsel %vm2507, %v2568, %v2569
      %v2571 = vrot.slane %v2376, 7
      %v2572 = vrot.slane %v2571, 4
      %v2573 = vrot.slane %v2377, 7
      %v2574 = vsel %vm2507, %v2572, %v2573
      %v2575 = vrot.slane %v2573, 4
      %v2576 = vrot.slane %v2378, 7
      %v2577 = vsel %vm2507, %v2575, %v2576
      %v2578 = vrot.slane %v2379, 7
      %v2579 = vrot.slane %v2578, 4
      %v2580 = vrot.slane %v2380, 7
      %v2581 = vsel %vm2507, %v2579, %v2580
      %v2582 = vrot.slane %v2580, 4
      %v2583 = vrot.slane %v2381, 7
      %v2584 = vsel %vm2507, %v2582, %v2583
      %v2585 = vrot.slane %v2382, 7
      %v2586 = vrot.slane %v2585, 4
      %v2587 = vrot.slane %v2383, 7
      %v2588 = vsel %vm2507, %v2586, %v2587
      %v2589 = vrot.slane %v2587, 4
      %v2590 = vrot.slane %v2384, 7
      %v2591 = vsel %vm2507, %v2589, %v2590
      %v2592 = vrot.slane %v2385, 7
      %v2593 = vrot.slane %v2592, 4
      %v2594 = vrot.slane %v2386, 7
      %v2595 = vsel %vm2507, %v2593, %v2594
      %v2596 = vrot.slane %v2594, 4
      %v2597 = vrot.slane %v2387, 7
      %v2598 = vsel %vm2507, %v2596, %v2597
      %v2599 = vrot.slane %v2388, 7
      %v2600 = vrot.slane %v2599, 4
      %v2601 = vrot.slane %v2389, 7
      %v2602 = vsel %vm2507, %v2600, %v2601
      %v2603 = vrot.slane %v2601, 4
      %v2604 = vrot.slane %v2390, 7
      %v2605 = vsel %vm2507, %v2603, %v2604
      %v2606 = vrot.slane %v2391, 7
      %v2607 = vrot.slane %v2606, 4
      %v2608 = vrot.slane %v2392, 7
      %v2609 = vsel %vm2507, %v2607, %v2608
      %v2610 = vrot.slane %v2608, 4
      %v2611 = vrot.slane %v2393, 7
      %v2612 = vsel %vm2507, %v2610, %v2611
      %v2613 = vrot.slane %v2394, 7
      %v2614 = vrot.slane %v2613, 4
      %v2615 = vrot.slane %v2395, 7
      %v2616 = vsel %vm2507, %v2614, %v2615
      %v2617 = vrot.slane %v2615, 4
      %v2618 = vrot.slane %v2396, 7
      %v2619 = vsel %vm2507, %v2617, %v2618
      %v2620 = vrot.slane %v2397, 7
      %v2621 = vrot.slane %v2620, 4
      %v2622 = vrot.slane %v2398, 7
      %v2623 = vsel %vm2507, %v2621, %v2622
      %v2624 = vrot.slane %v2622, 4
      %v2625 = vrot.slane %v2399, 7
      %v2626 = vsel %vm2507, %v2624, %v2625
      %v2627 = vrot.slane %v2400, 7
      %v2628 = vrot.slane %v2627, 4
      %v2629 = vrot.slane %v2401, 7
      %v2630 = vsel %vm2507, %v2628, %v2629
      %v2631 = vrot.slane %v2629, 4
      %v2632 = vrot.slane %v2402, 7
      %v2633 = vsel %vm2507, %v2631, %v2632
      %v2634 = vrot.slane %v2403, 7
      %v2635 = vrot.slane %v2634, 4
      %v2636 = vrot.slane %v2404, 7
      %v2637 = vsel %vm2507, %v2635, %v2636
      %v2638 = vrot.slane %v2636, 4
      %v2639 = vrot.slane %v2405, 7
      %v2640 = vsel %vm2507, %v2638, %v2639
      %v2641 = vrot.slane %v2406, 7
      %v2642 = vrot.slane %v2641, 4
      %v2643 = vrot.slane %v2407, 7
      %v2644 = vsel %vm2507, %v2642, %v2643
      %v2645 = vrot.slane %v2643, 4
      %v2646 = vrot.slane %v2408, 7
      %v2647 = vsel %vm2507, %v2645, %v2646
      %v2648 = vrot.slane %v2409, 7
      %v2649 = vrot.slane %v2648, 4
      %v2650 = vrot.slane %v2410, 7
      %v2651 = vsel %vm2507, %v2649, %v2650
      %v2652 = vrot.slane %v2650, 4
      %v2653 = vrot.slane %v2411, 7
      %v2654 = vsel %vm2507, %v2652, %v2653
      %v2655 = vrot.slane %v2412, 7
      %v2656 = vrot.slane %v2655, 4
      %v2657 = vrot.slane %v2413, 7
      %v2658 = vsel %vm2507, %v2656, %v2657
      %v2659 = vrot.slane %v2657, 4
      %v2660 = vrot.slane %v2414, 7
      %v2661 = vsel %vm2507, %v2659, %v2660
      %v2662 = vrot.slane %v2415, 7
      %v2663 = vrot.slane %v2662, 4
      %v2664 = vrot.slane %v2416, 7
      %v2665 = vsel %vm2507, %v2663, %v2664
      %v2666 = vrot.slane %v2664, 4
      %v2667 = vrot.slane %v2417, 7
      %v2668 = vsel %vm2507, %v2666, %v2667
      %v2669 = vrot.slane %v2418, 7
      %v2670 = vrot.slane %v2669, 4
      %v2671 = vrot.slane %v2419, 7
      %v2672 = vsel %vm2507, %v2670, %v2671
      %v2673 = vrot.slane %v2671, 4
      %v2674 = vrot.slane %v2420, 7
      %v2675 = vsel %vm2507, %v2673, %v2674
      %v2676 = vrot.slane %v2421, 7
      %v2677 = vrot.slane %v2676, 4
      %v2678 = vrot.slane %v2422, 7
      %v2679 = vsel %vm2507, %v2677, %v2678
      %v2680 = vrot.slane %v2678, 4
      %v2681 = vrot.slane %v2423, 7
      %v2682 = vsel %vm2507, %v2680, %v2681
      %v2683 = vrot.slane %v2424, 7
      %v2684 = vrot.slane %v2683, 4
      %v2685 = vrot.slane %v2425, 7
      %v2686 = vsel %vm2507, %v2684, %v2685
      %v2687 = vrot.slane %v2685, 4
      %v2688 = vrot.slane %v2426, 7
      %v2689 = vsel %vm2507, %v2687, %v2688
      %2690 = vrot.lane.b32.xlu0 %v2511, 8
      %v2691 = vpop.permute.xlu0 %2690
      %2692 = vrot.lane.b32.xlu0 %v2514, 8
      %v2693 = vpop.permute.xlu0 %2692
      %2694 = vrot.lane.b32.xlu0 %v2518, 8
      %v2695 = vpop.permute.xlu0 %2694
      %2696 = vrot.lane.b32.xlu0 %v2521, 8
      %v2697 = vpop.permute.xlu0 %2696
      %2698 = vrot.lane.b32.xlu0 %v2525, 8
      %v2699 = vpop.permute.xlu0 %2698
      %2700 = vrot.lane.b32.xlu0 %v2528, 8
      %v2701 = vpop.permute.xlu0 %2700
      %2702 = vrot.lane.b32.xlu0 %v2532, 8
      %v2703 = vpop.permute.xlu0 %2702
      %2704 = vrot.lane.b32.xlu0 %v2535, 8
      %v2705 = vpop.permute.xlu0 %2704
      %2706 = vrot.lane.b32.xlu0 %v2539, 8
      %v2707 = vpop.permute.xlu0 %2706
      %2708 = vrot.lane.b32.xlu0 %v2542, 8
      %v2709 = vpop.permute.xlu0 %2708
      %2710 = vrot.lane.b32.xlu0 %v2546, 8
      %v2711 = vpop.permute.xlu0 %2710
      %2712 = vrot.lane.b32.xlu0 %v2549, 8
      %v2713 = vpop.permute.xlu0 %2712
      %2714 = vrot.lane.b32.xlu0 %v2553, 8
      %v2715 = vpop.permute.xlu0 %2714
      %2716 = vrot.lane.b32.xlu0 %v2556, 8
      %v2717 = vpop.permute.xlu0 %2716
      %2718 = vrot.lane.b32.xlu0 %v2560, 8
      %v2719 = vpop.permute.xlu0 %2718
      %2720 = vrot.lane.b32.xlu0 %v2563, 8
      %v2721 = vpop.permute.xlu0 %2720
      %2722 = vrot.lane.b32.xlu0 %v2567, 8
      %v2723 = vpop.permute.xlu0 %2722
      %2724 = vrot.lane.b32.xlu0 %v2570, 8
      %v2725 = vpop.permute.xlu0 %2724
      %2726 = vrot.lane.b32.xlu0 %v2574, 8
      %v2727 = vpop.permute.xlu0 %2726
      %2728 = vrot.lane.b32.xlu0 %v2577, 8
      %v2729 = vpop.permute.xlu0 %2728
      %2730 = vrot.lane.b32.xlu0 %v2581, 8
      %v2731 = vpop.permute.xlu0 %2730
      %2732 = vrot.lane.b32.xlu0 %v2584, 8
      %v2733 = vpop.permute.xlu0 %2732
      %2734 = vrot.lane.b32.xlu0 %v2588, 8
      %v2735 = vpop.permute.xlu0 %2734
      %2736 = vrot.lane.b32.xlu0 %v2591, 8
      %v2737 = vpop.permute.xlu0 %2736
      %2738 = vrot.lane.b32.xlu0 %v2595, 8
      %v2739 = vpop.permute.xlu0 %2738
      %2740 = vrot.lane.b32.xlu0 %v2598, 8
      %v2741 = vpop.permute.xlu0 %2740
      %2742 = vrot.lane.b32.xlu0 %v2602, 8
      %v2743 = vpop.permute.xlu0 %2742
      %2744 = vrot.lane.b32.xlu0 %v2605, 8
      %v2745 = vpop.permute.xlu0 %2744
      %2746 = vrot.lane.b32.xlu0 %v2609, 8
      %v2747 = vpop.permute.xlu0 %2746
      %2748 = vrot.lane.b32.xlu0 %v2612, 8
      %v2749 = vpop.permute.xlu0 %2748
      %2750 = vrot.lane.b32.xlu0 %v2616, 8
      %v2751 = vpop.permute.xlu0 %2750
      %2752 = vrot.lane.b32.xlu0 %v2619, 8
      %v2753 = vpop.permute.xlu0 %2752
      %2754 = vrot.lane.b32.xlu0 %v2623, 8
      %v2755 = vpop.permute.xlu0 %2754
      %2756 = vrot.lane.b32.xlu0 %v2626, 8
      %v2757 = vpop.permute.xlu0 %2756
      %2758 = vrot.lane.b32.xlu0 %v2630, 8
      %v2759 = vpop.permute.xlu0 %2758
      %2760 = vrot.lane.b32.xlu0 %v2633, 8
      %v2761 = vpop.permute.xlu0 %2760
      %2762 = vrot.lane.b32.xlu0 %v2637, 8
      %v2763 = vpop.permute.xlu0 %2762
      %2764 = vrot.lane.b32.xlu0 %v2640, 8
      %v2765 = vpop.permute.xlu0 %2764
      %2766 = vrot.lane.b32.xlu0 %v2644, 8
      %v2767 = vpop.permute.xlu0 %2766
      %2768 = vrot.lane.b32.xlu0 %v2647, 8
      %v2769 = vpop.permute.xlu0 %2768
      %2770 = vrot.lane.b32.xlu0 %v2651, 8
      %v2771 = vpop.permute.xlu0 %2770
      %2772 = vrot.lane.b32.xlu0 %v2654, 8
      %v2773 = vpop.permute.xlu0 %2772
      %2774 = vrot.lane.b32.xlu0 %v2658, 8
      %v2775 = vpop.permute.xlu0 %2774
      %2776 = vrot.lane.b32.xlu0 %v2661, 8
      %v2777 = vpop.permute.xlu0 %2776
      %2778 = vrot.lane.b32.xlu0 %v2665, 8
      %v2779 = vpop.permute.xlu0 %2778
      %2780 = vrot.lane.b32.xlu0 %v2668, 8
      %v2781 = vpop.permute.xlu0 %2780
      %2782 = vrot.lane.b32.xlu0 %v2672, 8
      %v2783 = vpop.permute.xlu0 %2782
      %2784 = vrot.lane.b32.xlu0 %v2675, 8
      %v2785 = vpop.permute.xlu0 %2784
      %2786 = vrot.lane.b32.xlu0 %v2679, 8
      %v2787 = vpop.permute.xlu0 %2786
      %2788 = vrot.lane.b32.xlu0 %v2682, 8
      %v2789 = vpop.permute.xlu0 %2788
      %2790 = vrot.lane.b32.xlu0 %v2686, 8
      %v2791 = vpop.permute.xlu0 %2790
      %2792 = vrot.lane.b32.xlu0 %v2689, 8
      %v2793 = vpop.permute.xlu0 %2792
      %vm2846 = vcmask 93248
      %2847 = vst.msk [vmem:[#allocation3] sm:$0xf] %vm2846, %v2691
      %2848 = vst.msk [vmem:[#allocation3 + $0x4] sm:$0xf] %vm2846, %v2693
      %2849 = vst.msk [vmem:[#allocation3 + $0x8] sm:$0xf] %vm2846, %v2695
      %2850 = vst.msk [vmem:[#allocation3 + $0xc] sm:$0xf] %vm2846, %v2697
      %2851 = vst.msk [vmem:[#allocation3 + $0x10] sm:$0xf] %vm2846, %v2699
      %2852 = vst.msk [vmem:[#allocation3 + $0x14] sm:$0xf] %vm2846, %v2701
      %2853 = vst.msk [vmem:[#allocation3 + $0x18] sm:$0xf] %vm2846, %v2703
      %2854 = vst.msk [vmem:[#allocation3 + $0x1c] sm:$0xf] %vm2846, %v2705
      %2855 = vst.msk [vmem:[#allocation3 + $0x20] sm:$0xf] %vm2846, %v2707
      %2856 = vst.msk [vmem:[#allocation3 + $0x24] sm:$0xf] %vm2846, %v2709
      %2857 = vst.msk [vmem:[#allocation3 + $0x28] sm:$0xf] %vm2846, %v2711
      %2858 = vst.msk [vmem:[#allocation3 + $0x2c] sm:$0xf] %vm2846, %v2713
      %2859 = vst.msk [vmem:[#allocation3 + $0x30] sm:$0xf] %vm2846, %v2715
      %2860 = vst.msk [vmem:[#allocation3 + $0x34] sm:$0xf] %vm2846, %v2717
      %2861 = vst.msk [vmem:[#allocation3 + $0x38] sm:$0xf] %vm2846, %v2719
      %2862 = vst.msk [vmem:[#allocation3 + $0x3c] sm:$0xf] %vm2846, %v2721
      %2863 = vst.msk [vmem:[#allocation3 + $0x40] sm:$0xf] %vm2846, %v2723
      %2864 = vst.msk [vmem:[#allocation3 + $0x44] sm:$0xf] %vm2846, %v2725
      %2865 = vst.msk [vmem:[#allocation3 + $0x48] sm:$0xf] %vm2846, %v2727
      %2866 = vst.msk [vmem:[#allocation3 + $0x4c] sm:$0xf] %vm2846, %v2729
      %2867 = vst.msk [vmem:[#allocation3 + $0x50] sm:$0xf] %vm2846, %v2731
      %2868 = vst.msk [vmem:[#allocation3 + $0x54] sm:$0xf] %vm2846, %v2733
      %2869 = vst.msk [vmem:[#allocation3 + $0x58] sm:$0xf] %vm2846, %v2735
      %2870 = vst.msk [vmem:[#allocation3 + $0x5c] sm:$0xf] %vm2846, %v2737
      %2871 = vst.msk [vmem:[#allocation3 + $0x60] sm:$0xf] %vm2846, %v2739
      %2872 = vst.msk [vmem:[#allocation3 + $0x64] sm:$0xf] %vm2846, %v2741
      %2873 = vst.msk [vmem:[#allocation3 + $0x68] sm:$0xf] %vm2846, %v2743
      %2874 = vst.msk [vmem:[#allocation3 + $0x6c] sm:$0xf] %vm2846, %v2745
      %2875 = vst.msk [vmem:[#allocation3 + $0x70] sm:$0xf] %vm2846, %v2747
      %2876 = vst.msk [vmem:[#allocation3 + $0x74] sm:$0xf] %vm2846, %v2749
      %2877 = vst.msk [vmem:[#allocation3 + $0x78] sm:$0xf] %vm2846, %v2751
      %2878 = vst.msk [vmem:[#allocation3 + $0x7c] sm:$0xf] %vm2846, %v2753
      %2879 = vst.msk [vmem:[#allocation3 + $0x80] sm:$0xf] %vm2846, %v2755
      %2880 = vst.msk [vmem:[#allocation3 + $0x84] sm:$0xf] %vm2846, %v2757
      %2881 = vst.msk [vmem:[#allocation3 + $0x88] sm:$0xf] %vm2846, %v2759
      %2882 = vst.msk [vmem:[#allocation3 + $0x8c] sm:$0xf] %vm2846, %v2761
      %2883 = vst.msk [vmem:[#allocation3 + $0x90] sm:$0xf] %vm2846, %v2763
      %2884 = vst.msk [vmem:[#allocation3 + $0x94] sm:$0xf] %vm2846, %v2765
      %2885 = vst.msk [vmem:[#allocation3 + $0x98] sm:$0xf] %vm2846, %v2767
      %2886 = vst.msk [vmem:[#allocation3 + $0x9c] sm:$0xf] %vm2846, %v2769
      %2887 = vst.msk [vmem:[#allocation3 + $0xa0] sm:$0xf] %vm2846, %v2771
      %2888 = vst.msk [vmem:[#allocation3 + $0xa4] sm:$0xf] %vm2846, %v2773
      %2889 = vst.msk [vmem:[#allocation3 + $0xa8] sm:$0xf] %vm2846, %v2775
      %2890 = vst.msk [vmem:[#allocation3 + $0xac] sm:$0xf] %vm2846, %v2777
      %2891 = vst.msk [vmem:[#allocation3 + $0xb0] sm:$0xf] %vm2846, %v2779
      %2892 = vst.msk [vmem:[#allocation3 + $0xb4] sm:$0xf] %vm2846, %v2781
      %2893 = vst.msk [vmem:[#allocation3 + $0xb8] sm:$0xf] %vm2846, %v2783
      %2894 = vst.msk [vmem:[#allocation3 + $0xbc] sm:$0xf] %vm2846, %v2785
      %2895 = vst.msk [vmem:[#allocation3 + $0xc0] sm:$0xf] %vm2846, %v2787
      %2896 = vst.msk [vmem:[#allocation3 + $0xc4] sm:$0xf] %vm2846, %v2789
      %2897 = vst.msk [vmem:[#allocation3 + $0xc8] sm:$0xf] %vm2846, %v2791
      %2898 = vst.msk [vmem:[#allocation3 + $0xcc] sm:$0xf] %vm2846, %v2793
      %v2899 = vld [vmem:[#allocation3 + $0x20] sm:$0xf]
      %v2900 = vld [vmem:[#allocation3 + $0x24] sm:$0xf]
      %v2901 = vld [vmem:[#allocation3 + $0x28] sm:$0xf]
      %v2902 = vld [vmem:[#allocation3 + $0x2c] sm:$0xf]
      %v2903 = vld [vmem:[#allocation3 + $0x30] sm:$0xf]
      %v2904 = vld [vmem:[#allocation3 + $0x34] sm:$0xf]
      %v2905 = vld [vmem:[#allocation3 + $0x38] sm:$0xf]
      %v2906 = vld [vmem:[#allocation3 + $0x3c] sm:$0xf]
      %v2907 = vld [vmem:[#allocation3 + $0x40] sm:$0xf]
      %v2908 = vld [vmem:[#allocation3 + $0x44] sm:$0xf]
      %v2909 = vld [vmem:[#allocation3 + $0x48] sm:$0xf]
      %v2910 = vld [vmem:[#allocation3 + $0x4c] sm:$0xf]
      %v2911 = vld [vmem:[#allocation3 + $0x50] sm:$0xf]
      %v2912 = vld [vmem:[#allocation3 + $0x54] sm:$0xf]
      %v2913 = vld [vmem:[#allocation3 + $0x58] sm:$0xf]
      %v2914 = vld [vmem:[#allocation3 + $0x5c] sm:$0xf]
      %v2915 = vld [vmem:[#allocation3 + $0x60] sm:$0xf]
      %v2916 = vld [vmem:[#allocation3 + $0x64] sm:$0xf]
      %v2917 = vld [vmem:[#allocation3 + $0x68] sm:$0xf]
      %v2918 = vld [vmem:[#allocation3 + $0x6c] sm:$0xf]
      %v2919 = vld [vmem:[#allocation3 + $0x70] sm:$0xf]
      %v2920 = vld [vmem:[#allocation3 + $0x74] sm:$0xf]
      %v2921 = vld [vmem:[#allocation3 + $0x78] sm:$0xf]
      %v2922 = vld [vmem:[#allocation3 + $0x7c] sm:$0xf]
      %v2923 = vld [vmem:[#allocation3 + $0x80] sm:$0xf]
      %v2924 = vld [vmem:[#allocation3 + $0x84] sm:$0xf]
      %v2925 = vld [vmem:[#allocation3 + $0x88] sm:$0xf]
      %v2926 = vld [vmem:[#allocation3 + $0x8c] sm:$0xf]
      %v2927 = vld [vmem:[#allocation3 + $0x90] sm:$0xf]
      %v2928 = vld [vmem:[#allocation3 + $0x94] sm:$0xf]
      %v2929 = vld [vmem:[#allocation3 + $0x98] sm:$0xf]
      %v2930 = vld [vmem:[#allocation3 + $0x9c] sm:$0xf]
      %v2931 = vld [vmem:[%s1] sm:$0xf]
      %v2932 = vld [vmem:[%s1 + $0x4] sm:$0x3]
      %v2933 = vld [vmem:[#allocation3 + $0xa0] sm:$0xf]
      %v2934 = vld [vmem:[#allocation3 + $0xa4] sm:$0xf]
      %s2935 = scalar_lea.vmem %s1, 8
      %v2936 = vld [vmem:[%s2935] sm:$0xf]
      %v2937 = vld [vmem:[%s2935 + $0x4] sm:$0x3]
      %v2970 = vunpack.c.l.b16 %v2901
      %v2971 = vunpack.c.l.b16 %v2902
      %v2972 = vunpack.c.l.b16 %v2903
      %v2973 = vunpack.c.l.b16 %v2904
      %v2974 = vunpack.c.l.b16 %v2905
      %v2975 = vunpack.c.l.b16 %v2906
      %v2976 = vunpack.c.l.b16 %v2907
      %v2977 = vunpack.c.l.b16 %v2908
      %v2978 = vunpack.c.l.b16 %v2909
      %v2979 = vunpack.c.l.b16 %v2910
      %v2980 = vunpack.c.l.b16 %v2911
      %v2981 = vunpack.c.l.b16 %v2912
      %v2982 = vunpack.c.l.b16 %v2913
      %v2983 = vunpack.c.l.b16 %v2914
      %v2984 = vunpack.c.l.b16 %v2915
      %v2985 = vunpack.c.l.b16 %v2916
      %v2986 = vunpack.c.l.b16 %v2917
      %v2987 = vunpack.c.l.b16 %v2918
      %v2988 = vunpack.c.l.b16 %v2919
      %v2989 = vunpack.c.l.b16 %v2920
      %v2990 = vunpack.c.l.b16 %v2921
      %v2991 = vunpack.c.l.b16 %v2922
      %v2992 = vunpack.c.l.b16 %v2923
      %v2993 = vunpack.c.l.b16 %v2924
      %v2994 = vunpack.c.l.b16 %v2925
      %v2995 = vunpack.c.l.b16 %v2926
      %v2996 = vunpack.c.l.b16 %v2927
      %v2997 = vunpack.c.l.b16 %v2928
      %v2998 = vunpack.c.l.b16 %v2929
      %v2999 = vunpack.c.l.b16 %v2930
      %v3000 = vunpack.c.l.b16 %v2933
      %v3001 = vunpack.c.l.b16 %v2934
      %v3002 = vpack.c.b16 %v2971, %v2970
      %v3003 = vpack.c.b16 %v2973, %v2972
      %v3004 = vpack.c.b16 %v2975, %v2974
      %v3005 = vpack.c.b16 %v2977, %v2976
      %v3006 = vpack.c.b16 %v2979, %v2978
      %v3007 = vpack.c.b16 %v2981, %v2980
      %v3008 = vpack.c.b16 %v2983, %v2982
      %v3009 = vpack.c.b16 %v2985, %v2984
      %v3010 = vpack.c.b16 %v2987, %v2986
      %v3011 = vpack.c.b16 %v2989, %v2988
      %v3012 = vpack.c.b16 %v2991, %v2990
      %v3013 = vpack.c.b16 %v2993, %v2992
      %v3014 = vpack.c.b16 %v2995, %v2994
      %v3015 = vpack.c.b16 %v2997, %v2996
      %v3016 = vpack.c.b16 %v2999, %v2998
      %v3017 = vpack.c.b16 %v3001, %v3000
      %v3020 = vunpack.c.l.b16 %v2936
      %v3021 = vunpack.c.l.b16 %v2937
      %v3022 = vpack.c.b16 %v3021, %v3020
      %vm3023 = vcmask 97280
      %v3025 = vsel %vm3023, %v3002, 0
      %v3028 = vsel %vm3023, %v3003, 0
      %v3031 = vsel %vm3023, %v3004, 0
      %v3034 = vsel %vm3023, %v3005, 0
      %v3037 = vsel %vm3023, %v3006, 0
      %v3040 = vsel %vm3023, %v3007, 0
      %v3043 = vsel %vm3023, %v3008, 0
      %v3046 = vsel %vm3023, %v3009, 0
      %v3049 = vsel %vm3023, %v3010, 0
      %v3052 = vsel %vm3023, %v3011, 0
      %v3055 = vsel %vm3023, %v3012, 0
      %v3058 = vsel %vm3023, %v3013, 0
      %v3061 = vsel %vm3023, %v3014, 0
      %v3064 = vsel %vm3023, %v3015, 0
      %v3067 = vsel %vm3023, %v3016, 0
      %v3070 = vsel %vm3023, %v3017, 0
      %vm3072 = vcmask 1045504
      %v3074 = vsel %vm3072, %v3022, 0
      %3076 = vmatpush.bf16.msra.mxu0 0
      %3077 = vmatpush.bf16.msra.mxu0 0
      %3078 = vmatpush.bf16.msra.mxu0 0
      %3079 = vmatpush.bf16.msra.mxu0 0
      %3080 = vmatpush.bf16.msra.mxu0 0
      %3081 = vmatpush.bf16.msra.mxu0 0
      %3082 = vmatpush.bf16.msra.mxu0 0
      %3083 = vmatpush.bf16.msra.mxu0 %v3074
      %3084 = vmatmul.bf16.gmra.mxu0 %v3025
      %v3085 = vpop.f32.mrf.mxu0
      %v3086 = vadd.f32 0.0, %v3085
      %v3087 = vpop.f32.mrf.mxu0
      %v3088 = vadd.f32 0.0, %v3087
      %3089 = vmatmul.bf16.gmra.mxu0 %v3028
      %v3090 = vpop.f32.mrf.mxu0
      %v3091 = vadd.f32 0.0, %v3090
      %v3092 = vpop.f32.mrf.mxu0
      %v3093 = vadd.f32 0.0, %v3092
      %3094 = vmatmul.bf16.gmra.mxu0 %v3031
      %v3095 = vpop.f32.mrf.mxu0
      %v3096 = vadd.f32 0.0, %v3095
      %v3097 = vpop.f32.mrf.mxu0
      %v3098 = vadd.f32 0.0, %v3097
      %3099 = vmatmul.bf16.gmra.mxu0 %v3034
      %v3100 = vpop.f32.mrf.mxu0
      %v3101 = vadd.f32 0.0, %v3100
      %v3102 = vpop.f32.mrf.mxu0
      %v3103 = vadd.f32 0.0, %v3102
      %3104 = vmatmul.bf16.gmra.mxu0 %v3037
      %v3105 = vpop.f32.mrf.mxu0
      %v3106 = vadd.f32 0.0, %v3105
      %v3107 = vpop.f32.mrf.mxu0
      %v3108 = vadd.f32 0.0, %v3107
      %3109 = vmatmul.bf16.gmra.mxu0 %v3040
      %v3110 = vpop.f32.mrf.mxu0
      %v3111 = vadd.f32 0.0, %v3110
      %v3112 = vpop.f32.mrf.mxu0
      %v3113 = vadd.f32 0.0, %v3112
      %3114 = vmatmul.bf16.gmra.mxu0 %v3043
      %v3115 = vpop.f32.mrf.mxu0
      %v3116 = vadd.f32 0.0, %v3115
      %v3117 = vpop.f32.mrf.mxu0
      %v3118 = vadd.f32 0.0, %v3117
      %3119 = vmatmul.bf16.gmra.mxu0 %v3046
      %v3120 = vpop.f32.mrf.mxu0
      %v3121 = vadd.f32 0.0, %v3120
      %v3122 = vpop.f32.mrf.mxu0
      %v3123 = vadd.f32 0.0, %v3122
      %3124 = vmatmul.bf16.gmra.mxu0 %v3049
      %v3125 = vpop.f32.mrf.mxu0
      %v3126 = vadd.f32 0.0, %v3125
      %v3127 = vpop.f32.mrf.mxu0
      %v3128 = vadd.f32 0.0, %v3127
      %3129 = vmatmul.bf16.gmra.mxu0 %v3052
      %v3130 = vpop.f32.mrf.mxu0
      %v3131 = vadd.f32 0.0, %v3130
      %v3132 = vpop.f32.mrf.mxu0
      %v3133 = vadd.f32 0.0, %v3132
      %3134 = vmatmul.bf16.gmra.mxu0 %v3055
      %v3135 = vpop.f32.mrf.mxu0
      %v3136 = vadd.f32 0.0, %v3135
      %v3137 = vpop.f32.mrf.mxu0
      %v3138 = vadd.f32 0.0, %v3137
      %3139 = vmatmul.bf16.gmra.mxu0 %v3058
      %v3140 = vpop.f32.mrf.mxu0
      %v3141 = vadd.f32 0.0, %v3140
      %v3142 = vpop.f32.mrf.mxu0
      %v3143 = vadd.f32 0.0, %v3142
      %3144 = vmatmul.bf16.gmra.mxu0 %v3061
      %v3145 = vpop.f32.mrf.mxu0
      %v3146 = vadd.f32 0.0, %v3145
      %v3147 = vpop.f32.mrf.mxu0
      %v3148 = vadd.f32 0.0, %v3147
      %3149 = vmatmul.bf16.gmra.mxu0 %v3064
      %v3150 = vpop.f32.mrf.mxu0
      %v3151 = vadd.f32 0.0, %v3150
      %v3152 = vpop.f32.mrf.mxu0
      %v3153 = vadd.f32 0.0, %v3152
      %3154 = vmatmul.bf16.gmra.mxu0 %v3067
      %v3155 = vpop.f32.mrf.mxu0
      %v3156 = vadd.f32 0.0, %v3155
      %v3157 = vpop.f32.mrf.mxu0
      %v3158 = vadd.f32 0.0, %v3157
      %3159 = vmatmul.bf16.gmra.mxu0 %v3070
      %v3160 = vpop.f32.mrf.mxu0
      %v3161 = vadd.f32 0.0, %v3160
      %v3162 = vpop.f32.mrf.mxu0
      %v3163 = vadd.f32 0.0, %v3162
      %3164 = vdwg.mxu0
      %v3167 = vunpack.c.l.b16 %v2899
      %v3168 = vunpack.c.l.b16 %v2900
      %v3169 = vpack.c.b16 %v3168, %v3167
      %v3172 = vunpack.c.l.b16 %v2931
      %v3173 = vunpack.c.l.b16 %v2932
      %v3174 = vpack.c.b16 %v3173, %v3172
      %v3176 = vsel %vm3023, %v3169, 0
      %v3179 = vsel %vm3072, %v3174, 0
      %3181 = vmatpush.bf16.msra.mxu0 0
      %3182 = vmatpush.bf16.msra.mxu0 0
      %3183 = vmatpush.bf16.msra.mxu0 0
      %3184 = vmatpush.bf16.msra.mxu0 0
      %3185 = vmatpush.bf16.msra.mxu0 0
      %3186 = vmatpush.bf16.msra.mxu0 0
      %3187 = vmatpush.bf16.msra.mxu0 0
      %3188 = vmatpush.bf16.msra.mxu0 %v3179
      %3189 = vmatmul.bf16.gmra.mxu0 %v3176
      %v3190 = vpop.f32.mrf.mxu0
      %v3191 = vadd.f32 %v3086, %v3190
      %v3192 = vpop.f32.mrf.mxu0
      %v3193 = vadd.f32 %v3088, %v3192
      %3194 = vmatmul.bf16.gmra.mxu0 %v3025
      %v3195 = vpop.f32.mrf.mxu0
      %v3196 = vadd.f32 %v3091, %v3195
      %v3197 = vpop.f32.mrf.mxu0
      %v3198 = vadd.f32 %v3093, %v3197
      %3199 = vmatmul.bf16.gmra.mxu0 %v3028
      %v3200 = vpop.f32.mrf.mxu0
      %v3201 = vadd.f32 %v3096, %v3200
      %v3202 = vpop.f32.mrf.mxu0
      %v3203 = vadd.f32 %v3098, %v3202
      %3204 = vmatmul.bf16.gmra.mxu0 %v3031
      %v3205 = vpop.f32.mrf.mxu0
      %v3206 = vadd.f32 %v3101, %v3205
      %v3207 = vpop.f32.mrf.mxu0
      %v3208 = vadd.f32 %v3103, %v3207
      %3209 = vmatmul.bf16.gmra.mxu0 %v3034
      %v3210 = vpop.f32.mrf.mxu0
      %v3211 = vadd.f32 %v3106, %v3210
      %v3212 = vpop.f32.mrf.mxu0
      %v3213 = vadd.f32 %v3108, %v3212
      %3214 = vmatmul.bf16.gmra.mxu0 %v3037
      %v3215 = vpop.f32.mrf.mxu0
      %v3216 = vadd.f32 %v3111, %v3215
      %v3217 = vpop.f32.mrf.mxu0
      %v3218 = vadd.f32 %v3113, %v3217
      %3219 = vmatmul.bf16.gmra.mxu0 %v3040
      %v3220 = vpop.f32.mrf.mxu0
      %v3221 = vadd.f32 %v3116, %v3220
      %v3222 = vpop.f32.mrf.mxu0
      %v3223 = vadd.f32 %v3118, %v3222
      %3224 = vmatmul.bf16.gmra.mxu0 %v3043
      %v3225 = vpop.f32.mrf.mxu0
      %v3226 = vadd.f32 %v3121, %v3225
      %v3227 = vpop.f32.mrf.mxu0
      %v3228 = vadd.f32 %v3123, %v3227
      %3229 = vmatmul.bf16.gmra.mxu0 %v3046
      %v3230 = vpop.f32.mrf.mxu0
      %v3231 = vadd.f32 %v3126, %v3230
      %v3232 = vpop.f32.mrf.mxu0
      %v3233 = vadd.f32 %v3128, %v3232
      %3234 = vmatmul.bf16.gmra.mxu0 %v3049
      %v3235 = vpop.f32.mrf.mxu0
      %v3236 = vadd.f32 %v3131, %v3235
      %v3237 = vpop.f32.mrf.mxu0
      %v3238 = vadd.f32 %v3133, %v3237
      %3239 = vmatmul.bf16.gmra.mxu0 %v3052
      %v3240 = vpop.f32.mrf.mxu0
      %v3241 = vadd.f32 %v3136, %v3240
      %v3242 = vpop.f32.mrf.mxu0
      %v3243 = vadd.f32 %v3138, %v3242
      %3244 = vmatmul.bf16.gmra.mxu0 %v3055
      %v3245 = vpop.f32.mrf.mxu0
      %v3246 = vadd.f32 %v3141, %v3245
      %v3247 = vpop.f32.mrf.mxu0
      %v3248 = vadd.f32 %v3143, %v3247
      %3249 = vmatmul.bf16.gmra.mxu0 %v3058
      %v3250 = vpop.f32.mrf.mxu0
      %v3251 = vadd.f32 %v3146, %v3250
      %v3252 = vpop.f32.mrf.mxu0
      %v3253 = vadd.f32 %v3148, %v3252
      %3254 = vmatmul.bf16.gmra.mxu0 %v3061
      %v3255 = vpop.f32.mrf.mxu0
      %v3256 = vadd.f32 %v3151, %v3255
      %v3257 = vpop.f32.mrf.mxu0
      %v3258 = vadd.f32 %v3153, %v3257
      %3259 = vmatmul.bf16.gmra.mxu0 %v3064
      %v3260 = vpop.f32.mrf.mxu0
      %v3261 = vadd.f32 %v3156, %v3260
      %v3262 = vpop.f32.mrf.mxu0
      %v3263 = vadd.f32 %v3158, %v3262
      %3264 = vmatmul.bf16.gmra.mxu0 %v3067
      %v3265 = vpop.f32.mrf.mxu0
      %v3266 = vadd.f32 %v3161, %v3265
      %v3267 = vpop.f32.mrf.mxu0
      %v3268 = vadd.f32 %v3163, %v3267
      %3269 = vdwg.mxu0
      %v3270 = vld [vmem:[#allocation3 + $0x30] sm:$0xf]
      %v3271 = vld [vmem:[#allocation3 + $0x34] sm:$0xf]
      %v3272 = vld [vmem:[#allocation3 + $0x38] sm:$0xf]
      %v3273 = vld [vmem:[#allocation3 + $0x3c] sm:$0xf]
      %v3274 = vld [vmem:[#allocation3 + $0x40] sm:$0xf]
      %v3275 = vld [vmem:[#allocation3 + $0x44] sm:$0xf]
      %v3276 = vld [vmem:[#allocation3 + $0x48] sm:$0xf]
      %v3277 = vld [vmem:[#allocation3 + $0x4c] sm:$0xf]
      %v3278 = vld [vmem:[#allocation3 + $0x50] sm:$0xf]
      %v3279 = vld [vmem:[#allocation3 + $0x54] sm:$0xf]
      %v3280 = vld [vmem:[#allocation3 + $0x58] sm:$0xf]
      %v3281 = vld [vmem:[#allocation3 + $0x5c] sm:$0xf]
      %v3282 = vld [vmem:[#allocation3 + $0x60] sm:$0xf]
      %v3283 = vld [vmem:[#allocation3 + $0x64] sm:$0xf]
      %v3284 = vld [vmem:[#allocation3 + $0x68] sm:$0xf]
      %v3285 = vld [vmem:[#allocation3 + $0x6c] sm:$0xf]
      %v3286 = vld [vmem:[#allocation3 + $0x70] sm:$0xf]
      %v3287 = vld [vmem:[#allocation3 + $0x74] sm:$0xf]
      %v3288 = vld [vmem:[#allocation3 + $0x78] sm:$0xf]
      %v3289 = vld [vmem:[#allocation3 + $0x7c] sm:$0xf]
      %v3290 = vld [vmem:[#allocation3 + $0x80] sm:$0xf]
      %v3291 = vld [vmem:[#allocation3 + $0x84] sm:$0xf]
      %v3292 = vld [vmem:[#allocation3 + $0x88] sm:$0xf]
      %v3293 = vld [vmem:[#allocation3 + $0x8c] sm:$0xf]
      %v3294 = vld [vmem:[#allocation3 + $0x90] sm:$0xf]
      %v3295 = vld [vmem:[#allocation3 + $0x94] sm:$0xf]
      %v3296 = vld [vmem:[#allocation3 + $0x98] sm:$0xf]
      %v3297 = vld [vmem:[#allocation3 + $0x9c] sm:$0xf]
      %v3298 = vld [vmem:[#allocation3 + $0xa0] sm:$0xf]
      %v3299 = vld [vmem:[#allocation3 + $0xa4] sm:$0xf]
      %v3300 = vld [vmem:[#allocation3 + $0xa8] sm:$0xf]
      %v3301 = vld [vmem:[#allocation3 + $0xac] sm:$0xf]
      %s3302 = scalar_lea.vmem %s1, 16
      %v3303 = vld [vmem:[%s3302] sm:$0xf]
      %v3304 = vld [vmem:[%s3302 + $0x4] sm:$0x3]
      %v3337 = vunpack.c.l.b16 %v3270
      %v3338 = vunpack.c.l.b16 %v3271
      %v3339 = vunpack.c.l.b16 %v3272
      %v3340 = vunpack.c.l.b16 %v3273
      %v3341 = vunpack.c.l.b16 %v3274
      %v3342 = vunpack.c.l.b16 %v3275
      %v3343 = vunpack.c.l.b16 %v3276
      %v3344 = vunpack.c.l.b16 %v3277
      %v3345 = vunpack.c.l.b16 %v3278
      %v3346 = vunpack.c.l.b16 %v3279
      %v3347 = vunpack.c.l.b16 %v3280
      %v3348 = vunpack.c.l.b16 %v3281
      %v3349 = vunpack.c.l.b16 %v3282
      %v3350 = vunpack.c.l.b16 %v3283
      %v3351 = vunpack.c.l.b16 %v3284
      %v3352 = vunpack.c.l.b16 %v3285
      %v3353 = vunpack.c.l.b16 %v3286
      %v3354 = vunpack.c.l.b16 %v3287
      %v3355 = vunpack.c.l.b16 %v3288
      %v3356 = vunpack.c.l.b16 %v3289
      %v3357 = vunpack.c.l.b16 %v3290
      %v3358 = vunpack.c.l.b16 %v3291
      %v3359 = vunpack.c.l.b16 %v3292
      %v3360 = vunpack.c.l.b16 %v3293
      %v3361 = vunpack.c.l.b16 %v3294
      %v3362 = vunpack.c.l.b16 %v3295
      %v3363 = vunpack.c.l.b16 %v3296
      %v3364 = vunpack.c.l.b16 %v3297
      %v3365 = vunpack.c.l.b16 %v3298
      %v3366 = vunpack.c.l.b16 %v3299
      %v3367 = vunpack.c.l.b16 %v3300
      %v3368 = vunpack.c.l.b16 %v3301
      %v3369 = vpack.c.b16 %v3338, %v3337
      %v3370 = vpack.c.b16 %v3340, %v3339
      %v3371 = vpack.c.b16 %v3342, %v3341
      %v3372 = vpack.c.b16 %v3344, %v3343
      %v3373 = vpack.c.b16 %v3346, %v3345
      %v3374 = vpack.c.b16 %v3348, %v3347
      %v3375 = vpack.c.b16 %v3350, %v3349
      %v3376 = vpack.c.b16 %v3352, %v3351
      %v3377 = vpack.c.b16 %v3354, %v3353
      %v3378 = vpack.c.b16 %v3356, %v3355
      %v3379 = vpack.c.b16 %v3358, %v3357
      %v3380 = vpack.c.b16 %v3360, %v3359
      %v3381 = vpack.c.b16 %v3362, %v3361
      %v3382 = vpack.c.b16 %v3364, %v3363
      %v3383 = vpack.c.b16 %v3366, %v3365
      %v3384 = vpack.c.b16 %v3368, %v3367
      %v3387 = vunpack.c.l.b16 %v3303
      %v3388 = vunpack.c.l.b16 %v3304
      %v3389 = vpack.c.b16 %v3388, %v3387
      %v3391 = vsel %vm3023, %v3369, 0
      %v3394 = vsel %vm3023, %v3370, 0
      %v3397 = vsel %vm3023, %v3371, 0
      %v3400 = vsel %vm3023, %v3372, 0
      %v3403 = vsel %vm3023, %v3373, 0
      %v3406 = vsel %vm3023, %v3374, 0
      %v3409 = vsel %vm3023, %v3375, 0
      %v3412 = vsel %vm3023, %v3376, 0
      %v3415 = vsel %vm3023, %v3377, 0
      %v3418 = vsel %vm3023, %v3378, 0
      %v3421 = vsel %vm3023, %v3379, 0
      %v3424 = vsel %vm3023, %v3380, 0
      %v3427 = vsel %vm3023, %v3381, 0
      %v3430 = vsel %vm3023, %v3382, 0
      %v3433 = vsel %vm3023, %v3383, 0
      %v3436 = vsel %vm3023, %v3384, 0
      %v3439 = vsel %vm3072, %v3389, 0
      %3441 = vmatpush.bf16.msra.mxu0 0
      %3442 = vmatpush.bf16.msra.mxu0 0
      %3443 = vmatpush.bf16.msra.mxu0 0
      %3444 = vmatpush.bf16.msra.mxu0 0
      %3445 = vmatpush.bf16.msra.mxu0 0
      %3446 = vmatpush.bf16.msra.mxu0 0
      %3447 = vmatpush.bf16.msra.mxu0 0
      %3448 = vmatpush.bf16.msra.mxu0 %v3439
      %3449 = vmatmul.bf16.gmra.mxu0 %v3391
      %v3450 = vpop.f32.mrf.mxu0
      %v3451 = vadd.f32 0.0, %v3450
      %v3452 = vpop.f32.mrf.mxu0
      %v3453 = vadd.f32 0.0, %v3452
      %3454 = vmatmul.bf16.gmra.mxu0 %v3394
      %v3455 = vpop.f32.mrf.mxu0
      %v3456 = vadd.f32 0.0, %v3455
      %v3457 = vpop.f32.mrf.mxu0
      %v3458 = vadd.f32 0.0, %v3457
      %3459 = vmatmul.bf16.gmra.mxu0 %v3397
      %v3460 = vpop.f32.mrf.mxu0
      %v3461 = vadd.f32 0.0, %v3460
      %v3462 = vpop.f32.mrf.mxu0
      %v3463 = vadd.f32 0.0, %v3462
      %3464 = vmatmul.bf16.gmra.mxu0 %v3400
      %v3465 = vpop.f32.mrf.mxu0
      %v3466 = vadd.f32 0.0, %v3465
      %v3467 = vpop.f32.mrf.mxu0
      %v3468 = vadd.f32 0.0, %v3467
      %3469 = vmatmul.bf16.gmra.mxu0 %v3403
      %v3470 = vpop.f32.mrf.mxu0
      %v3471 = vadd.f32 0.0, %v3470
      %v3472 = vpop.f32.mrf.mxu0
      %v3473 = vadd.f32 0.0, %v3472
      %3474 = vmatmul.bf16.gmra.mxu0 %v3406
      %v3475 = vpop.f32.mrf.mxu0
      %v3476 = vadd.f32 0.0, %v3475
      %v3477 = vpop.f32.mrf.mxu0
      %v3478 = vadd.f32 0.0, %v3477
      %3479 = vmatmul.bf16.gmra.mxu0 %v3409
      %v3480 = vpop.f32.mrf.mxu0
      %v3481 = vadd.f32 0.0, %v3480
      %v3482 = vpop.f32.mrf.mxu0
      %v3483 = vadd.f32 0.0, %v3482
      %3484 = vmatmul.bf16.gmra.mxu0 %v3412
      %v3485 = vpop.f32.mrf.mxu0
      %v3486 = vadd.f32 0.0, %v3485
      %v3487 = vpop.f32.mrf.mxu0
      %v3488 = vadd.f32 0.0, %v3487
      %3489 = vmatmul.bf16.gmra.mxu0 %v3415
      %v3490 = vpop.f32.mrf.mxu0
      %v3491 = vadd.f32 0.0, %v3490
      %v3492 = vpop.f32.mrf.mxu0
      %v3493 = vadd.f32 0.0, %v3492
      %3494 = vmatmul.bf16.gmra.mxu0 %v3418
      %v3495 = vpop.f32.mrf.mxu0
      %v3496 = vadd.f32 0.0, %v3495
      %v3497 = vpop.f32.mrf.mxu0
      %v3498 = vadd.f32 0.0, %v3497
      %3499 = vmatmul.bf16.gmra.mxu0 %v3421
      %v3500 = vpop.f32.mrf.mxu0
      %v3501 = vadd.f32 0.0, %v3500
      %v3502 = vpop.f32.mrf.mxu0
      %v3503 = vadd.f32 0.0, %v3502
      %3504 = vmatmul.bf16.gmra.mxu0 %v3424
      %v3505 = vpop.f32.mrf.mxu0
      %v3506 = vadd.f32 0.0, %v3505
      %v3507 = vpop.f32.mrf.mxu0
      %v3508 = vadd.f32 0.0, %v3507
      %3509 = vmatmul.bf16.gmra.mxu0 %v3427
      %v3510 = vpop.f32.mrf.mxu0
      %v3511 = vadd.f32 0.0, %v3510
      %v3512 = vpop.f32.mrf.mxu0
      %v3513 = vadd.f32 0.0, %v3512
      %3514 = vmatmul.bf16.gmra.mxu0 %v3430
      %v3515 = vpop.f32.mrf.mxu0
      %v3516 = vadd.f32 0.0, %v3515
      %v3517 = vpop.f32.mrf.mxu0
      %v3518 = vadd.f32 0.0, %v3517
      %3519 = vmatmul.bf16.gmra.mxu0 %v3433
      %v3520 = vpop.f32.mrf.mxu0
      %v3521 = vadd.f32 0.0, %v3520
      %v3522 = vpop.f32.mrf.mxu0
      %v3523 = vadd.f32 0.0, %v3522
      %3524 = vmatmul.bf16.gmra.mxu0 %v3436
      %v3525 = vpop.f32.mrf.mxu0
      %v3526 = vadd.f32 0.0, %v3525
      %v3527 = vpop.f32.mrf.mxu0
      %v3528 = vadd.f32 0.0, %v3527
      %3529 = vdwg.mxu0
      %v3530 = vadd.f32 %v3191, %v3451
      %v3531 = vadd.f32 %v3193, %v3453
      %v3532 = vadd.f32 %v3196, %v3456
      %v3533 = vadd.f32 %v3198, %v3458
      %v3534 = vadd.f32 %v3201, %v3461
      %v3535 = vadd.f32 %v3203, %v3463
      %v3536 = vadd.f32 %v3206, %v3466
      %v3537 = vadd.f32 %v3208, %v3468
      %v3538 = vadd.f32 %v3211, %v3471
      %v3539 = vadd.f32 %v3213, %v3473
      %v3540 = vadd.f32 %v3216, %v3476
      %v3541 = vadd.f32 %v3218, %v3478
      %v3542 = vadd.f32 %v3221, %v3481
      %v3543 = vadd.f32 %v3223, %v3483
      %v3544 = vadd.f32 %v3226, %v3486
      %v3545 = vadd.f32 %v3228, %v3488
      %v3546 = vadd.f32 %v3231, %v3491
      %v3547 = vadd.f32 %v3233, %v3493
      %v3548 = vadd.f32 %v3236, %v3496
      %v3549 = vadd.f32 %v3238, %v3498
      %v3550 = vadd.f32 %v3241, %v3501
      %v3551 = vadd.f32 %v3243, %v3503
      %v3552 = vadd.f32 %v3246, %v3506
      %v3553 = vadd.f32 %v3248, %v3508
      %v3554 = vadd.f32 %v3251, %v3511
      %v3555 = vadd.f32 %v3253, %v3513
      %v3556 = vadd.f32 %v3256, %v3516
      %v3557 = vadd.f32 %v3258, %v3518
      %v3558 = vadd.f32 %v3261, %v3521
      %v3559 = vadd.f32 %v3263, %v3523
      %v3560 = vadd.f32 %v3266, %v3526
      %v3561 = vadd.f32 %v3268, %v3528
      %v3562 = vld [vmem:[%s2] sm:$0x1]
      %v3564 = vperm.slane %v3562, 0
      %v3566 = vadd.f32 %v3530, %v3564
      %v3567 = vadd.f32 %v3531, %v3564
      %v3568 = vadd.f32 %v3532, %v3564
      %v3569 = vadd.f32 %v3533, %v3564
      %v3570 = vadd.f32 %v3534, %v3564
      %v3571 = vadd.f32 %v3535, %v3564
      %v3572 = vadd.f32 %v3536, %v3564
      %v3573 = vadd.f32 %v3537, %v3564
      %v3574 = vadd.f32 %v3538, %v3564
      %v3575 = vadd.f32 %v3539, %v3564
      %v3576 = vadd.f32 %v3540, %v3564
      %v3577 = vadd.f32 %v3541, %v3564
      %v3578 = vadd.f32 %v3542, %v3564
      %v3579 = vadd.f32 %v3543, %v3564
      %v3580 = vadd.f32 %v3544, %v3564
      %v3581 = vadd.f32 %v3545, %v3564
      %v3582 = vadd.f32 %v3546, %v3564
      %v3583 = vadd.f32 %v3547, %v3564
      %v3584 = vadd.f32 %v3548, %v3564
      %v3585 = vadd.f32 %v3549, %v3564
      %v3586 = vadd.f32 %v3550, %v3564
      %v3587 = vadd.f32 %v3551, %v3564
      %v3588 = vadd.f32 %v3552, %v3564
      %v3589 = vadd.f32 %v3553, %v3564
      %v3590 = vadd.f32 %v3554, %v3564
      %v3591 = vadd.f32 %v3555, %v3564
      %v3592 = vadd.f32 %v3556, %v3564
      %v3593 = vadd.f32 %v3557, %v3564
      %v3594 = vadd.f32 %v3558, %v3564
      %v3595 = vadd.f32 %v3559, %v3564
      %v3596 = vadd.f32 %v3560, %v3564
      %v3597 = vadd.f32 %v3561, %v3564
      %v3598 = vmax.f32 %v3566, 0.0
      %v3599 = vmax.f32 %v3567, 0.0
      %v3600 = vmax.f32 %v3568, 0.0
      %v3601 = vmax.f32 %v3569, 0.0
      %v3602 = vmax.f32 %v3570, 0.0
      %v3603 = vmax.f32 %v3571, 0.0
      %v3604 = vmax.f32 %v3572, 0.0
      %v3605 = vmax.f32 %v3573, 0.0
      %v3606 = vmax.f32 %v3574, 0.0
      %v3607 = vmax.f32 %v3575, 0.0
      %v3608 = vmax.f32 %v3576, 0.0
      %v3609 = vmax.f32 %v3577, 0.0
      %v3610 = vmax.f32 %v3578, 0.0
      %v3611 = vmax.f32 %v3579, 0.0
      %v3612 = vmax.f32 %v3580, 0.0
      %v3613 = vmax.f32 %v3581, 0.0
      %v3614 = vmax.f32 %v3582, 0.0
      %v3615 = vmax.f32 %v3583, 0.0
      %v3616 = vmax.f32 %v3584, 0.0
      %v3617 = vmax.f32 %v3585, 0.0
      %v3618 = vmax.f32 %v3586, 0.0
      %v3619 = vmax.f32 %v3587, 0.0
      %v3620 = vmax.f32 %v3588, 0.0
      %v3621 = vmax.f32 %v3589, 0.0
      %v3622 = vmax.f32 %v3590, 0.0
      %v3623 = vmax.f32 %v3591, 0.0
      %v3624 = vmax.f32 %v3592, 0.0
      %v3625 = vmax.f32 %v3593, 0.0
      %v3626 = vmax.f32 %v3594, 0.0
      %v3627 = vmax.f32 %v3595, 0.0
      %v3628 = vmax.f32 %v3596, 0.0
      %v3629 = vmax.f32 %v3597, 0.0
      %v3630 = vpack.c.bf16 %v3599, %v3598
      %v3631 = vpack.c.bf16 %v3601, %v3600
      %v3632 = vpack.c.bf16 %v3603, %v3602
      %v3633 = vpack.c.bf16 %v3605, %v3604
      %v3634 = vpack.c.bf16 %v3607, %v3606
      %v3635 = vpack.c.bf16 %v3609, %v3608
      %v3636 = vpack.c.bf16 %v3611, %v3610
      %v3637 = vpack.c.bf16 %v3613, %v3612
      %v3638 = vpack.c.bf16 %v3615, %v3614
      %v3639 = vpack.c.bf16 %v3617, %v3616
      %v3640 = vpack.c.bf16 %v3619, %v3618
      %v3641 = vpack.c.bf16 %v3621, %v3620
      %v3642 = vpack.c.bf16 %v3623, %v3622
      %v3643 = vpack.c.bf16 %v3625, %v3624
      %v3644 = vpack.c.bf16 %v3627, %v3626
      %v3645 = vpack.c.bf16 %v3629, %v3628
      %v3646 = vld [vmem:[%s3] sm:$0x3]
      %vm3647 = vcmask 31744
      %v3649 = vsel %vm3647, %v3630, 0
      %v3652 = vsel %vm3647, %v3631, 0
      %v3655 = vsel %vm3647, %v3632, 0
      %v3658 = vsel %vm3647, %v3633, 0
      %v3661 = vsel %vm3647, %v3634, 0
      %v3664 = vsel %vm3647, %v3635, 0
      %v3667 = vsel %vm3647, %v3636, 0
      %v3670 = vsel %vm3647, %v3637, 0
      %v3673 = vsel %vm3647, %v3638, 0
      %v3676 = vsel %vm3647, %v3639, 0
      %v3679 = vsel %vm3647, %v3640, 0
      %v3682 = vsel %vm3647, %v3641, 0
      %v3685 = vsel %vm3647, %v3642, 0
      %v3688 = vsel %vm3647, %v3643, 0
      %v3691 = vsel %vm3647, %v3644, 0
      %v3694 = vsel %vm3647, %v3645, 0
      %vm3696 = vcmask 1041408
      %v3698 = vsel %vm3696, %v3646, 0
      %3700 = vmatpush.bf16.msra.mxu0 0
      %3701 = vmatpush.bf16.msra.mxu0 0
      %3702 = vmatpush.bf16.msra.mxu0 0
      %3703 = vmatpush.bf16.msra.mxu0 0
      %3704 = vmatpush.bf16.msra.mxu0 0
      %3705 = vmatpush.bf16.msra.mxu0 0
      %3706 = vmatpush.bf16.msra.mxu0 0
      %3707 = vmatpush.bf16.msra.mxu0 %v3698
      %3708 = vmatmul.bf16.gmra.mxu0 %v3649
      %v3709 = vpop.f32.mrf.mxu0
      %v3710 = vadd.f32 0.0, %v3709
      %v3711 = vpop.f32.mrf.mxu0
      %v3712 = vadd.f32 0.0, %v3711
      %3713 = vmatmul.bf16.gmra.mxu0 %v3652
      %v3714 = vpop.f32.mrf.mxu0
      %v3715 = vadd.f32 0.0, %v3714
      %v3716 = vpop.f32.mrf.mxu0
      %v3717 = vadd.f32 0.0, %v3716
      %3718 = vmatmul.bf16.gmra.mxu0 %v3655
      %v3719 = vpop.f32.mrf.mxu0
      %v3720 = vadd.f32 0.0, %v3719
      %v3721 = vpop.f32.mrf.mxu0
      %v3722 = vadd.f32 0.0, %v3721
      %3723 = vmatmul.bf16.gmra.mxu0 %v3658
      %v3724 = vpop.f32.mrf.mxu0
      %v3725 = vadd.f32 0.0, %v3724
      %v3726 = vpop.f32.mrf.mxu0
      %v3727 = vadd.f32 0.0, %v3726
      %3728 = vmatmul.bf16.gmra.mxu0 %v3661
      %v3729 = vpop.f32.mrf.mxu0
      %v3730 = vadd.f32 0.0, %v3729
      %v3731 = vpop.f32.mrf.mxu0
      %v3732 = vadd.f32 0.0, %v3731
      %3733 = vmatmul.bf16.gmra.mxu0 %v3664
      %v3734 = vpop.f32.mrf.mxu0
      %v3735 = vadd.f32 0.0, %v3734
      %v3736 = vpop.f32.mrf.mxu0
      %v3737 = vadd.f32 0.0, %v3736
      %3738 = vmatmul.bf16.gmra.mxu0 %v3667
      %v3739 = vpop.f32.mrf.mxu0
      %v3740 = vadd.f32 0.0, %v3739
      %v3741 = vpop.f32.mrf.mxu0
      %v3742 = vadd.f32 0.0, %v3741
      %3743 = vmatmul.bf16.gmra.mxu0 %v3670
      %v3744 = vpop.f32.mrf.mxu0
      %v3745 = vadd.f32 0.0, %v3744
      %v3746 = vpop.f32.mrf.mxu0
      %v3747 = vadd.f32 0.0, %v3746
      %3748 = vmatmul.bf16.gmra.mxu0 %v3673
      %v3749 = vpop.f32.mrf.mxu0
      %v3750 = vadd.f32 0.0, %v3749
      %v3751 = vpop.f32.mrf.mxu0
      %v3752 = vadd.f32 0.0, %v3751
      %3753 = vmatmul.bf16.gmra.mxu0 %v3676
      %v3754 = vpop.f32.mrf.mxu0
      %v3755 = vadd.f32 0.0, %v3754
      %v3756 = vpop.f32.mrf.mxu0
      %v3757 = vadd.f32 0.0, %v3756
      %3758 = vmatmul.bf16.gmra.mxu0 %v3679
      %v3759 = vpop.f32.mrf.mxu0
      %v3760 = vadd.f32 0.0, %v3759
      %v3761 = vpop.f32.mrf.mxu0
      %v3762 = vadd.f32 0.0, %v3761
      %3763 = vmatmul.bf16.gmra.mxu0 %v3682
      %v3764 = vpop.f32.mrf.mxu0
      %v3765 = vadd.f32 0.0, %v3764
      %v3766 = vpop.f32.mrf.mxu0
      %v3767 = vadd.f32 0.0, %v3766
      %3768 = vmatmul.bf16.gmra.mxu0 %v3685
      %v3769 = vpop.f32.mrf.mxu0
      %v3770 = vadd.f32 0.0, %v3769
      %v3771 = vpop.f32.mrf.mxu0
      %v3772 = vadd.f32 0.0, %v3771
      %3773 = vmatmul.bf16.gmra.mxu0 %v3688
      %v3774 = vpop.f32.mrf.mxu0
      %v3775 = vadd.f32 0.0, %v3774
      %v3776 = vpop.f32.mrf.mxu0
      %v3777 = vadd.f32 0.0, %v3776
      %3778 = vmatmul.bf16.gmra.mxu0 %v3691
      %v3779 = vpop.f32.mrf.mxu0
      %v3780 = vadd.f32 0.0, %v3779
      %v3781 = vpop.f32.mrf.mxu0
      %v3782 = vadd.f32 0.0, %v3781
      %3783 = vmatmul.bf16.gmra.mxu0 %v3694
      %v3784 = vpop.f32.mrf.mxu0
      %v3785 = vadd.f32 0.0, %v3784
      %v3786 = vpop.f32.mrf.mxu0
      %v3787 = vadd.f32 0.0, %v3786
      %3788 = vdwg.mxu0
      %3789 = vst.msk [vmem:[#allocation4] sm:$0xff] %vm3647, %v3710
      %3790 = vst.msk [vmem:[#allocation4 + $0x8] sm:$0xff] %vm3647, %v3712
      %3791 = vst.msk [vmem:[#allocation4 + $0x10] sm:$0xff] %vm3647, %v3715
      %3792 = vst.msk [vmem:[#allocation4 + $0x18] sm:$0xff] %vm3647, %v3717
      %3793 = vst.msk [vmem:[#allocation4 + $0x20] sm:$0xff] %vm3647, %v3720
      %3794 = vst.msk [vmem:[#allocation4 + $0x28] sm:$0xff] %vm3647, %v3722
      %3795 = vst.msk [vmem:[#allocation4 + $0x30] sm:$0xff] %vm3647, %v3725
      %3796 = vst.msk [vmem:[#allocation4 + $0x38] sm:$0xff] %vm3647, %v3727
      %3797 = vst.msk [vmem:[#allocation4 + $0x40] sm:$0xff] %vm3647, %v3730
      %3798 = vst.msk [vmem:[#allocation4 + $0x48] sm:$0xff] %vm3647, %v3732
      %3799 = vst.msk [vmem:[#allocation4 + $0x50] sm:$0xff] %vm3647, %v3735
      %3800 = vst.msk [vmem:[#allocation4 + $0x58] sm:$0xff] %vm3647, %v3737
      %3801 = vst.msk [vmem:[#allocation4 + $0x60] sm:$0xff] %vm3647, %v3740
      %3802 = vst.msk [vmem:[#allocation4 + $0x68] sm:$0xff] %vm3647, %v3742
      %3803 = vst.msk [vmem:[#allocation4 + $0x70] sm:$0xff] %vm3647, %v3745
      %3804 = vst.msk [vmem:[#allocation4 + $0x78] sm:$0xff] %vm3647, %v3747
      %3805 = vst.msk [vmem:[#allocation4 + $0x80] sm:$0xff] %vm3647, %v3750
      %3806 = vst.msk [vmem:[#allocation4 + $0x88] sm:$0xff] %vm3647, %v3752
      %3807 = vst.msk [vmem:[#allocation4 + $0x90] sm:$0xff] %vm3647, %v3755
      %3808 = vst.msk [vmem:[#allocation4 + $0x98] sm:$0xff] %vm3647, %v3757
      %3809 = vst.msk [vmem:[#allocation4 + $0xa0] sm:$0xff] %vm3647, %v3760
      %3810 = vst.msk [vmem:[#allocation4 + $0xa8] sm:$0xff] %vm3647, %v3762
      %3811 = vst.msk [vmem:[#allocation4 + $0xb0] sm:$0xff] %vm3647, %v3765
      %3812 = vst.msk [vmem:[#allocation4 + $0xb8] sm:$0xff] %vm3647, %v3767
      %3813 = vst.msk [vmem:[#allocation4 + $0xc0] sm:$0xff] %vm3647, %v3770
      %3814 = vst.msk [vmem:[#allocation4 + $0xc8] sm:$0xff] %vm3647, %v3772
      %3815 = vst.msk [vmem:[#allocation4 + $0xd0] sm:$0xff] %vm3647, %v3775
      %3816 = vst.msk [vmem:[#allocation4 + $0xd8] sm:$0xff] %vm3647, %v3777
      %3817 = vst.msk [vmem:[#allocation4 + $0xe0] sm:$0xff] %vm3647, %v3780
      %3818 = vst.msk [vmem:[#allocation4 + $0xe8] sm:$0xff] %vm3647, %v3782
      %3819 = vst.msk [vmem:[#allocation4 + $0xf0] sm:$0xff] %vm3647, %v3785
      %3820 = vst.msk [vmem:[#allocation4 + $0xf8] sm:$0xff] %vm3647, %v3787
      %v3821 = vld [vmem:[#allocation2] sm:$0xe]
      %v3822 = vld [vmem:[#allocation2 + $0x4] sm:$0xf]
      %v3823 = vld [vmem:[#allocation2 + $0x8] sm:$0x1]
      %v3824 = vld [vmem:[#allocation2 + $0x10] sm:$0xe]
      %v3825 = vld [vmem:[#allocation2 + $0x14] sm:$0xf]
      %v3826 = vld [vmem:[#allocation2 + $0x18] sm:$0x1]
      %v3827 = vld [vmem:[#allocation2 + $0x20] sm:$0xe]
      %v3828 = vld [vmem:[#allocation2 + $0x24] sm:$0xf]
      %v3829 = vld [vmem:[#allocation2 + $0x28] sm:$0x1]
      %v3830 = vld [vmem:[#allocation2 + $0x30] sm:$0xe]
      %v3831 = vld [vmem:[#allocation2 + $0x34] sm:$0xf]
      %v3832 = vld [vmem:[#allocation2 + $0x38] sm:$0x1]
      %v3833 = vld [vmem:[#allocation2 + $0x40] sm:$0xe]
      %v3834 = vld [vmem:[#allocation2 + $0x44] sm:$0xf]
      %v3835 = vld [vmem:[#allocation2 + $0x48] sm:$0x1]
      %v3836 = vld [vmem:[#allocation2 + $0x50] sm:$0xe]
      %v3837 = vld [vmem:[#allocation2 + $0x54] sm:$0xf]
      %v3838 = vld [vmem:[#allocation2 + $0x58] sm:$0x1]
      %v3839 = vld [vmem:[#allocation2 + $0x60] sm:$0xe]
      %v3840 = vld [vmem:[#allocation2 + $0x64] sm:$0xf]
      %v3841 = vld [vmem:[#allocation2 + $0x68] sm:$0x1]
      %v3842 = vld [vmem:[#allocation2 + $0x70] sm:$0xe]
      %v3843 = vld [vmem:[#allocation2 + $0x74] sm:$0xf]
      %v3844 = vld [vmem:[#allocation2 + $0x78] sm:$0x1]
      %v3845 = vld [vmem:[#allocation2 + $0x80] sm:$0xe]
      %v3846 = vld [vmem:[#allocation2 + $0x84] sm:$0xf]
      %v3847 = vld [vmem:[#allocation2 + $0x88] sm:$0x1]
      %v3848 = vld [vmem:[#allocation2 + $0x90] sm:$0xe]
      %v3849 = vld [vmem:[#allocation2 + $0x94] sm:$0xf]
      %v3850 = vld [vmem:[#allocation2 + $0x98] sm:$0x1]
      %v3851 = vld [vmem:[#allocation2 + $0xa0] sm:$0xe]
      %v3852 = vld [vmem:[#allocation2 + $0xa4] sm:$0xf]
      %v3853 = vld [vmem:[#allocation2 + $0xa8] sm:$0x1]
      %v3854 = vld [vmem:[#allocation2 + $0xb0] sm:$0xe]
      %v3855 = vld [vmem:[#allocation2 + $0xb4] sm:$0xf]
      %v3856 = vld [vmem:[#allocation2 + $0xb8] sm:$0x1]
      %v3857 = vld [vmem:[#allocation2 + $0xc0] sm:$0xe]
      %v3858 = vld [vmem:[#allocation2 + $0xc4] sm:$0xf]
      %v3859 = vld [vmem:[#allocation2 + $0xc8] sm:$0x1]
      %v3860 = vld [vmem:[#allocation2 + $0xd0] sm:$0xe]
      %v3861 = vld [vmem:[#allocation2 + $0xd4] sm:$0xf]
      %v3862 = vld [vmem:[#allocation2 + $0xd8] sm:$0x1]
      %v3863 = vld [vmem:[#allocation2 + $0xe0] sm:$0xe]
      %v3864 = vld [vmem:[#allocation2 + $0xe4] sm:$0xf]
      %v3865 = vld [vmem:[#allocation2 + $0xe8] sm:$0x1]
      %v3866 = vld [vmem:[#allocation2 + $0xf0] sm:$0xe]
      %v3867 = vld [vmem:[#allocation2 + $0xf4] sm:$0xf]
      %v3868 = vld [vmem:[#allocation2 + $0xf8] sm:$0x1]
      %v3869 = vld [vmem:[#allocation2 + $0x100] sm:$0xe]
      %v3870 = vld [vmem:[#allocation2 + $0x104] sm:$0xf]
      %v3871 = vld [vmem:[#allocation2 + $0x108] sm:$0x1]
      %v3872 = vld [vmem:[#allocation2 + $0x110] sm:$0xe]
      %v3873 = vld [vmem:[#allocation2 + $0x114] sm:$0xf]
      %v3874 = vld [vmem:[#allocation2 + $0x118] sm:$0x1]
      %v3875 = vld [vmem:[#allocation2 + $0x120] sm:$0xe]
      %v3876 = vld [vmem:[#allocation2 + $0x124] sm:$0xf]
      %v3877 = vld [vmem:[#allocation2 + $0x128] sm:$0x1]
      %v3878 = vld [vmem:[#allocation2 + $0x130] sm:$0xe]
      %v3879 = vld [vmem:[#allocation2 + $0x134] sm:$0xf]
      %v3880 = vld [vmem:[#allocation2 + $0x138] sm:$0x1]
      %v3881 = vld [vmem:[#allocation2 + $0x140] sm:$0xe]
      %v3882 = vld [vmem:[#allocation2 + $0x144] sm:$0xf]
      %v3883 = vld [vmem:[#allocation2 + $0x148] sm:$0x1]
      %v3884 = vld [vmem:[#allocation2 + $0x150] sm:$0xe]
      %v3885 = vld [vmem:[#allocation2 + $0x154] sm:$0xf]
      %v3886 = vld [vmem:[#allocation2 + $0x158] sm:$0x1]
      %v3887 = vld [vmem:[#allocation2 + $0x160] sm:$0xe]
      %v3888 = vld [vmem:[#allocation2 + $0x164] sm:$0xf]
      %v3889 = vld [vmem:[#allocation2 + $0x168] sm:$0x1]
      %v3890 = vld [vmem:[#allocation2 + $0x170] sm:$0xe]
      %v3891 = vld [vmem:[#allocation2 + $0x174] sm:$0xf]
      %v3892 = vld [vmem:[#allocation2 + $0x178] sm:$0x1]
      %v3893 = vld [vmem:[#allocation2 + $0x180] sm:$0xe]
      %v3894 = vld [vmem:[#allocation2 + $0x184] sm:$0xf]
      %v3895 = vld [vmem:[#allocation2 + $0x188] sm:$0x1]
      %v3896 = vld [vmem:[#allocation2 + $0x190] sm:$0xe]
      %v3897 = vld [vmem:[#allocation2 + $0x194] sm:$0xf]
      %v3898 = vld [vmem:[#allocation2 + $0x198] sm:$0x1]
      %vm3977 = vcmask 1042432
      %vm3978 = vcmask 1046532
      %vm3979 = vmor %vm3977, %vm3978
      %v3980 = vrot.slane %v3821, 5
      %v3981 = vrot.slane %v3980, 4
      %v3982 = vrot.slane %v3822, 5
      %v3983 = vsel %vm3979, %v3981, %v3982
      %v3984 = vrot.slane %v3982, 4
      %v3985 = vrot.slane %v3823, 5
      %v3986 = vsel %vm3979, %v3984, %v3985
      %v3987 = vrot.slane %v3824, 5
      %v3988 = vrot.slane %v3987, 4
      %v3989 = vrot.slane %v3825, 5
      %v3990 = vsel %vm3979, %v3988, %v3989
      %v3991 = vrot.slane %v3989, 4
      %v3992 = vrot.slane %v3826, 5
      %v3993 = vsel %vm3979, %v3991, %v3992
      %v3994 = vrot.slane %v3827, 5
      %v3995 = vrot.slane %v3994, 4
      %v3996 = vrot.slane %v3828, 5
      %v3997 = vsel %vm3979, %v3995, %v3996
      %v3998 = vrot.slane %v3996, 4
      %v3999 = vrot.slane %v3829, 5
      %v4000 = vsel %vm3979, %v3998, %v3999
      %v4001 = vrot.slane %v3830, 5
      %v4002 = vrot.slane %v4001, 4
      %v4003 = vrot.slane %v3831, 5
      %v4004 = vsel %vm3979, %v4002, %v4003
      %v4005 = vrot.slane %v4003, 4
      %v4006 = vrot.slane %v3832, 5
      %v4007 = vsel %vm3979, %v4005, %v4006
      %v4008 = vrot.slane %v3833, 5
      %v4009 = vrot.slane %v4008, 4
      %v4010 = vrot.slane %v3834, 5
      %v4011 = vsel %vm3979, %v4009, %v4010
      %v4012 = vrot.slane %v4010, 4
      %v4013 = vrot.slane %v3835, 5
      %v4014 = vsel %vm3979, %v4012, %v4013
      %v4015 = vrot.slane %v3836, 5
      %v4016 = vrot.slane %v4015, 4
      %v4017 = vrot.slane %v3837, 5
      %v4018 = vsel %vm3979, %v4016, %v4017
      %v4019 = vrot.slane %v4017, 4
      %v4020 = vrot.slane %v3838, 5
      %v4021 = vsel %vm3979, %v4019, %v4020
      %v4022 = vrot.slane %v3839, 5
      %v4023 = vrot.slane %v4022, 4
      %v4024 = vrot.slane %v3840, 5
      %v4025 = vsel %vm3979, %v4023, %v4024
      %v4026 = vrot.slane %v4024, 4
      %v4027 = vrot.slane %v3841, 5
      %v4028 = vsel %vm3979, %v4026, %v4027
      %v4029 = vrot.slane %v3842, 5
      %v4030 = vrot.slane %v4029, 4
      %v4031 = vrot.slane %v3843, 5
      %v4032 = vsel %vm3979, %v4030, %v4031
      %v4033 = vrot.slane %v4031, 4
      %v4034 = vrot.slane %v3844, 5
      %v4035 = vsel %vm3979, %v4033, %v4034
      %v4036 = vrot.slane %v3845, 5
      %v4037 = vrot.slane %v4036, 4
      %v4038 = vrot.slane %v3846, 5
      %v4039 = vsel %vm3979, %v4037, %v4038
      %v4040 = vrot.slane %v4038, 4
      %v4041 = vrot.slane %v3847, 5
      %v4042 = vsel %vm3979, %v4040, %v4041
      %v4043 = vrot.slane %v3848, 5
      %v4044 = vrot.slane %v4043, 4
      %v4045 = vrot.slane %v3849, 5
      %v4046 = vsel %vm3979, %v4044, %v4045
      %v4047 = vrot.slane %v4045, 4
      %v4048 = vrot.slane %v3850, 5
      %v4049 = vsel %vm3979, %v4047, %v4048
      %v4050 = vrot.slane %v3851, 5
      %v4051 = vrot.slane %v4050, 4
      %v4052 = vrot.slane %v3852, 5
      %v4053 = vsel %vm3979, %v4051, %v4052
      %v4054 = vrot.slane %v4052, 4
      %v4055 = vrot.slane %v3853, 5
      %v4056 = vsel %vm3979, %v4054, %v4055
      %v4057 = vrot.slane %v3854, 5
      %v4058 = vrot.slane %v4057, 4
      %v4059 = vrot.slane %v3855, 5
      %v4060 = vsel %vm3979, %v4058, %v4059
      %v4061 = vrot.slane %v4059, 4
      %v4062 = vrot.slane %v3856, 5
      %v4063 = vsel %vm3979, %v4061, %v4062
      %v4064 = vrot.slane %v3857, 5
      %v4065 = vrot.slane %v4064, 4
      %v4066 = vrot.slane %v3858, 5
      %v4067 = vsel %vm3979, %v4065, %v4066
      %v4068 = vrot.slane %v4066, 4
      %v4069 = vrot.slane %v3859, 5
      %v4070 = vsel %vm3979, %v4068, %v4069
      %v4071 = vrot.slane %v3860, 5
      %v4072 = vrot.slane %v4071, 4
      %v4073 = vrot.slane %v3861, 5
      %v4074 = vsel %vm3979, %v4072, %v4073
      %v4075 = vrot.slane %v4073, 4
      %v4076 = vrot.slane %v3862, 5
      %v4077 = vsel %vm3979, %v4075, %v4076
      %v4078 = vrot.slane %v3863, 5
      %v4079 = vrot.slane %v4078, 4
      %v4080 = vrot.slane %v3864, 5
      %v4081 = vsel %vm3979, %v4079, %v4080
      %v4082 = vrot.slane %v4080, 4
      %v4083 = vrot.slane %v3865, 5
      %v4084 = vsel %vm3979, %v4082, %v4083
      %v4085 = vrot.slane %v3866, 5
      %v4086 = vrot.slane %v4085, 4
      %v4087 = vrot.slane %v3867, 5
      %v4088 = vsel %vm3979, %v4086, %v4087
      %v4089 = vrot.slane %v4087, 4
      %v4090 = vrot.slane %v3868, 5
      %v4091 = vsel %vm3979, %v4089, %v4090
      %v4092 = vrot.slane %v3869, 5
      %v4093 = vrot.slane %v4092, 4
      %v4094 = vrot.slane %v3870, 5
      %v4095 = vsel %vm3979, %v4093, %v4094
      %v4096 = vrot.slane %v4094, 4
      %v4097 = vrot.slane %v3871, 5
      %v4098 = vsel %vm3979, %v4096, %v4097
      %v4099 = vrot.slane %v3872, 5
      %v4100 = vrot.slane %v4099, 4
      %v4101 = vrot.slane %v3873, 5
      %v4102 = vsel %vm3979, %v4100, %v4101
      %v4103 = vrot.slane %v4101, 4
      %v4104 = vrot.slane %v3874, 5
      %v4105 = vsel %vm3979, %v4103, %v4104
      %v4106 = vrot.slane %v3875, 5
      %v4107 = vrot.slane %v4106, 4
      %v4108 = vrot.slane %v3876, 5
      %v4109 = vsel %vm3979, %v4107, %v4108
      %v4110 = vrot.slane %v4108, 4
      %v4111 = vrot.slane %v3877, 5
      %v4112 = vsel %vm3979, %v4110, %v4111
      %v4113 = vrot.slane %v3878, 5
      %v4114 = vrot.slane %v4113, 4
      %v4115 = vrot.slane %v3879, 5
      %v4116 = vsel %vm3979, %v4114, %v4115
      %v4117 = vrot.slane %v4115, 4
      %v4118 = vrot.slane %v3880, 5
      %v4119 = vsel %vm3979, %v4117, %v4118
      %v4120 = vrot.slane %v3881, 5
      %v4121 = vrot.slane %v4120, 4
      %v4122 = vrot.slane %v3882, 5
      %v4123 = vsel %vm3979, %v4121, %v4122
      %v4124 = vrot.slane %v4122, 4
      %v4125 = vrot.slane %v3883, 5
      %v4126 = vsel %vm3979, %v4124, %v4125
      %v4127 = vrot.slane %v3884, 5
      %v4128 = vrot.slane %v4127, 4
      %v4129 = vrot.slane %v3885, 5
      %v4130 = vsel %vm3979, %v4128, %v4129
      %v4131 = vrot.slane %v4129, 4
      %v4132 = vrot.slane %v3886, 5
      %v4133 = vsel %vm3979, %v4131, %v4132
      %v4134 = vrot.slane %v3887, 5
      %v4135 = vrot.slane %v4134, 4
      %v4136 = vrot.slane %v3888, 5
      %v4137 = vsel %vm3979, %v4135, %v4136
      %v4138 = vrot.slane %v4136, 4
      %v4139 = vrot.slane %v3889, 5
      %v4140 = vsel %vm3979, %v4138, %v4139
      %v4141 = vrot.slane %v3890, 5
      %v4142 = vrot.slane %v4141, 4
      %v4143 = vrot.slane %v3891, 5
      %v4144 = vsel %vm3979, %v4142, %v4143
      %v4145 = vrot.slane %v4143, 4
      %v4146 = vrot.slane %v3892, 5
      %v4147 = vsel %vm3979, %v4145, %v4146
      %v4148 = vrot.slane %v3893, 5
      %v4149 = vrot.slane %v4148, 4
      %v4150 = vrot.slane %v3894, 5
      %v4151 = vsel %vm3979, %v4149, %v4150
      %v4152 = vrot.slane %v4150, 4
      %v4153 = vrot.slane %v3895, 5
      %v4154 = vsel %vm3979, %v4152, %v4153
      %v4155 = vrot.slane %v3896, 5
      %v4156 = vrot.slane %v4155, 4
      %v4157 = vrot.slane %v3897, 5
      %v4158 = vsel %vm3979, %v4156, %v4157
      %v4159 = vrot.slane %v4157, 4
      %v4160 = vrot.slane %v3898, 5
      %v4161 = vsel %vm3979, %v4159, %v4160
      %4214 = vst.msk [vmem:[#allocation3] sm:$0xf] %vm226, %v3983
      %4215 = vst.msk [vmem:[#allocation3 + $0x4] sm:$0xf] %vm226, %v3986
      %4216 = vst.msk [vmem:[#allocation3 + $0x8] sm:$0xf] %vm226, %v3990
      %4217 = vst.msk [vmem:[#allocation3 + $0xc] sm:$0xf] %vm226, %v3993
      %4218 = vst.msk [vmem:[#allocation3 + $0x10] sm:$0xf] %vm226, %v3997
      %4219 = vst.msk [vmem:[#allocation3 + $0x14] sm:$0xf] %vm226, %v4000
      %4220 = vst.msk [vmem:[#allocation3 + $0x18] sm:$0xf] %vm226, %v4004
      %4221 = vst.msk [vmem:[#allocation3 + $0x1c] sm:$0xf] %vm226, %v4007
      %4222 = vst.msk [vmem:[#allocation3 + $0x20] sm:$0xf] %vm226, %v4011
      %4223 = vst.msk [vmem:[#allocation3 + $0x24] sm:$0xf] %vm226, %v4014
      %4224 = vst.msk [vmem:[#allocation3 + $0x28] sm:$0xf] %vm226, %v4018
      %4225 = vst.msk [vmem:[#allocation3 + $0x2c] sm:$0xf] %vm226, %v4021
      %4226 = vst.msk [vmem:[#allocation3 + $0x30] sm:$0xf] %vm226, %v4025
      %4227 = vst.msk [vmem:[#allocation3 + $0x34] sm:$0xf] %vm226, %v4028
      %4228 = vst.msk [vmem:[#allocation3 + $0x38] sm:$0xf] %vm226, %v4032
      %4229 = vst.msk [vmem:[#allocation3 + $0x3c] sm:$0xf] %vm226, %v4035
      %4230 = vst.msk [vmem:[#allocation3 + $0x40] sm:$0xf] %vm226, %v4039
      %4231 = vst.msk [vmem:[#allocation3 + $0x44] sm:$0xf] %vm226, %v4042
      %4232 = vst.msk [vmem:[#allocation3 + $0x48] sm:$0xf] %vm226, %v4046
      %4233 = vst.msk [vmem:[#allocation3 + $0x4c] sm:$0xf] %vm226, %v4049
      %4234 = vst.msk [vmem:[#allocation3 + $0x50] sm:$0xf] %vm226, %v4053
      %4235 = vst.msk [vmem:[#allocation3 + $0x54] sm:$0xf] %vm226, %v4056
      %4236 = vst.msk [vmem:[#allocation3 + $0x58] sm:$0xf] %vm226, %v4060
      %4237 = vst.msk [vmem:[#allocation3 + $0x5c] sm:$0xf] %vm226, %v4063
      %4238 = vst.msk [vmem:[#allocation3 + $0x60] sm:$0xf] %vm226, %v4067
      %4239 = vst.msk [vmem:[#allocation3 + $0x64] sm:$0xf] %vm226, %v4070
      %4240 = vst.msk [vmem:[#allocation3 + $0x68] sm:$0xf] %vm226, %v4074
      %4241 = vst.msk [vmem:[#allocation3 + $0x6c] sm:$0xf] %vm226, %v4077
      %4242 = vst.msk [vmem:[#allocation3 + $0x70] sm:$0xf] %vm226, %v4081
      %4243 = vst.msk [vmem:[#allocation3 + $0x74] sm:$0xf] %vm226, %v4084
      %4244 = vst.msk [vmem:[#allocation3 + $0x78] sm:$0xf] %vm226, %v4088
      %4245 = vst.msk [vmem:[#allocation3 + $0x7c] sm:$0xf] %vm226, %v4091
      %4246 = vst.msk [vmem:[#allocation3 + $0x80] sm:$0xf] %vm226, %v4095
      %4247 = vst.msk [vmem:[#allocation3 + $0x84] sm:$0xf] %vm226, %v4098
      %4248 = vst.msk [vmem:[#allocation3 + $0x88] sm:$0xf] %vm226, %v4102
      %4249 = vst.msk [vmem:[#allocation3 + $0x8c] sm:$0xf] %vm226, %v4105
      %4250 = vst.msk [vmem:[#allocation3 + $0x90] sm:$0xf] %vm226, %v4109
      %4251 = vst.msk [vmem:[#allocation3 + $0x94] sm:$0xf] %vm226, %v4112
      %4252 = vst.msk [vmem:[#allocation3 + $0x98] sm:$0xf] %vm226, %v4116
      %4253 = vst.msk [vmem:[#allocation3 + $0x9c] sm:$0xf] %vm226, %v4119
      %4254 = vst.msk [vmem:[#allocation3 + $0xa0] sm:$0xf] %vm226, %v4123
      %4255 = vst.msk [vmem:[#allocation3 + $0xa4] sm:$0xf] %vm226, %v4126
      %4256 = vst.msk [vmem:[#allocation3 + $0xa8] sm:$0xf] %vm226, %v4130
      %4257 = vst.msk [vmem:[#allocation3 + $0xac] sm:$0xf] %vm226, %v4133
      %4258 = vst.msk [vmem:[#allocation3 + $0xb0] sm:$0xf] %vm226, %v4137
      %4259 = vst.msk [vmem:[#allocation3 + $0xb4] sm:$0xf] %vm226, %v4140
      %4260 = vst.msk [vmem:[#allocation3 + $0xb8] sm:$0xf] %vm226, %v4144
      %4261 = vst.msk [vmem:[#allocation3 + $0xbc] sm:$0xf] %vm226, %v4147
      %4262 = vst.msk [vmem:[#allocation3 + $0xc0] sm:$0xf] %vm226, %v4151
      %4263 = vst.msk [vmem:[#allocation3 + $0xc4] sm:$0xf] %vm226, %v4154
      %4264 = vst.msk [vmem:[#allocation3 + $0xc8] sm:$0xf] %vm226, %v4158
      %4265 = vst.msk [vmem:[#allocation3 + $0xcc] sm:$0xf] %vm226, %v4161
      %v4266 = vld [vmem:[#allocation2] sm:$0xc]
      %v4267 = vld [vmem:[#allocation2 + $0x4] sm:$0xf]
      %v4268 = vld [vmem:[#allocation2 + $0x8] sm:$0x7]
      %v4269 = vld [vmem:[#allocation2 + $0x10] sm:$0xc]
      %v4270 = vld [vmem:[#allocation2 + $0x14] sm:$0xf]
      %v4271 = vld [vmem:[#allocation2 + $0x18] sm:$0x7]
      %v4272 = vld [vmem:[#allocation2 + $0x20] sm:$0xc]
      %v4273 = vld [vmem:[#allocation2 + $0x24] sm:$0xf]
      %v4274 = vld [vmem:[#allocation2 + $0x28] sm:$0x7]
      %v4275 = vld [vmem:[#allocation2 + $0x30] sm:$0xc]
      %v4276 = vld [vmem:[#allocation2 + $0x34] sm:$0xf]
      %v4277 = vld [vmem:[#allocation2 + $0x38] sm:$0x7]
      %v4278 = vld [vmem:[#allocation2 + $0x40] sm:$0xc]
      %v4279 = vld [vmem:[#allocation2 + $0x44] sm:$0xf]
      %v4280 = vld [vmem:[#allocation2 + $0x48] sm:$0x7]
      %v4281 = vld [vmem:[#allocation2 + $0x50] sm:$0xc]
      %v4282 = vld [vmem:[#allocation2 + $0x54] sm:$0xf]
      %v4283 = vld [vmem:[#allocation2 + $0x58] sm:$0x7]
      %v4284 = vld [vmem:[#allocation2 + $0x60] sm:$0xc]
      %v4285 = vld [vmem:[#allocation2 + $0x64] sm:$0xf]
      %v4286 = vld [vmem:[#allocation2 + $0x68] sm:$0x7]
      %v4287 = vld [vmem:[#allocation2 + $0x70] sm:$0xc]
      %v4288 = vld [vmem:[#allocation2 + $0x74] sm:$0xf]
      %v4289 = vld [vmem:[#allocation2 + $0x78] sm:$0x7]
      %v4290 = vld [vmem:[#allocation2 + $0x80] sm:$0xc]
      %v4291 = vld [vmem:[#allocation2 + $0x84] sm:$0xf]
      %v4292 = vld [vmem:[#allocation2 + $0x88] sm:$0x7]
      %v4293 = vld [vmem:[#allocation2 + $0x90] sm:$0xc]
      %v4294 = vld [vmem:[#allocation2 + $0x94] sm:$0xf]
      %v4295 = vld [vmem:[#allocation2 + $0x98] sm:$0x7]
      %v4296 = vld [vmem:[#allocation2 + $0xa0] sm:$0xc]
      %v4297 = vld [vmem:[#allocation2 + $0xa4] sm:$0xf]
      %v4298 = vld [vmem:[#allocation2 + $0xa8] sm:$0x7]
      %v4299 = vld [vmem:[#allocation2 + $0xb0] sm:$0xc]
      %v4300 = vld [vmem:[#allocation2 + $0xb4] sm:$0xf]
      %v4301 = vld [vmem:[#allocation2 + $0xb8] sm:$0x7]
      %v4302 = vld [vmem:[#allocation2 + $0xc0] sm:$0xc]
      %v4303 = vld [vmem:[#allocation2 + $0xc4] sm:$0xf]
      %v4304 = vld [vmem:[#allocation2 + $0xc8] sm:$0x7]
      %v4305 = vld [vmem:[#allocation2 + $0xd0] sm:$0xc]
      %v4306 = vld [vmem:[#allocation2 + $0xd4] sm:$0xf]
      %v4307 = vld [vmem:[#allocation2 + $0xd8] sm:$0x7]
      %v4308 = vld [vmem:[#allocation2 + $0xe0] sm:$0xc]
      %v4309 = vld [vmem:[#allocation2 + $0xe4] sm:$0xf]
      %v4310 = vld [vmem:[#allocation2 + $0xe8] sm:$0x7]
      %v4311 = vld [vmem:[#allocation2 + $0xf0] sm:$0xc]
      %v4312 = vld [vmem:[#allocation2 + $0xf4] sm:$0xf]
      %v4313 = vld [vmem:[#allocation2 + $0xf8] sm:$0x7]
      %v4314 = vld [vmem:[#allocation2 + $0x100] sm:$0xc]
      %v4315 = vld [vmem:[#allocation2 + $0x104] sm:$0xf]
      %v4316 = vld [vmem:[#allocation2 + $0x108] sm:$0x7]
      %v4317 = vld [vmem:[#allocation2 + $0x110] sm:$0xc]
      %v4318 = vld [vmem:[#allocation2 + $0x114] sm:$0xf]
      %v4319 = vld [vmem:[#allocation2 + $0x118] sm:$0x7]
      %v4320 = vld [vmem:[#allocation2 + $0x120] sm:$0xc]
      %v4321 = vld [vmem:[#allocation2 + $0x124] sm:$0xf]
      %v4322 = vld [vmem:[#allocation2 + $0x128] sm:$0x7]
      %v4323 = vld [vmem:[#allocation2 + $0x130] sm:$0xc]
      %v4324 = vld [vmem:[#allocation2 + $0x134] sm:$0xf]
      %v4325 = vld [vmem:[#allocation2 + $0x138] sm:$0x7]
      %v4326 = vld [vmem:[#allocation2 + $0x140] sm:$0xc]
      %v4327 = vld [vmem:[#allocation2 + $0x144] sm:$0xf]
      %v4328 = vld [vmem:[#allocation2 + $0x148] sm:$0x7]
      %v4329 = vld [vmem:[#allocation2 + $0x150] sm:$0xc]
      %v4330 = vld [vmem:[#allocation2 + $0x154] sm:$0xf]
      %v4331 = vld [vmem:[#allocation2 + $0x158] sm:$0x7]
      %v4332 = vld [vmem:[#allocation2 + $0x160] sm:$0xc]
      %v4333 = vld [vmem:[#allocation2 + $0x164] sm:$0xf]
      %v4334 = vld [vmem:[#allocation2 + $0x168] sm:$0x7]
      %v4335 = vld [vmem:[#allocation2 + $0x170] sm:$0xc]
      %v4336 = vld [vmem:[#allocation2 + $0x174] sm:$0xf]
      %v4337 = vld [vmem:[#allocation2 + $0x178] sm:$0x7]
      %v4338 = vld [vmem:[#allocation2 + $0x180] sm:$0xc]
      %v4339 = vld [vmem:[#allocation2 + $0x184] sm:$0xf]
      %v4340 = vld [vmem:[#allocation2 + $0x188] sm:$0x7]
      %v4341 = vld [vmem:[#allocation2 + $0x190] sm:$0xc]
      %v4342 = vld [vmem:[#allocation2 + $0x194] sm:$0xf]
      %v4343 = vld [vmem:[#allocation2 + $0x198] sm:$0x7]
      %v4345 = vshrl.u32 %v4266, 16
      %v4347 = vrot.slane %v4345, 6
      %v4348 = vshll.u32 %v4266, 16
      %v4350 = vrot.slane %v4348, 7
      %v4351 = vor.u32 %v4347, %v4350
      %v4352 = vrot.slane %v4351, 4
      %v4354 = vshrl.u32 %v4267, 16
      %v4356 = vrot.slane %v4354, 6
      %v4357 = vshll.u32 %v4267, 16
      %v4359 = vrot.slane %v4357, 7
      %v4360 = vor.u32 %v4356, %v4359
      %v4361 = vsel %vm1411, %v4352, %v4360
      %v4362 = vrot.slane %v4360, 4
      %v4364 = vshrl.u32 %v4268, 16
      %v4366 = vrot.slane %v4364, 6
      %v4367 = vshll.u32 %v4268, 16
      %v4369 = vrot.slane %v4367, 7
      %v4370 = vor.u32 %v4366, %v4369
      %v4371 = vsel %vm1411, %v4362, %v4370
      %v4373 = vshrl.u32 %v4269, 16
      %v4375 = vrot.slane %v4373, 6
      %v4376 = vshll.u32 %v4269, 16
      %v4378 = vrot.slane %v4376, 7
      %v4379 = vor.u32 %v4375, %v4378
      %v4380 = vrot.slane %v4379, 4
      %v4382 = vshrl.u32 %v4270, 16
      %v4384 = vrot.slane %v4382, 6
      %v4385 = vshll.u32 %v4270, 16
      %v4387 = vrot.slane %v4385, 7
      %v4388 = vor.u32 %v4384, %v4387
      %v4389 = vsel %vm1411, %v4380, %v4388
      %v4390 = vrot.slane %v4388, 4
      %v4392 = vshrl.u32 %v4271, 16
      %v4394 = vrot.slane %v4392, 6
      %v4395 = vshll.u32 %v4271, 16
      %v4397 = vrot.slane %v4395, 7
      %v4398 = vor.u32 %v4394, %v4397
      %v4399 = vsel %vm1411, %v4390, %v4398
      %v4401 = vshrl.u32 %v4272, 16
      %v4403 = vrot.slane %v4401, 6
      %v4404 = vshll.u32 %v4272, 16
      %v4406 = vrot.slane %v4404, 7
      %v4407 = vor.u32 %v4403, %v4406
      %v4408 = vrot.slane %v4407, 4
      %v4410 = vshrl.u32 %v4273, 16
      %v4412 = vrot.slane %v4410, 6
      %v4413 = vshll.u32 %v4273, 16
      %v4415 = vrot.slane %v4413, 7
      %v4416 = vor.u32 %v4412, %v4415
      %v4417 = vsel %vm1411, %v4408, %v4416
      %v4418 = vrot.slane %v4416, 4
      %v4420 = vshrl.u32 %v4274, 16
      %v4422 = vrot.slane %v4420, 6
      %v4423 = vshll.u32 %v4274, 16
      %v4425 = vrot.slane %v4423, 7
      %v4426 = vor.u32 %v4422, %v4425
      %v4427 = vsel %vm1411, %v4418, %v4426
      %v4429 = vshrl.u32 %v4275, 16
      %v4431 = vrot.slane %v4429, 6
      %v4432 = vshll.u32 %v4275, 16
      %v4434 = vrot.slane %v4432, 7
      %v4435 = vor.u32 %v4431, %v4434
      %v4436 = vrot.slane %v4435, 4
      %v4438 = vshrl.u32 %v4276, 16
      %v4440 = vrot.slane %v4438, 6
      %v4441 = vshll.u32 %v4276, 16
      %v4443 = vrot.slane %v4441, 7
      %v4444 = vor.u32 %v4440, %v4443
      %v4445 = vsel %vm1411, %v4436, %v4444
      %v4446 = vrot.slane %v4444, 4
      %v4448 = vshrl.u32 %v4277, 16
      %v4450 = vrot.slane %v4448, 6
      %v4451 = vshll.u32 %v4277, 16
      %v4453 = vrot.slane %v4451, 7
      %v4454 = vor.u32 %v4450, %v4453
      %v4455 = vsel %vm1411, %v4446, %v4454
      %v4457 = vshrl.u32 %v4278, 16
      %v4459 = vrot.slane %v4457, 6
      %v4460 = vshll.u32 %v4278, 16
      %v4462 = vrot.slane %v4460, 7
      %v4463 = vor.u32 %v4459, %v4462
      %v4464 = vrot.slane %v4463, 4
      %v4466 = vshrl.u32 %v4279, 16
      %v4468 = vrot.slane %v4466, 6
      %v4469 = vshll.u32 %v4279, 16
      %v4471 = vrot.slane %v4469, 7
      %v4472 = vor.u32 %v4468, %v4471
      %v4473 = vsel %vm1411, %v4464, %v4472
      %v4474 = vrot.slane %v4472, 4
      %v4476 = vshrl.u32 %v4280, 16
      %v4478 = vrot.slane %v4476, 6
      %v4479 = vshll.u32 %v4280, 16
      %v4481 = vrot.slane %v4479, 7
      %v4482 = vor.u32 %v4478, %v4481
      %v4483 = vsel %vm1411, %v4474, %v4482
      %v4485 = vshrl.u32 %v4281, 16
      %v4487 = vrot.slane %v4485, 6
      %v4488 = vshll.u32 %v4281, 16
      %v4490 = vrot.slane %v4488, 7
      %v4491 = vor.u32 %v4487, %v4490
      %v4492 = vrot.slane %v4491, 4
      %v4494 = vshrl.u32 %v4282, 16
      %v4496 = vrot.slane %v4494, 6
      %v4497 = vshll.u32 %v4282, 16
      %v4499 = vrot.slane %v4497, 7
      %v4500 = vor.u32 %v4496, %v4499
      %v4501 = vsel %vm1411, %v4492, %v4500
      %v4502 = vrot.slane %v4500, 4
      %v4504 = vshrl.u32 %v4283, 16
      %v4506 = vrot.slane %v4504, 6
      %v4507 = vshll.u32 %v4283, 16
      %v4509 = vrot.slane %v4507, 7
      %v4510 = vor.u32 %v4506, %v4509
      %v4511 = vsel %vm1411, %v4502, %v4510
      %v4513 = vshrl.u32 %v4284, 16
      %v4515 = vrot.slane %v4513, 6
      %v4516 = vshll.u32 %v4284, 16
      %v4518 = vrot.slane %v4516, 7
      %v4519 = vor.u32 %v4515, %v4518
      %v4520 = vrot.slane %v4519, 4
      %v4522 = vshrl.u32 %v4285, 16
      %v4524 = vrot.slane %v4522, 6
      %v4525 = vshll.u32 %v4285, 16
      %v4527 = vrot.slane %v4525, 7
      %v4528 = vor.u32 %v4524, %v4527
      %v4529 = vsel %vm1411, %v4520, %v4528
      %v4530 = vrot.slane %v4528, 4
      %v4532 = vshrl.u32 %v4286, 16
      %v4534 = vrot.slane %v4532, 6
      %v4535 = vshll.u32 %v4286, 16
      %v4537 = vrot.slane %v4535, 7
      %v4538 = vor.u32 %v4534, %v4537
      %v4539 = vsel %vm1411, %v4530, %v4538
      %v4541 = vshrl.u32 %v4287, 16
      %v4543 = vrot.slane %v4541, 6
      %v4544 = vshll.u32 %v4287, 16
      %v4546 = vrot.slane %v4544, 7
      %v4547 = vor.u32 %v4543, %v4546
      %v4548 = vrot.slane %v4547, 4
      %v4550 = vshrl.u32 %v4288, 16
      %v4552 = vrot.slane %v4550, 6
      %v4553 = vshll.u32 %v4288, 16
      %v4555 = vrot.slane %v4553, 7
      %v4556 = vor.u32 %v4552, %v4555
      %v4557 = vsel %vm1411, %v4548, %v4556
      %v4558 = vrot.slane %v4556, 4
      %v4560 = vshrl.u32 %v4289, 16
      %v4562 = vrot.slane %v4560, 6
      %v4563 = vshll.u32 %v4289, 16
      %v4565 = vrot.slane %v4563, 7
      %v4566 = vor.u32 %v4562, %v4565
      %v4567 = vsel %vm1411, %v4558, %v4566
      %v4569 = vshrl.u32 %v4290, 16
      %v4571 = vrot.slane %v4569, 6
      %v4572 = vshll.u32 %v4290, 16
      %v4574 = vrot.slane %v4572, 7
      %v4575 = vor.u32 %v4571, %v4574
      %v4576 = vrot.slane %v4575, 4
      %v4578 = vshrl.u32 %v4291, 16
      %v4580 = vrot.slane %v4578, 6
      %v4581 = vshll.u32 %v4291, 16
      %v4583 = vrot.slane %v4581, 7
      %v4584 = vor.u32 %v4580, %v4583
      %v4585 = vsel %vm1411, %v4576, %v4584
      %v4586 = vrot.slane %v4584, 4
      %v4588 = vshrl.u32 %v4292, 16
      %v4590 = vrot.slane %v4588, 6
      %v4591 = vshll.u32 %v4292, 16
      %v4593 = vrot.slane %v4591, 7
      %v4594 = vor.u32 %v4590, %v4593
      %v4595 = vsel %vm1411, %v4586, %v4594
      %v4597 = vshrl.u32 %v4293, 16
      %v4599 = vrot.slane %v4597, 6
      %v4600 = vshll.u32 %v4293, 16
      %v4602 = vrot.slane %v4600, 7
      %v4603 = vor.u32 %v4599, %v4602
      %v4604 = vrot.slane %v4603, 4
      %v4606 = vshrl.u32 %v4294, 16
      %v4608 = vrot.slane %v4606, 6
      %v4609 = vshll.u32 %v4294, 16
      %v4611 = vrot.slane %v4609, 7
      %v4612 = vor.u32 %v4608, %v4611
      %v4613 = vsel %vm1411, %v4604, %v4612
      %v4614 = vrot.slane %v4612, 4
      %v4616 = vshrl.u32 %v4295, 16
      %v4618 = vrot.slane %v4616, 6
      %v4619 = vshll.u32 %v4295, 16
      %v4621 = vrot.slane %v4619, 7
      %v4622 = vor.u32 %v4618, %v4621
      %v4623 = vsel %vm1411, %v4614, %v4622
      %v4625 = vshrl.u32 %v4296, 16
      %v4627 = vrot.slane %v4625, 6
      %v4628 = vshll.u32 %v4296, 16
      %v4630 = vrot.slane %v4628, 7
      %v4631 = vor.u32 %v4627, %v4630
      %v4632 = vrot.slane %v4631, 4
      %v4634 = vshrl.u32 %v4297, 16
      %v4636 = vrot.slane %v4634, 6
      %v4637 = vshll.u32 %v4297, 16
      %v4639 = vrot.slane %v4637, 7
      %v4640 = vor.u32 %v4636, %v4639
      %v4641 = vsel %vm1411, %v4632, %v4640
      %v4642 = vrot.slane %v4640, 4
      %v4644 = vshrl.u32 %v4298, 16
      %v4646 = vrot.slane %v4644, 6
      %v4647 = vshll.u32 %v4298, 16
      %v4649 = vrot.slane %v4647, 7
      %v4650 = vor.u32 %v4646, %v4649
      %v4651 = vsel %vm1411, %v4642, %v4650
      %v4653 = vshrl.u32 %v4299, 16
      %v4655 = vrot.slane %v4653, 6
      %v4656 = vshll.u32 %v4299, 16
      %v4658 = vrot.slane %v4656, 7
      %v4659 = vor.u32 %v4655, %v4658
      %v4660 = vrot.slane %v4659, 4
      %v4662 = vshrl.u32 %v4300, 16
      %v4664 = vrot.slane %v4662, 6
      %v4665 = vshll.u32 %v4300, 16
      %v4667 = vrot.slane %v4665, 7
      %v4668 = vor.u32 %v4664, %v4667
      %v4669 = vsel %vm1411, %v4660, %v4668
      %v4670 = vrot.slane %v4668, 4
      %v4672 = vshrl.u32 %v4301, 16
      %v4674 = vrot.slane %v4672, 6
      %v4675 = vshll.u32 %v4301, 16
      %v4677 = vrot.slane %v4675, 7
      %v4678 = vor.u32 %v4674, %v4677
      %v4679 = vsel %vm1411, %v4670, %v4678
      %v4681 = vshrl.u32 %v4302, 16
      %v4683 = vrot.slane %v4681, 6
      %v4684 = vshll.u32 %v4302, 16
      %v4686 = vrot.slane %v4684, 7
      %v4687 = vor.u32 %v4683, %v4686
      %v4688 = vrot.slane %v4687, 4
      %v4690 = vshrl.u32 %v4303, 16
      %v4692 = vrot.slane %v4690, 6
      %v4693 = vshll.u32 %v4303, 16
      %v4695 = vrot.slane %v4693, 7
      %v4696 = vor.u32 %v4692, %v4695
      %v4697 = vsel %vm1411, %v4688, %v4696
      %v4698 = vrot.slane %v4696, 4
      %v4700 = vshrl.u32 %v4304, 16
      %v4702 = vrot.slane %v4700, 6
      %v4703 = vshll.u32 %v4304, 16
      %v4705 = vrot.slane %v4703, 7
      %v4706 = vor.u32 %v4702, %v4705
      %v4707 = vsel %vm1411, %v4698, %v4706
      %v4709 = vshrl.u32 %v4305, 16
      %v4711 = vrot.slane %v4709, 6
      %v4712 = vshll.u32 %v4305, 16
      %v4714 = vrot.slane %v4712, 7
      %v4715 = vor.u32 %v4711, %v4714
      %v4716 = vrot.slane %v4715, 4
      %v4718 = vshrl.u32 %v4306, 16
      %v4720 = vrot.slane %v4718, 6
      %v4721 = vshll.u32 %v4306, 16
      %v4723 = vrot.slane %v4721, 7
      %v4724 = vor.u32 %v4720, %v4723
      %v4725 = vsel %vm1411, %v4716, %v4724
      %v4726 = vrot.slane %v4724, 4
      %v4728 = vshrl.u32 %v4307, 16
      %v4730 = vrot.slane %v4728, 6
      %v4731 = vshll.u32 %v4307, 16
      %v4733 = vrot.slane %v4731, 7
      %v4734 = vor.u32 %v4730, %v4733
      %v4735 = vsel %vm1411, %v4726, %v4734
      %v4737 = vshrl.u32 %v4308, 16
      %v4739 = vrot.slane %v4737, 6
      %v4740 = vshll.u32 %v4308, 16
      %v4742 = vrot.slane %v4740, 7
      %v4743 = vor.u32 %v4739, %v4742
      %v4744 = vrot.slane %v4743, 4
      %v4746 = vshrl.u32 %v4309, 16
      %v4748 = vrot.slane %v4746, 6
      %v4749 = vshll.u32 %v4309, 16
      %v4751 = vrot.slane %v4749, 7
      %v4752 = vor.u32 %v4748, %v4751
      %v4753 = vsel %vm1411, %v4744, %v4752
      %v4754 = vrot.slane %v4752, 4
      %v4756 = vshrl.u32 %v4310, 16
      %v4758 = vrot.slane %v4756, 6
      %v4759 = vshll.u32 %v4310, 16
      %v4761 = vrot.slane %v4759, 7
      %v4762 = vor.u32 %v4758, %v4761
      %v4763 = vsel %vm1411, %v4754, %v4762
      %v4765 = vshrl.u32 %v4311, 16
      %v4767 = vrot.slane %v4765, 6
      %v4768 = vshll.u32 %v4311, 16
      %v4770 = vrot.slane %v4768, 7
      %v4771 = vor.u32 %v4767, %v4770
      %v4772 = vrot.slane %v4771, 4
      %v4774 = vshrl.u32 %v4312, 16
      %v4776 = vrot.slane %v4774, 6
      %v4777 = vshll.u32 %v4312, 16
      %v4779 = vrot.slane %v4777, 7
      %v4780 = vor.u32 %v4776, %v4779
      %v4781 = vsel %vm1411, %v4772, %v4780
      %v4782 = vrot.slane %v4780, 4
      %v4784 = vshrl.u32 %v4313, 16
      %v4786 = vrot.slane %v4784, 6
      %v4787 = vshll.u32 %v4313, 16
      %v4789 = vrot.slane %v4787, 7
      %v4790 = vor.u32 %v4786, %v4789
      %v4791 = vsel %vm1411, %v4782, %v4790
      %v4793 = vshrl.u32 %v4314, 16
      %v4795 = vrot.slane %v4793, 6
      %v4796 = vshll.u32 %v4314, 16
      %v4798 = vrot.slane %v4796, 7
      %v4799 = vor.u32 %v4795, %v4798
      %v4800 = vrot.slane %v4799, 4
      %v4802 = vshrl.u32 %v4315, 16
      %v4804 = vrot.slane %v4802, 6
      %v4805 = vshll.u32 %v4315, 16
      %v4807 = vrot.slane %v4805, 7
      %v4808 = vor.u32 %v4804, %v4807
      %v4809 = vsel %vm1411, %v4800, %v4808
      %v4810 = vrot.slane %v4808, 4
      %v4812 = vshrl.u32 %v4316, 16
      %v4814 = vrot.slane %v4812, 6
      %v4815 = vshll.u32 %v4316, 16
      %v4817 = vrot.slane %v4815, 7
      %v4818 = vor.u32 %v4814, %v4817
      %v4819 = vsel %vm1411, %v4810, %v4818
      %v4821 = vshrl.u32 %v4317, 16
      %v4823 = vrot.slane %v4821, 6
      %v4824 = vshll.u32 %v4317, 16
      %v4826 = vrot.slane %v4824, 7
      %v4827 = vor.u32 %v4823, %v4826
      %v4828 = vrot.slane %v4827, 4
      %v4830 = vshrl.u32 %v4318, 16
      %v4832 = vrot.slane %v4830, 6
      %v4833 = vshll.u32 %v4318, 16
      %v4835 = vrot.slane %v4833, 7
      %v4836 = vor.u32 %v4832, %v4835
      %v4837 = vsel %vm1411, %v4828, %v4836
      %v4838 = vrot.slane %v4836, 4
      %v4840 = vshrl.u32 %v4319, 16
      %v4842 = vrot.slane %v4840, 6
      %v4843 = vshll.u32 %v4319, 16
      %v4845 = vrot.slane %v4843, 7
      %v4846 = vor.u32 %v4842, %v4845
      %v4847 = vsel %vm1411, %v4838, %v4846
      %v4849 = vshrl.u32 %v4320, 16
      %v4851 = vrot.slane %v4849, 6
      %v4852 = vshll.u32 %v4320, 16
      %v4854 = vrot.slane %v4852, 7
      %v4855 = vor.u32 %v4851, %v4854
      %v4856 = vrot.slane %v4855, 4
      %v4858 = vshrl.u32 %v4321, 16
      %v4860 = vrot.slane %v4858, 6
      %v4861 = vshll.u32 %v4321, 16
      %v4863 = vrot.slane %v4861, 7
      %v4864 = vor.u32 %v4860, %v4863
      %v4865 = vsel %vm1411, %v4856, %v4864
      %v4866 = vrot.slane %v4864, 4
      %v4868 = vshrl.u32 %v4322, 16
      %v4870 = vrot.slane %v4868, 6
      %v4871 = vshll.u32 %v4322, 16
      %v4873 = vrot.slane %v4871, 7
      %v4874 = vor.u32 %v4870, %v4873
      %v4875 = vsel %vm1411, %v4866, %v4874
      %v4877 = vshrl.u32 %v4323, 16
      %v4879 = vrot.slane %v4877, 6
      %v4880 = vshll.u32 %v4323, 16
      %v4882 = vrot.slane %v4880, 7
      %v4883 = vor.u32 %v4879, %v4882
      %v4884 = vrot.slane %v4883, 4
      %v4886 = vshrl.u32 %v4324, 16
      %v4888 = vrot.slane %v4886, 6
      %v4889 = vshll.u32 %v4324, 16
      %v4891 = vrot.slane %v4889, 7
      %v4892 = vor.u32 %v4888, %v4891
      %v4893 = vsel %vm1411, %v4884, %v4892
      %v4894 = vrot.slane %v4892, 4
      %v4896 = vshrl.u32 %v4325, 16
      %v4898 = vrot.slane %v4896, 6
      %v4899 = vshll.u32 %v4325, 16
      %v4901 = vrot.slane %v4899, 7
      %v4902 = vor.u32 %v4898, %v4901
      %v4903 = vsel %vm1411, %v4894, %v4902
      %v4905 = vshrl.u32 %v4326, 16
      %v4907 = vrot.slane %v4905, 6
      %v4908 = vshll.u32 %v4326, 16
      %v4910 = vrot.slane %v4908, 7
      %v4911 = vor.u32 %v4907, %v4910
      %v4912 = vrot.slane %v4911, 4
      %v4914 = vshrl.u32 %v4327, 16
      %v4916 = vrot.slane %v4914, 6
      %v4917 = vshll.u32 %v4327, 16
      %v4919 = vrot.slane %v4917, 7
      %v4920 = vor.u32 %v4916, %v4919
      %v4921 = vsel %vm1411, %v4912, %v4920
      %v4922 = vrot.slane %v4920, 4
      %v4924 = vshrl.u32 %v4328, 16
      %v4926 = vrot.slane %v4924, 6
      %v4927 = vshll.u32 %v4328, 16
      %v4929 = vrot.slane %v4927, 7
      %v4930 = vor.u32 %v4926, %v4929
      %v4931 = vsel %vm1411, %v4922, %v4930
      %v4933 = vshrl.u32 %v4329, 16
      %v4935 = vrot.slane %v4933, 6
      %v4936 = vshll.u32 %v4329, 16
      %v4938 = vrot.slane %v4936, 7
      %v4939 = vor.u32 %v4935, %v4938
      %v4940 = vrot.slane %v4939, 4
      %v4942 = vshrl.u32 %v4330, 16
      %v4944 = vrot.slane %v4942, 6
      %v4945 = vshll.u32 %v4330, 16
      %v4947 = vrot.slane %v4945, 7
      %v4948 = vor.u32 %v4944, %v4947
      %v4949 = vsel %vm1411, %v4940, %v4948
      %v4950 = vrot.slane %v4948, 4
      %v4952 = vshrl.u32 %v4331, 16
      %v4954 = vrot.slane %v4952, 6
      %v4955 = vshll.u32 %v4331, 16
      %v4957 = vrot.slane %v4955, 7
      %v4958 = vor.u32 %v4954, %v4957
      %v4959 = vsel %vm1411, %v4950, %v4958
      %v4961 = vshrl.u32 %v4332, 16
      %v4963 = vrot.slane %v4961, 6
      %v4964 = vshll.u32 %v4332, 16
      %v4966 = vrot.slane %v4964, 7
      %v4967 = vor.u32 %v4963, %v4966
      %v4968 = vrot.slane %v4967, 4
      %v4970 = vshrl.u32 %v4333, 16
      %v4972 = vrot.slane %v4970, 6
      %v4973 = vshll.u32 %v4333, 16
      %v4975 = vrot.slane %v4973, 7
      %v4976 = vor.u32 %v4972, %v4975
      %v4977 = vsel %vm1411, %v4968, %v4976
      %v4978 = vrot.slane %v4976, 4
      %v4980 = vshrl.u32 %v4334, 16
      %v4982 = vrot.slane %v4980, 6
      %v4983 = vshll.u32 %v4334, 16
      %v4985 = vrot.slane %v4983, 7
      %v4986 = vor.u32 %v4982, %v4985
      %v4987 = vsel %vm1411, %v4978, %v4986
      %v4989 = vshrl.u32 %v4335, 16
      %v4991 = vrot.slane %v4989, 6
      %v4992 = vshll.u32 %v4335, 16
      %v4994 = vrot.slane %v4992, 7
      %v4995 = vor.u32 %v4991, %v4994
      %v4996 = vrot.slane %v4995, 4
      %v4998 = vshrl.u32 %v4336, 16
      %v5000 = vrot.slane %v4998, 6
      %v5001 = vshll.u32 %v4336, 16
      %v5003 = vrot.slane %v5001, 7
      %v5004 = vor.u32 %v5000, %v5003
      %v5005 = vsel %vm1411, %v4996, %v5004
      %v5006 = vrot.slane %v5004, 4
      %v5008 = vshrl.u32 %v4337, 16
      %v5010 = vrot.slane %v5008, 6
      %v5011 = vshll.u32 %v4337, 16
      %v5013 = vrot.slane %v5011, 7
      %v5014 = vor.u32 %v5010, %v5013
      %v5015 = vsel %vm1411, %v5006, %v5014
      %v5017 = vshrl.u32 %v4338, 16
      %v5019 = vrot.slane %v5017, 6
      %v5020 = vshll.u32 %v4338, 16
      %v5022 = vrot.slane %v5020, 7
      %v5023 = vor.u32 %v5019, %v5022
      %v5024 = vrot.slane %v5023, 4
      %v5026 = vshrl.u32 %v4339, 16
      %v5028 = vrot.slane %v5026, 6
      %v5029 = vshll.u32 %v4339, 16
      %v5031 = vrot.slane %v5029, 7
      %v5032 = vor.u32 %v5028, %v5031
      %v5033 = vsel %vm1411, %v5024, %v5032
      %v5034 = vrot.slane %v5032, 4
      %v5036 = vshrl.u32 %v4340, 16
      %v5038 = vrot.slane %v5036, 6
      %v5039 = vshll.u32 %v4340, 16
      %v5041 = vrot.slane %v5039, 7
      %v5042 = vor.u32 %v5038, %v5041
      %v5043 = vsel %vm1411, %v5034, %v5042
      %v5045 = vshrl.u32 %v4341, 16
      %v5047 = vrot.slane %v5045, 6
      %v5048 = vshll.u32 %v4341, 16
      %v5050 = vrot.slane %v5048, 7
      %v5051 = vor.u32 %v5047, %v5050
      %v5052 = vrot.slane %v5051, 4
      %v5054 = vshrl.u32 %v4342, 16
      %v5056 = vrot.slane %v5054, 6
      %v5057 = vshll.u32 %v4342, 16
      %v5059 = vrot.slane %v5057, 7
      %v5060 = vor.u32 %v5056, %v5059
      %v5061 = vsel %vm1411, %v5052, %v5060
      %v5062 = vrot.slane %v5060, 4
      %v5064 = vshrl.u32 %v4343, 16
      %v5066 = vrot.slane %v5064, 6
      %v5067 = vshll.u32 %v4343, 16
      %v5069 = vrot.slane %v5067, 7
      %v5070 = vor.u32 %v5066, %v5069
      %v5071 = vsel %vm1411, %v5062, %v5070
      %5072 = vrot.lane.b32.xlu0 %v4361, 4
      %v5073 = vpop.permute.xlu0 %5072
      %5074 = vrot.lane.b32.xlu0 %v4371, 4
      %v5075 = vpop.permute.xlu0 %5074
      %5076 = vrot.lane.b32.xlu0 %v4389, 4
      %v5077 = vpop.permute.xlu0 %5076
      %5078 = vrot.lane.b32.xlu0 %v4399, 4
      %v5079 = vpop.permute.xlu0 %5078
      %5080 = vrot.lane.b32.xlu0 %v4417, 4
      %v5081 = vpop.permute.xlu0 %5080
      %5082 = vrot.lane.b32.xlu0 %v4427, 4
      %v5083 = vpop.permute.xlu0 %5082
      %5084 = vrot.lane.b32.xlu0 %v4445, 4
      %v5085 = vpop.permute.xlu0 %5084
      %5086 = vrot.lane.b32.xlu0 %v4455, 4
      %v5087 = vpop.permute.xlu0 %5086
      %5088 = vrot.lane.b32.xlu0 %v4473, 4
      %v5089 = vpop.permute.xlu0 %5088
      %5090 = vrot.lane.b32.xlu0 %v4483, 4
      %v5091 = vpop.permute.xlu0 %5090
      %5092 = vrot.lane.b32.xlu0 %v4501, 4
      %v5093 = vpop.permute.xlu0 %5092
      %5094 = vrot.lane.b32.xlu0 %v4511, 4
      %v5095 = vpop.permute.xlu0 %5094
      %5096 = vrot.lane.b32.xlu0 %v4529, 4
      %v5097 = vpop.permute.xlu0 %5096
      %5098 = vrot.lane.b32.xlu0 %v4539, 4
      %v5099 = vpop.permute.xlu0 %5098
      %5100 = vrot.lane.b32.xlu0 %v4557, 4
      %v5101 = vpop.permute.xlu0 %5100
      %5102 = vrot.lane.b32.xlu0 %v4567, 4
      %v5103 = vpop.permute.xlu0 %5102
      %5104 = vrot.lane.b32.xlu0 %v4585, 4
      %v5105 = vpop.permute.xlu0 %5104
      %5106 = vrot.lane.b32.xlu0 %v4595, 4
      %v5107 = vpop.permute.xlu0 %5106
      %5108 = vrot.lane.b32.xlu0 %v4613, 4
      %v5109 = vpop.permute.xlu0 %5108
      %5110 = vrot.lane.b32.xlu0 %v4623, 4
      %v5111 = vpop.permute.xlu0 %5110
      %5112 = vrot.lane.b32.xlu0 %v4641, 4
      %v5113 = vpop.permute.xlu0 %5112
      %5114 = vrot.lane.b32.xlu0 %v4651, 4
      %v5115 = vpop.permute.xlu0 %5114
      %5116 = vrot.lane.b32.xlu0 %v4669, 4
      %v5117 = vpop.permute.xlu0 %5116
      %5118 = vrot.lane.b32.xlu0 %v4679, 4
      %v5119 = vpop.permute.xlu0 %5118
      %5120 = vrot.lane.b32.xlu0 %v4697, 4
      %v5121 = vpop.permute.xlu0 %5120
      %5122 = vrot.lane.b32.xlu0 %v4707, 4
      %v5123 = vpop.permute.xlu0 %5122
      %5124 = vrot.lane.b32.xlu0 %v4725, 4
      %v5125 = vpop.permute.xlu0 %5124
      %5126 = vrot.lane.b32.xlu0 %v4735, 4
      %v5127 = vpop.permute.xlu0 %5126
      %5128 = vrot.lane.b32.xlu0 %v4753, 4
      %v5129 = vpop.permute.xlu0 %5128
      %5130 = vrot.lane.b32.xlu0 %v4763, 4
      %v5131 = vpop.permute.xlu0 %5130
      %5132 = vrot.lane.b32.xlu0 %v4781, 4
      %v5133 = vpop.permute.xlu0 %5132
      %5134 = vrot.lane.b32.xlu0 %v4791, 4
      %v5135 = vpop.permute.xlu0 %5134
      %5136 = vrot.lane.b32.xlu0 %v4809, 4
      %v5137 = vpop.permute.xlu0 %5136
      %5138 = vrot.lane.b32.xlu0 %v4819, 4
      %v5139 = vpop.permute.xlu0 %5138
      %5140 = vrot.lane.b32.xlu0 %v4837, 4
      %v5141 = vpop.permute.xlu0 %5140
      %5142 = vrot.lane.b32.xlu0 %v4847, 4
      %v5143 = vpop.permute.xlu0 %5142
      %5144 = vrot.lane.b32.xlu0 %v4865, 4
      %v5145 = vpop.permute.xlu0 %5144
      %5146 = vrot.lane.b32.xlu0 %v4875, 4
      %v5147 = vpop.permute.xlu0 %5146
      %5148 = vrot.lane.b32.xlu0 %v4893, 4
      %v5149 = vpop.permute.xlu0 %5148
      %5150 = vrot.lane.b32.xlu0 %v4903, 4
      %v5151 = vpop.permute.xlu0 %5150
      %5152 = vrot.lane.b32.xlu0 %v4921, 4
      %v5153 = vpop.permute.xlu0 %5152
      %5154 = vrot.lane.b32.xlu0 %v4931, 4
      %v5155 = vpop.permute.xlu0 %5154
      %5156 = vrot.lane.b32.xlu0 %v4949, 4
      %v5157 = vpop.permute.xlu0 %5156
      %5158 = vrot.lane.b32.xlu0 %v4959, 4
      %v5159 = vpop.permute.xlu0 %5158
      %5160 = vrot.lane.b32.xlu0 %v4977, 4
      %v5161 = vpop.permute.xlu0 %5160
      %5162 = vrot.lane.b32.xlu0 %v4987, 4
      %v5163 = vpop.permute.xlu0 %5162
      %5164 = vrot.lane.b32.xlu0 %v5005, 4
      %v5165 = vpop.permute.xlu0 %5164
      %5166 = vrot.lane.b32.xlu0 %v5015, 4
      %v5167 = vpop.permute.xlu0 %5166
      %5168 = vrot.lane.b32.xlu0 %v5033, 4
      %v5169 = vpop.permute.xlu0 %5168
      %5170 = vrot.lane.b32.xlu0 %v5043, 4
      %v5171 = vpop.permute.xlu0 %5170
      %5172 = vrot.lane.b32.xlu0 %v5061, 4
      %v5173 = vpop.permute.xlu0 %5172
      %5174 = vrot.lane.b32.xlu0 %v5071, 4
      %v5175 = vpop.permute.xlu0 %5174
      %5228 = vst.msk [vmem:[#allocation3] sm:$0xf] %vm2296, %v5073
      %5229 = vst.msk [vmem:[#allocation3 + $0x4] sm:$0xf] %vm2296, %v5075
      %5230 = vst.msk [vmem:[#allocation3 + $0x8] sm:$0xf] %vm2296, %v5077
      %5231 = vst.msk [vmem:[#allocation3 + $0xc] sm:$0xf] %vm2296, %v5079
      %5232 = vst.msk [vmem:[#allocation3 + $0x10] sm:$0xf] %vm2296, %v5081
      %5233 = vst.msk [vmem:[#allocation3 + $0x14] sm:$0xf] %vm2296, %v5083
      %5234 = vst.msk [vmem:[#allocation3 + $0x18] sm:$0xf] %vm2296, %v5085
      %5235 = vst.msk [vmem:[#allocation3 + $0x1c] sm:$0xf] %vm2296, %v5087
      %5236 = vst.msk [vmem:[#allocation3 + $0x20] sm:$0xf] %vm2296, %v5089
      %5237 = vst.msk [vmem:[#allocation3 + $0x24] sm:$0xf] %vm2296, %v5091
      %5238 = vst.msk [vmem:[#allocation3 + $0x28] sm:$0xf] %vm2296, %v5093
      %5239 = vst.msk [vmem:[#allocation3 + $0x2c] sm:$0xf] %vm2296, %v5095
      %5240 = vst.msk [vmem:[#allocation3 + $0x30] sm:$0xf] %vm2296, %v5097
      %5241 = vst.msk [vmem:[#allocation3 + $0x34] sm:$0xf] %vm2296, %v5099
      %5242 = vst.msk [vmem:[#allocation3 + $0x38] sm:$0xf] %vm2296, %v5101
      %5243 = vst.msk [vmem:[#allocation3 + $0x3c] sm:$0xf] %vm2296, %v5103
      %5244 = vst.msk [vmem:[#allocation3 + $0x40] sm:$0xf] %vm2296, %v5105
      %5245 = vst.msk [vmem:[#allocation3 + $0x44] sm:$0xf] %vm2296, %v5107
      %5246 = vst.msk [vmem:[#allocation3 + $0x48] sm:$0xf] %vm2296, %v5109
      %5247 = vst.msk [vmem:[#allocation3 + $0x4c] sm:$0xf] %vm2296, %v5111
      %5248 = vst.msk [vmem:[#allocation3 + $0x50] sm:$0xf] %vm2296, %v5113
      %5249 = vst.msk [vmem:[#allocation3 + $0x54] sm:$0xf] %vm2296, %v5115
      %5250 = vst.msk [vmem:[#allocation3 + $0x58] sm:$0xf] %vm2296, %v5117
      %5251 = vst.msk [vmem:[#allocation3 + $0x5c] sm:$0xf] %vm2296, %v5119
      %5252 = vst.msk [vmem:[#allocation3 + $0x60] sm:$0xf] %vm2296, %v5121
      %5253 = vst.msk [vmem:[#allocation3 + $0x64] sm:$0xf] %vm2296, %v5123
      %5254 = vst.msk [vmem:[#allocation3 + $0x68] sm:$0xf] %vm2296, %v5125
      %5255 = vst.msk [vmem:[#allocation3 + $0x6c] sm:$0xf] %vm2296, %v5127
      %5256 = vst.msk [vmem:[#allocation3 + $0x70] sm:$0xf] %vm2296, %v5129
      %5257 = vst.msk [vmem:[#allocation3 + $0x74] sm:$0xf] %vm2296, %v5131
      %5258 = vst.msk [vmem:[#allocation3 + $0x78] sm:$0xf] %vm2296, %v5133
      %5259 = vst.msk [vmem:[#allocation3 + $0x7c] sm:$0xf] %vm2296, %v5135
      %5260 = vst.msk [vmem:[#allocation3 + $0x80] sm:$0xf] %vm2296, %v5137
      %5261 = vst.msk [vmem:[#allocation3 + $0x84] sm:$0xf] %vm2296, %v5139
      %5262 = vst.msk [vmem:[#allocation3 + $0x88] sm:$0xf] %vm2296, %v5141
      %5263 = vst.msk [vmem:[#allocation3 + $0x8c] sm:$0xf] %vm2296, %v5143
      %5264 = vst.msk [vmem:[#allocation3 + $0x90] sm:$0xf] %vm2296, %v5145
      %5265 = vst.msk [vmem:[#allocation3 + $0x94] sm:$0xf] %vm2296, %v5147
      %5266 = vst.msk [vmem:[#allocation3 + $0x98] sm:$0xf] %vm2296, %v5149
      %5267 = vst.msk [vmem:[#allocation3 + $0x9c] sm:$0xf] %vm2296, %v5151
      %5268 = vst.msk [vmem:[#allocation3 + $0xa0] sm:$0xf] %vm2296, %v5153
      %5269 = vst.msk [vmem:[#allocation3 + $0xa4] sm:$0xf] %vm2296, %v5155
      %5270 = vst.msk [vmem:[#allocation3 + $0xa8] sm:$0xf] %vm2296, %v5157
      %5271 = vst.msk [vmem:[#allocation3 + $0xac] sm:$0xf] %vm2296, %v5159
      %5272 = vst.msk [vmem:[#allocation3 + $0xb0] sm:$0xf] %vm2296, %v5161
      %5273 = vst.msk [vmem:[#allocation3 + $0xb4] sm:$0xf] %vm2296, %v5163
      %5274 = vst.msk [vmem:[#allocation3 + $0xb8] sm:$0xf] %vm2296, %v5165
      %5275 = vst.msk [vmem:[#allocation3 + $0xbc] sm:$0xf] %vm2296, %v5167
      %5276 = vst.msk [vmem:[#allocation3 + $0xc0] sm:$0xf] %vm2296, %v5169
      %5277 = vst.msk [vmem:[#allocation3 + $0xc4] sm:$0xf] %vm2296, %v5171
      %5278 = vst.msk [vmem:[#allocation3 + $0xc8] sm:$0xf] %vm2296, %v5173
      %5279 = vst.msk [vmem:[#allocation3 + $0xcc] sm:$0xf] %vm2296, %v5175
      %v5280 = vld [vmem:[#allocation2 + $0x4] sm:$0xf]
      %v5281 = vld [vmem:[#allocation2 + $0x8] sm:$0xf]
      %v5282 = vld [vmem:[#allocation2 + $0x14] sm:$0xf]
      %v5283 = vld [vmem:[#allocation2 + $0x18] sm:$0xf]
      %v5284 = vld [vmem:[#allocation2 + $0x24] sm:$0xf]
      %v5285 = vld [vmem:[#allocation2 + $0x28] sm:$0xf]
      %v5286 = vld [vmem:[#allocation2 + $0x34] sm:$0xf]
      %v5287 = vld [vmem:[#allocation2 + $0x38] sm:$0xf]
      %v5288 = vld [vmem:[#allocation2 + $0x44] sm:$0xf]
      %v5289 = vld [vmem:[#allocation2 + $0x48] sm:$0xf]
      %v5290 = vld [vmem:[#allocation2 + $0x54] sm:$0xf]
      %v5291 = vld [vmem:[#allocation2 + $0x58] sm:$0xf]
      %v5292 = vld [vmem:[#allocation2 + $0x64] sm:$0xf]
      %v5293 = vld [vmem:[#allocation2 + $0x68] sm:$0xf]
      %v5294 = vld [vmem:[#allocation2 + $0x74] sm:$0xf]
      %v5295 = vld [vmem:[#allocation2 + $0x78] sm:$0xf]
      %v5296 = vld [vmem:[#allocation2 + $0x84] sm:$0xf]
      %v5297 = vld [vmem:[#allocation2 + $0x88] sm:$0xf]
      %v5298 = vld [vmem:[#allocation2 + $0x94] sm:$0xf]
      %v5299 = vld [vmem:[#allocation2 + $0x98] sm:$0xf]
      %v5300 = vld [vmem:[#allocation2 + $0xa4] sm:$0xf]
      %v5301 = vld [vmem:[#allocation2 + $0xa8] sm:$0xf]
      %v5302 = vld [vmem:[#allocation2 + $0xb4] sm:$0xf]
      %v5303 = vld [vmem:[#allocation2 + $0xb8] sm:$0xf]
      %v5304 = vld [vmem:[#allocation2 + $0xc4] sm:$0xf]
      %v5305 = vld [vmem:[#allocation2 + $0xc8] sm:$0xf]
      %v5306 = vld [vmem:[#allocation2 + $0xd4] sm:$0xf]
      %v5307 = vld [vmem:[#allocation2 + $0xd8] sm:$0xf]
      %v5308 = vld [vmem:[#allocation2 + $0xe4] sm:$0xf]
      %v5309 = vld [vmem:[#allocation2 + $0xe8] sm:$0xf]
      %v5310 = vld [vmem:[#allocation2 + $0xf4] sm:$0xf]
      %v5311 = vld [vmem:[#allocation2 + $0xf8] sm:$0xf]
      %v5312 = vld [vmem:[#allocation2 + $0x104] sm:$0xf]
      %v5313 = vld [vmem:[#allocation2 + $0x108] sm:$0xf]
      %v5314 = vld [vmem:[#allocation2 + $0x114] sm:$0xf]
      %v5315 = vld [vmem:[#allocation2 + $0x118] sm:$0xf]
      %v5316 = vld [vmem:[#allocation2 + $0x124] sm:$0xf]
      %v5317 = vld [vmem:[#allocation2 + $0x128] sm:$0xf]
      %v5318 = vld [vmem:[#allocation2 + $0x134] sm:$0xf]
      %v5319 = vld [vmem:[#allocation2 + $0x138] sm:$0xf]
      %v5320 = vld [vmem:[#allocation2 + $0x144] sm:$0xf]
      %v5321 = vld [vmem:[#allocation2 + $0x148] sm:$0xf]
      %v5322 = vld [vmem:[#allocation2 + $0x154] sm:$0xf]
      %v5323 = vld [vmem:[#allocation2 + $0x158] sm:$0xf]
      %v5324 = vld [vmem:[#allocation2 + $0x164] sm:$0xf]
      %v5325 = vld [vmem:[#allocation2 + $0x168] sm:$0xf]
      %v5326 = vld [vmem:[#allocation2 + $0x174] sm:$0xf]
      %v5327 = vld [vmem:[#allocation2 + $0x178] sm:$0xf]
      %v5328 = vld [vmem:[#allocation2 + $0x184] sm:$0xf]
      %v5329 = vld [vmem:[#allocation2 + $0x188] sm:$0xf]
      %v5330 = vld [vmem:[#allocation2 + $0x194] sm:$0xf]
      %v5331 = vld [vmem:[#allocation2 + $0x198] sm:$0xf]
      %5384 = vrot.lane.b32.xlu0 %v5280, 8
      %v5385 = vpop.permute.xlu0 %5384
      %5386 = vrot.lane.b32.xlu0 %v5281, 8
      %v5387 = vpop.permute.xlu0 %5386
      %5388 = vrot.lane.b32.xlu0 %v5282, 8
      %v5389 = vpop.permute.xlu0 %5388
      %5390 = vrot.lane.b32.xlu0 %v5283, 8
      %v5391 = vpop.permute.xlu0 %5390
      %5392 = vrot.lane.b32.xlu0 %v5284, 8
      %v5393 = vpop.permute.xlu0 %5392
      %5394 = vrot.lane.b32.xlu0 %v5285, 8
      %v5395 = vpop.permute.xlu0 %5394
      %5396 = vrot.lane.b32.xlu0 %v5286, 8
      %v5397 = vpop.permute.xlu0 %5396
      %5398 = vrot.lane.b32.xlu0 %v5287, 8
      %v5399 = vpop.permute.xlu0 %5398
      %5400 = vrot.lane.b32.xlu0 %v5288, 8
      %v5401 = vpop.permute.xlu0 %5400
      %5402 = vrot.lane.b32.xlu0 %v5289, 8
      %v5403 = vpop.permute.xlu0 %5402
      %5404 = vrot.lane.b32.xlu0 %v5290, 8
      %v5405 = vpop.permute.xlu0 %5404
      %5406 = vrot.lane.b32.xlu0 %v5291, 8
      %v5407 = vpop.permute.xlu0 %5406
      %5408 = vrot.lane.b32.xlu0 %v5292, 8
      %v5409 = vpop.permute.xlu0 %5408
      %5410 = vrot.lane.b32.xlu0 %v5293, 8
      %v5411 = vpop.permute.xlu0 %5410
      %5412 = vrot.lane.b32.xlu0 %v5294, 8
      %v5413 = vpop.permute.xlu0 %5412
      %5414 = vrot.lane.b32.xlu0 %v5295, 8
      %v5415 = vpop.permute.xlu0 %5414
      %5416 = vrot.lane.b32.xlu0 %v5296, 8
      %v5417 = vpop.permute.xlu0 %5416
      %5418 = vrot.lane.b32.xlu0 %v5297, 8
      %v5419 = vpop.permute.xlu0 %5418
      %5420 = vrot.lane.b32.xlu0 %v5298, 8
      %v5421 = vpop.permute.xlu0 %5420
      %5422 = vrot.lane.b32.xlu0 %v5299, 8
      %v5423 = vpop.permute.xlu0 %5422
      %5424 = vrot.lane.b32.xlu0 %v5300, 8
      %v5425 = vpop.permute.xlu0 %5424
      %5426 = vrot.lane.b32.xlu0 %v5301, 8
      %v5427 = vpop.permute.xlu0 %5426
      %5428 = vrot.lane.b32.xlu0 %v5302, 8
      %v5429 = vpop.permute.xlu0 %5428
      %5430 = vrot.lane.b32.xlu0 %v5303, 8
      %v5431 = vpop.permute.xlu0 %5430
      %5432 = vrot.lane.b32.xlu0 %v5304, 8
      %v5433 = vpop.permute.xlu0 %5432
      %5434 = vrot.lane.b32.xlu0 %v5305, 8
      %v5435 = vpop.permute.xlu0 %5434
      %5436 = vrot.lane.b32.xlu0 %v5306, 8
      %v5437 = vpop.permute.xlu0 %5436
      %5438 = vrot.lane.b32.xlu0 %v5307, 8
      %v5439 = vpop.permute.xlu0 %5438
      %5440 = vrot.lane.b32.xlu0 %v5308, 8
      %v5441 = vpop.permute.xlu0 %5440
      %5442 = vrot.lane.b32.xlu0 %v5309, 8
      %v5443 = vpop.permute.xlu0 %5442
      %5444 = vrot.lane.b32.xlu0 %v5310, 8
      %v5445 = vpop.permute.xlu0 %5444
      %5446 = vrot.lane.b32.xlu0 %v5311, 8
      %v5447 = vpop.permute.xlu0 %5446
      %5448 = vrot.lane.b32.xlu0 %v5312, 8
      %v5449 = vpop.permute.xlu0 %5448
      %5450 = vrot.lane.b32.xlu0 %v5313, 8
      %v5451 = vpop.permute.xlu0 %5450
      %5452 = vrot.lane.b32.xlu0 %v5314, 8
      %v5453 = vpop.permute.xlu0 %5452
      %5454 = vrot.lane.b32.xlu0 %v5315, 8
      %v5455 = vpop.permute.xlu0 %5454
      %5456 = vrot.lane.b32.xlu0 %v5316, 8
      %v5457 = vpop.permute.xlu0 %5456
      %5458 = vrot.lane.b32.xlu0 %v5317, 8
      %v5459 = vpop.permute.xlu0 %5458
      %5460 = vrot.lane.b32.xlu0 %v5318, 8
      %v5461 = vpop.permute.xlu0 %5460
      %5462 = vrot.lane.b32.xlu0 %v5319, 8
      %v5463 = vpop.permute.xlu0 %5462
      %5464 = vrot.lane.b32.xlu0 %v5320, 8
      %v5465 = vpop.permute.xlu0 %5464
      %5466 = vrot.lane.b32.xlu0 %v5321, 8
      %v5467 = vpop.permute.xlu0 %5466
      %5468 = vrot.lane.b32.xlu0 %v5322, 8
      %v5469 = vpop.permute.xlu0 %5468
      %5470 = vrot.lane.b32.xlu0 %v5323, 8
      %v5471 = vpop.permute.xlu0 %5470
      %5472 = vrot.lane.b32.xlu0 %v5324, 8
      %v5473 = vpop.permute.xlu0 %5472
      %5474 = vrot.lane.b32.xlu0 %v5325, 8
      %v5475 = vpop.permute.xlu0 %5474
      %5476 = vrot.lane.b32.xlu0 %v5326, 8
      %v5477 = vpop.permute.xlu0 %5476
      %5478 = vrot.lane.b32.xlu0 %v5327, 8
      %v5479 = vpop.permute.xlu0 %5478
      %5480 = vrot.lane.b32.xlu0 %v5328, 8
      %v5481 = vpop.permute.xlu0 %5480
      %5482 = vrot.lane.b32.xlu0 %v5329, 8
      %v5483 = vpop.permute.xlu0 %5482
      %5484 = vrot.lane.b32.xlu0 %v5330, 8
      %v5485 = vpop.permute.xlu0 %5484
      %5486 = vrot.lane.b32.xlu0 %v5331, 8
      %v5487 = vpop.permute.xlu0 %5486
      %5540 = vst.msk [vmem:[#allocation3] sm:$0xf] %vm2846, %v5385
      %5541 = vst.msk [vmem:[#allocation3 + $0x4] sm:$0xf] %vm2846, %v5387
      %5542 = vst.msk [vmem:[#allocation3 + $0x8] sm:$0xf] %vm2846, %v5389
      %5543 = vst.msk [vmem:[#allocation3 + $0xc] sm:$0xf] %vm2846, %v5391
      %5544 = vst.msk [vmem:[#allocation3 + $0x10] sm:$0xf] %vm2846, %v5393
      %5545 = vst.msk [vmem:[#allocation3 + $0x14] sm:$0xf] %vm2846, %v5395
      %5546 = vst.msk [vmem:[#allocation3 + $0x18] sm:$0xf] %vm2846, %v5397
      %5547 = vst.msk [vmem:[#allocation3 + $0x1c] sm:$0xf] %vm2846, %v5399
      %5548 = vst.msk [vmem:[#allocation3 + $0x20] sm:$0xf] %vm2846, %v5401
      %5549 = vst.msk [vmem:[#allocation3 + $0x24] sm:$0xf] %vm2846, %v5403
      %5550 = vst.msk [vmem:[#allocation3 + $0x28] sm:$0xf] %vm2846, %v5405
      %5551 = vst.msk [vmem:[#allocation3 + $0x2c] sm:$0xf] %vm2846, %v5407
      %5552 = vst.msk [vmem:[#allocation3 + $0x30] sm:$0xf] %vm2846, %v5409
      %5553 = vst.msk [vmem:[#allocation3 + $0x34] sm:$0xf] %vm2846, %v5411
      %5554 = vst.msk [vmem:[#allocation3 + $0x38] sm:$0xf] %vm2846, %v5413
      %5555 = vst.msk [vmem:[#allocation3 + $0x3c] sm:$0xf] %vm2846, %v5415
      %5556 = vst.msk [vmem:[#allocation3 + $0x40] sm:$0xf] %vm2846, %v5417
      %5557 = vst.msk [vmem:[#allocation3 + $0x44] sm:$0xf] %vm2846, %v5419
      %5558 = vst.msk [vmem:[#allocation3 + $0x48] sm:$0xf] %vm2846, %v5421
      %5559 = vst.msk [vmem:[#allocation3 + $0x4c] sm:$0xf] %vm2846, %v5423
      %5560 = vst.msk [vmem:[#allocation3 + $0x50] sm:$0xf] %vm2846, %v5425
      %5561 = vst.msk [vmem:[#allocation3 + $0x54] sm:$0xf] %vm2846, %v5427
      %5562 = vst.msk [vmem:[#allocation3 + $0x58] sm:$0xf] %vm2846, %v5429
      %5563 = vst.msk [vmem:[#allocation3 + $0x5c] sm:$0xf] %vm2846, %v5431
      %5564 = vst.msk [vmem:[#allocation3 + $0x60] sm:$0xf] %vm2846, %v5433
      %5565 = vst.msk [vmem:[#allocation3 + $0x64] sm:$0xf] %vm2846, %v5435
      %5566 = vst.msk [vmem:[#allocation3 + $0x68] sm:$0xf] %vm2846, %v5437
      %5567 = vst.msk [vmem:[#allocation3 + $0x6c] sm:$0xf] %vm2846, %v5439
      %5568 = vst.msk [vmem:[#allocation3 + $0x70] sm:$0xf] %vm2846, %v5441
      %5569 = vst.msk [vmem:[#allocation3 + $0x74] sm:$0xf] %vm2846, %v5443
      %5570 = vst.msk [vmem:[#allocation3 + $0x78] sm:$0xf] %vm2846, %v5445
      %5571 = vst.msk [vmem:[#allocation3 + $0x7c] sm:$0xf] %vm2846, %v5447
      %5572 = vst.msk [vmem:[#allocation3 + $0x80] sm:$0xf] %vm2846, %v5449
      %5573 = vst.msk [vmem:[#allocation3 + $0x84] sm:$0xf] %vm2846, %v5451
      %5574 = vst.msk [vmem:[#allocation3 + $0x88] sm:$0xf] %vm2846, %v5453
      %5575 = vst.msk [vmem:[#allocation3 + $0x8c] sm:$0xf] %vm2846, %v5455
      %5576 = vst.msk [vmem:[#allocation3 + $0x90] sm:$0xf] %vm2846, %v5457
      %5577 = vst.msk [vmem:[#allocation3 + $0x94] sm:$0xf] %vm2846, %v5459
      %5578 = vst.msk [vmem:[#allocation3 + $0x98] sm:$0xf] %vm2846, %v5461
      %5579 = vst.msk [vmem:[#allocation3 + $0x9c] sm:$0xf] %vm2846, %v5463
      %5580 = vst.msk [vmem:[#allocation3 + $0xa0] sm:$0xf] %vm2846, %v5465
      %5581 = vst.msk [vmem:[#allocation3 + $0xa4] sm:$0xf] %vm2846, %v5467
      %5582 = vst.msk [vmem:[#allocation3 + $0xa8] sm:$0xf] %vm2846, %v5469
      %5583 = vst.msk [vmem:[#allocation3 + $0xac] sm:$0xf] %vm2846, %v5471
      %5584 = vst.msk [vmem:[#allocation3 + $0xb0] sm:$0xf] %vm2846, %v5473
      %5585 = vst.msk [vmem:[#allocation3 + $0xb4] sm:$0xf] %vm2846, %v5475
      %5586 = vst.msk [vmem:[#allocation3 + $0xb8] sm:$0xf] %vm2846, %v5477
      %5587 = vst.msk [vmem:[#allocation3 + $0xbc] sm:$0xf] %vm2846, %v5479
      %5588 = vst.msk [vmem:[#allocation3 + $0xc0] sm:$0xf] %vm2846, %v5481
      %5589 = vst.msk [vmem:[#allocation3 + $0xc4] sm:$0xf] %vm2846, %v5483
      %5590 = vst.msk [vmem:[#allocation3 + $0xc8] sm:$0xf] %vm2846, %v5485
      %5591 = vst.msk [vmem:[#allocation3 + $0xcc] sm:$0xf] %vm2846, %v5487
      %v5592 = vld [vmem:[#allocation3 + $0x10] sm:$0xf]
      %v5593 = vld [vmem:[#allocation3 + $0x14] sm:$0xf]
      %v5594 = vld [vmem:[#allocation3 + $0x18] sm:$0xf]
      %v5595 = vld [vmem:[#allocation3 + $0x1c] sm:$0xf]
      %v5596 = vld [vmem:[#allocation3 + $0x20] sm:$0xf]
      %v5597 = vld [vmem:[#allocation3 + $0x24] sm:$0xf]
      %v5598 = vld [vmem:[#allocation3 + $0x28] sm:$0xf]
      %v5599 = vld [vmem:[#allocation3 + $0x2c] sm:$0xf]
      %v5600 = vld [vmem:[#allocation3 + $0x30] sm:$0xf]
      %v5601 = vld [vmem:[#allocation3 + $0x34] sm:$0xf]
      %v5602 = vld [vmem:[#allocation3 + $0x38] sm:$0xf]
      %v5603 = vld [vmem:[#allocation3 + $0x3c] sm:$0xf]
      %v5604 = vld [vmem:[#allocation3 + $0x40] sm:$0xf]
      %v5605 = vld [vmem:[#allocation3 + $0x44] sm:$0xf]
      %v5606 = vld [vmem:[#allocation3 + $0x48] sm:$0xf]
      %v5607 = vld [vmem:[#allocation3 + $0x4c] sm:$0xf]
      %v5608 = vld [vmem:[#allocation3 + $0x50] sm:$0xf]
      %v5609 = vld [vmem:[#allocation3 + $0x54] sm:$0xf]
      %v5610 = vld [vmem:[#allocation3 + $0x58] sm:$0xf]
      %v5611 = vld [vmem:[#allocation3 + $0x5c] sm:$0xf]
      %v5612 = vld [vmem:[#allocation3 + $0x60] sm:$0xf]
      %v5613 = vld [vmem:[#allocation3 + $0x64] sm:$0xf]
      %v5614 = vld [vmem:[#allocation3 + $0x68] sm:$0xf]
      %v5615 = vld [vmem:[#allocation3 + $0x6c] sm:$0xf]
      %v5616 = vld [vmem:[#allocation3 + $0x70] sm:$0xf]
      %v5617 = vld [vmem:[#allocation3 + $0x74] sm:$0xf]
      %v5618 = vld [vmem:[#allocation3 + $0x78] sm:$0xf]
      %v5619 = vld [vmem:[#allocation3 + $0x7c] sm:$0xf]
      %v5620 = vld [vmem:[#allocation3 + $0x80] sm:$0xf]
      %v5621 = vld [vmem:[#allocation3 + $0x84] sm:$0xf]
      %v5622 = vld [vmem:[#allocation3 + $0x88] sm:$0xf]
      %v5623 = vld [vmem:[#allocation3 + $0x8c] sm:$0xf]
      %s5624 = scalar_lea.vmem %s1, 24
      %v5625 = vld [vmem:[%s5624] sm:$0xf]
      %v5626 = vld [vmem:[%s5624 + $0x4] sm:$0x3]
      %v5627 = vld [vmem:[#allocation3 + $0x90] sm:$0xf]
      %v5628 = vld [vmem:[#allocation3 + $0x94] sm:$0xf]
      %v5629 = vld [vmem:[#allocation3 + $0x98] sm:$0xf]
      %v5630 = vld [vmem:[#allocation3 + $0x9c] sm:$0xf]
      %v5631 = vld [vmem:[#allocation3 + $0xa0] sm:$0xf]
      %v5632 = vld [vmem:[#allocation3 + $0xa4] sm:$0xf]
      %s5633 = scalar_lea.vmem %s1, 32
      %v5634 = vld [vmem:[%s5633] sm:$0xf]
      %v5635 = vld [vmem:[%s5633 + $0x4] sm:$0x3]
      %v5668 = vunpack.c.l.b16 %v5598
      %v5669 = vunpack.c.l.b16 %v5599
      %v5670 = vunpack.c.l.b16 %v5600
      %v5671 = vunpack.c.l.b16 %v5601
      %v5672 = vunpack.c.l.b16 %v5602
      %v5673 = vunpack.c.l.b16 %v5603
      %v5674 = vunpack.c.l.b16 %v5604
      %v5675 = vunpack.c.l.b16 %v5605
      %v5676 = vunpack.c.l.b16 %v5606
      %v5677 = vunpack.c.l.b16 %v5607
      %v5678 = vunpack.c.l.b16 %v5608
      %v5679 = vunpack.c.l.b16 %v5609
      %v5680 = vunpack.c.l.b16 %v5610
      %v5681 = vunpack.c.l.b16 %v5611
      %v5682 = vunpack.c.l.b16 %v5612
      %v5683 = vunpack.c.l.b16 %v5613
      %v5684 = vunpack.c.l.b16 %v5614
      %v5685 = vunpack.c.l.b16 %v5615
      %v5686 = vunpack.c.l.b16 %v5616
      %v5687 = vunpack.c.l.b16 %v5617
      %v5688 = vunpack.c.l.b16 %v5618
      %v5689 = vunpack.c.l.b16 %v5619
      %v5690 = vunpack.c.l.b16 %v5620
      %v5691 = vunpack.c.l.b16 %v5621
      %v5692 = vunpack.c.l.b16 %v5622
      %v5693 = vunpack.c.l.b16 %v5623
      %v5694 = vunpack.c.l.b16 %v5627
      %v5695 = vunpack.c.l.b16 %v5628
      %v5696 = vunpack.c.l.b16 %v5629
      %v5697 = vunpack.c.l.b16 %v5630
      %v5698 = vunpack.c.l.b16 %v5631
      %v5699 = vunpack.c.l.b16 %v5632
      %v5700 = vpack.c.b16 %v5669, %v5668
      %v5701 = vpack.c.b16 %v5671, %v5670
      %v5702 = vpack.c.b16 %v5673, %v5672
      %v5703 = vpack.c.b16 %v5675, %v5674
      %v5704 = vpack.c.b16 %v5677, %v5676
      %v5705 = vpack.c.b16 %v5679, %v5678
      %v5706 = vpack.c.b16 %v5681, %v5680
      %v5707 = vpack.c.b16 %v5683, %v5682
      %v5708 = vpack.c.b16 %v5685, %v5684
      %v5709 = vpack.c.b16 %v5687, %v5686
      %v5710 = vpack.c.b16 %v5689, %v5688
      %v5711 = vpack.c.b16 %v5691, %v5690
      %v5712 = vpack.c.b16 %v5693, %v5692
      %v5713 = vpack.c.b16 %v5695, %v5694
      %v5714 = vpack.c.b16 %v5697, %v5696
      %v5715 = vpack.c.b16 %v5699, %v5698
      %v5718 = vunpack.c.l.b16 %v5634
      %v5719 = vunpack.c.l.b16 %v5635
      %v5720 = vpack.c.b16 %v5719, %v5718
      %v5722 = vsel %vm3023, %v5700, 0
      %v5725 = vsel %vm3023, %v5701, 0
      %v5728 = vsel %vm3023, %v5702, 0
      %v5731 = vsel %vm3023, %v5703, 0
      %v5734 = vsel %vm3023, %v5704, 0
      %v5737 = vsel %vm3023, %v5705, 0
      %v5740 = vsel %vm3023, %v5706, 0
      %v5743 = vsel %vm3023, %v5707, 0
      %v5746 = vsel %vm3023, %v5708, 0
      %v5749 = vsel %vm3023, %v5709, 0
      %v5752 = vsel %vm3023, %v5710, 0
      %v5755 = vsel %vm3023, %v5711, 0
      %v5758 = vsel %vm3023, %v5712, 0
      %v5761 = vsel %vm3023, %v5713, 0
      %v5764 = vsel %vm3023, %v5714, 0
      %v5767 = vsel %vm3023, %v5715, 0
      %v5770 = vsel %vm3072, %v5720, 0
      %5772 = vmatpush.bf16.msra.mxu0 0
      %5773 = vmatpush.bf16.msra.mxu0 0
      %5774 = vmatpush.bf16.msra.mxu0 0
      %5775 = vmatpush.bf16.msra.mxu0 0
      %5776 = vmatpush.bf16.msra.mxu0 0
      %5777 = vmatpush.bf16.msra.mxu0 0
      %5778 = vmatpush.bf16.msra.mxu0 0
      %5779 = vmatpush.bf16.msra.mxu0 %v5770
      %5780 = vmatmul.bf16.gmra.mxu0 %v5722
      %v5781 = vpop.f32.mrf.mxu0
      %v5782 = vadd.f32 0.0, %v5781
      %v5783 = vpop.f32.mrf.mxu0
      %v5784 = vadd.f32 0.0, %v5783
      %5785 = vmatmul.bf16.gmra.mxu0 %v5725
      %v5786 = vpop.f32.mrf.mxu0
      %v5787 = vadd.f32 0.0, %v5786
      %v5788 = vpop.f32.mrf.mxu0
      %v5789 = vadd.f32 0.0, %v5788
      %5790 = vmatmul.bf16.gmra.mxu0 %v5728
      %v5791 = vpop.f32.mrf.mxu0
      %v5792 = vadd.f32 0.0, %v5791
      %v5793 = vpop.f32.mrf.mxu0
      %v5794 = vadd.f32 0.0, %v5793
      %5795 = vmatmul.bf16.gmra.mxu0 %v5731
      %v5796 = vpop.f32.mrf.mxu0
      %v5797 = vadd.f32 0.0, %v5796
      %v5798 = vpop.f32.mrf.mxu0
      %v5799 = vadd.f32 0.0, %v5798
      %5800 = vmatmul.bf16.gmra.mxu0 %v5734
      %v5801 = vpop.f32.mrf.mxu0
      %v5802 = vadd.f32 0.0, %v5801
      %v5803 = vpop.f32.mrf.mxu0
      %v5804 = vadd.f32 0.0, %v5803
      %5805 = vmatmul.bf16.gmra.mxu0 %v5737
      %v5806 = vpop.f32.mrf.mxu0
      %v5807 = vadd.f32 0.0, %v5806
      %v5808 = vpop.f32.mrf.mxu0
      %v5809 = vadd.f32 0.0, %v5808
      %5810 = vmatmul.bf16.gmra.mxu0 %v5740
      %v5811 = vpop.f32.mrf.mxu0
      %v5812 = vadd.f32 0.0, %v5811
      %v5813 = vpop.f32.mrf.mxu0
      %v5814 = vadd.f32 0.0, %v5813
      %5815 = vmatmul.bf16.gmra.mxu0 %v5743
      %v5816 = vpop.f32.mrf.mxu0
      %v5817 = vadd.f32 0.0, %v5816
      %v5818 = vpop.f32.mrf.mxu0
      %v5819 = vadd.f32 0.0, %v5818
      %5820 = vmatmul.bf16.gmra.mxu0 %v5746
      %v5821 = vpop.f32.mrf.mxu0
      %v5822 = vadd.f32 0.0, %v5821
      %v5823 = vpop.f32.mrf.mxu0
      %v5824 = vadd.f32 0.0, %v5823
      %5825 = vmatmul.bf16.gmra.mxu0 %v5749
      %v5826 = vpop.f32.mrf.mxu0
      %v5827 = vadd.f32 0.0, %v5826
      %v5828 = vpop.f32.mrf.mxu0
      %v5829 = vadd.f32 0.0, %v5828
      %5830 = vmatmul.bf16.gmra.mxu0 %v5752
      %v5831 = vpop.f32.mrf.mxu0
      %v5832 = vadd.f32 0.0, %v5831
      %v5833 = vpop.f32.mrf.mxu0
      %v5834 = vadd.f32 0.0, %v5833
      %5835 = vmatmul.bf16.gmra.mxu0 %v5755
      %v5836 = vpop.f32.mrf.mxu0
      %v5837 = vadd.f32 0.0, %v5836
      %v5838 = vpop.f32.mrf.mxu0
      %v5839 = vadd.f32 0.0, %v5838
      %5840 = vmatmul.bf16.gmra.mxu0 %v5758
      %v5841 = vpop.f32.mrf.mxu0
      %v5842 = vadd.f32 0.0, %v5841
      %v5843 = vpop.f32.mrf.mxu0
      %v5844 = vadd.f32 0.0, %v5843
      %5845 = vmatmul.bf16.gmra.mxu0 %v5761
      %v5846 = vpop.f32.mrf.mxu0
      %v5847 = vadd.f32 0.0, %v5846
      %v5848 = vpop.f32.mrf.mxu0
      %v5849 = vadd.f32 0.0, %v5848
      %5850 = vmatmul.bf16.gmra.mxu0 %v5764
      %v5851 = vpop.f32.mrf.mxu0
      %v5852 = vadd.f32 0.0, %v5851
      %v5853 = vpop.f32.mrf.mxu0
      %v5854 = vadd.f32 0.0, %v5853
      %5855 = vmatmul.bf16.gmra.mxu0 %v5767
      %v5856 = vpop.f32.mrf.mxu0
      %v5857 = vadd.f32 0.0, %v5856
      %v5858 = vpop.f32.mrf.mxu0
      %v5859 = vadd.f32 0.0, %v5858
      %5860 = vdwg.mxu0
      %v5867 = vunpack.c.l.b16 %v5592
      %v5868 = vunpack.c.l.b16 %v5593
      %v5869 = vunpack.c.l.b16 %v5594
      %v5870 = vunpack.c.l.b16 %v5595
      %v5871 = vunpack.c.l.b16 %v5596
      %v5872 = vunpack.c.l.b16 %v5597
      %v5873 = vpack.c.b16 %v5868, %v5867
      %v5874 = vpack.c.b16 %v5870, %v5869
      %v5875 = vpack.c.b16 %v5872, %v5871
      %v5878 = vunpack.c.l.b16 %v5625
      %v5879 = vunpack.c.l.b16 %v5626
      %v5880 = vpack.c.b16 %v5879, %v5878
      %v5882 = vsel %vm3023, %v5873, 0
      %v5885 = vsel %vm3023, %v5874, 0
      %v5888 = vsel %vm3023, %v5875, 0
      %v5891 = vsel %vm3072, %v5880, 0
      %5893 = vmatpush.bf16.msra.mxu0 0
      %5894 = vmatpush.bf16.msra.mxu0 0
      %5895 = vmatpush.bf16.msra.mxu0 0
      %5896 = vmatpush.bf16.msra.mxu0 0
      %5897 = vmatpush.bf16.msra.mxu0 0
      %5898 = vmatpush.bf16.msra.mxu0 0
      %5899 = vmatpush.bf16.msra.mxu0 0
      %5900 = vmatpush.bf16.msra.mxu0 %v5891
      %5901 = vmatmul.bf16.gmra.mxu0 %v5882
      %v5902 = vpop.f32.mrf.mxu0
      %v5903 = vadd.f32 %v5782, %v5902
      %v5904 = vpop.f32.mrf.mxu0
      %v5905 = vadd.f32 %v5784, %v5904
      %5906 = vmatmul.bf16.gmra.mxu0 %v5885
      %v5907 = vpop.f32.mrf.mxu0
      %v5908 = vadd.f32 %v5787, %v5907
      %v5909 = vpop.f32.mrf.mxu0
      %v5910 = vadd.f32 %v5789, %v5909
      %5911 = vmatmul.bf16.gmra.mxu0 %v5888
      %v5912 = vpop.f32.mrf.mxu0
      %v5913 = vadd.f32 %v5792, %v5912
      %v5914 = vpop.f32.mrf.mxu0
      %v5915 = vadd.f32 %v5794, %v5914
      %5916 = vmatmul.bf16.gmra.mxu0 %v5722
      %v5917 = vpop.f32.mrf.mxu0
      %v5918 = vadd.f32 %v5797, %v5917
      %v5919 = vpop.f32.mrf.mxu0
      %v5920 = vadd.f32 %v5799, %v5919
      %5921 = vmatmul.bf16.gmra.mxu0 %v5725
      %v5922 = vpop.f32.mrf.mxu0
      %v5923 = vadd.f32 %v5802, %v5922
      %v5924 = vpop.f32.mrf.mxu0
      %v5925 = vadd.f32 %v5804, %v5924
      %5926 = vmatmul.bf16.gmra.mxu0 %v5728
      %v5927 = vpop.f32.mrf.mxu0
      %v5928 = vadd.f32 %v5807, %v5927
      %v5929 = vpop.f32.mrf.mxu0
      %v5930 = vadd.f32 %v5809, %v5929
      %5931 = vmatmul.bf16.gmra.mxu0 %v5731
      %v5932 = vpop.f32.mrf.mxu0
      %v5933 = vadd.f32 %v5812, %v5932
      %v5934 = vpop.f32.mrf.mxu0
      %v5935 = vadd.f32 %v5814, %v5934
      %5936 = vmatmul.bf16.gmra.mxu0 %v5734
      %v5937 = vpop.f32.mrf.mxu0
      %v5938 = vadd.f32 %v5817, %v5937
      %v5939 = vpop.f32.mrf.mxu0
      %v5940 = vadd.f32 %v5819, %v5939
      %5941 = vmatmul.bf16.gmra.mxu0 %v5737
      %v5942 = vpop.f32.mrf.mxu0
      %v5943 = vadd.f32 %v5822, %v5942
      %v5944 = vpop.f32.mrf.mxu0
      %v5945 = vadd.f32 %v5824, %v5944
      %5946 = vmatmul.bf16.gmra.mxu0 %v5740
      %v5947 = vpop.f32.mrf.mxu0
      %v5948 = vadd.f32 %v5827, %v5947
      %v5949 = vpop.f32.mrf.mxu0
      %v5950 = vadd.f32 %v5829, %v5949
      %5951 = vmatmul.bf16.gmra.mxu0 %v5743
      %v5952 = vpop.f32.mrf.mxu0
      %v5953 = vadd.f32 %v5832, %v5952
      %v5954 = vpop.f32.mrf.mxu0
      %v5955 = vadd.f32 %v5834, %v5954
      %5956 = vmatmul.bf16.gmra.mxu0 %v5746
      %v5957 = vpop.f32.mrf.mxu0
      %v5958 = vadd.f32 %v5837, %v5957
      %v5959 = vpop.f32.mrf.mxu0
      %v5960 = vadd.f32 %v5839, %v5959
      %5961 = vmatmul.bf16.gmra.mxu0 %v5749
      %v5962 = vpop.f32.mrf.mxu0
      %v5963 = vadd.f32 %v5842, %v5962
      %v5964 = vpop.f32.mrf.mxu0
      %v5965 = vadd.f32 %v5844, %v5964
      %5966 = vmatmul.bf16.gmra.mxu0 %v5752
      %v5967 = vpop.f32.mrf.mxu0
      %v5968 = vadd.f32 %v5847, %v5967
      %v5969 = vpop.f32.mrf.mxu0
      %v5970 = vadd.f32 %v5849, %v5969
      %5971 = vmatmul.bf16.gmra.mxu0 %v5755
      %v5972 = vpop.f32.mrf.mxu0
      %v5973 = vadd.f32 %v5852, %v5972
      %v5974 = vpop.f32.mrf.mxu0
      %v5975 = vadd.f32 %v5854, %v5974
      %5976 = vmatmul.bf16.gmra.mxu0 %v5758
      %v5977 = vpop.f32.mrf.mxu0
      %v5978 = vadd.f32 %v5857, %v5977
      %v5979 = vpop.f32.mrf.mxu0
      %v5980 = vadd.f32 %v5859, %v5979
      %5981 = vdwg.mxu0
      %v5982 = vld [vmem:[#allocation3 + $0x40] sm:$0xf]
      %v5983 = vld [vmem:[#allocation3 + $0x44] sm:$0xf]
      %v5984 = vld [vmem:[#allocation3 + $0x48] sm:$0xf]
      %v5985 = vld [vmem:[#allocation3 + $0x4c] sm:$0xf]
      %v5986 = vld [vmem:[#allocation3 + $0x50] sm:$0xf]
      %v5987 = vld [vmem:[#allocation3 + $0x54] sm:$0xf]
      %v5988 = vld [vmem:[#allocation3 + $0x58] sm:$0xf]
      %v5989 = vld [vmem:[#allocation3 + $0x5c] sm:$0xf]
      %v5990 = vld [vmem:[#allocation3 + $0x60] sm:$0xf]
      %v5991 = vld [vmem:[#allocation3 + $0x64] sm:$0xf]
      %v5992 = vld [vmem:[#allocation3 + $0x68] sm:$0xf]
      %v5993 = vld [vmem:[#allocation3 + $0x6c] sm:$0xf]
      %v5994 = vld [vmem:[#allocation3 + $0x70] sm:$0xf]
      %v5995 = vld [vmem:[#allocation3 + $0x74] sm:$0xf]
      %v5996 = vld [vmem:[#allocation3 + $0x78] sm:$0xf]
      %v5997 = vld [vmem:[#allocation3 + $0x7c] sm:$0xf]
      %v5998 = vld [vmem:[#allocation3 + $0x80] sm:$0xf]
      %v5999 = vld [vmem:[#allocation3 + $0x84] sm:$0xf]
      %v6000 = vld [vmem:[#allocation3 + $0x88] sm:$0xf]
      %v6001 = vld [vmem:[#allocation3 + $0x8c] sm:$0xf]
      %v6002 = vld [vmem:[#allocation3 + $0x90] sm:$0xf]
      %v6003 = vld [vmem:[#allocation3 + $0x94] sm:$0xf]
      %v6004 = vld [vmem:[#allocation3 + $0x98] sm:$0xf]
      %v6005 = vld [vmem:[#allocation3 + $0x9c] sm:$0xf]
      %v6006 = vld [vmem:[#allocation3 + $0xa0] sm:$0xf]
      %v6007 = vld [vmem:[#allocation3 + $0xa4] sm:$0xf]
      %v6008 = vld [vmem:[#allocation3 + $0xa8] sm:$0xf]
      %v6009 = vld [vmem:[#allocation3 + $0xac] sm:$0xf]
      %v6010 = vld [vmem:[#allocation3 + $0xb0] sm:$0xf]
      %v6011 = vld [vmem:[#allocation3 + $0xb4] sm:$0xf]
      %v6012 = vld [vmem:[#allocation3 + $0xb8] sm:$0xf]
      %v6013 = vld [vmem:[#allocation3 + $0xbc] sm:$0xf]
      %s6014 = scalar_lea.vmem %s1, 40
      %v6015 = vld [vmem:[%s6014] sm:$0xf]
      %v6016 = vld [vmem:[%s6014 + $0x4] sm:$0x3]
      %v6049 = vunpack.c.l.b16 %v5982
      %v6050 = vunpack.c.l.b16 %v5983
      %v6051 = vunpack.c.l.b16 %v5984
      %v6052 = vunpack.c.l.b16 %v5985
      %v6053 = vunpack.c.l.b16 %v5986
      %v6054 = vunpack.c.l.b16 %v5987
      %v6055 = vunpack.c.l.b16 %v5988
      %v6056 = vunpack.c.l.b16 %v5989
      %v6057 = vunpack.c.l.b16 %v5990
      %v6058 = vunpack.c.l.b16 %v5991
      %v6059 = vunpack.c.l.b16 %v5992
      %v6060 = vunpack.c.l.b16 %v5993
      %v6061 = vunpack.c.l.b16 %v5994
      %v6062 = vunpack.c.l.b16 %v5995
      %v6063 = vunpack.c.l.b16 %v5996
      %v6064 = vunpack.c.l.b16 %v5997
      %v6065 = vunpack.c.l.b16 %v5998
      %v6066 = vunpack.c.l.b16 %v5999
      %v6067 = vunpack.c.l.b16 %v6000
      %v6068 = vunpack.c.l.b16 %v6001
      %v6069 = vunpack.c.l.b16 %v6002
      %v6070 = vunpack.c.l.b16 %v6003
      %v6071 = vunpack.c.l.b16 %v6004
      %v6072 = vunpack.c.l.b16 %v6005
      %v6073 = vunpack.c.l.b16 %v6006
      %v6074 = vunpack.c.l.b16 %v6007
      %v6075 = vunpack.c.l.b16 %v6008
      %v6076 = vunpack.c.l.b16 %v6009
      %v6077 = vunpack.c.l.b16 %v6010
      %v6078 = vunpack.c.l.b16 %v6011
      %v6079 = vunpack.c.l.b16 %v6012
      %v6080 = vunpack.c.l.b16 %v6013
      %v6081 = vpack.c.b16 %v6050, %v6049
      %v6082 = vpack.c.b16 %v6052, %v6051
      %v6083 = vpack.c.b16 %v6054, %v6053
      %v6084 = vpack.c.b16 %v6056, %v6055
      %v6085 = vpack.c.b16 %v6058, %v6057
      %v6086 = vpack.c.b16 %v6060, %v6059
      %v6087 = vpack.c.b16 %v6062, %v6061
      %v6088 = vpack.c.b16 %v6064, %v6063
      %v6089 = vpack.c.b16 %v6066, %v6065
      %v6090 = vpack.c.b16 %v6068, %v6067
      %v6091 = vpack.c.b16 %v6070, %v6069
      %v6092 = vpack.c.b16 %v6072, %v6071
      %v6093 = vpack.c.b16 %v6074, %v6073
      %v6094 = vpack.c.b16 %v6076, %v6075
      %v6095 = vpack.c.b16 %v6078, %v6077
      %v6096 = vpack.c.b16 %v6080, %v6079
      %v6099 = vunpack.c.l.b16 %v6015
      %v6100 = vunpack.c.l.b16 %v6016
      %v6101 = vpack.c.b16 %v6100, %v6099
      %v6103 = vsel %vm3023, %v6081, 0
      %v6106 = vsel %vm3023, %v6082, 0
      %v6109 = vsel %vm3023, %v6083, 0
      %v6112 = vsel %vm3023, %v6084, 0
      %v6115 = vsel %vm3023, %v6085, 0
      %v6118 = vsel %vm3023, %v6086, 0
      %v6121 = vsel %vm3023, %v6087, 0
      %v6124 = vsel %vm3023, %v6088, 0
      %v6127 = vsel %vm3023, %v6089, 0
      %v6130 = vsel %vm3023, %v6090, 0
      %v6133 = vsel %vm3023, %v6091, 0
      %v6136 = vsel %vm3023, %v6092, 0
      %v6139 = vsel %vm3023, %v6093, 0
      %v6142 = vsel %vm3023, %v6094, 0
      %v6145 = vsel %vm3023, %v6095, 0
      %v6148 = vsel %vm3023, %v6096, 0
      %v6151 = vsel %vm3072, %v6101, 0
      %6153 = vmatpush.bf16.msra.mxu0 0
      %6154 = vmatpush.bf16.msra.mxu0 0
      %6155 = vmatpush.bf16.msra.mxu0 0
      %6156 = vmatpush.bf16.msra.mxu0 0
      %6157 = vmatpush.bf16.msra.mxu0 0
      %6158 = vmatpush.bf16.msra.mxu0 0
      %6159 = vmatpush.bf16.msra.mxu0 0
      %6160 = vmatpush.bf16.msra.mxu0 %v6151
      %6161 = vmatmul.bf16.gmra.mxu0 %v6103
      %v6162 = vpop.f32.mrf.mxu0
      %v6163 = vadd.f32 0.0, %v6162
      %v6164 = vpop.f32.mrf.mxu0
      %v6165 = vadd.f32 0.0, %v6164
      %6166 = vmatmul.bf16.gmra.mxu0 %v6106
      %v6167 = vpop.f32.mrf.mxu0
      %v6168 = vadd.f32 0.0, %v6167
      %v6169 = vpop.f32.mrf.mxu0
      %v6170 = vadd.f32 0.0, %v6169
      %6171 = vmatmul.bf16.gmra.mxu0 %v6109
      %v6172 = vpop.f32.mrf.mxu0
      %v6173 = vadd.f32 0.0, %v6172
      %v6174 = vpop.f32.mrf.mxu0
      %v6175 = vadd.f32 0.0, %v6174
      %6176 = vmatmul.bf16.gmra.mxu0 %v6112
      %v6177 = vpop.f32.mrf.mxu0
      %v6178 = vadd.f32 0.0, %v6177
      %v6179 = vpop.f32.mrf.mxu0
      %v6180 = vadd.f32 0.0, %v6179
      %6181 = vmatmul.bf16.gmra.mxu0 %v6115
      %v6182 = vpop.f32.mrf.mxu0
      %v6183 = vadd.f32 0.0, %v6182
      %v6184 = vpop.f32.mrf.mxu0
      %v6185 = vadd.f32 0.0, %v6184
      %6186 = vmatmul.bf16.gmra.mxu0 %v6118
      %v6187 = vpop.f32.mrf.mxu0
      %v6188 = vadd.f32 0.0, %v6187
      %v6189 = vpop.f32.mrf.mxu0
      %v6190 = vadd.f32 0.0, %v6189
      %6191 = vmatmul.bf16.gmra.mxu0 %v6121
      %v6192 = vpop.f32.mrf.mxu0
      %v6193 = vadd.f32 0.0, %v6192
      %v6194 = vpop.f32.mrf.mxu0
      %v6195 = vadd.f32 0.0, %v6194
      %6196 = vmatmul.bf16.gmra.mxu0 %v6124
      %v6197 = vpop.f32.mrf.mxu0
      %v6198 = vadd.f32 0.0, %v6197
      %v6199 = vpop.f32.mrf.mxu0
      %v6200 = vadd.f32 0.0, %v6199
      %6201 = vmatmul.bf16.gmra.mxu0 %v6127
      %v6202 = vpop.f32.mrf.mxu0
      %v6203 = vadd.f32 0.0, %v6202
      %v6204 = vpop.f32.mrf.mxu0
      %v6205 = vadd.f32 0.0, %v6204
      %6206 = vmatmul.bf16.gmra.mxu0 %v6130
      %v6207 = vpop.f32.mrf.mxu0
      %v6208 = vadd.f32 0.0, %v6207
      %v6209 = vpop.f32.mrf.mxu0
      %v6210 = vadd.f32 0.0, %v6209
      %6211 = vmatmul.bf16.gmra.mxu0 %v6133
      %v6212 = vpop.f32.mrf.mxu0
      %v6213 = vadd.f32 0.0, %v6212
      %v6214 = vpop.f32.mrf.mxu0
      %v6215 = vadd.f32 0.0, %v6214
      %6216 = vmatmul.bf16.gmra.mxu0 %v6136
      %v6217 = vpop.f32.mrf.mxu0
      %v6218 = vadd.f32 0.0, %v6217
      %v6219 = vpop.f32.mrf.mxu0
      %v6220 = vadd.f32 0.0, %v6219
      %6221 = vmatmul.bf16.gmra.mxu0 %v6139
      %v6222 = vpop.f32.mrf.mxu0
      %v6223 = vadd.f32 0.0, %v6222
      %v6224 = vpop.f32.mrf.mxu0
      %v6225 = vadd.f32 0.0, %v6224
      %6226 = vmatmul.bf16.gmra.mxu0 %v6142
      %v6227 = vpop.f32.mrf.mxu0
      %v6228 = vadd.f32 0.0, %v6227
      %v6229 = vpop.f32.mrf.mxu0
      %v6230 = vadd.f32 0.0, %v6229
      %6231 = vmatmul.bf16.gmra.mxu0 %v6145
      %v6232 = vpop.f32.mrf.mxu0
      %v6233 = vadd.f32 0.0, %v6232
      %v6234 = vpop.f32.mrf.mxu0
      %v6235 = vadd.f32 0.0, %v6234
      %6236 = vmatmul.bf16.gmra.mxu0 %v6148
      %v6237 = vpop.f32.mrf.mxu0
      %v6238 = vadd.f32 0.0, %v6237
      %v6239 = vpop.f32.mrf.mxu0
      %v6240 = vadd.f32 0.0, %v6239
      %6241 = vdwg.mxu0
      %v6242 = vadd.f32 %v5903, %v6163
      %v6243 = vadd.f32 %v5905, %v6165
      %v6244 = vadd.f32 %v5908, %v6168
      %v6245 = vadd.f32 %v5910, %v6170
      %v6246 = vadd.f32 %v5913, %v6173
      %v6247 = vadd.f32 %v5915, %v6175
      %v6248 = vadd.f32 %v5918, %v6178
      %v6249 = vadd.f32 %v5920, %v6180
      %v6250 = vadd.f32 %v5923, %v6183
      %v6251 = vadd.f32 %v5925, %v6185
      %v6252 = vadd.f32 %v5928, %v6188
      %v6253 = vadd.f32 %v5930, %v6190
      %v6254 = vadd.f32 %v5933, %v6193
      %v6255 = vadd.f32 %v5935, %v6195
      %v6256 = vadd.f32 %v5938, %v6198
      %v6257 = vadd.f32 %v5940, %v6200
      %v6258 = vadd.f32 %v5943, %v6203
      %v6259 = vadd.f32 %v5945, %v6205
      %v6260 = vadd.f32 %v5948, %v6208
      %v6261 = vadd.f32 %v5950, %v6210
      %v6262 = vadd.f32 %v5953, %v6213
      %v6263 = vadd.f32 %v5955, %v6215
      %v6264 = vadd.f32 %v5958, %v6218
      %v6265 = vadd.f32 %v5960, %v6220
      %v6266 = vadd.f32 %v5963, %v6223
      %v6267 = vadd.f32 %v5965, %v6225
      %v6268 = vadd.f32 %v5968, %v6228
      %v6269 = vadd.f32 %v5970, %v6230
      %v6270 = vadd.f32 %v5973, %v6233
      %v6271 = vadd.f32 %v5975, %v6235
      %v6272 = vadd.f32 %v5978, %v6238
      %v6273 = vadd.f32 %v5980, %v6240
      %s6274 = scalar_lea.vmem %s2, 1
      %v6275 = vld [vmem:[%s6274] sm:$0x1]
      %v6277 = vperm.slane %v6275, 0
      %v6279 = vadd.f32 %v6242, %v6277
      %v6280 = vadd.f32 %v6243, %v6277
      %v6281 = vadd.f32 %v6244, %v6277
      %v6282 = vadd.f32 %v6245, %v6277
      %v6283 = vadd.f32 %v6246, %v6277
      %v6284 = vadd.f32 %v6247, %v6277
      %v6285 = vadd.f32 %v6248, %v6277
      %v6286 = vadd.f32 %v6249, %v6277
      %v6287 = vadd.f32 %v6250, %v6277
      %v6288 = vadd.f32 %v6251, %v6277
      %v6289 = vadd.f32 %v6252, %v6277
      %v6290 = vadd.f32 %v6253, %v6277
      %v6291 = vadd.f32 %v6254, %v6277
      %v6292 = vadd.f32 %v6255, %v6277
      %v6293 = vadd.f32 %v6256, %v6277
      %v6294 = vadd.f32 %v6257, %v6277
      %v6295 = vadd.f32 %v6258, %v6277
      %v6296 = vadd.f32 %v6259, %v6277
      %v6297 = vadd.f32 %v6260, %v6277
      %v6298 = vadd.f32 %v6261, %v6277
      %v6299 = vadd.f32 %v6262, %v6277
      %v6300 = vadd.f32 %v6263, %v6277
      %v6301 = vadd.f32 %v6264, %v6277
      %v6302 = vadd.f32 %v6265, %v6277
      %v6303 = vadd.f32 %v6266, %v6277
      %v6304 = vadd.f32 %v6267, %v6277
      %v6305 = vadd.f32 %v6268, %v6277
      %v6306 = vadd.f32 %v6269, %v6277
      %v6307 = vadd.f32 %v6270, %v6277
      %v6308 = vadd.f32 %v6271, %v6277
      %v6309 = vadd.f32 %v6272, %v6277
      %v6310 = vadd.f32 %v6273, %v6277
      %v6311 = vmax.f32 %v6279, 0.0
      %v6312 = vmax.f32 %v6280, 0.0
      %v6313 = vmax.f32 %v6281, 0.0
      %v6314 = vmax.f32 %v6282, 0.0
      %v6315 = vmax.f32 %v6283, 0.0
      %v6316 = vmax.f32 %v6284, 0.0
      %v6317 = vmax.f32 %v6285, 0.0
      %v6318 = vmax.f32 %v6286, 0.0
      %v6319 = vmax.f32 %v6287, 0.0
      %v6320 = vmax.f32 %v6288, 0.0
      %v6321 = vmax.f32 %v6289, 0.0
      %v6322 = vmax.f32 %v6290, 0.0
      %v6323 = vmax.f32 %v6291, 0.0
      %v6324 = vmax.f32 %v6292, 0.0
      %v6325 = vmax.f32 %v6293, 0.0
      %v6326 = vmax.f32 %v6294, 0.0
      %v6327 = vmax.f32 %v6295, 0.0
      %v6328 = vmax.f32 %v6296, 0.0
      %v6329 = vmax.f32 %v6297, 0.0
      %v6330 = vmax.f32 %v6298, 0.0
      %v6331 = vmax.f32 %v6299, 0.0
      %v6332 = vmax.f32 %v6300, 0.0
      %v6333 = vmax.f32 %v6301, 0.0
      %v6334 = vmax.f32 %v6302, 0.0
      %v6335 = vmax.f32 %v6303, 0.0
      %v6336 = vmax.f32 %v6304, 0.0
      %v6337 = vmax.f32 %v6305, 0.0
      %v6338 = vmax.f32 %v6306, 0.0
      %v6339 = vmax.f32 %v6307, 0.0
      %v6340 = vmax.f32 %v6308, 0.0
      %v6341 = vmax.f32 %v6309, 0.0
      %v6342 = vmax.f32 %v6310, 0.0
      %v6343 = vpack.c.bf16 %v6312, %v6311
      %v6344 = vpack.c.bf16 %v6314, %v6313
      %v6345 = vpack.c.bf16 %v6316, %v6315
      %v6346 = vpack.c.bf16 %v6318, %v6317
      %v6347 = vpack.c.bf16 %v6320, %v6319
      %v6348 = vpack.c.bf16 %v6322, %v6321
      %v6349 = vpack.c.bf16 %v6324, %v6323
      %v6350 = vpack.c.bf16 %v6326, %v6325
      %v6351 = vpack.c.bf16 %v6328, %v6327
      %v6352 = vpack.c.bf16 %v6330, %v6329
      %v6353 = vpack.c.bf16 %v6332, %v6331
      %v6354 = vpack.c.bf16 %v6334, %v6333
      %v6355 = vpack.c.bf16 %v6336, %v6335
      %v6356 = vpack.c.bf16 %v6338, %v6337
      %v6357 = vpack.c.bf16 %v6340, %v6339
      %v6358 = vpack.c.bf16 %v6342, %v6341
      %v6359 = vld [vmem:[%s3] sm:$0x3]
      %v6361 = vsel %vm3647, %v6343, 0
      %v6364 = vsel %vm3647, %v6344, 0
      %v6367 = vsel %vm3647, %v6345, 0
      %v6370 = vsel %vm3647, %v6346, 0
      %v6373 = vsel %vm3647, %v6347, 0
      %v6376 = vsel %vm3647, %v6348, 0
      %v6379 = vsel %vm3647, %v6349, 0
      %v6382 = vsel %vm3647, %v6350, 0
      %v6385 = vsel %vm3647, %v6351, 0
      %v6388 = vsel %vm3647, %v6352, 0
      %v6391 = vsel %vm3647, %v6353, 0
      %v6394 = vsel %vm3647, %v6354, 0
      %v6397 = vsel %vm3647, %v6355, 0
      %v6400 = vsel %vm3647, %v6356, 0
      %v6403 = vsel %vm3647, %v6357, 0
      %v6406 = vsel %vm3647, %v6358, 0
      %v6409 = vsel %vm3696, %v6359, 0
      %6411 = vmatpush.bf16.msra.mxu0 0
      %6412 = vmatpush.bf16.msra.mxu0 0
      %6413 = vmatpush.bf16.msra.mxu0 0
      %6414 = vmatpush.bf16.msra.mxu0 0
      %6415 = vmatpush.bf16.msra.mxu0 0
      %6416 = vmatpush.bf16.msra.mxu0 0
      %6417 = vmatpush.bf16.msra.mxu0 0
      %6418 = vmatpush.bf16.msra.mxu0 %v6409
      %6419 = vmatmul.bf16.gmra.mxu0 %v6361
      %v6420 = vpop.f32.mrf.mxu0
      %v6421 = vadd.f32 0.0, %v6420
      %v6422 = vpop.f32.mrf.mxu0
      %v6423 = vadd.f32 0.0, %v6422
      %6424 = vmatmul.bf16.gmra.mxu0 %v6364
      %v6425 = vpop.f32.mrf.mxu0
      %v6426 = vadd.f32 0.0, %v6425
      %v6427 = vpop.f32.mrf.mxu0
      %v6428 = vadd.f32 0.0, %v6427
      %6429 = vmatmul.bf16.gmra.mxu0 %v6367
      %v6430 = vpop.f32.mrf.mxu0
      %v6431 = vadd.f32 0.0, %v6430
      %v6432 = vpop.f32.mrf.mxu0
      %v6433 = vadd.f32 0.0, %v6432
      %6434 = vmatmul.bf16.gmra.mxu0 %v6370
      %v6435 = vpop.f32.mrf.mxu0
      %v6436 = vadd.f32 0.0, %v6435
      %v6437 = vpop.f32.mrf.mxu0
      %v6438 = vadd.f32 0.0, %v6437
      %6439 = vmatmul.bf16.gmra.mxu0 %v6373
      %v6440 = vpop.f32.mrf.mxu0
      %v6441 = vadd.f32 0.0, %v6440
      %v6442 = vpop.f32.mrf.mxu0
      %v6443 = vadd.f32 0.0, %v6442
      %6444 = vmatmul.bf16.gmra.mxu0 %v6376
      %v6445 = vpop.f32.mrf.mxu0
      %v6446 = vadd.f32 0.0, %v6445
      %v6447 = vpop.f32.mrf.mxu0
      %v6448 = vadd.f32 0.0, %v6447
      %6449 = vmatmul.bf16.gmra.mxu0 %v6379
      %v6450 = vpop.f32.mrf.mxu0
      %v6451 = vadd.f32 0.0, %v6450
      %v6452 = vpop.f32.mrf.mxu0
      %v6453 = vadd.f32 0.0, %v6452
      %6454 = vmatmul.bf16.gmra.mxu0 %v6382
      %v6455 = vpop.f32.mrf.mxu0
      %v6456 = vadd.f32 0.0, %v6455
      %v6457 = vpop.f32.mrf.mxu0
      %v6458 = vadd.f32 0.0, %v6457
      %6459 = vmatmul.bf16.gmra.mxu0 %v6385
      %v6460 = vpop.f32.mrf.mxu0
      %v6461 = vadd.f32 0.0, %v6460
      %v6462 = vpop.f32.mrf.mxu0
      %v6463 = vadd.f32 0.0, %v6462
      %6464 = vmatmul.bf16.gmra.mxu0 %v6388
      %v6465 = vpop.f32.mrf.mxu0
      %v6466 = vadd.f32 0.0, %v6465
      %v6467 = vpop.f32.mrf.mxu0
      %v6468 = vadd.f32 0.0, %v6467
      %6469 = vmatmul.bf16.gmra.mxu0 %v6391
      %v6470 = vpop.f32.mrf.mxu0
      %v6471 = vadd.f32 0.0, %v6470
      %v6472 = vpop.f32.mrf.mxu0
      %v6473 = vadd.f32 0.0, %v6472
      %6474 = vmatmul.bf16.gmra.mxu0 %v6394
      %v6475 = vpop.f32.mrf.mxu0
      %v6476 = vadd.f32 0.0, %v6475
      %v6477 = vpop.f32.mrf.mxu0
      %v6478 = vadd.f32 0.0, %v6477
      %6479 = vmatmul.bf16.gmra.mxu0 %v6397
      %v6480 = vpop.f32.mrf.mxu0
      %v6481 = vadd.f32 0.0, %v6480
      %v6482 = vpop.f32.mrf.mxu0
      %v6483 = vadd.f32 0.0, %v6482
      %6484 = vmatmul.bf16.gmra.mxu0 %v6400
      %v6485 = vpop.f32.mrf.mxu0
      %v6486 = vadd.f32 0.0, %v6485
      %v6487 = vpop.f32.mrf.mxu0
      %v6488 = vadd.f32 0.0, %v6487
      %6489 = vmatmul.bf16.gmra.mxu0 %v6403
      %v6490 = vpop.f32.mrf.mxu0
      %v6491 = vadd.f32 0.0, %v6490
      %v6492 = vpop.f32.mrf.mxu0
      %v6493 = vadd.f32 0.0, %v6492
      %6494 = vmatmul.bf16.gmra.mxu0 %v6406
      %v6495 = vpop.f32.mrf.mxu0
      %v6496 = vadd.f32 0.0, %v6495
      %v6497 = vpop.f32.mrf.mxu0
      %v6498 = vadd.f32 0.0, %v6497
      %6499 = vdwg.mxu0
      %v6500 = vld [vmem:[#allocation4] sm:$0xff]
      %v6501 = vld [vmem:[#allocation4 + $0x8] sm:$0xff]
      %v6502 = vld [vmem:[#allocation4 + $0x10] sm:$0xff]
      %v6503 = vld [vmem:[#allocation4 + $0x18] sm:$0xff]
      %v6504 = vld [vmem:[#allocation4 + $0x20] sm:$0xff]
      %v6505 = vld [vmem:[#allocation4 + $0x28] sm:$0xff]
      %v6506 = vld [vmem:[#allocation4 + $0x30] sm:$0xff]
      %v6507 = vld [vmem:[#allocation4 + $0x38] sm:$0xff]
      %v6508 = vld [vmem:[#allocation4 + $0x40] sm:$0xff]
      %v6509 = vld [vmem:[#allocation4 + $0x48] sm:$0xff]
      %v6510 = vld [vmem:[#allocation4 + $0x50] sm:$0xff]
      %v6511 = vld [vmem:[#allocation4 + $0x58] sm:$0xff]
      %v6512 = vld [vmem:[#allocation4 + $0x60] sm:$0xff]
      %v6513 = vld [vmem:[#allocation4 + $0x68] sm:$0xff]
      %v6514 = vld [vmem:[#allocation4 + $0x70] sm:$0xff]
      %v6515 = vld [vmem:[#allocation4 + $0x78] sm:$0xff]
      %v6516 = vld [vmem:[#allocation4 + $0x80] sm:$0xff]
      %v6517 = vld [vmem:[#allocation4 + $0x88] sm:$0xff]
      %v6518 = vld [vmem:[#allocation4 + $0x90] sm:$0xff]
      %v6519 = vld [vmem:[#allocation4 + $0x98] sm:$0xff]
      %v6520 = vld [vmem:[#allocation4 + $0xa0] sm:$0xff]
      %v6521 = vld [vmem:[#allocation4 + $0xa8] sm:$0xff]
      %v6522 = vld [vmem:[#allocation4 + $0xb0] sm:$0xff]
      %v6523 = vld [vmem:[#allocation4 + $0xb8] sm:$0xff]
      %v6524 = vld [vmem:[#allocation4 + $0xc0] sm:$0xff]
      %v6525 = vld [vmem:[#allocation4 + $0xc8] sm:$0xff]
      %v6526 = vld [vmem:[#allocation4 + $0xd0] sm:$0xff]
      %v6527 = vld [vmem:[#allocation4 + $0xd8] sm:$0xff]
      %v6528 = vld [vmem:[#allocation4 + $0xe0] sm:$0xff]
      %v6529 = vld [vmem:[#allocation4 + $0xe8] sm:$0xff]
      %v6530 = vld [vmem:[#allocation4 + $0xf0] sm:$0xff]
      %v6531 = vld [vmem:[#allocation4 + $0xf8] sm:$0xff]
      %v6532 = vadd.f32 %v6500, %v6421
      %v6533 = vadd.f32 %v6501, %v6423
      %v6534 = vadd.f32 %v6502, %v6426
      %v6535 = vadd.f32 %v6503, %v6428
      %v6536 = vadd.f32 %v6504, %v6431
      %v6537 = vadd.f32 %v6505, %v6433
      %v6538 = vadd.f32 %v6506, %v6436
      %v6539 = vadd.f32 %v6507, %v6438
      %v6540 = vadd.f32 %v6508, %v6441
      %v6541 = vadd.f32 %v6509, %v6443
      %v6542 = vadd.f32 %v6510, %v6446
      %v6543 = vadd.f32 %v6511, %v6448
      %v6544 = vadd.f32 %v6512, %v6451
      %v6545 = vadd.f32 %v6513, %v6453
      %v6546 = vadd.f32 %v6514, %v6456
      %v6547 = vadd.f32 %v6515, %v6458
      %v6548 = vadd.f32 %v6516, %v6461
      %v6549 = vadd.f32 %v6517, %v6463
      %v6550 = vadd.f32 %v6518, %v6466
      %v6551 = vadd.f32 %v6519, %v6468
      %v6552 = vadd.f32 %v6520, %v6471
      %v6553 = vadd.f32 %v6521, %v6473
      %v6554 = vadd.f32 %v6522, %v6476
      %v6555 = vadd.f32 %v6523, %v6478
      %v6556 = vadd.f32 %v6524, %v6481
      %v6557 = vadd.f32 %v6525, %v6483
      %v6558 = vadd.f32 %v6526, %v6486
      %v6559 = vadd.f32 %v6527, %v6488
      %v6560 = vadd.f32 %v6528, %v6491
      %v6561 = vadd.f32 %v6529, %v6493
      %v6562 = vadd.f32 %v6530, %v6496
      %v6563 = vadd.f32 %v6531, %v6498
      %6564 = vst.msk [vmem:[#allocation4] sm:$0xff] %vm3647, %v6532
      %6565 = vst.msk [vmem:[#allocation4 + $0x8] sm:$0xff] %vm3647, %v6533
      %6566 = vst.msk [vmem:[#allocation4 + $0x10] sm:$0xff] %vm3647, %v6534
      %6567 = vst.msk [vmem:[#allocation4 + $0x18] sm:$0xff] %vm3647, %v6535
      %6568 = vst.msk [vmem:[#allocation4 + $0x20] sm:$0xff] %vm3647, %v6536
      %6569 = vst.msk [vmem:[#allocation4 + $0x28] sm:$0xff] %vm3647, %v6537
      %6570 = vst.msk [vmem:[#allocation4 + $0x30] sm:$0xff] %vm3647, %v6538
      %6571 = vst.msk [vmem:[#allocation4 + $0x38] sm:$0xff] %vm3647, %v6539
      %6572 = vst.msk [vmem:[#allocation4 + $0x40] sm:$0xff] %vm3647, %v6540
      %6573 = vst.msk [vmem:[#allocation4 + $0x48] sm:$0xff] %vm3647, %v6541
      %6574 = vst.msk [vmem:[#allocation4 + $0x50] sm:$0xff] %vm3647, %v6542
      %6575 = vst.msk [vmem:[#allocation4 + $0x58] sm:$0xff] %vm3647, %v6543
      %6576 = vst.msk [vmem:[#allocation4 + $0x60] sm:$0xff] %vm3647, %v6544
      %6577 = vst.msk [vmem:[#allocation4 + $0x68] sm:$0xff] %vm3647, %v6545
      %6578 = vst.msk [vmem:[#allocation4 + $0x70] sm:$0xff] %vm3647, %v6546
      %6579 = vst.msk [vmem:[#allocation4 + $0x78] sm:$0xff] %vm3647, %v6547
      %6580 = vst.msk [vmem:[#allocation4 + $0x80] sm:$0xff] %vm3647, %v6548
      %6581 = vst.msk [vmem:[#allocation4 + $0x88] sm:$0xff] %vm3647, %v6549
      %6582 = vst.msk [vmem:[#allocation4 + $0x90] sm:$0xff] %vm3647, %v6550
      %6583 = vst.msk [vmem:[#allocation4 + $0x98] sm:$0xff] %vm3647, %v6551
      %6584 = vst.msk [vmem:[#allocation4 + $0xa0] sm:$0xff] %vm3647, %v6552
      %6585 = vst.msk [vmem:[#allocation4 + $0xa8] sm:$0xff] %vm3647, %v6553
      %6586 = vst.msk [vmem:[#allocation4 + $0xb0] sm:$0xff] %vm3647, %v6554
      %6587 = vst.msk [vmem:[#allocation4 + $0xb8] sm:$0xff] %vm3647, %v6555
      %6588 = vst.msk [vmem:[#allocation4 + $0xc0] sm:$0xff] %vm3647, %v6556
      %6589 = vst.msk [vmem:[#allocation4 + $0xc8] sm:$0xff] %vm3647, %v6557
      %6590 = vst.msk [vmem:[#allocation4 + $0xd0] sm:$0xff] %vm3647, %v6558
      %6591 = vst.msk [vmem:[#allocation4 + $0xd8] sm:$0xff] %vm3647, %v6559
      %6592 = vst.msk [vmem:[#allocation4 + $0xe0] sm:$0xff] %vm3647, %v6560
      %6593 = vst.msk [vmem:[#allocation4 + $0xe8] sm:$0xff] %vm3647, %v6561
      %6594 = vst.msk [vmem:[#allocation4 + $0xf0] sm:$0xff] %vm3647, %v6562
      %6595 = vst.msk [vmem:[#allocation4 + $0xf8] sm:$0xff] %vm3647, %v6563
      %v6596 = vld [vmem:[#allocation2] sm:$0xf]
      %v6597 = vld [vmem:[#allocation2 + $0x4] sm:$0xf]
      %v6598 = vld [vmem:[#allocation2 + $0x10] sm:$0xf]
      %v6599 = vld [vmem:[#allocation2 + $0x14] sm:$0xf]
      %v6600 = vld [vmem:[#allocation2 + $0x20] sm:$0xf]
      %v6601 = vld [vmem:[#allocation2 + $0x24] sm:$0xf]
      %v6602 = vld [vmem:[#allocation2 + $0x30] sm:$0xf]
      %v6603 = vld [vmem:[#allocation2 + $0x34] sm:$0xf]
      %v6604 = vld [vmem:[#allocation2 + $0x40] sm:$0xf]
      %v6605 = vld [vmem:[#allocation2 + $0x44] sm:$0xf]
      %v6606 = vld [vmem:[#allocation2 + $0x50] sm:$0xf]
      %v6607 = vld [vmem:[#allocation2 + $0x54] sm:$0xf]
      %v6608 = vld [vmem:[#allocation2 + $0x60] sm:$0xf]
      %v6609 = vld [vmem:[#allocation2 + $0x64] sm:$0xf]
      %v6610 = vld [vmem:[#allocation2 + $0x70] sm:$0xf]
      %v6611 = vld [vmem:[#allocation2 + $0x74] sm:$0xf]
      %v6612 = vld [vmem:[#allocation2 + $0x80] sm:$0xf]
      %v6613 = vld [vmem:[#allocation2 + $0x84] sm:$0xf]
      %v6614 = vld [vmem:[#allocation2 + $0x90] sm:$0xf]
      %v6615 = vld [vmem:[#allocation2 + $0x94] sm:$0xf]
      %v6616 = vld [vmem:[#allocation2 + $0xa0] sm:$0xf]
      %v6617 = vld [vmem:[#allocation2 + $0xa4] sm:$0xf]
      %v6618 = vld [vmem:[#allocation2 + $0xb0] sm:$0xf]
      %v6619 = vld [vmem:[#allocation2 + $0xb4] sm:$0xf]
      %v6620 = vld [vmem:[#allocation2 + $0xc0] sm:$0xf]
      %v6621 = vld [vmem:[#allocation2 + $0xc4] sm:$0xf]
      %v6622 = vld [vmem:[#allocation2 + $0xd0] sm:$0xf]
      %v6623 = vld [vmem:[#allocation2 + $0xd4] sm:$0xf]
      %v6624 = vld [vmem:[#allocation2 + $0xe0] sm:$0xf]
      %v6625 = vld [vmem:[#allocation2 + $0xe4] sm:$0xf]
      %v6626 = vld [vmem:[#allocation2 + $0xf0] sm:$0xf]
      %v6627 = vld [vmem:[#allocation2 + $0xf4] sm:$0xf]
      %v6628 = vld [vmem:[#allocation2 + $0x100] sm:$0xf]
      %v6629 = vld [vmem:[#allocation2 + $0x104] sm:$0xf]
      %v6630 = vld [vmem:[#allocation2 + $0x110] sm:$0xf]
      %v6631 = vld [vmem:[#allocation2 + $0x114] sm:$0xf]
      %v6632 = vld [vmem:[#allocation2 + $0x120] sm:$0xf]
      %v6633 = vld [vmem:[#allocation2 + $0x124] sm:$0xf]
      %v6634 = vld [vmem:[#allocation2 + $0x130] sm:$0xf]
      %v6635 = vld [vmem:[#allocation2 + $0x134] sm:$0xf]
      %v6636 = vld [vmem:[#allocation2 + $0x140] sm:$0xf]
      %v6637 = vld [vmem:[#allocation2 + $0x144] sm:$0xf]
      %v6638 = vld [vmem:[#allocation2 + $0x150] sm:$0xf]
      %v6639 = vld [vmem:[#allocation2 + $0x154] sm:$0xf]
      %v6640 = vld [vmem:[#allocation2 + $0x160] sm:$0xf]
      %v6641 = vld [vmem:[#allocation2 + $0x164] sm:$0xf]
      %v6642 = vld [vmem:[#allocation2 + $0x170] sm:$0xf]
      %v6643 = vld [vmem:[#allocation2 + $0x174] sm:$0xf]
      %v6644 = vld [vmem:[#allocation2 + $0x180] sm:$0xf]
      %v6645 = vld [vmem:[#allocation2 + $0x184] sm:$0xf]
      %v6646 = vld [vmem:[#allocation2 + $0x190] sm:$0xf]
      %v6647 = vld [vmem:[#allocation2 + $0x194] sm:$0xf]
      %6648 = vst.msk [vmem:[#allocation3] sm:$0xf] %vm226, %v6596
      %6649 = vst.msk [vmem:[#allocation3 + $0x4] sm:$0xf] %vm226, %v6597
      %6650 = vst.msk [vmem:[#allocation3 + $0x8] sm:$0xf] %vm226, %v6598
      %6651 = vst.msk [vmem:[#allocation3 + $0xc] sm:$0xf] %vm226, %v6599
      %6652 = vst.msk [vmem:[#allocation3 + $0x10] sm:$0xf] %vm226, %v6600
      %6653 = vst.msk [vmem:[#allocation3 + $0x14] sm:$0xf] %vm226, %v6601
      %6654 = vst.msk [vmem:[#allocation3 + $0x18] sm:$0xf] %vm226, %v6602
      %6655 = vst.msk [vmem:[#allocation3 + $0x1c] sm:$0xf] %vm226, %v6603
      %6656 = vst.msk [vmem:[#allocation3 + $0x20] sm:$0xf] %vm226, %v6604
      %6657 = vst.msk [vmem:[#allocation3 + $0x24] sm:$0xf] %vm226, %v6605
      %6658 = vst.msk [vmem:[#allocation3 + $0x28] sm:$0xf] %vm226, %v6606
      %6659 = vst.msk [vmem:[#allocation3 + $0x2c] sm:$0xf] %vm226, %v6607
      %6660 = vst.msk [vmem:[#allocation3 + $0x30] sm:$0xf] %vm226, %v6608
      %6661 = vst.msk [vmem:[#allocation3 + $0x34] sm:$0xf] %vm226, %v6609
      %6662 = vst.msk [vmem:[#allocation3 + $0x38] sm:$0xf] %vm226, %v6610
      %6663 = vst.msk [vmem:[#allocation3 + $0x3c] sm:$0xf] %vm226, %v6611
      %6664 = vst.msk [vmem:[#allocation3 + $0x40] sm:$0xf] %vm226, %v6612
      %6665 = vst.msk [vmem:[#allocation3 + $0x44] sm:$0xf] %vm226, %v6613
      %6666 = vst.msk [vmem:[#allocation3 + $0x48] sm:$0xf] %vm226, %v6614
      %6667 = vst.msk [vmem:[#allocation3 + $0x4c] sm:$0xf] %vm226, %v6615
      %6668 = vst.msk [vmem:[#allocation3 + $0x50] sm:$0xf] %vm226, %v6616
      %6669 = vst.msk [vmem:[#allocation3 + $0x54] sm:$0xf] %vm226, %v6617
      %6670 = vst.msk [vmem:[#allocation3 + $0x58] sm:$0xf] %vm226, %v6618
      %6671 = vst.msk [vmem:[#allocation3 + $0x5c] sm:$0xf] %vm226, %v6619
      %6672 = vst.msk [vmem:[#allocation3 + $0x60] sm:$0xf] %vm226, %v6620
      %6673 = vst.msk [vmem:[#allocation3 + $0x64] sm:$0xf] %vm226, %v6621
      %6674 = vst.msk [vmem:[#allocation3 + $0x68] sm:$0xf] %vm226, %v6622
      %6675 = vst.msk [vmem:[#allocation3 + $0x6c] sm:$0xf] %vm226, %v6623
      %6676 = vst.msk [vmem:[#allocation3 + $0x70] sm:$0xf] %vm226, %v6624
      %6677 = vst.msk [vmem:[#allocation3 + $0x74] sm:$0xf] %vm226, %v6625
      %6678 = vst.msk [vmem:[#allocation3 + $0x78] sm:$0xf] %vm226, %v6626
      %6679 = vst.msk [vmem:[#allocation3 + $0x7c] sm:$0xf] %vm226, %v6627
      %6680 = vst.msk [vmem:[#allocation3 + $0x80] sm:$0xf] %vm226, %v6628
      %6681 = vst.msk [vmem:[#allocation3 + $0x84] sm:$0xf] %vm226, %v6629
      %6682 = vst.msk [vmem:[#allocation3 + $0x88] sm:$0xf] %vm226, %v6630
      %6683 = vst.msk [vmem:[#allocation3 + $0x8c] sm:$0xf] %vm226, %v6631
      %6684 = vst.msk [vmem:[#allocation3 + $0x90] sm:$0xf] %vm226, %v6632
      %6685 = vst.msk [vmem:[#allocation3 + $0x94] sm:$0xf] %vm226, %v6633
      %6686 = vst.msk [vmem:[#allocation3 + $0x98] sm:$0xf] %vm226, %v6634
      %6687 = vst.msk [vmem:[#allocation3 + $0x9c] sm:$0xf] %vm226, %v6635
      %6688 = vst.msk [vmem:[#allocation3 + $0xa0] sm:$0xf] %vm226, %v6636
      %6689 = vst.msk [vmem:[#allocation3 + $0xa4] sm:$0xf] %vm226, %v6637
      %6690 = vst.msk [vmem:[#allocation3 + $0xa8] sm:$0xf] %vm226, %v6638
      %6691 = vst.msk [vmem:[#allocation3 + $0xac] sm:$0xf] %vm226, %v6639
      %6692 = vst.msk [vmem:[#allocation3 + $0xb0] sm:$0xf] %vm226, %v6640
      %6693 = vst.msk [vmem:[#allocation3 + $0xb4] sm:$0xf] %vm226, %v6641
      %6694 = vst.msk [vmem:[#allocation3 + $0xb8] sm:$0xf] %vm226, %v6642
      %6695 = vst.msk [vmem:[#allocation3 + $0xbc] sm:$0xf] %vm226, %v6643
      %6696 = vst.msk [vmem:[#allocation3 + $0xc0] sm:$0xf] %vm226, %v6644
      %6697 = vst.msk [vmem:[#allocation3 + $0xc4] sm:$0xf] %vm226, %v6645
      %6698 = vst.msk [vmem:[#allocation3 + $0xc8] sm:$0xf] %vm226, %v6646
      %6699 = vst.msk [vmem:[#allocation3 + $0xcc] sm:$0xf] %vm226, %v6647
      %v6700 = vld [vmem:[#allocation2] sm:$0xc]
      %v6701 = vld [vmem:[#allocation2 + $0x4] sm:$0xf]
      %v6702 = vld [vmem:[#allocation2 + $0x8] sm:$0x7]
      %v6703 = vld [vmem:[#allocation2 + $0x10] sm:$0xc]
      %v6704 = vld [vmem:[#allocation2 + $0x14] sm:$0xf]
      %v6705 = vld [vmem:[#allocation2 + $0x18] sm:$0x7]
      %v6706 = vld [vmem:[#allocation2 + $0x20] sm:$0xc]
      %v6707 = vld [vmem:[#allocation2 + $0x24] sm:$0xf]
      %v6708 = vld [vmem:[#allocation2 + $0x28] sm:$0x7]
      %v6709 = vld [vmem:[#allocation2 + $0x30] sm:$0xc]
      %v6710 = vld [vmem:[#allocation2 + $0x34] sm:$0xf]
      %v6711 = vld [vmem:[#allocation2 + $0x38] sm:$0x7]
      %v6712 = vld [vmem:[#allocation2 + $0x40] sm:$0xc]
      %v6713 = vld [vmem:[#allocation2 + $0x44] sm:$0xf]
      %v6714 = vld [vmem:[#allocation2 + $0x48] sm:$0x7]
      %v6715 = vld [vmem:[#allocation2 + $0x50] sm:$0xc]
      %v6716 = vld [vmem:[#allocation2 + $0x54] sm:$0xf]
      %v6717 = vld [vmem:[#allocation2 + $0x58] sm:$0x7]
      %v6718 = vld [vmem:[#allocation2 + $0x60] sm:$0xc]
      %v6719 = vld [vmem:[#allocation2 + $0x64] sm:$0xf]
      %v6720 = vld [vmem:[#allocation2 + $0x68] sm:$0x7]
      %v6721 = vld [vmem:[#allocation2 + $0x70] sm:$0xc]
      %v6722 = vld [vmem:[#allocation2 + $0x74] sm:$0xf]
      %v6723 = vld [vmem:[#allocation2 + $0x78] sm:$0x7]
      %v6724 = vld [vmem:[#allocation2 + $0x80] sm:$0xc]
      %v6725 = vld [vmem:[#allocation2 + $0x84] sm:$0xf]
      %v6726 = vld [vmem:[#allocation2 + $0x88] sm:$0x7]
      %v6727 = vld [vmem:[#allocation2 + $0x90] sm:$0xc]
      %v6728 = vld [vmem:[#allocation2 + $0x94] sm:$0xf]
      %v6729 = vld [vmem:[#allocation2 + $0x98] sm:$0x7]
      %v6730 = vld [vmem:[#allocation2 + $0xa0] sm:$0xc]
      %v6731 = vld [vmem:[#allocation2 + $0xa4] sm:$0xf]
      %v6732 = vld [vmem:[#allocation2 + $0xa8] sm:$0x7]
      %v6733 = vld [vmem:[#allocation2 + $0xb0] sm:$0xc]
      %v6734 = vld [vmem:[#allocation2 + $0xb4] sm:$0xf]
      %v6735 = vld [vmem:[#allocation2 + $0xb8] sm:$0x7]
      %v6736 = vld [vmem:[#allocation2 + $0xc0] sm:$0xc]
      %v6737 = vld [vmem:[#allocation2 + $0xc4] sm:$0xf]
      %v6738 = vld [vmem:[#allocation2 + $0xc8] sm:$0x7]
      %v6739 = vld [vmem:[#allocation2 + $0xd0] sm:$0xc]
      %v6740 = vld [vmem:[#allocation2 + $0xd4] sm:$0xf]
      %v6741 = vld [vmem:[#allocation2 + $0xd8] sm:$0x7]
      %v6742 = vld [vmem:[#allocation2 + $0xe0] sm:$0xc]
      %v6743 = vld [vmem:[#allocation2 + $0xe4] sm:$0xf]
      %v6744 = vld [vmem:[#allocation2 + $0xe8] sm:$0x7]
      %v6745 = vld [vmem:[#allocation2 + $0xf0] sm:$0xc]
      %v6746 = vld [vmem:[#allocation2 + $0xf4] sm:$0xf]
      %v6747 = vld [vmem:[#allocation2 + $0xf8] sm:$0x7]
      %v6748 = vld [vmem:[#allocation2 + $0x100] sm:$0xc]
      %v6749 = vld [vmem:[#allocation2 + $0x104] sm:$0xf]
      %v6750 = vld [vmem:[#allocation2 + $0x108] sm:$0x7]
      %v6751 = vld [vmem:[#allocation2 + $0x110] sm:$0xc]
      %v6752 = vld [vmem:[#allocation2 + $0x114] sm:$0xf]
      %v6753 = vld [vmem:[#allocation2 + $0x118] sm:$0x7]
      %v6754 = vld [vmem:[#allocation2 + $0x120] sm:$0xc]
      %v6755 = vld [vmem:[#allocation2 + $0x124] sm:$0xf]
      %v6756 = vld [vmem:[#allocation2 + $0x128] sm:$0x7]
      %v6757 = vld [vmem:[#allocation2 + $0x130] sm:$0xc]
      %v6758 = vld [vmem:[#allocation2 + $0x134] sm:$0xf]
      %v6759 = vld [vmem:[#allocation2 + $0x138] sm:$0x7]
      %v6760 = vld [vmem:[#allocation2 + $0x140] sm:$0xc]
      %v6761 = vld [vmem:[#allocation2 + $0x144] sm:$0xf]
      %v6762 = vld [vmem:[#allocation2 + $0x148] sm:$0x7]
      %v6763 = vld [vmem:[#allocation2 + $0x150] sm:$0xc]
      %v6764 = vld [vmem:[#allocation2 + $0x154] sm:$0xf]
      %v6765 = vld [vmem:[#allocation2 + $0x158] sm:$0x7]
      %v6766 = vld [vmem:[#allocation2 + $0x160] sm:$0xc]
      %v6767 = vld [vmem:[#allocation2 + $0x164] sm:$0xf]
      %v6768 = vld [vmem:[#allocation2 + $0x168] sm:$0x7]
      %v6769 = vld [vmem:[#allocation2 + $0x170] sm:$0xc]
      %v6770 = vld [vmem:[#allocation2 + $0x174] sm:$0xf]
      %v6771 = vld [vmem:[#allocation2 + $0x178] sm:$0x7]
      %v6772 = vld [vmem:[#allocation2 + $0x180] sm:$0xc]
      %v6773 = vld [vmem:[#allocation2 + $0x184] sm:$0xf]
      %v6774 = vld [vmem:[#allocation2 + $0x188] sm:$0x7]
      %v6775 = vld [vmem:[#allocation2 + $0x190] sm:$0xc]
      %v6776 = vld [vmem:[#allocation2 + $0x194] sm:$0xf]
      %v6777 = vld [vmem:[#allocation2 + $0x198] sm:$0x7]
      %v6779 = vshrl.u32 %v6700, 16
      %v6781 = vrot.slane %v6779, 6
      %v6782 = vshll.u32 %v6700, 16
      %v6784 = vrot.slane %v6782, 7
      %v6785 = vor.u32 %v6781, %v6784
      %v6786 = vrot.slane %v6785, 4
      %v6788 = vshrl.u32 %v6701, 16
      %v6790 = vrot.slane %v6788, 6
      %v6791 = vshll.u32 %v6701, 16
      %v6793 = vrot.slane %v6791, 7
      %v6794 = vor.u32 %v6790, %v6793
      %v6795 = vsel %vm1411, %v6786, %v6794
      %v6796 = vrot.slane %v6794, 4
      %v6798 = vshrl.u32 %v6702, 16
      %v6800 = vrot.slane %v6798, 6
      %v6801 = vshll.u32 %v6702, 16
      %v6803 = vrot.slane %v6801, 7
      %v6804 = vor.u32 %v6800, %v6803
      %v6805 = vsel %vm1411, %v6796, %v6804
      %v6807 = vshrl.u32 %v6703, 16
      %v6809 = vrot.slane %v6807, 6
      %v6810 = vshll.u32 %v6703, 16
      %v6812 = vrot.slane %v6810, 7
      %v6813 = vor.u32 %v6809, %v6812
      %v6814 = vrot.slane %v6813, 4
      %v6816 = vshrl.u32 %v6704, 16
      %v6818 = vrot.slane %v6816, 6
      %v6819 = vshll.u32 %v6704, 16
      %v6821 = vrot.slane %v6819, 7
      %v6822 = vor.u32 %v6818, %v6821
      %v6823 = vsel %vm1411, %v6814, %v6822
      %v6824 = vrot.slane %v6822, 4
      %v6826 = vshrl.u32 %v6705, 16
      %v6828 = vrot.slane %v6826, 6
      %v6829 = vshll.u32 %v6705, 16
      %v6831 = vrot.slane %v6829, 7
      %v6832 = vor.u32 %v6828, %v6831
      %v6833 = vsel %vm1411, %v6824, %v6832
      %v6835 = vshrl.u32 %v6706, 16
      %v6837 = vrot.slane %v6835, 6
      %v6838 = vshll.u32 %v6706, 16
      %v6840 = vrot.slane %v6838, 7
      %v6841 = vor.u32 %v6837, %v6840
      %v6842 = vrot.slane %v6841, 4
      %v6844 = vshrl.u32 %v6707, 16
      %v6846 = vrot.slane %v6844, 6
      %v6847 = vshll.u32 %v6707, 16
      %v6849 = vrot.slane %v6847, 7
      %v6850 = vor.u32 %v6846, %v6849
      %v6851 = vsel %vm1411, %v6842, %v6850
      %v6852 = vrot.slane %v6850, 4
      %v6854 = vshrl.u32 %v6708, 16
      %v6856 = vrot.slane %v6854, 6
      %v6857 = vshll.u32 %v6708, 16
      %v6859 = vrot.slane %v6857, 7
      %v6860 = vor.u32 %v6856, %v6859
      %v6861 = vsel %vm1411, %v6852, %v6860
      %v6863 = vshrl.u32 %v6709, 16
      %v6865 = vrot.slane %v6863, 6
      %v6866 = vshll.u32 %v6709, 16
      %v6868 = vrot.slane %v6866, 7
      %v6869 = vor.u32 %v6865, %v6868
      %v6870 = vrot.slane %v6869, 4
      %v6872 = vshrl.u32 %v6710, 16
      %v6874 = vrot.slane %v6872, 6
      %v6875 = vshll.u32 %v6710, 16
      %v6877 = vrot.slane %v6875, 7
      %v6878 = vor.u32 %v6874, %v6877
      %v6879 = vsel %vm1411, %v6870, %v6878
      %v6880 = vrot.slane %v6878, 4
      %v6882 = vshrl.u32 %v6711, 16
      %v6884 = vrot.slane %v6882, 6
      %v6885 = vshll.u32 %v6711, 16
      %v6887 = vrot.slane %v6885, 7
      %v6888 = vor.u32 %v6884, %v6887
      %v6889 = vsel %vm1411, %v6880, %v6888
      %v6891 = vshrl.u32 %v6712, 16
      %v6893 = vrot.slane %v6891, 6
      %v6894 = vshll.u32 %v6712, 16
      %v6896 = vrot.slane %v6894, 7
      %v6897 = vor.u32 %v6893, %v6896
      %v6898 = vrot.slane %v6897, 4
      %v6900 = vshrl.u32 %v6713, 16
      %v6902 = vrot.slane %v6900, 6
      %v6903 = vshll.u32 %v6713, 16
      %v6905 = vrot.slane %v6903, 7
      %v6906 = vor.u32 %v6902, %v6905
      %v6907 = vsel %vm1411, %v6898, %v6906
      %v6908 = vrot.slane %v6906, 4
      %v6910 = vshrl.u32 %v6714, 16
      %v6912 = vrot.slane %v6910, 6
      %v6913 = vshll.u32 %v6714, 16
      %v6915 = vrot.slane %v6913, 7
      %v6916 = vor.u32 %v6912, %v6915
      %v6917 = vsel %vm1411, %v6908, %v6916
      %v6919 = vshrl.u32 %v6715, 16
      %v6921 = vrot.slane %v6919, 6
      %v6922 = vshll.u32 %v6715, 16
      %v6924 = vrot.slane %v6922, 7
      %v6925 = vor.u32 %v6921, %v6924
      %v6926 = vrot.slane %v6925, 4
      %v6928 = vshrl.u32 %v6716, 16
      %v6930 = vrot.slane %v6928, 6
      %v6931 = vshll.u32 %v6716, 16
      %v6933 = vrot.slane %v6931, 7
      %v6934 = vor.u32 %v6930, %v6933
      %v6935 = vsel %vm1411, %v6926, %v6934
      %v6936 = vrot.slane %v6934, 4
      %v6938 = vshrl.u32 %v6717, 16
      %v6940 = vrot.slane %v6938, 6
      %v6941 = vshll.u32 %v6717, 16
      %v6943 = vrot.slane %v6941, 7
      %v6944 = vor.u32 %v6940, %v6943
      %v6945 = vsel %vm1411, %v6936, %v6944
      %v6947 = vshrl.u32 %v6718, 16
      %v6949 = vrot.slane %v6947, 6
      %v6950 = vshll.u32 %v6718, 16
      %v6952 = vrot.slane %v6950, 7
      %v6953 = vor.u32 %v6949, %v6952
      %v6954 = vrot.slane %v6953, 4
      %v6956 = vshrl.u32 %v6719, 16
      %v6958 = vrot.slane %v6956, 6
      %v6959 = vshll.u32 %v6719, 16
      %v6961 = vrot.slane %v6959, 7
      %v6962 = vor.u32 %v6958, %v6961
      %v6963 = vsel %vm1411, %v6954, %v6962
      %v6964 = vrot.slane %v6962, 4
      %v6966 = vshrl.u32 %v6720, 16
      %v6968 = vrot.slane %v6966, 6
      %v6969 = vshll.u32 %v6720, 16
      %v6971 = vrot.slane %v6969, 7
      %v6972 = vor.u32 %v6968, %v6971
      %v6973 = vsel %vm1411, %v6964, %v6972
      %v6975 = vshrl.u32 %v6721, 16
      %v6977 = vrot.slane %v6975, 6
      %v6978 = vshll.u32 %v6721, 16
      %v6980 = vrot.slane %v6978, 7
      %v6981 = vor.u32 %v6977, %v6980
      %v6982 = vrot.slane %v6981, 4
      %v6984 = vshrl.u32 %v6722, 16
      %v6986 = vrot.slane %v6984, 6
      %v6987 = vshll.u32 %v6722, 16
      %v6989 = vrot.slane %v6987, 7
      %v6990 = vor.u32 %v6986, %v6989
      %v6991 = vsel %vm1411, %v6982, %v6990
      %v6992 = vrot.slane %v6990, 4
      %v6994 = vshrl.u32 %v6723, 16
      %v6996 = vrot.slane %v6994, 6
      %v6997 = vshll.u32 %v6723, 16
      %v6999 = vrot.slane %v6997, 7
      %v7000 = vor.u32 %v6996, %v6999
      %v7001 = vsel %vm1411, %v6992, %v7000
      %v7003 = vshrl.u32 %v6724, 16
      %v7005 = vrot.slane %v7003, 6
      %v7006 = vshll.u32 %v6724, 16
      %v7008 = vrot.slane %v7006, 7
      %v7009 = vor.u32 %v7005, %v7008
      %v7010 = vrot.slane %v7009, 4
      %v7012 = vshrl.u32 %v6725, 16
      %v7014 = vrot.slane %v7012, 6
      %v7015 = vshll.u32 %v6725, 16
      %v7017 = vrot.slane %v7015, 7
      %v7018 = vor.u32 %v7014, %v7017
      %v7019 = vsel %vm1411, %v7010, %v7018
      %v7020 = vrot.slane %v7018, 4
      %v7022 = vshrl.u32 %v6726, 16
      %v7024 = vrot.slane %v7022, 6
      %v7025 = vshll.u32 %v6726, 16
      %v7027 = vrot.slane %v7025, 7
      %v7028 = vor.u32 %v7024, %v7027
      %v7029 = vsel %vm1411, %v7020, %v7028
      %v7031 = vshrl.u32 %v6727, 16
      %v7033 = vrot.slane %v7031, 6
      %v7034 = vshll.u32 %v6727, 16
      %v7036 = vrot.slane %v7034, 7
      %v7037 = vor.u32 %v7033, %v7036
      %v7038 = vrot.slane %v7037, 4
      %v7040 = vshrl.u32 %v6728, 16
      %v7042 = vrot.slane %v7040, 6
      %v7043 = vshll.u32 %v6728, 16
      %v7045 = vrot.slane %v7043, 7
      %v7046 = vor.u32 %v7042, %v7045
      %v7047 = vsel %vm1411, %v7038, %v7046
      %v7048 = vrot.slane %v7046, 4
      %v7050 = vshrl.u32 %v6729, 16
      %v7052 = vrot.slane %v7050, 6
      %v7053 = vshll.u32 %v6729, 16
      %v7055 = vrot.slane %v7053, 7
      %v7056 = vor.u32 %v7052, %v7055
      %v7057 = vsel %vm1411, %v7048, %v7056
      %v7059 = vshrl.u32 %v6730, 16
      %v7061 = vrot.slane %v7059, 6
      %v7062 = vshll.u32 %v6730, 16
      %v7064 = vrot.slane %v7062, 7
      %v7065 = vor.u32 %v7061, %v7064
      %v7066 = vrot.slane %v7065, 4
      %v7068 = vshrl.u32 %v6731, 16
      %v7070 = vrot.slane %v7068, 6
      %v7071 = vshll.u32 %v6731, 16
      %v7073 = vrot.slane %v7071, 7
      %v7074 = vor.u32 %v7070, %v7073
      %v7075 = vsel %vm1411, %v7066, %v7074
      %v7076 = vrot.slane %v7074, 4
      %v7078 = vshrl.u32 %v6732, 16
      %v7080 = vrot.slane %v7078, 6
      %v7081 = vshll.u32 %v6732, 16
      %v7083 = vrot.slane %v7081, 7
      %v7084 = vor.u32 %v7080, %v7083
      %v7085 = vsel %vm1411, %v7076, %v7084
      %v7087 = vshrl.u32 %v6733, 16
      %v7089 = vrot.slane %v7087, 6
      %v7090 = vshll.u32 %v6733, 16
      %v7092 = vrot.slane %v7090, 7
      %v7093 = vor.u32 %v7089, %v7092
      %v7094 = vrot.slane %v7093, 4
      %v7096 = vshrl.u32 %v6734, 16
      %v7098 = vrot.slane %v7096, 6
      %v7099 = vshll.u32 %v6734, 16
      %v7101 = vrot.slane %v7099, 7
      %v7102 = vor.u32 %v7098, %v7101
      %v7103 = vsel %vm1411, %v7094, %v7102
      %v7104 = vrot.slane %v7102, 4
      %v7106 = vshrl.u32 %v6735, 16
      %v7108 = vrot.slane %v7106, 6
      %v7109 = vshll.u32 %v6735, 16
      %v7111 = vrot.slane %v7109, 7
      %v7112 = vor.u32 %v7108, %v7111
      %v7113 = vsel %vm1411, %v7104, %v7112
      %v7115 = vshrl.u32 %v6736, 16
      %v7117 = vrot.slane %v7115, 6
      %v7118 = vshll.u32 %v6736, 16
      %v7120 = vrot.slane %v7118, 7
      %v7121 = vor.u32 %v7117, %v7120
      %v7122 = vrot.slane %v7121, 4
      %v7124 = vshrl.u32 %v6737, 16
      %v7126 = vrot.slane %v7124, 6
      %v7127 = vshll.u32 %v6737, 16
      %v7129 = vrot.slane %v7127, 7
      %v7130 = vor.u32 %v7126, %v7129
      %v7131 = vsel %vm1411, %v7122, %v7130
      %v7132 = vrot.slane %v7130, 4
      %v7134 = vshrl.u32 %v6738, 16
      %v7136 = vrot.slane %v7134, 6
      %v7137 = vshll.u32 %v6738, 16
      %v7139 = vrot.slane %v7137, 7
      %v7140 = vor.u32 %v7136, %v7139
      %v7141 = vsel %vm1411, %v7132, %v7140
      %v7143 = vshrl.u32 %v6739, 16
      %v7145 = vrot.slane %v7143, 6
      %v7146 = vshll.u32 %v6739, 16
      %v7148 = vrot.slane %v7146, 7
      %v7149 = vor.u32 %v7145, %v7148
      %v7150 = vrot.slane %v7149, 4
      %v7152 = vshrl.u32 %v6740, 16
      %v7154 = vrot.slane %v7152, 6
      %v7155 = vshll.u32 %v6740, 16
      %v7157 = vrot.slane %v7155, 7
      %v7158 = vor.u32 %v7154, %v7157
      %v7159 = vsel %vm1411, %v7150, %v7158
      %v7160 = vrot.slane %v7158, 4
      %v7162 = vshrl.u32 %v6741, 16
      %v7164 = vrot.slane %v7162, 6
      %v7165 = vshll.u32 %v6741, 16
      %v7167 = vrot.slane %v7165, 7
      %v7168 = vor.u32 %v7164, %v7167
      %v7169 = vsel %vm1411, %v7160, %v7168
      %v7171 = vshrl.u32 %v6742, 16
      %v7173 = vrot.slane %v7171, 6
      %v7174 = vshll.u32 %v6742, 16
      %v7176 = vrot.slane %v7174, 7
      %v7177 = vor.u32 %v7173, %v7176
      %v7178 = vrot.slane %v7177, 4
      %v7180 = vshrl.u32 %v6743, 16
      %v7182 = vrot.slane %v7180, 6
      %v7183 = vshll.u32 %v6743, 16
      %v7185 = vrot.slane %v7183, 7
      %v7186 = vor.u32 %v7182, %v7185
      %v7187 = vsel %vm1411, %v7178, %v7186
      %v7188 = vrot.slane %v7186, 4
      %v7190 = vshrl.u32 %v6744, 16
      %v7192 = vrot.slane %v7190, 6
      %v7193 = vshll.u32 %v6744, 16
      %v7195 = vrot.slane %v7193, 7
      %v7196 = vor.u32 %v7192, %v7195
      %v7197 = vsel %vm1411, %v7188, %v7196
      %v7199 = vshrl.u32 %v6745, 16
      %v7201 = vrot.slane %v7199, 6
      %v7202 = vshll.u32 %v6745, 16
      %v7204 = vrot.slane %v7202, 7
      %v7205 = vor.u32 %v7201, %v7204
      %v7206 = vrot.slane %v7205, 4
      %v7208 = vshrl.u32 %v6746, 16
      %v7210 = vrot.slane %v7208, 6
      %v7211 = vshll.u32 %v6746, 16
      %v7213 = vrot.slane %v7211, 7
      %v7214 = vor.u32 %v7210, %v7213
      %v7215 = vsel %vm1411, %v7206, %v7214
      %v7216 = vrot.slane %v7214, 4
      %v7218 = vshrl.u32 %v6747, 16
      %v7220 = vrot.slane %v7218, 6
      %v7221 = vshll.u32 %v6747, 16
      %v7223 = vrot.slane %v7221, 7
      %v7224 = vor.u32 %v7220, %v7223
      %v7225 = vsel %vm1411, %v7216, %v7224
      %v7227 = vshrl.u32 %v6748, 16
      %v7229 = vrot.slane %v7227, 6
      %v7230 = vshll.u32 %v6748, 16
      %v7232 = vrot.slane %v7230, 7
      %v7233 = vor.u32 %v7229, %v7232
      %v7234 = vrot.slane %v7233, 4
      %v7236 = vshrl.u32 %v6749, 16
      %v7238 = vrot.slane %v7236, 6
      %v7239 = vshll.u32 %v6749, 16
      %v7241 = vrot.slane %v7239, 7
      %v7242 = vor.u32 %v7238, %v7241
      %v7243 = vsel %vm1411, %v7234, %v7242
      %v7244 = vrot.slane %v7242, 4
      %v7246 = vshrl.u32 %v6750, 16
      %v7248 = vrot.slane %v7246, 6
      %v7249 = vshll.u32 %v6750, 16
      %v7251 = vrot.slane %v7249, 7
      %v7252 = vor.u32 %v7248, %v7251
      %v7253 = vsel %vm1411, %v7244, %v7252
      %v7255 = vshrl.u32 %v6751, 16
      %v7257 = vrot.slane %v7255, 6
      %v7258 = vshll.u32 %v6751, 16
      %v7260 = vrot.slane %v7258, 7
      %v7261 = vor.u32 %v7257, %v7260
      %v7262 = vrot.slane %v7261, 4
      %v7264 = vshrl.u32 %v6752, 16
      %v7266 = vrot.slane %v7264, 6
      %v7267 = vshll.u32 %v6752, 16
      %v7269 = vrot.slane %v7267, 7
      %v7270 = vor.u32 %v7266, %v7269
      %v7271 = vsel %vm1411, %v7262, %v7270
      %v7272 = vrot.slane %v7270, 4
      %v7274 = vshrl.u32 %v6753, 16
      %v7276 = vrot.slane %v7274, 6
      %v7277 = vshll.u32 %v6753, 16
      %v7279 = vrot.slane %v7277, 7
      %v7280 = vor.u32 %v7276, %v7279
      %v7281 = vsel %vm1411, %v7272, %v7280
      %v7283 = vshrl.u32 %v6754, 16
      %v7285 = vrot.slane %v7283, 6
      %v7286 = vshll.u32 %v6754, 16
      %v7288 = vrot.slane %v7286, 7
      %v7289 = vor.u32 %v7285, %v7288
      %v7290 = vrot.slane %v7289, 4
      %v7292 = vshrl.u32 %v6755, 16
      %v7294 = vrot.slane %v7292, 6
      %v7295 = vshll.u32 %v6755, 16
      %v7297 = vrot.slane %v7295, 7
      %v7298 = vor.u32 %v7294, %v7297
      %v7299 = vsel %vm1411, %v7290, %v7298
      %v7300 = vrot.slane %v7298, 4
      %v7302 = vshrl.u32 %v6756, 16
      %v7304 = vrot.slane %v7302, 6
      %v7305 = vshll.u32 %v6756, 16
      %v7307 = vrot.slane %v7305, 7
      %v7308 = vor.u32 %v7304, %v7307
      %v7309 = vsel %vm1411, %v7300, %v7308
      %v7311 = vshrl.u32 %v6757, 16
      %v7313 = vrot.slane %v7311, 6
      %v7314 = vshll.u32 %v6757, 16
      %v7316 = vrot.slane %v7314, 7
      %v7317 = vor.u32 %v7313, %v7316
      %v7318 = vrot.slane %v7317, 4
      %v7320 = vshrl.u32 %v6758, 16
      %v7322 = vrot.slane %v7320, 6
      %v7323 = vshll.u32 %v6758, 16
      %v7325 = vrot.slane %v7323, 7
      %v7326 = vor.u32 %v7322, %v7325
      %v7327 = vsel %vm1411, %v7318, %v7326
      %v7328 = vrot.slane %v7326, 4
      %v7330 = vshrl.u32 %v6759, 16
      %v7332 = vrot.slane %v7330, 6
      %v7333 = vshll.u32 %v6759, 16
      %v7335 = vrot.slane %v7333, 7
      %v7336 = vor.u32 %v7332, %v7335
      %v7337 = vsel %vm1411, %v7328, %v7336
      %v7339 = vshrl.u32 %v6760, 16
      %v7341 = vrot.slane %v7339, 6
      %v7342 = vshll.u32 %v6760, 16
      %v7344 = vrot.slane %v7342, 7
      %v7345 = vor.u32 %v7341, %v7344
      %v7346 = vrot.slane %v7345, 4
      %v7348 = vshrl.u32 %v6761, 16
      %v7350 = vrot.slane %v7348, 6
      %v7351 = vshll.u32 %v6761, 16
      %v7353 = vrot.slane %v7351, 7
      %v7354 = vor.u32 %v7350, %v7353
      %v7355 = vsel %vm1411, %v7346, %v7354
      %v7356 = vrot.slane %v7354, 4
      %v7358 = vshrl.u32 %v6762, 16
      %v7360 = vrot.slane %v7358, 6
      %v7361 = vshll.u32 %v6762, 16
      %v7363 = vrot.slane %v7361, 7
      %v7364 = vor.u32 %v7360, %v7363
      %v7365 = vsel %vm1411, %v7356, %v7364
      %v7367 = vshrl.u32 %v6763, 16
      %v7369 = vrot.slane %v7367, 6
      %v7370 = vshll.u32 %v6763, 16
      %v7372 = vrot.slane %v7370, 7
      %v7373 = vor.u32 %v7369, %v7372
      %v7374 = vrot.slane %v7373, 4
      %v7376 = vshrl.u32 %v6764, 16
      %v7378 = vrot.slane %v7376, 6
      %v7379 = vshll.u32 %v6764, 16
      %v7381 = vrot.slane %v7379, 7
      %v7382 = vor.u32 %v7378, %v7381
      %v7383 = vsel %vm1411, %v7374, %v7382
      %v7384 = vrot.slane %v7382, 4
      %v7386 = vshrl.u32 %v6765, 16
      %v7388 = vrot.slane %v7386, 6
      %v7389 = vshll.u32 %v6765, 16
      %v7391 = vrot.slane %v7389, 7
      %v7392 = vor.u32 %v7388, %v7391
      %v7393 = vsel %vm1411, %v7384, %v7392
      %v7395 = vshrl.u32 %v6766, 16
      %v7397 = vrot.slane %v7395, 6
      %v7398 = vshll.u32 %v6766, 16
      %v7400 = vrot.slane %v7398, 7
      %v7401 = vor.u32 %v7397, %v7400
      %v7402 = vrot.slane %v7401, 4
      %v7404 = vshrl.u32 %v6767, 16
      %v7406 = vrot.slane %v7404, 6
      %v7407 = vshll.u32 %v6767, 16
      %v7409 = vrot.slane %v7407, 7
      %v7410 = vor.u32 %v7406, %v7409
      %v7411 = vsel %vm1411, %v7402, %v7410
      %v7412 = vrot.slane %v7410, 4
      %v7414 = vshrl.u32 %v6768, 16
      %v7416 = vrot.slane %v7414, 6
      %v7417 = vshll.u32 %v6768, 16
      %v7419 = vrot.slane %v7417, 7
      %v7420 = vor.u32 %v7416, %v7419
      %v7421 = vsel %vm1411, %v7412, %v7420
      %v7423 = vshrl.u32 %v6769, 16
      %v7425 = vrot.slane %v7423, 6
      %v7426 = vshll.u32 %v6769, 16
      %v7428 = vrot.slane %v7426, 7
      %v7429 = vor.u32 %v7425, %v7428
      %v7430 = vrot.slane %v7429, 4
      %v7432 = vshrl.u32 %v6770, 16
      %v7434 = vrot.slane %v7432, 6
      %v7435 = vshll.u32 %v6770, 16
      %v7437 = vrot.slane %v7435, 7
      %v7438 = vor.u32 %v7434, %v7437
      %v7439 = vsel %vm1411, %v7430, %v7438
      %v7440 = vrot.slane %v7438, 4
      %v7442 = vshrl.u32 %v6771, 16
      %v7444 = vrot.slane %v7442, 6
      %v7445 = vshll.u32 %v6771, 16
      %v7447 = vrot.slane %v7445, 7
      %v7448 = vor.u32 %v7444, %v7447
      %v7449 = vsel %vm1411, %v7440, %v7448
      %v7451 = vshrl.u32 %v6772, 16
      %v7453 = vrot.slane %v7451, 6
      %v7454 = vshll.u32 %v6772, 16
      %v7456 = vrot.slane %v7454, 7
      %v7457 = vor.u32 %v7453, %v7456
      %v7458 = vrot.slane %v7457, 4
      %v7460 = vshrl.u32 %v6773, 16
      %v7462 = vrot.slane %v7460, 6
      %v7463 = vshll.u32 %v6773, 16
      %v7465 = vrot.slane %v7463, 7
      %v7466 = vor.u32 %v7462, %v7465
      %v7467 = vsel %vm1411, %v7458, %v7466
      %v7468 = vrot.slane %v7466, 4
      %v7470 = vshrl.u32 %v6774, 16
      %v7472 = vrot.slane %v7470, 6
      %v7473 = vshll.u32 %v6774, 16
      %v7475 = vrot.slane %v7473, 7
      %v7476 = vor.u32 %v7472, %v7475
      %v7477 = vsel %vm1411, %v7468, %v7476
      %v7479 = vshrl.u32 %v6775, 16
      %v7481 = vrot.slane %v7479, 6
      %v7482 = vshll.u32 %v6775, 16
      %v7484 = vrot.slane %v7482, 7
      %v7485 = vor.u32 %v7481, %v7484
      %v7486 = vrot.slane %v7485, 4
      %v7488 = vshrl.u32 %v6776, 16
      %v7490 = vrot.slane %v7488, 6
      %v7491 = vshll.u32 %v6776, 16
      %v7493 = vrot.slane %v7491, 7
      %v7494 = vor.u32 %v7490, %v7493
      %v7495 = vsel %vm1411, %v7486, %v7494
      %v7496 = vrot.slane %v7494, 4
      %v7498 = vshrl.u32 %v6777, 16
      %v7500 = vrot.slane %v7498, 6
      %v7501 = vshll.u32 %v6777, 16
      %v7503 = vrot.slane %v7501, 7
      %v7504 = vor.u32 %v7500, %v7503
      %v7505 = vsel %vm1411, %v7496, %v7504
      %7506 = vrot.lane.b32.xlu0 %v6795, 4
      %v7507 = vpop.permute.xlu0 %7506
      %7508 = vrot.lane.b32.xlu0 %v6805, 4
      %v7509 = vpop.permute.xlu0 %7508
      %7510 = vrot.lane.b32.xlu0 %v6823, 4
      %v7511 = vpop.permute.xlu0 %7510
      %7512 = vrot.lane.b32.xlu0 %v6833, 4
      %v7513 = vpop.permute.xlu0 %7512
      %7514 = vrot.lane.b32.xlu0 %v6851, 4
      %v7515 = vpop.permute.xlu0 %7514
      %7516 = vrot.lane.b32.xlu0 %v6861, 4
      %v7517 = vpop.permute.xlu0 %7516
      %7518 = vrot.lane.b32.xlu0 %v6879, 4
      %v7519 = vpop.permute.xlu0 %7518
      %7520 = vrot.lane.b32.xlu0 %v6889, 4
      %v7521 = vpop.permute.xlu0 %7520
      %7522 = vrot.lane.b32.xlu0 %v6907, 4
      %v7523 = vpop.permute.xlu0 %7522
      %7524 = vrot.lane.b32.xlu0 %v6917, 4
      %v7525 = vpop.permute.xlu0 %7524
      %7526 = vrot.lane.b32.xlu0 %v6935, 4
      %v7527 = vpop.permute.xlu0 %7526
      %7528 = vrot.lane.b32.xlu0 %v6945, 4
      %v7529 = vpop.permute.xlu0 %7528
      %7530 = vrot.lane.b32.xlu0 %v6963, 4
      %v7531 = vpop.permute.xlu0 %7530
      %7532 = vrot.lane.b32.xlu0 %v6973, 4
      %v7533 = vpop.permute.xlu0 %7532
      %7534 = vrot.lane.b32.xlu0 %v6991, 4
      %v7535 = vpop.permute.xlu0 %7534
      %7536 = vrot.lane.b32.xlu0 %v7001, 4
      %v7537 = vpop.permute.xlu0 %7536
      %7538 = vrot.lane.b32.xlu0 %v7019, 4
      %v7539 = vpop.permute.xlu0 %7538
      %7540 = vrot.lane.b32.xlu0 %v7029, 4
      %v7541 = vpop.permute.xlu0 %7540
      %7542 = vrot.lane.b32.xlu0 %v7047, 4
      %v7543 = vpop.permute.xlu0 %7542
      %7544 = vrot.lane.b32.xlu0 %v7057, 4
      %v7545 = vpop.permute.xlu0 %7544
      %7546 = vrot.lane.b32.xlu0 %v7075, 4
      %v7547 = vpop.permute.xlu0 %7546
      %7548 = vrot.lane.b32.xlu0 %v7085, 4
      %v7549 = vpop.permute.xlu0 %7548
      %7550 = vrot.lane.b32.xlu0 %v7103, 4
      %v7551 = vpop.permute.xlu0 %7550
      %7552 = vrot.lane.b32.xlu0 %v7113, 4
      %v7553 = vpop.permute.xlu0 %7552
      %7554 = vrot.lane.b32.xlu0 %v7131, 4
      %v7555 = vpop.permute.xlu0 %7554
      %7556 = vrot.lane.b32.xlu0 %v7141, 4
      %v7557 = vpop.permute.xlu0 %7556
      %7558 = vrot.lane.b32.xlu0 %v7159, 4
      %v7559 = vpop.permute.xlu0 %7558
      %7560 = vrot.lane.b32.xlu0 %v7169, 4
      %v7561 = vpop.permute.xlu0 %7560
      %7562 = vrot.lane.b32.xlu0 %v7187, 4
      %v7563 = vpop.permute.xlu0 %7562
      %7564 = vrot.lane.b32.xlu0 %v7197, 4
      %v7565 = vpop.permute.xlu0 %7564
      %7566 = vrot.lane.b32.xlu0 %v7215, 4
      %v7567 = vpop.permute.xlu0 %7566
      %7568 = vrot.lane.b32.xlu0 %v7225, 4
      %v7569 = vpop.permute.xlu0 %7568
      %7570 = vrot.lane.b32.xlu0 %v7243, 4
      %v7571 = vpop.permute.xlu0 %7570
      %7572 = vrot.lane.b32.xlu0 %v7253, 4
      %v7573 = vpop.permute.xlu0 %7572
      %7574 = vrot.lane.b32.xlu0 %v7271, 4
      %v7575 = vpop.permute.xlu0 %7574
      %7576 = vrot.lane.b32.xlu0 %v7281, 4
      %v7577 = vpop.permute.xlu0 %7576
      %7578 = vrot.lane.b32.xlu0 %v7299, 4
      %v7579 = vpop.permute.xlu0 %7578
      %7580 = vrot.lane.b32.xlu0 %v7309, 4
      %v7581 = vpop.permute.xlu0 %7580
      %7582 = vrot.lane.b32.xlu0 %v7327, 4
      %v7583 = vpop.permute.xlu0 %7582
      %7584 = vrot.lane.b32.xlu0 %v7337, 4
      %v7585 = vpop.permute.xlu0 %7584
      %7586 = vrot.lane.b32.xlu0 %v7355, 4
      %v7587 = vpop.permute.xlu0 %7586
      %7588 = vrot.lane.b32.xlu0 %v7365, 4
      %v7589 = vpop.permute.xlu0 %7588
      %7590 = vrot.lane.b32.xlu0 %v7383, 4
      %v7591 = vpop.permute.xlu0 %7590
      %7592 = vrot.lane.b32.xlu0 %v7393, 4
      %v7593 = vpop.permute.xlu0 %7592
      %7594 = vrot.lane.b32.xlu0 %v7411, 4
      %v7595 = vpop.permute.xlu0 %7594
      %7596 = vrot.lane.b32.xlu0 %v7421, 4
      %v7597 = vpop.permute.xlu0 %7596
      %7598 = vrot.lane.b32.xlu0 %v7439, 4
      %v7599 = vpop.permute.xlu0 %7598
      %7600 = vrot.lane.b32.xlu0 %v7449, 4
      %v7601 = vpop.permute.xlu0 %7600
      %7602 = vrot.lane.b32.xlu0 %v7467, 4
      %v7603 = vpop.permute.xlu0 %7602
      %7604 = vrot.lane.b32.xlu0 %v7477, 4
      %v7605 = vpop.permute.xlu0 %7604
      %7606 = vrot.lane.b32.xlu0 %v7495, 4
      %v7607 = vpop.permute.xlu0 %7606
      %7608 = vrot.lane.b32.xlu0 %v7505, 4
      %v7609 = vpop.permute.xlu0 %7608
      %7662 = vst.msk [vmem:[#allocation3] sm:$0xf] %vm2296, %v7507
      %7663 = vst.msk [vmem:[#allocation3 + $0x4] sm:$0xf] %vm2296, %v7509
      %7664 = vst.msk [vmem:[#allocation3 + $0x8] sm:$0xf] %vm2296, %v7511
      %7665 = vst.msk [vmem:[#allocation3 + $0xc] sm:$0xf] %vm2296, %v7513
      %7666 = vst.msk [vmem:[#allocation3 + $0x10] sm:$0xf] %vm2296, %v7515
      %7667 = vst.msk [vmem:[#allocation3 + $0x14] sm:$0xf] %vm2296, %v7517
      %7668 = vst.msk [vmem:[#allocation3 + $0x18] sm:$0xf] %vm2296, %v7519
      %7669 = vst.msk [vmem:[#allocation3 + $0x1c] sm:$0xf] %vm2296, %v7521
      %7670 = vst.msk [vmem:[#allocation3 + $0x20] sm:$0xf] %vm2296, %v7523
      %7671 = vst.msk [vmem:[#allocation3 + $0x24] sm:$0xf] %vm2296, %v7525
      %7672 = vst.msk [vmem:[#allocation3 + $0x28] sm:$0xf] %vm2296, %v7527
      %7673 = vst.msk [vmem:[#allocation3 + $0x2c] sm:$0xf] %vm2296, %v7529
      %7674 = vst.msk [vmem:[#allocation3 + $0x30] sm:$0xf] %vm2296, %v7531
      %7675 = vst.msk [vmem:[#allocation3 + $0x34] sm:$0xf] %vm2296, %v7533
      %7676 = vst.msk [vmem:[#allocation3 + $0x38] sm:$0xf] %vm2296, %v7535
      %7677 = vst.msk [vmem:[#allocation3 + $0x3c] sm:$0xf] %vm2296, %v7537
      %7678 = vst.msk [vmem:[#allocation3 + $0x40] sm:$0xf] %vm2296, %v7539
      %7679 = vst.msk [vmem:[#allocation3 + $0x44] sm:$0xf] %vm2296, %v7541
      %7680 = vst.msk [vmem:[#allocation3 + $0x48] sm:$0xf] %vm2296, %v7543
      %7681 = vst.msk [vmem:[#allocation3 + $0x4c] sm:$0xf] %vm2296, %v7545
      %7682 = vst.msk [vmem:[#allocation3 + $0x50] sm:$0xf] %vm2296, %v7547
      %7683 = vst.msk [vmem:[#allocation3 + $0x54] sm:$0xf] %vm2296, %v7549
      %7684 = vst.msk [vmem:[#allocation3 + $0x58] sm:$0xf] %vm2296, %v7551
      %7685 = vst.msk [vmem:[#allocation3 + $0x5c] sm:$0xf] %vm2296, %v7553
      %7686 = vst.msk [vmem:[#allocation3 + $0x60] sm:$0xf] %vm2296, %v7555
      %7687 = vst.msk [vmem:[#allocation3 + $0x64] sm:$0xf] %vm2296, %v7557
      %7688 = vst.msk [vmem:[#allocation3 + $0x68] sm:$0xf] %vm2296, %v7559
      %7689 = vst.msk [vmem:[#allocation3 + $0x6c] sm:$0xf] %vm2296, %v7561
      %7690 = vst.msk [vmem:[#allocation3 + $0x70] sm:$0xf] %vm2296, %v7563
      %7691 = vst.msk [vmem:[#allocation3 + $0x74] sm:$0xf] %vm2296, %v7565
      %7692 = vst.msk [vmem:[#allocation3 + $0x78] sm:$0xf] %vm2296, %v7567
      %7693 = vst.msk [vmem:[#allocation3 + $0x7c] sm:$0xf] %vm2296, %v7569
      %7694 = vst.msk [vmem:[#allocation3 + $0x80] sm:$0xf] %vm2296, %v7571
      %7695 = vst.msk [vmem:[#allocation3 + $0x84] sm:$0xf] %vm2296, %v7573
      %7696 = vst.msk [vmem:[#allocation3 + $0x88] sm:$0xf] %vm2296, %v7575
      %7697 = vst.msk [vmem:[#allocation3 + $0x8c] sm:$0xf] %vm2296, %v7577
      %7698 = vst.msk [vmem:[#allocation3 + $0x90] sm:$0xf] %vm2296, %v7579
      %7699 = vst.msk [vmem:[#allocation3 + $0x94] sm:$0xf] %vm2296, %v7581
      %7700 = vst.msk [vmem:[#allocation3 + $0x98] sm:$0xf] %vm2296, %v7583
      %7701 = vst.msk [vmem:[#allocation3 + $0x9c] sm:$0xf] %vm2296, %v7585
      %7702 = vst.msk [vmem:[#allocation3 + $0xa0] sm:$0xf] %vm2296, %v7587
      %7703 = vst.msk [vmem:[#allocation3 + $0xa4] sm:$0xf] %vm2296, %v7589
      %7704 = vst.msk [vmem:[#allocation3 + $0xa8] sm:$0xf] %vm2296, %v7591
      %7705 = vst.msk [vmem:[#allocation3 + $0xac] sm:$0xf] %vm2296, %v7593
      %7706 = vst.msk [vmem:[#allocation3 + $0xb0] sm:$0xf] %vm2296, %v7595
      %7707 = vst.msk [vmem:[#allocation3 + $0xb4] sm:$0xf] %vm2296, %v7597
      %7708 = vst.msk [vmem:[#allocation3 + $0xb8] sm:$0xf] %vm2296, %v7599
      %7709 = vst.msk [vmem:[#allocation3 + $0xbc] sm:$0xf] %vm2296, %v7601
      %7710 = vst.msk [vmem:[#allocation3 + $0xc0] sm:$0xf] %vm2296, %v7603
      %7711 = vst.msk [vmem:[#allocation3 + $0xc4] sm:$0xf] %vm2296, %v7605
      %7712 = vst.msk [vmem:[#allocation3 + $0xc8] sm:$0xf] %vm2296, %v7607
      %7713 = vst.msk [vmem:[#allocation3 + $0xcc] sm:$0xf] %vm2296, %v7609
      %v7714 = vld [vmem:[#allocation2 + $0x4] sm:$0xe]
      %v7715 = vld [vmem:[#allocation2 + $0x8] sm:$0xf]
      %v7716 = vld [vmem:[#allocation2 + $0xc] sm:$0x1]
      %v7717 = vld [vmem:[#allocation2 + $0x14] sm:$0xe]
      %v7718 = vld [vmem:[#allocation2 + $0x18] sm:$0xf]
      %v7719 = vld [vmem:[#allocation2 + $0x1c] sm:$0x1]
      %v7720 = vld [vmem:[#allocation2 + $0x24] sm:$0xe]
      %v7721 = vld [vmem:[#allocation2 + $0x28] sm:$0xf]
      %v7722 = vld [vmem:[#allocation2 + $0x2c] sm:$0x1]
      %v7723 = vld [vmem:[#allocation2 + $0x34] sm:$0xe]
      %v7724 = vld [vmem:[#allocation2 + $0x38] sm:$0xf]
      %v7725 = vld [vmem:[#allocation2 + $0x3c] sm:$0x1]
      %v7726 = vld [vmem:[#allocation2 + $0x44] sm:$0xe]
      %v7727 = vld [vmem:[#allocation2 + $0x48] sm:$0xf]
      %v7728 = vld [vmem:[#allocation2 + $0x4c] sm:$0x1]
      %v7729 = vld [vmem:[#allocation2 + $0x54] sm:$0xe]
      %v7730 = vld [vmem:[#allocation2 + $0x58] sm:$0xf]
      %v7731 = vld [vmem:[#allocation2 + $0x5c] sm:$0x1]
      %v7732 = vld [vmem:[#allocation2 + $0x64] sm:$0xe]
      %v7733 = vld [vmem:[#allocation2 + $0x68] sm:$0xf]
      %v7734 = vld [vmem:[#allocation2 + $0x6c] sm:$0x1]
      %v7735 = vld [vmem:[#allocation2 + $0x74] sm:$0xe]
      %v7736 = vld [vmem:[#allocation2 + $0x78] sm:$0xf]
      %v7737 = vld [vmem:[#allocation2 + $0x7c] sm:$0x1]
      %v7738 = vld [vmem:[#allocation2 + $0x84] sm:$0xe]
      %v7739 = vld [vmem:[#allocation2 + $0x88] sm:$0xf]
      %v7740 = vld [vmem:[#allocation2 + $0x8c] sm:$0x1]
      %v7741 = vld [vmem:[#allocation2 + $0x94] sm:$0xe]
      %v7742 = vld [vmem:[#allocation2 + $0x98] sm:$0xf]
      %v7743 = vld [vmem:[#allocation2 + $0x9c] sm:$0x1]
      %v7744 = vld [vmem:[#allocation2 + $0xa4] sm:$0xe]
      %v7745 = vld [vmem:[#allocation2 + $0xa8] sm:$0xf]
      %v7746 = vld [vmem:[#allocation2 + $0xac] sm:$0x1]
      %v7747 = vld [vmem:[#allocation2 + $0xb4] sm:$0xe]
      %v7748 = vld [vmem:[#allocation2 + $0xb8] sm:$0xf]
      %v7749 = vld [vmem:[#allocation2 + $0xbc] sm:$0x1]
      %v7750 = vld [vmem:[#allocation2 + $0xc4] sm:$0xe]
      %v7751 = vld [vmem:[#allocation2 + $0xc8] sm:$0xf]
      %v7752 = vld [vmem:[#allocation2 + $0xcc] sm:$0x1]
      %v7753 = vld [vmem:[#allocation2 + $0xd4] sm:$0xe]
      %v7754 = vld [vmem:[#allocation2 + $0xd8] sm:$0xf]
      %v7755 = vld [vmem:[#allocation2 + $0xdc] sm:$0x1]
      %v7756 = vld [vmem:[#allocation2 + $0xe4] sm:$0xe]
      %v7757 = vld [vmem:[#allocation2 + $0xe8] sm:$0xf]
      %v7758 = vld [vmem:[#allocation2 + $0xec] sm:$0x1]
      %v7759 = vld [vmem:[#allocation2 + $0xf4] sm:$0xe]
      %v7760 = vld [vmem:[#allocation2 + $0xf8] sm:$0xf]
      %v7761 = vld [vmem:[#allocation2 + $0xfc] sm:$0x1]
      %v7762 = vld [vmem:[#allocation2 + $0x104] sm:$0xe]
      %v7763 = vld [vmem:[#allocation2 + $0x108] sm:$0xf]
      %v7764 = vld [vmem:[#allocation2 + $0x10c] sm:$0x1]
      %v7765 = vld [vmem:[#allocation2 + $0x114] sm:$0xe]
      %v7766 = vld [vmem:[#allocation2 + $0x118] sm:$0xf]
      %v7767 = vld [vmem:[#allocation2 + $0x11c] sm:$0x1]
      %v7768 = vld [vmem:[#allocation2 + $0x124] sm:$0xe]
      %v7769 = vld [vmem:[#allocation2 + $0x128] sm:$0xf]
      %v7770 = vld [vmem:[#allocation2 + $0x12c] sm:$0x1]
      %v7771 = vld [vmem:[#allocation2 + $0x134] sm:$0xe]
      %v7772 = vld [vmem:[#allocation2 + $0x138] sm:$0xf]
      %v7773 = vld [vmem:[#allocation2 + $0x13c] sm:$0x1]
      %v7774 = vld [vmem:[#allocation2 + $0x144] sm:$0xe]
      %v7775 = vld [vmem:[#allocation2 + $0x148] sm:$0xf]
      %v7776 = vld [vmem:[#allocation2 + $0x14c] sm:$0x1]
      %v7777 = vld [vmem:[#allocation2 + $0x154] sm:$0xe]
      %v7778 = vld [vmem:[#allocation2 + $0x158] sm:$0xf]
      %v7779 = vld [vmem:[#allocation2 + $0x15c] sm:$0x1]
      %v7780 = vld [vmem:[#allocation2 + $0x164] sm:$0xe]
      %v7781 = vld [vmem:[#allocation2 + $0x168] sm:$0xf]
      %v7782 = vld [vmem:[#allocation2 + $0x16c] sm:$0x1]
      %v7783 = vld [vmem:[#allocation2 + $0x174] sm:$0xe]
      %v7784 = vld [vmem:[#allocation2 + $0x178] sm:$0xf]
      %v7785 = vld [vmem:[#allocation2 + $0x17c] sm:$0x1]
      %v7786 = vld [vmem:[#allocation2 + $0x184] sm:$0xe]
      %v7787 = vld [vmem:[#allocation2 + $0x188] sm:$0xf]
      %v7788 = vld [vmem:[#allocation2 + $0x18c] sm:$0x1]
      %v7789 = vld [vmem:[#allocation2 + $0x194] sm:$0xe]
      %v7790 = vld [vmem:[#allocation2 + $0x198] sm:$0xf]
      %v7791 = vld [vmem:[#allocation2 + $0x19c] sm:$0x1]
      %v7870 = vrot.slane %v7714, 5
      %v7871 = vrot.slane %v7870, 4
      %v7872 = vrot.slane %v7715, 5
      %v7873 = vsel %vm3979, %v7871, %v7872
      %v7874 = vrot.slane %v7872, 4
      %v7875 = vrot.slane %v7716, 5
      %v7876 = vsel %vm3979, %v7874, %v7875
      %v7877 = vrot.slane %v7717, 5
      %v7878 = vrot.slane %v7877, 4
      %v7879 = vrot.slane %v7718, 5
      %v7880 = vsel %vm3979, %v7878, %v7879
      %v7881 = vrot.slane %v7879, 4
      %v7882 = vrot.slane %v7719, 5
      %v7883 = vsel %vm3979, %v7881, %v7882
      %v7884 = vrot.slane %v7720, 5
      %v7885 = vrot.slane %v7884, 4
      %v7886 = vrot.slane %v7721, 5
      %v7887 = vsel %vm3979, %v7885, %v7886
      %v7888 = vrot.slane %v7886, 4
      %v7889 = vrot.slane %v7722, 5
      %v7890 = vsel %vm3979, %v7888, %v7889
      %v7891 = vrot.slane %v7723, 5
      %v7892 = vrot.slane %v7891, 4
      %v7893 = vrot.slane %v7724, 5
      %v7894 = vsel %vm3979, %v7892, %v7893
      %v7895 = vrot.slane %v7893, 4
      %v7896 = vrot.slane %v7725, 5
      %v7897 = vsel %vm3979, %v7895, %v7896
      %v7898 = vrot.slane %v7726, 5
      %v7899 = vrot.slane %v7898, 4
      %v7900 = vrot.slane %v7727, 5
      %v7901 = vsel %vm3979, %v7899, %v7900
      %v7902 = vrot.slane %v7900, 4
      %v7903 = vrot.slane %v7728, 5
      %v7904 = vsel %vm3979, %v7902, %v7903
      %v7905 = vrot.slane %v7729, 5
      %v7906 = vrot.slane %v7905, 4
      %v7907 = vrot.slane %v7730, 5
      %v7908 = vsel %vm3979, %v7906, %v7907
      %v7909 = vrot.slane %v7907, 4
      %v7910 = vrot.slane %v7731, 5
      %v7911 = vsel %vm3979, %v7909, %v7910
      %v7912 = vrot.slane %v7732, 5
      %v7913 = vrot.slane %v7912, 4
      %v7914 = vrot.slane %v7733, 5
      %v7915 = vsel %vm3979, %v7913, %v7914
      %v7916 = vrot.slane %v7914, 4
      %v7917 = vrot.slane %v7734, 5
      %v7918 = vsel %vm3979, %v7916, %v7917
      %v7919 = vrot.slane %v7735, 5
      %v7920 = vrot.slane %v7919, 4
      %v7921 = vrot.slane %v7736, 5
      %v7922 = vsel %vm3979, %v7920, %v7921
      %v7923 = vrot.slane %v7921, 4
      %v7924 = vrot.slane %v7737, 5
      %v7925 = vsel %vm3979, %v7923, %v7924
      %v7926 = vrot.slane %v7738, 5
      %v7927 = vrot.slane %v7926, 4
      %v7928 = vrot.slane %v7739, 5
      %v7929 = vsel %vm3979, %v7927, %v7928
      %v7930 = vrot.slane %v7928, 4
      %v7931 = vrot.slane %v7740, 5
      %v7932 = vsel %vm3979, %v7930, %v7931
      %v7933 = vrot.slane %v7741, 5
      %v7934 = vrot.slane %v7933, 4
      %v7935 = vrot.slane %v7742, 5
      %v7936 = vsel %vm3979, %v7934, %v7935
      %v7937 = vrot.slane %v7935, 4
      %v7938 = vrot.slane %v7743, 5
      %v7939 = vsel %vm3979, %v7937, %v7938
      %v7940 = vrot.slane %v7744, 5
      %v7941 = vrot.slane %v7940, 4
      %v7942 = vrot.slane %v7745, 5
      %v7943 = vsel %vm3979, %v7941, %v7942
      %v7944 = vrot.slane %v7942, 4
      %v7945 = vrot.slane %v7746, 5
      %v7946 = vsel %vm3979, %v7944, %v7945
      %v7947 = vrot.slane %v7747, 5
      %v7948 = vrot.slane %v7947, 4
      %v7949 = vrot.slane %v7748, 5
      %v7950 = vsel %vm3979, %v7948, %v7949
      %v7951 = vrot.slane %v7949, 4
      %v7952 = vrot.slane %v7749, 5
      %v7953 = vsel %vm3979, %v7951, %v7952
      %v7954 = vrot.slane %v7750, 5
      %v7955 = vrot.slane %v7954, 4
      %v7956 = vrot.slane %v7751, 5
      %v7957 = vsel %vm3979, %v7955, %v7956
      %v7958 = vrot.slane %v7956, 4
      %v7959 = vrot.slane %v7752, 5
      %v7960 = vsel %vm3979, %v7958, %v7959
      %v7961 = vrot.slane %v7753, 5
      %v7962 = vrot.slane %v7961, 4
      %v7963 = vrot.slane %v7754, 5
      %v7964 = vsel %vm3979, %v7962, %v7963
      %v7965 = vrot.slane %v7963, 4
      %v7966 = vrot.slane %v7755, 5
      %v7967 = vsel %vm3979, %v7965, %v7966
      %v7968 = vrot.slane %v7756, 5
      %v7969 = vrot.slane %v7968, 4
      %v7970 = vrot.slane %v7757, 5
      %v7971 = vsel %vm3979, %v7969, %v7970
      %v7972 = vrot.slane %v7970, 4
      %v7973 = vrot.slane %v7758, 5
      %v7974 = vsel %vm3979, %v7972, %v7973
      %v7975 = vrot.slane %v7759, 5
      %v7976 = vrot.slane %v7975, 4
      %v7977 = vrot.slane %v7760, 5
      %v7978 = vsel %vm3979, %v7976, %v7977
      %v7979 = vrot.slane %v7977, 4
      %v7980 = vrot.slane %v7761, 5
      %v7981 = vsel %vm3979, %v7979, %v7980
      %v7982 = vrot.slane %v7762, 5
      %v7983 = vrot.slane %v7982, 4
      %v7984 = vrot.slane %v7763, 5
      %v7985 = vsel %vm3979, %v7983, %v7984
      %v7986 = vrot.slane %v7984, 4
      %v7987 = vrot.slane %v7764, 5
      %v7988 = vsel %vm3979, %v7986, %v7987
      %v7989 = vrot.slane %v7765, 5
      %v7990 = vrot.slane %v7989, 4
      %v7991 = vrot.slane %v7766, 5
      %v7992 = vsel %vm3979, %v7990, %v7991
      %v7993 = vrot.slane %v7991, 4
      %v7994 = vrot.slane %v7767, 5
      %v7995 = vsel %vm3979, %v7993, %v7994
      %v7996 = vrot.slane %v7768, 5
      %v7997 = vrot.slane %v7996, 4
      %v7998 = vrot.slane %v7769, 5
      %v7999 = vsel %vm3979, %v7997, %v7998
      %v8000 = vrot.slane %v7998, 4
      %v8001 = vrot.slane %v7770, 5
      %v8002 = vsel %vm3979, %v8000, %v8001
      %v8003 = vrot.slane %v7771, 5
      %v8004 = vrot.slane %v8003, 4
      %v8005 = vrot.slane %v7772, 5
      %v8006 = vsel %vm3979, %v8004, %v8005
      %v8007 = vrot.slane %v8005, 4
      %v8008 = vrot.slane %v7773, 5
      %v8009 = vsel %vm3979, %v8007, %v8008
      %v8010 = vrot.slane %v7774, 5
      %v8011 = vrot.slane %v8010, 4
      %v8012 = vrot.slane %v7775, 5
      %v8013 = vsel %vm3979, %v8011, %v8012
      %v8014 = vrot.slane %v8012, 4
      %v8015 = vrot.slane %v7776, 5
      %v8016 = vsel %vm3979, %v8014, %v8015
      %v8017 = vrot.slane %v7777, 5
      %v8018 = vrot.slane %v8017, 4
      %v8019 = vrot.slane %v7778, 5
      %v8020 = vsel %vm3979, %v8018, %v8019
      %v8021 = vrot.slane %v8019, 4
      %v8022 = vrot.slane %v7779, 5
      %v8023 = vsel %vm3979, %v8021, %v8022
      %v8024 = vrot.slane %v7780, 5
      %v8025 = vrot.slane %v8024, 4
      %v8026 = vrot.slane %v7781, 5
      %v8027 = vsel %vm3979, %v8025, %v8026
      %v8028 = vrot.slane %v8026, 4
      %v8029 = vrot.slane %v7782, 5
      %v8030 = vsel %vm3979, %v8028, %v8029
      %v8031 = vrot.slane %v7783, 5
      %v8032 = vrot.slane %v8031, 4
      %v8033 = vrot.slane %v7784, 5
      %v8034 = vsel %vm3979, %v8032, %v8033
      %v8035 = vrot.slane %v8033, 4
      %v8036 = vrot.slane %v7785, 5
      %v8037 = vsel %vm3979, %v8035, %v8036
      %v8038 = vrot.slane %v7786, 5
      %v8039 = vrot.slane %v8038, 4
      %v8040 = vrot.slane %v7787, 5
      %v8041 = vsel %vm3979, %v8039, %v8040
      %v8042 = vrot.slane %v8040, 4
      %v8043 = vrot.slane %v7788, 5
      %v8044 = vsel %vm3979, %v8042, %v8043
      %v8045 = vrot.slane %v7789, 5
      %v8046 = vrot.slane %v8045, 4
      %v8047 = vrot.slane %v7790, 5
      %v8048 = vsel %vm3979, %v8046, %v8047
      %v8049 = vrot.slane %v8047, 4
      %v8050 = vrot.slane %v7791, 5
      %v8051 = vsel %vm3979, %v8049, %v8050
      %8052 = vrot.lane.b32.xlu0 %v7873, 8
      %v8053 = vpop.permute.xlu0 %8052
      %8054 = vrot.lane.b32.xlu0 %v7876, 8
      %v8055 = vpop.permute.xlu0 %8054
      %8056 = vrot.lane.b32.xlu0 %v7880, 8
      %v8057 = vpop.permute.xlu0 %8056
      %8058 = vrot.lane.b32.xlu0 %v7883, 8
      %v8059 = vpop.permute.xlu0 %8058
      %8060 = vrot.lane.b32.xlu0 %v7887, 8
      %v8061 = vpop.permute.xlu0 %8060
      %8062 = vrot.lane.b32.xlu0 %v7890, 8
      %v8063 = vpop.permute.xlu0 %8062
      %8064 = vrot.lane.b32.xlu0 %v7894, 8
      %v8065 = vpop.permute.xlu0 %8064
      %8066 = vrot.lane.b32.xlu0 %v7897, 8
      %v8067 = vpop.permute.xlu0 %8066
      %8068 = vrot.lane.b32.xlu0 %v7901, 8
      %v8069 = vpop.permute.xlu0 %8068
      %8070 = vrot.lane.b32.xlu0 %v7904, 8
      %v8071 = vpop.permute.xlu0 %8070
      %8072 = vrot.lane.b32.xlu0 %v7908, 8
      %v8073 = vpop.permute.xlu0 %8072
      %8074 = vrot.lane.b32.xlu0 %v7911, 8
      %v8075 = vpop.permute.xlu0 %8074
      %8076 = vrot.lane.b32.xlu0 %v7915, 8
      %v8077 = vpop.permute.xlu0 %8076
      %8078 = vrot.lane.b32.xlu0 %v7918, 8
      %v8079 = vpop.permute.xlu0 %8078
      %8080 = vrot.lane.b32.xlu0 %v7922, 8
      %v8081 = vpop.permute.xlu0 %8080
      %8082 = vrot.lane.b32.xlu0 %v7925, 8
      %v8083 = vpop.permute.xlu0 %8082
      %8084 = vrot.lane.b32.xlu0 %v7929, 8
      %v8085 = vpop.permute.xlu0 %8084
      %8086 = vrot.lane.b32.xlu0 %v7932, 8
      %v8087 = vpop.permute.xlu0 %8086
      %8088 = vrot.lane.b32.xlu0 %v7936, 8
      %v8089 = vpop.permute.xlu0 %8088
      %8090 = vrot.lane.b32.xlu0 %v7939, 8
      %v8091 = vpop.permute.xlu0 %8090
      %8092 = vrot.lane.b32.xlu0 %v7943, 8
      %v8093 = vpop.permute.xlu0 %8092
      %8094 = vrot.lane.b32.xlu0 %v7946, 8
      %v8095 = vpop.permute.xlu0 %8094
      %8096 = vrot.lane.b32.xlu0 %v7950, 8
      %v8097 = vpop.permute.xlu0 %8096
      %8098 = vrot.lane.b32.xlu0 %v7953, 8
      %v8099 = vpop.permute.xlu0 %8098
      %8100 = vrot.lane.b32.xlu0 %v7957, 8
      %v8101 = vpop.permute.xlu0 %8100
      %8102 = vrot.lane.b32.xlu0 %v7960, 8
      %v8103 = vpop.permute.xlu0 %8102
      %8104 = vrot.lane.b32.xlu0 %v7964, 8
      %v8105 = vpop.permute.xlu0 %8104
      %8106 = vrot.lane.b32.xlu0 %v7967, 8
      %v8107 = vpop.permute.xlu0 %8106
      %8108 = vrot.lane.b32.xlu0 %v7971, 8
      %v8109 = vpop.permute.xlu0 %8108
      %8110 = vrot.lane.b32.xlu0 %v7974, 8
      %v8111 = vpop.permute.xlu0 %8110
      %8112 = vrot.lane.b32.xlu0 %v7978, 8
      %v8113 = vpop.permute.xlu0 %8112
      %8114 = vrot.lane.b32.xlu0 %v7981, 8
      %v8115 = vpop.permute.xlu0 %8114
      %8116 = vrot.lane.b32.xlu0 %v7985, 8
      %v8117 = vpop.permute.xlu0 %8116
      %8118 = vrot.lane.b32.xlu0 %v7988, 8
      %v8119 = vpop.permute.xlu0 %8118
      %8120 = vrot.lane.b32.xlu0 %v7992, 8
      %v8121 = vpop.permute.xlu0 %8120
      %8122 = vrot.lane.b32.xlu0 %v7995, 8
      %v8123 = vpop.permute.xlu0 %8122
      %8124 = vrot.lane.b32.xlu0 %v7999, 8
      %v8125 = vpop.permute.xlu0 %8124
      %8126 = vrot.lane.b32.xlu0 %v8002, 8
      %v8127 = vpop.permute.xlu0 %8126
      %8128 = vrot.lane.b32.xlu0 %v8006, 8
      %v8129 = vpop.permute.xlu0 %8128
      %8130 = vrot.lane.b32.xlu0 %v8009, 8
      %v8131 = vpop.permute.xlu0 %8130
      %8132 = vrot.lane.b32.xlu0 %v8013, 8
      %v8133 = vpop.permute.xlu0 %8132
      %8134 = vrot.lane.b32.xlu0 %v8016, 8
      %v8135 = vpop.permute.xlu0 %8134
      %8136 = vrot.lane.b32.xlu0 %v8020, 8
      %v8137 = vpop.permute.xlu0 %8136
      %8138 = vrot.lane.b32.xlu0 %v8023, 8
      %v8139 = vpop.permute.xlu0 %8138
      %8140 = vrot.lane.b32.xlu0 %v8027, 8
      %v8141 = vpop.permute.xlu0 %8140
      %8142 = vrot.lane.b32.xlu0 %v8030, 8
      %v8143 = vpop.permute.xlu0 %8142
      %8144 = vrot.lane.b32.xlu0 %v8034, 8
      %v8145 = vpop.permute.xlu0 %8144
      %8146 = vrot.lane.b32.xlu0 %v8037, 8
      %v8147 = vpop.permute.xlu0 %8146
      %8148 = vrot.lane.b32.xlu0 %v8041, 8
      %v8149 = vpop.permute.xlu0 %8148
      %8150 = vrot.lane.b32.xlu0 %v8044, 8
      %v8151 = vpop.permute.xlu0 %8150
      %8152 = vrot.lane.b32.xlu0 %v8048, 8
      %v8153 = vpop.permute.xlu0 %8152
      %8154 = vrot.lane.b32.xlu0 %v8051, 8
      %v8155 = vpop.permute.xlu0 %8154
      %8208 = vst.msk [vmem:[#allocation3] sm:$0xf] %vm2846, %v8053
      %8209 = vst.msk [vmem:[#allocation3 + $0x4] sm:$0xf] %vm2846, %v8055
      %8210 = vst.msk [vmem:[#allocation3 + $0x8] sm:$0xf] %vm2846, %v8057
      %8211 = vst.msk [vmem:[#allocation3 + $0xc] sm:$0xf] %vm2846, %v8059
      %8212 = vst.msk [vmem:[#allocation3 + $0x10] sm:$0xf] %vm2846, %v8061
      %8213 = vst.msk [vmem:[#allocation3 + $0x14] sm:$0xf] %vm2846, %v8063
      %8214 = vst.msk [vmem:[#allocation3 + $0x18] sm:$0xf] %vm2846, %v8065
      %8215 = vst.msk [vmem:[#allocation3 + $0x1c] sm:$0xf] %vm2846, %v8067
      %8216 = vst.msk [vmem:[#allocation3 + $0x20] sm:$0xf] %vm2846, %v8069
      %8217 = vst.msk [vmem:[#allocation3 + $0x24] sm:$0xf] %vm2846, %v8071
      %8218 = vst.msk [vmem:[#allocation3 + $0x28] sm:$0xf] %vm2846, %v8073
      %8219 = vst.msk [vmem:[#allocation3 + $0x2c] sm:$0xf] %vm2846, %v8075
      %8220 = vst.msk [vmem:[#allocation3 + $0x30] sm:$0xf] %vm2846, %v8077
      %8221 = vst.msk [vmem:[#allocation3 + $0x34] sm:$0xf] %vm2846, %v8079
      %8222 = vst.msk [vmem:[#allocation3 + $0x38] sm:$0xf] %vm2846, %v8081
      %8223 = vst.msk [vmem:[#allocation3 + $0x3c] sm:$0xf] %vm2846, %v8083
      %8224 = vst.msk [vmem:[#allocation3 + $0x40] sm:$0xf] %vm2846, %v8085
      %8225 = vst.msk [vmem:[#allocation3 + $0x44] sm:$0xf] %vm2846, %v8087
      %8226 = vst.msk [vmem:[#allocation3 + $0x48] sm:$0xf] %vm2846, %v8089
      %8227 = vst.msk [vmem:[#allocation3 + $0x4c] sm:$0xf] %vm2846, %v8091
      %8228 = vst.msk [vmem:[#allocation3 + $0x50] sm:$0xf] %vm2846, %v8093
      %8229 = vst.msk [vmem:[#allocation3 + $0x54] sm:$0xf] %vm2846, %v8095
      %8230 = vst.msk [vmem:[#allocation3 + $0x58] sm:$0xf] %vm2846, %v8097
      %8231 = vst.msk [vmem:[#allocation3 + $0x5c] sm:$0xf] %vm2846, %v8099
      %8232 = vst.msk [vmem:[#allocation3 + $0x60] sm:$0xf] %vm2846, %v8101
      %8233 = vst.msk [vmem:[#allocation3 + $0x64] sm:$0xf] %vm2846, %v8103
      %8234 = vst.msk [vmem:[#allocation3 + $0x68] sm:$0xf] %vm2846, %v8105
      %8235 = vst.msk [vmem:[#allocation3 + $0x6c] sm:$0xf] %vm2846, %v8107
      %8236 = vst.msk [vmem:[#allocation3 + $0x70] sm:$0xf] %vm2846, %v8109
      %8237 = vst.msk [vmem:[#allocation3 + $0x74] sm:$0xf] %vm2846, %v8111
      %8238 = vst.msk [vmem:[#allocation3 + $0x78] sm:$0xf] %vm2846, %v8113
      %8239 = vst.msk [vmem:[#allocation3 + $0x7c] sm:$0xf] %vm2846, %v8115
      %8240 = vst.msk [vmem:[#allocation3 + $0x80] sm:$0xf] %vm2846, %v8117
      %8241 = vst.msk [vmem:[#allocation3 + $0x84] sm:$0xf] %vm2846, %v8119
      %8242 = vst.msk [vmem:[#allocation3 + $0x88] sm:$0xf] %vm2846, %v8121
      %8243 = vst.msk [vmem:[#allocation3 + $0x8c] sm:$0xf] %vm2846, %v8123
      %8244 = vst.msk [vmem:[#allocation3 + $0x90] sm:$0xf] %vm2846, %v8125
      %8245 = vst.msk [vmem:[#allocation3 + $0x94] sm:$0xf] %vm2846, %v8127
      %8246 = vst.msk [vmem:[#allocation3 + $0x98] sm:$0xf] %vm2846, %v8129
      %8247 = vst.msk [vmem:[#allocation3 + $0x9c] sm:$0xf] %vm2846, %v8131
      %8248 = vst.msk [vmem:[#allocation3 + $0xa0] sm:$0xf] %vm2846, %v8133
      %8249 = vst.msk [vmem:[#allocation3 + $0xa4] sm:$0xf] %vm2846, %v8135
      %8250 = vst.msk [vmem:[#allocation3 + $0xa8] sm:$0xf] %vm2846, %v8137
      %8251 = vst.msk [vmem:[#allocation3 + $0xac] sm:$0xf] %vm2846, %v8139
      %8252 = vst.msk [vmem:[#allocation3 + $0xb0] sm:$0xf] %vm2846, %v8141
      %8253 = vst.msk [vmem:[#allocation3 + $0xb4] sm:$0xf] %vm2846, %v8143
      %8254 = vst.msk [vmem:[#allocation3 + $0xb8] sm:$0xf] %vm2846, %v8145
      %8255 = vst.msk [vmem:[#allocation3 + $0xbc] sm:$0xf] %vm2846, %v8147
      %8256 = vst.msk [vmem:[#allocation3 + $0xc0] sm:$0xf] %vm2846, %v8149
      %8257 = vst.msk [vmem:[#allocation3 + $0xc4] sm:$0xf] %vm2846, %v8151
      %8258 = vst.msk [vmem:[#allocation3 + $0xc8] sm:$0xf] %vm2846, %v8153
      %8259 = vst.msk [vmem:[#allocation3 + $0xcc] sm:$0xf] %vm2846, %v8155
      %v8260 = vld [vmem:[#allocation3] sm:$0xf]
      %v8261 = vld [vmem:[#allocation3 + $0x4] sm:$0xf]
      %v8262 = vld [vmem:[#allocation3 + $0x8] sm:$0xf]
      %v8263 = vld [vmem:[#allocation3 + $0xc] sm:$0xf]
      %v8264 = vld [vmem:[#allocation3 + $0x10] sm:$0xf]
      %v8265 = vld [vmem:[#allocation3 + $0x14] sm:$0xf]
      %v8266 = vld [vmem:[#allocation3 + $0x18] sm:$0xf]
      %v8267 = vld [vmem:[#allocation3 + $0x1c] sm:$0xf]
      %v8268 = vld [vmem:[#allocation3 + $0x20] sm:$0xf]
      %v8269 = vld [vmem:[#allocation3 + $0x24] sm:$0xf]
      %v8270 = vld [vmem:[#allocation3 + $0x28] sm:$0xf]
      %v8271 = vld [vmem:[#allocation3 + $0x2c] sm:$0xf]
      %v8272 = vld [vmem:[#allocation3 + $0x30] sm:$0xf]
      %v8273 = vld [vmem:[#allocation3 + $0x34] sm:$0xf]
      %v8274 = vld [vmem:[#allocation3 + $0x38] sm:$0xf]
      %v8275 = vld [vmem:[#allocation3 + $0x3c] sm:$0xf]
      %v8276 = vld [vmem:[#allocation3 + $0x40] sm:$0xf]
      %v8277 = vld [vmem:[#allocation3 + $0x44] sm:$0xf]
      %v8278 = vld [vmem:[#allocation3 + $0x48] sm:$0xf]
      %v8279 = vld [vmem:[#allocation3 + $0x4c] sm:$0xf]
      %v8280 = vld [vmem:[#allocation3 + $0x50] sm:$0xf]
      %v8281 = vld [vmem:[#allocation3 + $0x54] sm:$0xf]
      %v8282 = vld [vmem:[#allocation3 + $0x58] sm:$0xf]
      %v8283 = vld [vmem:[#allocation3 + $0x5c] sm:$0xf]
      %v8284 = vld [vmem:[#allocation3 + $0x60] sm:$0xf]
      %v8285 = vld [vmem:[#allocation3 + $0x64] sm:$0xf]
      %v8286 = vld [vmem:[#allocation3 + $0x68] sm:$0xf]
      %v8287 = vld [vmem:[#allocation3 + $0x6c] sm:$0xf]
      %v8288 = vld [vmem:[#allocation3 + $0x70] sm:$0xf]
      %v8289 = vld [vmem:[#allocation3 + $0x74] sm:$0xf]
      %v8290 = vld [vmem:[#allocation3 + $0x78] sm:$0xf]
      %v8291 = vld [vmem:[#allocation3 + $0x7c] sm:$0xf]
      %s8292 = scalar_lea.vmem %s1, 48
      %v8293 = vld [vmem:[%s8292] sm:$0xf]
      %v8294 = vld [vmem:[%s8292 + $0x4] sm:$0x3]
      %v8295 = vld [vmem:[#allocation3 + $0x80] sm:$0xf]
      %v8296 = vld [vmem:[#allocation3 + $0x84] sm:$0xf]
      %v8297 = vld [vmem:[#allocation3 + $0x88] sm:$0xf]
      %v8298 = vld [vmem:[#allocation3 + $0x8c] sm:$0xf]
      %v8299 = vld [vmem:[#allocation3 + $0x90] sm:$0xf]
      %v8300 = vld [vmem:[#allocation3 + $0x94] sm:$0xf]
      %v8301 = vld [vmem:[#allocation3 + $0x98] sm:$0xf]
      %v8302 = vld [vmem:[#allocation3 + $0x9c] sm:$0xf]
      %v8303 = vld [vmem:[#allocation3 + $0xa0] sm:$0xf]
      %v8304 = vld [vmem:[#allocation3 + $0xa4] sm:$0xf]
      %s8305 = scalar_lea.vmem %s1, 56
      %v8306 = vld [vmem:[%s8305] sm:$0xf]
      %v8307 = vld [vmem:[%s8305 + $0x4] sm:$0x3]
      %v8340 = vunpack.c.l.b16 %v8270
      %v8341 = vunpack.c.l.b16 %v8271
      %v8342 = vunpack.c.l.b16 %v8272
      %v8343 = vunpack.c.l.b16 %v8273
      %v8344 = vunpack.c.l.b16 %v8274
      %v8345 = vunpack.c.l.b16 %v8275
      %v8346 = vunpack.c.l.b16 %v8276
      %v8347 = vunpack.c.l.b16 %v8277
      %v8348 = vunpack.c.l.b16 %v8278
      %v8349 = vunpack.c.l.b16 %v8279
      %v8350 = vunpack.c.l.b16 %v8280
      %v8351 = vunpack.c.l.b16 %v8281
      %v8352 = vunpack.c.l.b16 %v8282
      %v8353 = vunpack.c.l.b16 %v8283
      %v8354 = vunpack.c.l.b16 %v8284
      %v8355 = vunpack.c.l.b16 %v8285
      %v8356 = vunpack.c.l.b16 %v8286
      %v8357 = vunpack.c.l.b16 %v8287
      %v8358 = vunpack.c.l.b16 %v8288
      %v8359 = vunpack.c.l.b16 %v8289
      %v8360 = vunpack.c.l.b16 %v8290
      %v8361 = vunpack.c.l.b16 %v8291
      %v8362 = vunpack.c.l.b16 %v8295
      %v8363 = vunpack.c.l.b16 %v8296
      %v8364 = vunpack.c.l.b16 %v8297
      %v8365 = vunpack.c.l.b16 %v8298
      %v8366 = vunpack.c.l.b16 %v8299
      %v8367 = vunpack.c.l.b16 %v8300
      %v8368 = vunpack.c.l.b16 %v8301
      %v8369 = vunpack.c.l.b16 %v8302
      %v8370 = vunpack.c.l.b16 %v8303
      %v8371 = vunpack.c.l.b16 %v8304
      %v8372 = vpack.c.b16 %v8341, %v8340
      %v8373 = vpack.c.b16 %v8343, %v8342
      %v8374 = vpack.c.b16 %v8345, %v8344
      %v8375 = vpack.c.b16 %v8347, %v8346
      %v8376 = vpack.c.b16 %v8349, %v8348
      %v8377 = vpack.c.b16 %v8351, %v8350
      %v8378 = vpack.c.b16 %v8353, %v8352
      %v8379 = vpack.c.b16 %v8355, %v8354
      %v8380 = vpack.c.b16 %v8357, %v8356
      %v8381 = vpack.c.b16 %v8359, %v8358
      %v8382 = vpack.c.b16 %v8361, %v8360
      %v8383 = vpack.c.b16 %v8363, %v8362
      %v8384 = vpack.c.b16 %v8365, %v8364
      %v8385 = vpack.c.b16 %v8367, %v8366
      %v8386 = vpack.c.b16 %v8369, %v8368
      %v8387 = vpack.c.b16 %v8371, %v8370
      %v8390 = vunpack.c.l.b16 %v8306
      %v8391 = vunpack.c.l.b16 %v8307
      %v8392 = vpack.c.b16 %v8391, %v8390
      %v8394 = vsel %vm3023, %v8372, 0
      %v8397 = vsel %vm3023, %v8373, 0
      %v8400 = vsel %vm3023, %v8374, 0
      %v8403 = vsel %vm3023, %v8375, 0
      %v8406 = vsel %vm3023, %v8376, 0
      %v8409 = vsel %vm3023, %v8377, 0
      %v8412 = vsel %vm3023, %v8378, 0
      %v8415 = vsel %vm3023, %v8379, 0
      %v8418 = vsel %vm3023, %v8380, 0
      %v8421 = vsel %vm3023, %v8381, 0
      %v8424 = vsel %vm3023, %v8382, 0
      %v8427 = vsel %vm3023, %v8383, 0
      %v8430 = vsel %vm3023, %v8384, 0
      %v8433 = vsel %vm3023, %v8385, 0
      %v8436 = vsel %vm3023, %v8386, 0
      %v8439 = vsel %vm3023, %v8387, 0
      %v8442 = vsel %vm3072, %v8392, 0
      %8444 = vmatpush.bf16.msra.mxu0 0
      %8445 = vmatpush.bf16.msra.mxu0 0
      %8446 = vmatpush.bf16.msra.mxu0 0
      %8447 = vmatpush.bf16.msra.mxu0 0
      %8448 = vmatpush.bf16.msra.mxu0 0
      %8449 = vmatpush.bf16.msra.mxu0 0
      %8450 = vmatpush.bf16.msra.mxu0 0
      %8451 = vmatpush.bf16.msra.mxu0 %v8442
      %8452 = vmatmul.bf16.gmra.mxu0 %v8394
      %v8453 = vpop.f32.mrf.mxu0
      %v8454 = vadd.f32 0.0, %v8453
      %v8455 = vpop.f32.mrf.mxu0
      %v8456 = vadd.f32 0.0, %v8455
      %8457 = vmatmul.bf16.gmra.mxu0 %v8397
      %v8458 = vpop.f32.mrf.mxu0
      %v8459 = vadd.f32 0.0, %v8458
      %v8460 = vpop.f32.mrf.mxu0
      %v8461 = vadd.f32 0.0, %v8460
      %8462 = vmatmul.bf16.gmra.mxu0 %v8400
      %v8463 = vpop.f32.mrf.mxu0
      %v8464 = vadd.f32 0.0, %v8463
      %v8465 = vpop.f32.mrf.mxu0
      %v8466 = vadd.f32 0.0, %v8465
      %8467 = vmatmul.bf16.gmra.mxu0 %v8403
      %v8468 = vpop.f32.mrf.mxu0
      %v8469 = vadd.f32 0.0, %v8468
      %v8470 = vpop.f32.mrf.mxu0
      %v8471 = vadd.f32 0.0, %v8470
      %8472 = vmatmul.bf16.gmra.mxu0 %v8406
      %v8473 = vpop.f32.mrf.mxu0
      %v8474 = vadd.f32 0.0, %v8473
      %v8475 = vpop.f32.mrf.mxu0
      %v8476 = vadd.f32 0.0, %v8475
      %8477 = vmatmul.bf16.gmra.mxu0 %v8409
      %v8478 = vpop.f32.mrf.mxu0
      %v8479 = vadd.f32 0.0, %v8478
      %v8480 = vpop.f32.mrf.mxu0
      %v8481 = vadd.f32 0.0, %v8480
      %8482 = vmatmul.bf16.gmra.mxu0 %v8412
      %v8483 = vpop.f32.mrf.mxu0
      %v8484 = vadd.f32 0.0, %v8483
      %v8485 = vpop.f32.mrf.mxu0
      %v8486 = vadd.f32 0.0, %v8485
      %8487 = vmatmul.bf16.gmra.mxu0 %v8415
      %v8488 = vpop.f32.mrf.mxu0
      %v8489 = vadd.f32 0.0, %v8488
      %v8490 = vpop.f32.mrf.mxu0
      %v8491 = vadd.f32 0.0, %v8490
      %8492 = vmatmul.bf16.gmra.mxu0 %v8418
      %v8493 = vpop.f32.mrf.mxu0
      %v8494 = vadd.f32 0.0, %v8493
      %v8495 = vpop.f32.mrf.mxu0
      %v8496 = vadd.f32 0.0, %v8495
      %8497 = vmatmul.bf16.gmra.mxu0 %v8421
      %v8498 = vpop.f32.mrf.mxu0
      %v8499 = vadd.f32 0.0, %v8498
      %v8500 = vpop.f32.mrf.mxu0
      %v8501 = vadd.f32 0.0, %v8500
      %8502 = vmatmul.bf16.gmra.mxu0 %v8424
      %v8503 = vpop.f32.mrf.mxu0
      %v8504 = vadd.f32 0.0, %v8503
      %v8505 = vpop.f32.mrf.mxu0
      %v8506 = vadd.f32 0.0, %v8505
      %8507 = vmatmul.bf16.gmra.mxu0 %v8427
      %v8508 = vpop.f32.mrf.mxu0
      %v8509 = vadd.f32 0.0, %v8508
      %v8510 = vpop.f32.mrf.mxu0
      %v8511 = vadd.f32 0.0, %v8510
      %8512 = vmatmul.bf16.gmra.mxu0 %v8430
      %v8513 = vpop.f32.mrf.mxu0
      %v8514 = vadd.f32 0.0, %v8513
      %v8515 = vpop.f32.mrf.mxu0
      %v8516 = vadd.f32 0.0, %v8515
      %8517 = vmatmul.bf16.gmra.mxu0 %v8433
      %v8518 = vpop.f32.mrf.mxu0
      %v8519 = vadd.f32 0.0, %v8518
      %v8520 = vpop.f32.mrf.mxu0
      %v8521 = vadd.f32 0.0, %v8520
      %8522 = vmatmul.bf16.gmra.mxu0 %v8436
      %v8523 = vpop.f32.mrf.mxu0
      %v8524 = vadd.f32 0.0, %v8523
      %v8525 = vpop.f32.mrf.mxu0
      %v8526 = vadd.f32 0.0, %v8525
      %8527 = vmatmul.bf16.gmra.mxu0 %v8439
      %v8528 = vpop.f32.mrf.mxu0
      %v8529 = vadd.f32 0.0, %v8528
      %v8530 = vpop.f32.mrf.mxu0
      %v8531 = vadd.f32 0.0, %v8530
      %8532 = vdwg.mxu0
      %v8543 = vunpack.c.l.b16 %v8260
      %v8544 = vunpack.c.l.b16 %v8261
      %v8545 = vunpack.c.l.b16 %v8262
      %v8546 = vunpack.c.l.b16 %v8263
      %v8547 = vunpack.c.l.b16 %v8264
      %v8548 = vunpack.c.l.b16 %v8265
      %v8549 = vunpack.c.l.b16 %v8266
      %v8550 = vunpack.c.l.b16 %v8267
      %v8551 = vunpack.c.l.b16 %v8268
      %v8552 = vunpack.c.l.b16 %v8269
      %v8553 = vpack.c.b16 %v8544, %v8543
      %v8554 = vpack.c.b16 %v8546, %v8545
      %v8555 = vpack.c.b16 %v8548, %v8547
      %v8556 = vpack.c.b16 %v8550, %v8549
      %v8557 = vpack.c.b16 %v8552, %v8551
      %v8560 = vunpack.c.l.b16 %v8293
      %v8561 = vunpack.c.l.b16 %v8294
      %v8562 = vpack.c.b16 %v8561, %v8560
      %v8564 = vsel %vm3023, %v8553, 0
      %v8567 = vsel %vm3023, %v8554, 0
      %v8570 = vsel %vm3023, %v8555, 0
      %v8573 = vsel %vm3023, %v8556, 0
      %v8576 = vsel %vm3023, %v8557, 0
      %v8579 = vsel %vm3072, %v8562, 0
      %8581 = vmatpush.bf16.msra.mxu0 0
      %8582 = vmatpush.bf16.msra.mxu0 0
      %8583 = vmatpush.bf16.msra.mxu0 0
      %8584 = vmatpush.bf16.msra.mxu0 0
      %8585 = vmatpush.bf16.msra.mxu0 0
      %8586 = vmatpush.bf16.msra.mxu0 0
      %8587 = vmatpush.bf16.msra.mxu0 0
      %8588 = vmatpush.bf16.msra.mxu0 %v8579
      %8589 = vmatmul.bf16.gmra.mxu0 %v8564
      %v8590 = vpop.f32.mrf.mxu0
      %v8591 = vadd.f32 %v8454, %v8590
      %v8592 = vpop.f32.mrf.mxu0
      %v8593 = vadd.f32 %v8456, %v8592
      %8594 = vmatmul.bf16.gmra.mxu0 %v8567
      %v8595 = vpop.f32.mrf.mxu0
      %v8596 = vadd.f32 %v8459, %v8595
      %v8597 = vpop.f32.mrf.mxu0
      %v8598 = vadd.f32 %v8461, %v8597
      %8599 = vmatmul.bf16.gmra.mxu0 %v8570
      %v8600 = vpop.f32.mrf.mxu0
      %v8601 = vadd.f32 %v8464, %v8600
      %v8602 = vpop.f32.mrf.mxu0
      %v8603 = vadd.f32 %v8466, %v8602
      %8604 = vmatmul.bf16.gmra.mxu0 %v8573
      %v8605 = vpop.f32.mrf.mxu0
      %v8606 = vadd.f32 %v8469, %v8605
      %v8607 = vpop.f32.mrf.mxu0
      %v8608 = vadd.f32 %v8471, %v8607
      %8609 = vmatmul.bf16.gmra.mxu0 %v8576
      %v8610 = vpop.f32.mrf.mxu0
      %v8611 = vadd.f32 %v8474, %v8610
      %v8612 = vpop.f32.mrf.mxu0
      %v8613 = vadd.f32 %v8476, %v8612
      %8614 = vmatmul.bf16.gmra.mxu0 %v8394
      %v8615 = vpop.f32.mrf.mxu0
      %v8616 = vadd.f32 %v8479, %v8615
      %v8617 = vpop.f32.mrf.mxu0
      %v8618 = vadd.f32 %v8481, %v8617
      %8619 = vmatmul.bf16.gmra.mxu0 %v8397
      %v8620 = vpop.f32.mrf.mxu0
      %v8621 = vadd.f32 %v8484, %v8620
      %v8622 = vpop.f32.mrf.mxu0
      %v8623 = vadd.f32 %v8486, %v8622
      %8624 = vmatmul.bf16.gmra.mxu0 %v8400
      %v8625 = vpop.f32.mrf.mxu0
      %v8626 = vadd.f32 %v8489, %v8625
      %v8627 = vpop.f32.mrf.mxu0
      %v8628 = vadd.f32 %v8491, %v8627
      %8629 = vmatmul.bf16.gmra.mxu0 %v8403
      %v8630 = vpop.f32.mrf.mxu0
      %v8631 = vadd.f32 %v8494, %v8630
      %v8632 = vpop.f32.mrf.mxu0
      %v8633 = vadd.f32 %v8496, %v8632
      %8634 = vmatmul.bf16.gmra.mxu0 %v8406
      %v8635 = vpop.f32.mrf.mxu0
      %v8636 = vadd.f32 %v8499, %v8635
      %v8637 = vpop.f32.mrf.mxu0
      %v8638 = vadd.f32 %v8501, %v8637
      %8639 = vmatmul.bf16.gmra.mxu0 %v8409
      %v8640 = vpop.f32.mrf.mxu0
      %v8641 = vadd.f32 %v8504, %v8640
      %v8642 = vpop.f32.mrf.mxu0
      %v8643 = vadd.f32 %v8506, %v8642
      %8644 = vmatmul.bf16.gmra.mxu0 %v8412
      %v8645 = vpop.f32.mrf.mxu0
      %v8646 = vadd.f32 %v8509, %v8645
      %v8647 = vpop.f32.mrf.mxu0
      %v8648 = vadd.f32 %v8511, %v8647
      %8649 = vmatmul.bf16.gmra.mxu0 %v8415
      %v8650 = vpop.f32.mrf.mxu0
      %v8651 = vadd.f32 %v8514, %v8650
      %v8652 = vpop.f32.mrf.mxu0
      %v8653 = vadd.f32 %v8516, %v8652
      %8654 = vmatmul.bf16.gmra.mxu0 %v8418
      %v8655 = vpop.f32.mrf.mxu0
      %v8656 = vadd.f32 %v8519, %v8655
      %v8657 = vpop.f32.mrf.mxu0
      %v8658 = vadd.f32 %v8521, %v8657
      %8659 = vmatmul.bf16.gmra.mxu0 %v8421
      %v8660 = vpop.f32.mrf.mxu0
      %v8661 = vadd.f32 %v8524, %v8660
      %v8662 = vpop.f32.mrf.mxu0
      %v8663 = vadd.f32 %v8526, %v8662
      %8664 = vmatmul.bf16.gmra.mxu0 %v8424
      %v8665 = vpop.f32.mrf.mxu0
      %v8666 = vadd.f32 %v8529, %v8665
      %v8667 = vpop.f32.mrf.mxu0
      %v8668 = vadd.f32 %v8531, %v8667
      %8669 = vdwg.mxu0
      %v8670 = vld [vmem:[#allocation3 + $0x50] sm:$0xf]
      %v8671 = vld [vmem:[#allocation3 + $0x54] sm:$0xf]
      %v8672 = vld [vmem:[#allocation3 + $0x58] sm:$0xf]
      %v8673 = vld [vmem:[#allocation3 + $0x5c] sm:$0xf]
      %v8674 = vld [vmem:[#allocation3 + $0x60] sm:$0xf]
      %v8675 = vld [vmem:[#allocation3 + $0x64] sm:$0xf]
      %v8676 = vld [vmem:[#allocation3 + $0x68] sm:$0xf]
      %v8677 = vld [vmem:[#allocation3 + $0x6c] sm:$0xf]
      %v8678 = vld [vmem:[#allocation3 + $0x70] sm:$0xf]
      %v8679 = vld [vmem:[#allocation3 + $0x74] sm:$0xf]
      %v8680 = vld [vmem:[#allocation3 + $0x78] sm:$0xf]
      %v8681 = vld [vmem:[#allocation3 + $0x7c] sm:$0xf]
      %v8682 = vld [vmem:[#allocation3 + $0x80] sm:$0xf]
      %v8683 = vld [vmem:[#allocation3 + $0x84] sm:$0xf]
      %v8684 = vld [vmem:[#allocation3 + $0x88] sm:$0xf]
      %v8685 = vld [vmem:[#allocation3 + $0x8c] sm:$0xf]
      %v8686 = vld [vmem:[#allocation3 + $0x90] sm:$0xf]
      %v8687 = vld [vmem:[#allocation3 + $0x94] sm:$0xf]
      %v8688 = vld [vmem:[#allocation3 + $0x98] sm:$0xf]
      %v8689 = vld [vmem:[#allocation3 + $0x9c] sm:$0xf]
      %v8690 = vld [vmem:[#allocation3 + $0xa0] sm:$0xf]
      %v8691 = vld [vmem:[#allocation3 + $0xa4] sm:$0xf]
      %v8692 = vld [vmem:[#allocation3 + $0xa8] sm:$0xf]
      %v8693 = vld [vmem:[#allocation3 + $0xac] sm:$0xf]
      %v8694 = vld [vmem:[#allocation3 + $0xb0] sm:$0xf]
      %v8695 = vld [vmem:[#allocation3 + $0xb4] sm:$0xf]
      %v8696 = vld [vmem:[#allocation3 + $0xb8] sm:$0xf]
      %v8697 = vld [vmem:[#allocation3 + $0xbc] sm:$0xf]
      %v8698 = vld [vmem:[#allocation3 + $0xc0] sm:$0xf]
      %v8699 = vld [vmem:[#allocation3 + $0xc4] sm:$0xf]
      %v8700 = vld [vmem:[#allocation3 + $0xc8] sm:$0xf]
      %v8701 = vld [vmem:[#allocation3 + $0xcc] sm:$0xf]
      %s8702 = scalar_lea.vmem %s1, 64
      %v8703 = vld [vmem:[%s8702] sm:$0xf]
      %v8704 = vld [vmem:[%s8702 + $0x4] sm:$0x3]
      %v8737 = vunpack.c.l.b16 %v8670
      %v8738 = vunpack.c.l.b16 %v8671
      %v8739 = vunpack.c.l.b16 %v8672
      %v8740 = vunpack.c.l.b16 %v8673
      %v8741 = vunpack.c.l.b16 %v8674
      %v8742 = vunpack.c.l.b16 %v8675
      %v8743 = vunpack.c.l.b16 %v8676
      %v8744 = vunpack.c.l.b16 %v8677
      %v8745 = vunpack.c.l.b16 %v8678
      %v8746 = vunpack.c.l.b16 %v8679
      %v8747 = vunpack.c.l.b16 %v8680
      %v8748 = vunpack.c.l.b16 %v8681
      %v8749 = vunpack.c.l.b16 %v8682
      %v8750 = vunpack.c.l.b16 %v8683
      %v8751 = vunpack.c.l.b16 %v8684
      %v8752 = vunpack.c.l.b16 %v8685
      %v8753 = vunpack.c.l.b16 %v8686
      %v8754 = vunpack.c.l.b16 %v8687
      %v8755 = vunpack.c.l.b16 %v8688
      %v8756 = vunpack.c.l.b16 %v8689
      %v8757 = vunpack.c.l.b16 %v8690
      %v8758 = vunpack.c.l.b16 %v8691
      %v8759 = vunpack.c.l.b16 %v8692
      %v8760 = vunpack.c.l.b16 %v8693
      %v8761 = vunpack.c.l.b16 %v8694
      %v8762 = vunpack.c.l.b16 %v8695
      %v8763 = vunpack.c.l.b16 %v8696
      %v8764 = vunpack.c.l.b16 %v8697
      %v8765 = vunpack.c.l.b16 %v8698
      %v8766 = vunpack.c.l.b16 %v8699
      %v8767 = vunpack.c.l.b16 %v8700
      %v8768 = vunpack.c.l.b16 %v8701
      %v8769 = vpack.c.b16 %v8738, %v8737
      %v8770 = vpack.c.b16 %v8740, %v8739
      %v8771 = vpack.c.b16 %v8742, %v8741
      %v8772 = vpack.c.b16 %v8744, %v8743
      %v8773 = vpack.c.b16 %v8746, %v8745
      %v8774 = vpack.c.b16 %v8748, %v8747
      %v8775 = vpack.c.b16 %v8750, %v8749
      %v8776 = vpack.c.b16 %v8752, %v8751
      %v8777 = vpack.c.b16 %v8754, %v8753
      %v8778 = vpack.c.b16 %v8756, %v8755
      %v8779 = vpack.c.b16 %v8758, %v8757
      %v8780 = vpack.c.b16 %v8760, %v8759
      %v8781 = vpack.c.b16 %v8762, %v8761
      %v8782 = vpack.c.b16 %v8764, %v8763
      %v8783 = vpack.c.b16 %v8766, %v8765
      %v8784 = vpack.c.b16 %v8768, %v8767
      %v8787 = vunpack.c.l.b16 %v8703
      %v8788 = vunpack.c.l.b16 %v8704
      %v8789 = vpack.c.b16 %v8788, %v8787
      %v8791 = vsel %vm3023, %v8769, 0
      %v8794 = vsel %vm3023, %v8770, 0
      %v8797 = vsel %vm3023, %v8771, 0
      %v8800 = vsel %vm3023, %v8772, 0
      %v8803 = vsel %vm3023, %v8773, 0
      %v8806 = vsel %vm3023, %v8774, 0
      %v8809 = vsel %vm3023, %v8775, 0
      %v8812 = vsel %vm3023, %v8776, 0
      %v8815 = vsel %vm3023, %v8777, 0
      %v8818 = vsel %vm3023, %v8778, 0
      %v8821 = vsel %vm3023, %v8779, 0
      %v8824 = vsel %vm3023, %v8780, 0
      %v8827 = vsel %vm3023, %v8781, 0
      %v8830 = vsel %vm3023, %v8782, 0
      %v8833 = vsel %vm3023, %v8783, 0
      %v8836 = vsel %vm3023, %v8784, 0
      %v8839 = vsel %vm3072, %v8789, 0
      %8841 = vmatpush.bf16.msra.mxu0 0
      %8842 = vmatpush.bf16.msra.mxu0 0
      %8843 = vmatpush.bf16.msra.mxu0 0
      %8844 = vmatpush.bf16.msra.mxu0 0
      %8845 = vmatpush.bf16.msra.mxu0 0
      %8846 = vmatpush.bf16.msra.mxu0 0
      %8847 = vmatpush.bf16.msra.mxu0 0
      %8848 = vmatpush.bf16.msra.mxu0 %v8839
      %8849 = vmatmul.bf16.gmra.mxu0 %v8791
      %v8850 = vpop.f32.mrf.mxu0
      %v8851 = vadd.f32 0.0, %v8850
      %v8852 = vpop.f32.mrf.mxu0
      %v8853 = vadd.f32 0.0, %v8852
      %8854 = vmatmul.bf16.gmra.mxu0 %v8794
      %v8855 = vpop.f32.mrf.mxu0
      %v8856 = vadd.f32 0.0, %v8855
      %v8857 = vpop.f32.mrf.mxu0
      %v8858 = vadd.f32 0.0, %v8857
      %8859 = vmatmul.bf16.gmra.mxu0 %v8797
      %v8860 = vpop.f32.mrf.mxu0
      %v8861 = vadd.f32 0.0, %v8860
      %v8862 = vpop.f32.mrf.mxu0
      %v8863 = vadd.f32 0.0, %v8862
      %8864 = vmatmul.bf16.gmra.mxu0 %v8800
      %v8865 = vpop.f32.mrf.mxu0
      %v8866 = vadd.f32 0.0, %v8865
      %v8867 = vpop.f32.mrf.mxu0
      %v8868 = vadd.f32 0.0, %v8867
      %8869 = vmatmul.bf16.gmra.mxu0 %v8803
      %v8870 = vpop.f32.mrf.mxu0
      %v8871 = vadd.f32 0.0, %v8870
      %v8872 = vpop.f32.mrf.mxu0
      %v8873 = vadd.f32 0.0, %v8872
      %8874 = vmatmul.bf16.gmra.mxu0 %v8806
      %v8875 = vpop.f32.mrf.mxu0
      %v8876 = vadd.f32 0.0, %v8875
      %v8877 = vpop.f32.mrf.mxu0
      %v8878 = vadd.f32 0.0, %v8877
      %8879 = vmatmul.bf16.gmra.mxu0 %v8809
      %v8880 = vpop.f32.mrf.mxu0
      %v8881 = vadd.f32 0.0, %v8880
      %v8882 = vpop.f32.mrf.mxu0
      %v8883 = vadd.f32 0.0, %v8882
      %8884 = vmatmul.bf16.gmra.mxu0 %v8812
      %v8885 = vpop.f32.mrf.mxu0
      %v8886 = vadd.f32 0.0, %v8885
      %v8887 = vpop.f32.mrf.mxu0
      %v8888 = vadd.f32 0.0, %v8887
      %8889 = vmatmul.bf16.gmra.mxu0 %v8815
      %v8890 = vpop.f32.mrf.mxu0
      %v8891 = vadd.f32 0.0, %v8890
      %v8892 = vpop.f32.mrf.mxu0
      %v8893 = vadd.f32 0.0, %v8892
      %8894 = vmatmul.bf16.gmra.mxu0 %v8818
      %v8895 = vpop.f32.mrf.mxu0
      %v8896 = vadd.f32 0.0, %v8895
      %v8897 = vpop.f32.mrf.mxu0
      %v8898 = vadd.f32 0.0, %v8897
      %8899 = vmatmul.bf16.gmra.mxu0 %v8821
      %v8900 = vpop.f32.mrf.mxu0
      %v8901 = vadd.f32 0.0, %v8900
      %v8902 = vpop.f32.mrf.mxu0
      %v8903 = vadd.f32 0.0, %v8902
      %8904 = vmatmul.bf16.gmra.mxu0 %v8824
      %v8905 = vpop.f32.mrf.mxu0
      %v8906 = vadd.f32 0.0, %v8905
      %v8907 = vpop.f32.mrf.mxu0
      %v8908 = vadd.f32 0.0, %v8907
      %8909 = vmatmul.bf16.gmra.mxu0 %v8827
      %v8910 = vpop.f32.mrf.mxu0
      %v8911 = vadd.f32 0.0, %v8910
      %v8912 = vpop.f32.mrf.mxu0
      %v8913 = vadd.f32 0.0, %v8912
      %8914 = vmatmul.bf16.gmra.mxu0 %v8830
      %v8915 = vpop.f32.mrf.mxu0
      %v8916 = vadd.f32 0.0, %v8915
      %v8917 = vpop.f32.mrf.mxu0
      %v8918 = vadd.f32 0.0, %v8917
      %8919 = vmatmul.bf16.gmra.mxu0 %v8833
      %v8920 = vpop.f32.mrf.mxu0
      %v8921 = vadd.f32 0.0, %v8920
      %v8922 = vpop.f32.mrf.mxu0
      %v8923 = vadd.f32 0.0, %v8922
      %8924 = vmatmul.bf16.gmra.mxu0 %v8836
      %v8925 = vpop.f32.mrf.mxu0
      %v8926 = vadd.f32 0.0, %v8925
      %v8927 = vpop.f32.mrf.mxu0
      %v8928 = vadd.f32 0.0, %v8927
      %8929 = vdwg.mxu0
      %v8930 = vadd.f32 %v8591, %v8851
      %v8931 = vadd.f32 %v8593, %v8853
      %v8932 = vadd.f32 %v8596, %v8856
      %v8933 = vadd.f32 %v8598, %v8858
      %v8934 = vadd.f32 %v8601, %v8861
      %v8935 = vadd.f32 %v8603, %v8863
      %v8936 = vadd.f32 %v8606, %v8866
      %v8937 = vadd.f32 %v8608, %v8868
      %v8938 = vadd.f32 %v8611, %v8871
      %v8939 = vadd.f32 %v8613, %v8873
      %v8940 = vadd.f32 %v8616, %v8876
      %v8941 = vadd.f32 %v8618, %v8878
      %v8942 = vadd.f32 %v8621, %v8881
      %v8943 = vadd.f32 %v8623, %v8883
      %v8944 = vadd.f32 %v8626, %v8886
      %v8945 = vadd.f32 %v8628, %v8888
      %v8946 = vadd.f32 %v8631, %v8891
      %v8947 = vadd.f32 %v8633, %v8893
      %v8948 = vadd.f32 %v8636, %v8896
      %v8949 = vadd.f32 %v8638, %v8898
      %v8950 = vadd.f32 %v8641, %v8901
      %v8951 = vadd.f32 %v8643, %v8903
      %v8952 = vadd.f32 %v8646, %v8906
      %v8953 = vadd.f32 %v8648, %v8908
      %v8954 = vadd.f32 %v8651, %v8911
      %v8955 = vadd.f32 %v8653, %v8913
      %v8956 = vadd.f32 %v8656, %v8916
      %v8957 = vadd.f32 %v8658, %v8918
      %v8958 = vadd.f32 %v8661, %v8921
      %v8959 = vadd.f32 %v8663, %v8923
      %v8960 = vadd.f32 %v8666, %v8926
      %v8961 = vadd.f32 %v8668, %v8928
      %s8962 = scalar_lea.vmem %s2, 2
      %v8963 = vld [vmem:[%s8962] sm:$0x1]
      %v8965 = vperm.slane %v8963, 0
      %v8967 = vadd.f32 %v8930, %v8965
      %v8968 = vadd.f32 %v8931, %v8965
      %v8969 = vadd.f32 %v8932, %v8965
      %v8970 = vadd.f32 %v8933, %v8965
      %v8971 = vadd.f32 %v8934, %v8965
      %v8972 = vadd.f32 %v8935, %v8965
      %v8973 = vadd.f32 %v8936, %v8965
      %v8974 = vadd.f32 %v8937, %v8965
      %v8975 = vadd.f32 %v8938, %v8965
      %v8976 = vadd.f32 %v8939, %v8965
      %v8977 = vadd.f32 %v8940, %v8965
      %v8978 = vadd.f32 %v8941, %v8965
      %v8979 = vadd.f32 %v8942, %v8965
      %v8980 = vadd.f32 %v8943, %v8965
      %v8981 = vadd.f32 %v8944, %v8965
      %v8982 = vadd.f32 %v8945, %v8965
      %v8983 = vadd.f32 %v8946, %v8965
      %v8984 = vadd.f32 %v8947, %v8965
      %v8985 = vadd.f32 %v8948, %v8965
      %v8986 = vadd.f32 %v8949, %v8965
      %v8987 = vadd.f32 %v8950, %v8965
      %v8988 = vadd.f32 %v8951, %v8965
      %v8989 = vadd.f32 %v8952, %v8965
      %v8990 = vadd.f32 %v8953, %v8965
      %v8991 = vadd.f32 %v8954, %v8965
      %v8992 = vadd.f32 %v8955, %v8965
      %v8993 = vadd.f32 %v8956, %v8965
      %v8994 = vadd.f32 %v8957, %v8965
      %v8995 = vadd.f32 %v8958, %v8965
      %v8996 = vadd.f32 %v8959, %v8965
      %v8997 = vadd.f32 %v8960, %v8965
      %v8998 = vadd.f32 %v8961, %v8965
      %v8999 = vmax.f32 %v8967, 0.0
      %v9000 = vmax.f32 %v8968, 0.0
      %v9001 = vmax.f32 %v8969, 0.0
      %v9002 = vmax.f32 %v8970, 0.0
      %v9003 = vmax.f32 %v8971, 0.0
      %v9004 = vmax.f32 %v8972, 0.0
      %v9005 = vmax.f32 %v8973, 0.0
      %v9006 = vmax.f32 %v8974, 0.0
      %v9007 = vmax.f32 %v8975, 0.0
      %v9008 = vmax.f32 %v8976, 0.0
      %v9009 = vmax.f32 %v8977, 0.0
      %v9010 = vmax.f32 %v8978, 0.0
      %v9011 = vmax.f32 %v8979, 0.0
      %v9012 = vmax.f32 %v8980, 0.0
      %v9013 = vmax.f32 %v8981, 0.0
      %v9014 = vmax.f32 %v8982, 0.0
      %v9015 = vmax.f32 %v8983, 0.0
      %v9016 = vmax.f32 %v8984, 0.0
      %v9017 = vmax.f32 %v8985, 0.0
      %v9018 = vmax.f32 %v8986, 0.0
      %v9019 = vmax.f32 %v8987, 0.0
      %v9020 = vmax.f32 %v8988, 0.0
      %v9021 = vmax.f32 %v8989, 0.0
      %v9022 = vmax.f32 %v8990, 0.0
      %v9023 = vmax.f32 %v8991, 0.0
      %v9024 = vmax.f32 %v8992, 0.0
      %v9025 = vmax.f32 %v8993, 0.0
      %v9026 = vmax.f32 %v8994, 0.0
      %v9027 = vmax.f32 %v8995, 0.0
      %v9028 = vmax.f32 %v8996, 0.0
      %v9029 = vmax.f32 %v8997, 0.0
      %v9030 = vmax.f32 %v8998, 0.0
      %v9031 = vpack.c.bf16 %v9000, %v8999
      %v9032 = vpack.c.bf16 %v9002, %v9001
      %v9033 = vpack.c.bf16 %v9004, %v9003
      %v9034 = vpack.c.bf16 %v9006, %v9005
      %v9035 = vpack.c.bf16 %v9008, %v9007
      %v9036 = vpack.c.bf16 %v9010, %v9009
      %v9037 = vpack.c.bf16 %v9012, %v9011
      %v9038 = vpack.c.bf16 %v9014, %v9013
      %v9039 = vpack.c.bf16 %v9016, %v9015
      %v9040 = vpack.c.bf16 %v9018, %v9017
      %v9041 = vpack.c.bf16 %v9020, %v9019
      %v9042 = vpack.c.bf16 %v9022, %v9021
      %v9043 = vpack.c.bf16 %v9024, %v9023
      %v9044 = vpack.c.bf16 %v9026, %v9025
      %v9045 = vpack.c.bf16 %v9028, %v9027
      %v9046 = vpack.c.bf16 %v9030, %v9029
      %v9047 = vld [vmem:[%s3] sm:$0x3]
      %v9049 = vsel %vm3647, %v9031, 0
      %v9052 = vsel %vm3647, %v9032, 0
      %v9055 = vsel %vm3647, %v9033, 0
      %v9058 = vsel %vm3647, %v9034, 0
      %v9061 = vsel %vm3647, %v9035, 0
      %v9064 = vsel %vm3647, %v9036, 0
      %v9067 = vsel %vm3647, %v9037, 0
      %v9070 = vsel %vm3647, %v9038, 0
      %v9073 = vsel %vm3647, %v9039, 0
      %v9076 = vsel %vm3647, %v9040, 0
      %v9079 = vsel %vm3647, %v9041, 0
      %v9082 = vsel %vm3647, %v9042, 0
      %v9085 = vsel %vm3647, %v9043, 0
      %v9088 = vsel %vm3647, %v9044, 0
      %v9091 = vsel %vm3647, %v9045, 0
      %v9094 = vsel %vm3647, %v9046, 0
      %v9097 = vsel %vm3696, %v9047, 0
      %9099 = vmatpush.bf16.msra.mxu0 0
      %9100 = vmatpush.bf16.msra.mxu0 0
      %9101 = vmatpush.bf16.msra.mxu0 0
      %9102 = vmatpush.bf16.msra.mxu0 0
      %9103 = vmatpush.bf16.msra.mxu0 0
      %9104 = vmatpush.bf16.msra.mxu0 0
      %9105 = vmatpush.bf16.msra.mxu0 0
      %9106 = vmatpush.bf16.msra.mxu0 %v9097
      %9107 = vmatmul.bf16.gmra.mxu0 %v9049
      %v9108 = vpop.f32.mrf.mxu0
      %v9109 = vadd.f32 0.0, %v9108
      %v9110 = vpop.f32.mrf.mxu0
      %v9111 = vadd.f32 0.0, %v9110
      %9112 = vmatmul.bf16.gmra.mxu0 %v9052
      %v9113 = vpop.f32.mrf.mxu0
      %v9114 = vadd.f32 0.0, %v9113
      %v9115 = vpop.f32.mrf.mxu0
      %v9116 = vadd.f32 0.0, %v9115
      %9117 = vmatmul.bf16.gmra.mxu0 %v9055
      %v9118 = vpop.f32.mrf.mxu0
      %v9119 = vadd.f32 0.0, %v9118
      %v9120 = vpop.f32.mrf.mxu0
      %v9121 = vadd.f32 0.0, %v9120
      %9122 = vmatmul.bf16.gmra.mxu0 %v9058
      %v9123 = vpop.f32.mrf.mxu0
      %v9124 = vadd.f32 0.0, %v9123
      %v9125 = vpop.f32.mrf.mxu0
      %v9126 = vadd.f32 0.0, %v9125
      %9127 = vmatmul.bf16.gmra.mxu0 %v9061
      %v9128 = vpop.f32.mrf.mxu0
      %v9129 = vadd.f32 0.0, %v9128
      %v9130 = vpop.f32.mrf.mxu0
      %v9131 = vadd.f32 0.0, %v9130
      %9132 = vmatmul.bf16.gmra.mxu0 %v9064
      %v9133 = vpop.f32.mrf.mxu0
      %v9134 = vadd.f32 0.0, %v9133
      %v9135 = vpop.f32.mrf.mxu0
      %v9136 = vadd.f32 0.0, %v9135
      %9137 = vmatmul.bf16.gmra.mxu0 %v9067
      %v9138 = vpop.f32.mrf.mxu0
      %v9139 = vadd.f32 0.0, %v9138
      %v9140 = vpop.f32.mrf.mxu0
      %v9141 = vadd.f32 0.0, %v9140
      %9142 = vmatmul.bf16.gmra.mxu0 %v9070
      %v9143 = vpop.f32.mrf.mxu0
      %v9144 = vadd.f32 0.0, %v9143
      %v9145 = vpop.f32.mrf.mxu0
      %v9146 = vadd.f32 0.0, %v9145
      %9147 = vmatmul.bf16.gmra.mxu0 %v9073
      %v9148 = vpop.f32.mrf.mxu0
      %v9149 = vadd.f32 0.0, %v9148
      %v9150 = vpop.f32.mrf.mxu0
      %v9151 = vadd.f32 0.0, %v9150
      %9152 = vmatmul.bf16.gmra.mxu0 %v9076
      %v9153 = vpop.f32.mrf.mxu0
      %v9154 = vadd.f32 0.0, %v9153
      %v9155 = vpop.f32.mrf.mxu0
      %v9156 = vadd.f32 0.0, %v9155
      %9157 = vmatmul.bf16.gmra.mxu0 %v9079
      %v9158 = vpop.f32.mrf.mxu0
      %v9159 = vadd.f32 0.0, %v9158
      %v9160 = vpop.f32.mrf.mxu0
      %v9161 = vadd.f32 0.0, %v9160
      %9162 = vmatmul.bf16.gmra.mxu0 %v9082
      %v9163 = vpop.f32.mrf.mxu0
      %v9164 = vadd.f32 0.0, %v9163
      %v9165 = vpop.f32.mrf.mxu0
      %v9166 = vadd.f32 0.0, %v9165
      %9167 = vmatmul.bf16.gmra.mxu0 %v9085
      %v9168 = vpop.f32.mrf.mxu0
      %v9169 = vadd.f32 0.0, %v9168
      %v9170 = vpop.f32.mrf.mxu0
      %v9171 = vadd.f32 0.0, %v9170
      %9172 = vmatmul.bf16.gmra.mxu0 %v9088
      %v9173 = vpop.f32.mrf.mxu0
      %v9174 = vadd.f32 0.0, %v9173
      %v9175 = vpop.f32.mrf.mxu0
      %v9176 = vadd.f32 0.0, %v9175
      %9177 = vmatmul.bf16.gmra.mxu0 %v9091
      %v9178 = vpop.f32.mrf.mxu0
      %v9179 = vadd.f32 0.0, %v9178
      %v9180 = vpop.f32.mrf.mxu0
      %v9181 = vadd.f32 0.0, %v9180
      %9182 = vmatmul.bf16.gmra.mxu0 %v9094
      %v9183 = vpop.f32.mrf.mxu0
      %v9184 = vadd.f32 0.0, %v9183
      %v9185 = vpop.f32.mrf.mxu0
      %v9186 = vadd.f32 0.0, %v9185
      %9187 = vdwg.mxu0
      %v9188 = vld [vmem:[#allocation4] sm:$0xff]
      %v9189 = vld [vmem:[#allocation4 + $0x8] sm:$0xff]
      %v9190 = vld [vmem:[#allocation4 + $0x10] sm:$0xff]
      %v9191 = vld [vmem:[#allocation4 + $0x18] sm:$0xff]
      %v9192 = vld [vmem:[#allocation4 + $0x20] sm:$0xff]
      %v9193 = vld [vmem:[#allocation4 + $0x28] sm:$0xff]
      %v9194 = vld [vmem:[#allocation4 + $0x30] sm:$0xff]
      %v9195 = vld [vmem:[#allocation4 + $0x38] sm:$0xff]
      %v9196 = vld [vmem:[#allocation4 + $0x40] sm:$0xff]
      %v9197 = vld [vmem:[#allocation4 + $0x48] sm:$0xff]
      %v9198 = vld [vmem:[#allocation4 + $0x50] sm:$0xff]
      %v9199 = vld [vmem:[#allocation4 + $0x58] sm:$0xff]
      %v9200 = vld [vmem:[#allocation4 + $0x60] sm:$0xff]
      %v9201 = vld [vmem:[#allocation4 + $0x68] sm:$0xff]
      %v9202 = vld [vmem:[#allocation4 + $0x70] sm:$0xff]
      %v9203 = vld [vmem:[#allocation4 + $0x78] sm:$0xff]
      %v9204 = vld [vmem:[#allocation4 + $0x80] sm:$0xff]
      %v9205 = vld [vmem:[#allocation4 + $0x88] sm:$0xff]
      %v9206 = vld [vmem:[#allocation4 + $0x90] sm:$0xff]
      %v9207 = vld [vmem:[#allocation4 + $0x98] sm:$0xff]
      %v9208 = vld [vmem:[#allocation4 + $0xa0] sm:$0xff]
      %v9209 = vld [vmem:[#allocation4 + $0xa8] sm:$0xff]
      %v9210 = vld [vmem:[#allocation4 + $0xb0] sm:$0xff]
      %v9211 = vld [vmem:[#allocation4 + $0xb8] sm:$0xff]
      %v9212 = vld [vmem:[#allocation4 + $0xc0] sm:$0xff]
      %v9213 = vld [vmem:[#allocation4 + $0xc8] sm:$0xff]
      %v9214 = vld [vmem:[#allocation4 + $0xd0] sm:$0xff]
      %v9215 = vld [vmem:[#allocation4 + $0xd8] sm:$0xff]
      %v9216 = vld [vmem:[#allocation4 + $0xe0] sm:$0xff]
      %v9217 = vld [vmem:[#allocation4 + $0xe8] sm:$0xff]
      %v9218 = vld [vmem:[#allocation4 + $0xf0] sm:$0xff]
      %v9219 = vld [vmem:[#allocation4 + $0xf8] sm:$0xff]
      %v9220 = vadd.f32 %v9188, %v9109
      %v9221 = vadd.f32 %v9189, %v9111
      %v9222 = vadd.f32 %v9190, %v9114
      %v9223 = vadd.f32 %v9191, %v9116
      %v9224 = vadd.f32 %v9192, %v9119
      %v9225 = vadd.f32 %v9193, %v9121
      %v9226 = vadd.f32 %v9194, %v9124
      %v9227 = vadd.f32 %v9195, %v9126
      %v9228 = vadd.f32 %v9196, %v9129
      %v9229 = vadd.f32 %v9197, %v9131
      %v9230 = vadd.f32 %v9198, %v9134
      %v9231 = vadd.f32 %v9199, %v9136
      %v9232 = vadd.f32 %v9200, %v9139
      %v9233 = vadd.f32 %v9201, %v9141
      %v9234 = vadd.f32 %v9202, %v9144
      %v9235 = vadd.f32 %v9203, %v9146
      %v9236 = vadd.f32 %v9204, %v9149
      %v9237 = vadd.f32 %v9205, %v9151
      %v9238 = vadd.f32 %v9206, %v9154
      %v9239 = vadd.f32 %v9207, %v9156
      %v9240 = vadd.f32 %v9208, %v9159
      %v9241 = vadd.f32 %v9209, %v9161
      %v9242 = vadd.f32 %v9210, %v9164
      %v9243 = vadd.f32 %v9211, %v9166
      %v9244 = vadd.f32 %v9212, %v9169
      %v9245 = vadd.f32 %v9213, %v9171
      %v9246 = vadd.f32 %v9214, %v9174
      %v9247 = vadd.f32 %v9215, %v9176
      %v9248 = vadd.f32 %v9216, %v9179
      %v9249 = vadd.f32 %v9217, %v9181
      %v9250 = vadd.f32 %v9218, %v9184
      %v9251 = vadd.f32 %v9219, %v9186
      %9252 = vst.msk [vmem:[#allocation4] sm:$0xff] %vm3647, %v9220
      %9253 = vst.msk [vmem:[#allocation4 + $0x8] sm:$0xff] %vm3647, %v9221
      %9254 = vst.msk [vmem:[#allocation4 + $0x10] sm:$0xff] %vm3647, %v9222
      %9255 = vst.msk [vmem:[#allocation4 + $0x18] sm:$0xff] %vm3647, %v9223
      %9256 = vst.msk [vmem:[#allocation4 + $0x20] sm:$0xff] %vm3647, %v9224
      %9257 = vst.msk [vmem:[#allocation4 + $0x28] sm:$0xff] %vm3647, %v9225
      %9258 = vst.msk [vmem:[#allocation4 + $0x30] sm:$0xff] %vm3647, %v9226
      %9259 = vst.msk [vmem:[#allocation4 + $0x38] sm:$0xff] %vm3647, %v9227
      %9260 = vst.msk [vmem:[#allocation4 + $0x40] sm:$0xff] %vm3647, %v9228
      %9261 = vst.msk [vmem:[#allocation4 + $0x48] sm:$0xff] %vm3647, %v9229
      %9262 = vst.msk [vmem:[#allocation4 + $0x50] sm:$0xff] %vm3647, %v9230
      %9263 = vst.msk [vmem:[#allocation4 + $0x58] sm:$0xff] %vm3647, %v9231
      %9264 = vst.msk [vmem:[#allocation4 + $0x60] sm:$0xff] %vm3647, %v9232
      %9265 = vst.msk [vmem:[#allocation4 + $0x68] sm:$0xff] %vm3647, %v9233
      %9266 = vst.msk [vmem:[#allocation4 + $0x70] sm:$0xff] %vm3647, %v9234
      %9267 = vst.msk [vmem:[#allocation4 + $0x78] sm:$0xff] %vm3647, %v9235
      %9268 = vst.msk [vmem:[#allocation4 + $0x80] sm:$0xff] %vm3647, %v9236
      %9269 = vst.msk [vmem:[#allocation4 + $0x88] sm:$0xff] %vm3647, %v9237
      %9270 = vst.msk [vmem:[#allocation4 + $0x90] sm:$0xff] %vm3647, %v9238
      %9271 = vst.msk [vmem:[#allocation4 + $0x98] sm:$0xff] %vm3647, %v9239
      %9272 = vst.msk [vmem:[#allocation4 + $0xa0] sm:$0xff] %vm3647, %v9240
      %9273 = vst.msk [vmem:[#allocation4 + $0xa8] sm:$0xff] %vm3647, %v9241
      %9274 = vst.msk [vmem:[#allocation4 + $0xb0] sm:$0xff] %vm3647, %v9242
      %9275 = vst.msk [vmem:[#allocation4 + $0xb8] sm:$0xff] %vm3647, %v9243
      %9276 = vst.msk [vmem:[#allocation4 + $0xc0] sm:$0xff] %vm3647, %v9244
      %9277 = vst.msk [vmem:[#allocation4 + $0xc8] sm:$0xff] %vm3647, %v9245
      %9278 = vst.msk [vmem:[#allocation4 + $0xd0] sm:$0xff] %vm3647, %v9246
      %9279 = vst.msk [vmem:[#allocation4 + $0xd8] sm:$0xff] %vm3647, %v9247
      %9280 = vst.msk [vmem:[#allocation4 + $0xe0] sm:$0xff] %vm3647, %v9248
      %9281 = vst.msk [vmem:[#allocation4 + $0xe8] sm:$0xff] %vm3647, %v9249
      %9282 = vst.msk [vmem:[#allocation4 + $0xf0] sm:$0xff] %vm3647, %v9250
      %9283 = vst.msk [vmem:[#allocation4 + $0xf8] sm:$0xff] %vm3647, %v9251
      %v9284 = vld [vmem:[#allocation4] sm:$0xff]
      %v9285 = vld [vmem:[#allocation4 + $0x8] sm:$0xff]
      %v9286 = vld [vmem:[#allocation4 + $0x10] sm:$0xff]
      %v9287 = vld [vmem:[#allocation4 + $0x18] sm:$0xff]
      %v9288 = vld [vmem:[#allocation4 + $0x20] sm:$0xff]
      %v9289 = vld [vmem:[#allocation4 + $0x28] sm:$0xff]
      %v9290 = vld [vmem:[#allocation4 + $0x30] sm:$0xff]
      %v9291 = vld [vmem:[#allocation4 + $0x38] sm:$0xff]
      %v9292 = vld [vmem:[#allocation4 + $0x40] sm:$0xff]
      %v9293 = vld [vmem:[#allocation4 + $0x48] sm:$0xff]
      %v9294 = vld [vmem:[#allocation4 + $0x50] sm:$0xff]
      %v9295 = vld [vmem:[#allocation4 + $0x58] sm:$0xff]
      %v9296 = vld [vmem:[#allocation4 + $0x60] sm:$0xff]
      %v9297 = vld [vmem:[#allocation4 + $0x68] sm:$0xff]
      %v9298 = vld [vmem:[#allocation4 + $0x70] sm:$0xff]
      %v9299 = vld [vmem:[#allocation4 + $0x78] sm:$0xff]
      %v9300 = vld [vmem:[#allocation4 + $0x80] sm:$0xff]
      %v9301 = vld [vmem:[#allocation4 + $0x88] sm:$0xff]
      %v9302 = vld [vmem:[#allocation4 + $0x90] sm:$0xff]
      %v9303 = vld [vmem:[#allocation4 + $0x98] sm:$0xff]
      %v9304 = vld [vmem:[#allocation4 + $0xa0] sm:$0xff]
      %v9305 = vld [vmem:[#allocation4 + $0xa8] sm:$0xff]
      %v9306 = vld [vmem:[#allocation4 + $0xb0] sm:$0xff]
      %v9307 = vld [vmem:[#allocation4 + $0xb8] sm:$0xff]
      %v9308 = vld [vmem:[#allocation4 + $0xc0] sm:$0xff]
      %v9309 = vld [vmem:[#allocation4 + $0xc8] sm:$0xff]
      %v9310 = vld [vmem:[#allocation4 + $0xd0] sm:$0xff]
      %v9311 = vld [vmem:[#allocation4 + $0xd8] sm:$0xff]
      %v9312 = vld [vmem:[#allocation4 + $0xe0] sm:$0xff]
      %v9313 = vld [vmem:[#allocation4 + $0xe8] sm:$0xff]
      %v9314 = vld [vmem:[#allocation4 + $0xf0] sm:$0xff]
      %v9315 = vld [vmem:[#allocation4 + $0xf8] sm:$0xff]
      %v9316 = vld [vmem:[%s4] sm:$0x1]
      %v9318 = vperm.slane %v9316, 0
      %v9320 = vadd.f32 %v9284, %v9318
      %v9321 = vadd.f32 %v9285, %v9318
      %v9322 = vadd.f32 %v9286, %v9318
      %v9323 = vadd.f32 %v9287, %v9318
      %v9324 = vadd.f32 %v9288, %v9318
      %v9325 = vadd.f32 %v9289, %v9318
      %v9326 = vadd.f32 %v9290, %v9318
      %v9327 = vadd.f32 %v9291, %v9318
      %v9328 = vadd.f32 %v9292, %v9318
      %v9329 = vadd.f32 %v9293, %v9318
      %v9330 = vadd.f32 %v9294, %v9318
      %v9331 = vadd.f32 %v9295, %v9318
      %v9332 = vadd.f32 %v9296, %v9318
      %v9333 = vadd.f32 %v9297, %v9318
      %v9334 = vadd.f32 %v9298, %v9318
      %v9335 = vadd.f32 %v9299, %v9318
      %v9336 = vadd.f32 %v9300, %v9318
      %v9337 = vadd.f32 %v9301, %v9318
      %v9338 = vadd.f32 %v9302, %v9318
      %v9339 = vadd.f32 %v9303, %v9318
      %v9340 = vadd.f32 %v9304, %v9318
      %v9341 = vadd.f32 %v9305, %v9318
      %v9342 = vadd.f32 %v9306, %v9318
      %v9343 = vadd.f32 %v9307, %v9318
      %v9344 = vadd.f32 %v9308, %v9318
      %v9345 = vadd.f32 %v9309, %v9318
      %v9346 = vadd.f32 %v9310, %v9318
      %v9347 = vadd.f32 %v9311, %v9318
      %v9348 = vadd.f32 %v9312, %v9318
      %v9349 = vadd.f32 %v9313, %v9318
      %v9350 = vadd.f32 %v9314, %v9318
      %v9351 = vadd.f32 %v9315, %v9318
      %v9352 = vpack.c.bf16 %v9320, %v9320
      %v9353 = vpack.c.bf16 %v9321, %v9321
      %v9354 = vpack.c.bf16 %v9322, %v9322
      %v9355 = vpack.c.bf16 %v9323, %v9323
      %v9356 = vpack.c.bf16 %v9324, %v9324
      %v9357 = vpack.c.bf16 %v9325, %v9325
      %v9358 = vpack.c.bf16 %v9326, %v9326
      %v9359 = vpack.c.bf16 %v9327, %v9327
      %v9360 = vpack.c.bf16 %v9328, %v9328
      %v9361 = vpack.c.bf16 %v9329, %v9329
      %v9362 = vpack.c.bf16 %v9330, %v9330
      %v9363 = vpack.c.bf16 %v9331, %v9331
      %v9364 = vpack.c.bf16 %v9332, %v9332
      %v9365 = vpack.c.bf16 %v9333, %v9333
      %v9366 = vpack.c.bf16 %v9334, %v9334
      %v9367 = vpack.c.bf16 %v9335, %v9335
      %v9368 = vpack.c.bf16 %v9336, %v9336
      %v9369 = vpack.c.bf16 %v9337, %v9337
      %v9370 = vpack.c.bf16 %v9338, %v9338
      %v9371 = vpack.c.bf16 %v9339, %v9339
      %v9372 = vpack.c.bf16 %v9340, %v9340
      %v9373 = vpack.c.bf16 %v9341, %v9341
      %v9374 = vpack.c.bf16 %v9342, %v9342
      %v9375 = vpack.c.bf16 %v9343, %v9343
      %v9376 = vpack.c.bf16 %v9344, %v9344
      %v9377 = vpack.c.bf16 %v9345, %v9345
      %v9378 = vpack.c.bf16 %v9346, %v9346
      %v9379 = vpack.c.bf16 %v9347, %v9347
      %v9380 = vpack.c.bf16 %v9348, %v9348
      %v9381 = vpack.c.bf16 %v9349, %v9349
      %v9382 = vpack.c.bf16 %v9350, %v9350
      %v9383 = vpack.c.bf16 %v9351, %v9351
      %9384 = vst.msk [vmem:[%s224] sm:$0xf] %vm226, %v9352
      %9385 = vst.msk [vmem:[%s224 + $0x4] sm:$0xf] %vm226, %v9353
      %9386 = vst.msk [vmem:[%s224 + $0x8] sm:$0xf] %vm226, %v9354
      %9387 = vst.msk [vmem:[%s224 + $0xc] sm:$0xf] %vm226, %v9355
      %9388 = vst.msk [vmem:[%s224 + $0x10] sm:$0xf] %vm226, %v9356
      %9389 = vst.msk [vmem:[%s224 + $0x14] sm:$0xf] %vm226, %v9357
      %9390 = vst.msk [vmem:[%s224 + $0x18] sm:$0xf] %vm226, %v9358
      %9391 = vst.msk [vmem:[%s224 + $0x1c] sm:$0xf] %vm226, %v9359
      %9392 = vst.msk [vmem:[%s224 + $0x20] sm:$0xf] %vm226, %v9360
      %9393 = vst.msk [vmem:[%s224 + $0x24] sm:$0xf] %vm226, %v9361
      %9394 = vst.msk [vmem:[%s224 + $0x28] sm:$0xf] %vm226, %v9362
      %9395 = vst.msk [vmem:[%s224 + $0x2c] sm:$0xf] %vm226, %v9363
      %9396 = vst.msk [vmem:[%s224 + $0x30] sm:$0xf] %vm226, %v9364
      %9397 = vst.msk [vmem:[%s224 + $0x34] sm:$0xf] %vm226, %v9365
      %9398 = vst.msk [vmem:[%s224 + $0x38] sm:$0xf] %vm226, %v9366
      %9399 = vst.msk [vmem:[%s224 + $0x3c] sm:$0xf] %vm226, %v9367
      %9400 = vst.msk [vmem:[%s224 + $0x40] sm:$0xf] %vm226, %v9368
      %9401 = vst.msk [vmem:[%s224 + $0x44] sm:$0xf] %vm226, %v9369
      %9402 = vst.msk [vmem:[%s224 + $0x48] sm:$0xf] %vm226, %v9370
      %9403 = vst.msk [vmem:[%s224 + $0x4c] sm:$0xf] %vm226, %v9371
      %9404 = vst.msk [vmem:[%s224 + $0x50] sm:$0xf] %vm226, %v9372
      %9405 = vst.msk [vmem:[%s224 + $0x54] sm:$0xf] %vm226, %v9373
      %9406 = vst.msk [vmem:[%s224 + $0x58] sm:$0xf] %vm226, %v9374
      %9407 = vst.msk [vmem:[%s224 + $0x5c] sm:$0xf] %vm226, %v9375
      %9408 = vst.msk [vmem:[%s224 + $0x60] sm:$0xf] %vm226, %v9376
      %9409 = vst.msk [vmem:[%s224 + $0x64] sm:$0xf] %vm226, %v9377
      %9410 = vst.msk [vmem:[%s224 + $0x68] sm:$0xf] %vm226, %v9378
      %9411 = vst.msk [vmem:[%s224 + $0x6c] sm:$0xf] %vm226, %v9379
      %9412 = vst.msk [vmem:[%s224 + $0x70] sm:$0xf] %vm226, %v9380
      %9413 = vst.msk [vmem:[%s224 + $0x74] sm:$0xf] %vm226, %v9381
      %9414 = vst.msk [vmem:[%s224 + $0x78] sm:$0xf] %vm226, %v9382
      %9415 = vst.msk [vmem:[%s224 + $0x7c] sm:$0xf] %vm226, %v9383
      %p9416 = scmp.lt.s32.totalorder %s16, 1
      %s9417 = scalar_select %p9416, %s16, 1
      %s9418 = smul.addr %s9417, 32
      %s9419 = smul.addr %s9418, 4
      %s9420 = scalar_lea.vmem %s5, %s9419
      // Predicated region
      $region41: #{tpu_custom_call.1} parent=39 // pred_check
        %p9421 = pneg %p144
      $region42: #{tpu_custom_call.1} parent=39 // pred_check_branch
        %9423 = sbr.rel (%p9421) target = $region44
      $region43: #{tpu_custom_call.1} parent=39 // pred_region
        _
      $region44: #{tpu_custom_call.1} parent=39 // pred_fallthru
        _
    $region40: #{tpu_custom_call.1} parent=5 // pred_fallthru
      _
    %p9424 = scmp.le.s32.totalorder 2, %s11
    // Predicated region
    $region45: #{tpu_custom_call.1} parent=5 // pred_check
      %p9425 = pneg %p9424
    $region46: #{tpu_custom_call.1} parent=5 // pred_check_branch
      %9427 = sbr.rel (%p9425) target = $region48
    $region47: #{tpu_custom_call.1} parent=5 // pred_region
      %s9428 = ssub.s32 %s11, 2
      // Predicated region
      $region49: #{tpu_custom_call.1} parent=47 // pred_check
        %p9429 = pneg %p150
      $region50: #{tpu_custom_call.1} parent=47 // pred_check_branch
        %9431 = sbr.rel (%p9429) target = $region52
      $region51: #{tpu_custom_call.1} parent=47 // pred_region
        %p9432 = scmp.lt.s32.totalorder %s17, 1
        %s9433 = scalar_select %p9432, %s17, 1
        %s9434 = smul.addr %s9433, 32
        %s9435 = smul.addr %s9434, 4
        %s9436 = scalar_lea.vmem %s5, %s9435
      $region52: #{tpu_custom_call.1} parent=47 // pred_fallthru
        _
    $region48: #{tpu_custom_call.1} parent=5 // pred_fallthru
      _
  $region6: #{tpu_custom_call.1} parent=0 // loop_footer
    %s15 = sadd.s32 1, %s11
  $region7: #{tpu_custom_call.1} parent=0 // loop_footer_branch
    %10 = sbr.rel target = $region3
  $region8: #{tpu_custom_call.1} parent=0 // loop_exit
    _

</llo_original>
